<compile_context>
chip_gen: v7x
topology: tpu7x:2x2x1
jax: 0.10.0
libtpu: 0.0.40
codegen_flags: <defaults>
</compile_context>

<pallas_src>
import functools
import math

import jax
import jax.numpy as jnp
from jax.experimental import pallas as pl
from jax.experimental.pallas import tpu as pltpu

# ----------------------------- model sizes (small) -----------------------------
B = 2          # batch
L = 16         # max token sequence length fed to the BART stand-in
V = 64         # vocab size
N_SENT = 4     # max number of sentences per document
H_BA = 64      # "bart" hidden size  (stands in for 1024)
H = 32         # ordering-model hidden size (stands in for 768)
HEADS = 4
BART_HEADS = 4
FF_SIZE = 64
BART_FF = 128
NEG = -1000000000.0


# ============================ in-kernel helper math ============================

def _ln_rows(x, g, b):
    """Row-wise LayerNorm: x (R, D) f32, g/b (1, D) f32."""
    mu = jnp.mean(x, axis=-1, keepdims=True)
    var = jnp.mean((x - mu) ** 2, axis=-1, keepdims=True)
    return (x - mu) * jax.lax.rsqrt(var + 1e-5) * g + b


def _softmax_rows(s):
    """Row softmax in f32; divide goes through the EUP via pl.reciprocal."""
    s = s - jnp.max(s, axis=-1, keepdims=True)
    p = jnp.exp(s)
    return p * pl.reciprocal(jnp.sum(p, axis=-1, keepdims=True), approx=True)


def _mm(x, w_ref, b_ref):
    """x (R, K) f32  @  bf16 weight ref (K, M)  + f32 bias ref (1, M) -> f32."""
    return jnp.dot(x.astype(jnp.bfloat16), w_ref[...],
                   preferred_element_type=jnp.float32) + b_ref[...]


def _attend(q_all, k_all, v_all, bias, num_heads):
    """All heads of one batch element.  q_all (Sq,D), k/v_all (Sk,D) f32,
    bias (1,Sk) additive mask.  Heads are static lane slices; matmuls bf16."""
    d = q_all.shape[-1]
    dh = d // num_heads
    scale = 1.0 / math.sqrt(dh)
    parts = []
    for hh in range(num_heads):
        sl = slice(hh * dh, (hh + 1) * dh)
        q = q_all[:, sl].astype(jnp.bfloat16)
        k = k_all[:, sl].astype(jnp.bfloat16)
        v = v_all[:, sl].astype(jnp.bfloat16)
        s = jax.lax.dot_general(q, k, (((1,), (1,)), ((), ())),
                                preferred_element_type=jnp.float32) * scale
        p = _softmax_rows(s + bias)
        parts.append(jnp.dot(p.astype(jnp.bfloat16), v,
                             preferred_element_type=jnp.float32))
    return jnp.concatenate(parts, axis=-1)          # (Sq, D) f32


# ============================ fused layer kernels =============================

def _encoder_layer_kernel(x_ref, bias_ref, ln_ref, wqkv_ref, bqkv_ref,
                          wo_ref, bo_ref, w1_ref, b1_ref, w2_ref, b2_ref,
                          o_ref, *, num_heads, in_ln, out_ln):
    x = x_ref[0]                              # (S, D) f32
    bias = bias_ref[0]                        # (1, S) f32
    lns = ln_ref[...]                         # (4/6/8, D) f32
    d = x.shape[-1]

    row = 4                                   # static row cursor for extra LNs
    if in_ln:                                 # fused embedding / input LayerNorm
        x = _ln_rows(x, lns[row:row + 1], lns[row + 1:row + 2])
        row += 2

    # --- self attention (pre-LN, fused QKV) ---
    h = _ln_rows(x, lns[0:1], lns[1:2])
    qkv = _mm(h, wqkv_ref, bqkv_ref)          # (S, 3D)
    ctx = _attend(qkv[:, :d], qkv[:, d:2 * d], qkv[:, 2 * d:], bias, num_heads)
    x = x + _mm(ctx, wo_ref, bo_ref)

    # --- feed forward ---
    h = _ln_rows(x, lns[2:3], lns[3:4])
    f = jnp.maximum(_mm(h, w1_ref, b1_ref), 0.0)
    x = x + _mm(f, w2_ref, b2_ref)

    if out_ln:                                # fused stack-output LayerNorm
        x = _ln_rows(x, lns[row:row + 1], lns[row + 1:row + 2])
    o_ref[0] = x


def _decoder_layer_kernel(x_ref, mem_ref, sbias_ref, cbias_ref, ln_ref,
                          wqkv_ref, bqkv_ref, wso_ref, bso_ref,
                          wcq_ref, bcq_ref, wckv_ref, bckv_ref, wco_ref, bco_ref,
                          w1_ref, b1_ref, w2_ref, b2_ref, o_ref, *, num_heads):
    x = x_ref[0]                              # (S, D)
    mem = mem_ref[0]                          # (Sm, D)
    sbias = sbias_ref[0]                      # (1, S)
    cbias = cbias_ref[0]                      # (1, Sm)
    lns = ln_ref[...]                         # (6, D)
    d = x.shape[-1]

    # --- self attention ---
    h = _ln_rows(x, lns[0:1], lns[1:2])
    qkv = _mm(h, wqkv_ref, bqkv_ref)          # (S, 3D)
    ctx = _attend(qkv[:, :d], qkv[:, d:2 * d], qkv[:, 2 * d:], sbias, num_heads)
    x = x + _mm(ctx, wso_ref, bso_ref)

    # --- cross attention (K/V fused into one matmul over mem) ---
    h = _ln_rows(x, lns[2:3], lns[3:4])
    qc = _mm(h, wcq_ref, bcq_ref)             # (S, D)
    kv = _mm(mem, wckv_ref, bckv_ref)         # (Sm, 2D)
    ctx = _attend(qc, kv[:, :d], kv[:, d:], cbias, num_heads)
    x = x + _mm(ctx, wco_ref, bco_ref)

    # --- feed forward ---
    h = _ln_rows(x, lns[4:5], lns[5:6])
    f = jnp.maximum(_mm(h, w1_ref, b1_ref), 0.0)
    o_ref[0] = x + _mm(f, w2_ref, b2_ref)


def _encode_head_kernel(g_ref, pe_ref, wh_ref, bh_ref, wp_ref, bp_ref,
                        wk_ref, bk_ref, sen_ref, pos_ref, key_ref):
    g = g_ref[0]                                      # (N, H_BA)
    sen = _mm(g, wh_ref, bh_ref)                      # linear_hidden
    sen_ref[0] = sen
    key_ref[0] = _mm(sen, wk_ref, bk_ref)             # key_linear
    pos_ref[0] = _mm(pe_ref[...], wp_ref, bp_ref)     # pol(pos encodings)


def _pointer_loss_kernel(len_ref, dec_ref, key_ref, wq_ref, bq_ref,
                         wt_ref, bt_ref, tgt_ref, out_ref, *, batch):
    """Fused query_linear + tanh pointer scores + row/column NLL losses.
    Single grid step over the whole batch; static python loop over B."""
    n = dec_ref.shape[1]
    col_iota = jax.lax.broadcasted_iota(jnp.int32, (n, n), 1)   # key index j
    row_iota = jax.lax.broadcasted_iota(jnp.int32, (n, n), 0)   # decode step t
    step_ids = jax.lax.broadcasted_iota(jnp.int32, (n, 1), 0)
    lower = (col_iota < row_iota).astype(jnp.float32)
    w = wt_ref[...]                    # (1, H) f32
    bq = bq_ref[...]                   # (1, H) f32
    total = 0.0
    for bb in range(batch):
        n_len = len_ref[bb]            # int32 scalar from SMEM (scalar prefetch)
        dec = dec_ref[bb]              # (N, H)
        key = key_ref[bb]              # (N, H)
        q = jnp.dot(dec.astype(jnp.bfloat16), wq_ref[...],
                    preferred_element_type=jnp.float32) + bq
        t = jnp.tanh(q[:, None, :] + key[None, :, :])           # (N, N, H)
        e = jnp.sum(t * w[None, :, :], axis=-1) + bt_ref[...]   # (N, N)

        tgt = tgt_ref[bb]                                        # (N, 1) int32
        onehot = (tgt == col_iota).astype(jnp.float32)
        # pointed[t, j] = any_{s < t} (target[s] == j)
        pointed = jnp.dot(lower, onehot, preferred_element_type=jnp.float32) > 0.5
        valid_key = col_iota < n_len
        valid_row = row_iota < n_len
        len_f = n_len.astype(jnp.float32)
        tmask = (step_ids < n_len).astype(jnp.float32)

        # ---- row loss: log_softmax over keys (dim=-1), NLL at target ----
        e_row = jnp.where(pointed, NEG, e)
        e_row = jnp.where(valid_key, e_row, NEG)
        m1 = jnp.max(e_row, axis=-1, keepdims=True)
        lse1 = jnp.log(jnp.sum(jnp.exp(e_row - m1), axis=-1, keepdims=True)) + m1
        nll1 = -jnp.sum((e_row - lse1) * onehot, axis=-1, keepdims=True)
        # divisor matches the PyTorch reference exactly: (len + 1e-20 - 1)
        row_loss = jnp.sum(nll1 * tmask) / (len_f + 1e-20 - 1.0)

        # ---- column loss: log_softmax over decode steps (dim=1) ----
        e_col = jnp.where(valid_key, e, NEG)
        e_col = jnp.where(valid_row, e_col, NEG)
        m2 = jnp.max(e_col, axis=0, keepdims=True)
        lse2 = jnp.log(jnp.sum(jnp.exp(e_col - m2), axis=0, keepdims=True)) + m2
        nll2 = -jnp.sum((e_col - lse2) * onehot, axis=-1, keepdims=True)
        col_loss = (jnp.sum(nll2 * tmask) / len_f) / (len_f + 1e-20 - 1.0)

        total = total + row_loss + col_loss
    out_ref[...] = (total / batch) * jnp.ones((1, 1), jnp.float32)


# =============================== python wrappers ===============================

def _w16(lin):
    return lin["w"].astype(jnp.bfloat16), lin["b"].reshape(1, -1)


def _qkv_pack(attn):
    w = jnp.concatenate([attn["q"]["w"], attn["k"]["w"], attn["v"]["w"]], axis=1)
    b = jnp.concatenate([attn["q"]["b"], attn["k"]["b"], attn["v"]["b"]], axis=0)
    return w.astype(jnp.bfloat16), b.reshape(1, -1)


def encoder_layer(p, x, bias, num_heads, in_ln=None, out_ln=None):
    """One fused encoder layer; optionally fuses an input LN (e.g. BART's
    embedding LayerNorm) and/or a stack-output LN (sentence encoder's ln_out)."""
    b, s, d = x.shape
    ff = p["ff1"]["w"].shape[1]
    ln_rows = [p["ln1"]["g"], p["ln1"]["b"], p["ln2"]["g"], p["ln2"]["b"]]
    if in_ln is not None:
        ln_rows += [in_ln["g"], in_ln["b"]]
    if out_ln is not None:
        ln_rows += [out_ln["g"], out_ln["b"]]
    ln = jnp.stack(ln_rows)
    n_ln = len(ln_rows)
    wqkv, bqkv = _qkv_pack(p["attn"])
    wo, bo = _w16(p["attn"]["o"])
    w1, b1 = _w16(p["ff1"])
    w2, b2 = _w16(p["ff2"])
    rep2 = lambda i: (0, 0)
    return pl.pallas_call(
        functools.partial(_encoder_layer_kernel, num_heads=num_heads,
                          in_ln=in_ln is not None, out_ln=out_ln is not None),
        grid=(b,),
        in_specs=[
            pl.BlockSpec((1, s, d), lambda i: (i, 0, 0)),      # x
            pl.BlockSpec((1, 1, s), lambda i: (i, 0, 0)),      # attention bias
            pl.BlockSpec((n_ln, d), rep2),                     # layernorm params
            pl.BlockSpec((d, 3 * d), rep2),                    # fused QKV weight
            pl.BlockSpec((1, 3 * d), rep2),
            pl.BlockSpec((d, d), rep2),                        # out proj
            pl.BlockSpec((1, d), rep2),
            pl.BlockSpec((d, ff), rep2),                       # ffn
            pl.BlockSpec((1, ff), rep2),
            pl.BlockSpec((ff, d), rep2),
            pl.BlockSpec((1, d), rep2),
        ],
        out_specs=pl.BlockSpec((1, s, d), lambda i: (i, 0, 0)),
        out_shape=jax.ShapeDtypeStruct((b, s, d), jnp.float32),
        compiler_params=pltpu.CompilerParams(dimension_semantics=("parallel",)),
    )(x, bias, ln, wqkv, bqkv, wo, bo, w1, b1, w2, b2)


def decoder_layer(p, x, mem, self_bias, cross_bias, num_heads):
    b, s, d = x.shape
    sm = mem.shape[1]
    ff = p["ff1"]["w"].shape[1]
    ln = jnp.stack([p["ln1"]["g"], p["ln1"]["b"], p["ln2"]["g"], p["ln2"]["b"],
                    p["ln3"]["g"], p["ln3"]["b"]])
    wqkv, bqkv = _qkv_pack(p["self_attn"])
    wso, bso = _w16(p["self_attn"]["o"])
    wcq, bcq = _w16(p["cross_attn"]["q"])
    wckv = jnp.concatenate([p["cross_attn"]["k"]["w"], p["cross_attn"]["v"]["w"]],
                           axis=1).astype(jnp.bfloat16)
    bckv = jnp.concatenate([p["cross_attn"]["k"]["b"], p["cross_attn"]["v"]["b"]],
                           axis=0).reshape(1, -1)
    wco, bco = _w16(p["cross_attn"]["o"])
    w1, b1 = _w16(p["ff1"])
    w2, b2 = _w16(p["ff2"])
    rep2 = lambda i: (0, 0)
    return pl.pallas_call(
        functools.partial(_decoder_layer_kernel, num_heads=num_heads),
        grid=(b,),
        in_specs=[
            pl.BlockSpec((1, s, d), lambda i: (i, 0, 0)),      # x
            pl.BlockSpec((1, sm, d), lambda i: (i, 0, 0)),     # memory
            pl.BlockSpec((1, 1, s), lambda i: (i, 0, 0)),      # self bias
            pl.BlockSpec((1, 1, sm), lambda i: (i, 0, 0)),     # cross bias
            pl.BlockSpec((6, d), rep2),                        # layernorm params
            pl.BlockSpec((d, 3 * d), rep2),                    # self fused QKV
            pl.BlockSpec((1, 3 * d), rep2),
            pl.BlockSpec((d, d), rep2),                        # self out proj
            pl.BlockSpec((1, d), rep2),
            pl.BlockSpec((d, d), rep2),                        # cross q
            pl.BlockSpec((1, d), rep2),
            pl.BlockSpec((d, 2 * d), rep2),                    # cross fused KV
            pl.BlockSpec((1, 2 * d), rep2),
            pl.BlockSpec((d, d), rep2),                        # cross out proj
            pl.BlockSpec((1, d), rep2),
            pl.BlockSpec((d, ff), rep2),                       # ffn
            pl.BlockSpec((1, ff), rep2),
            pl.BlockSpec((ff, d), rep2),
            pl.BlockSpec((1, d), rep2),
        ],
        out_specs=pl.BlockSpec((1, s, d), lambda i: (i, 0, 0)),
        out_shape=jax.ShapeDtypeStruct((b, s, d), jnp.float32),
        compiler_params=pltpu.CompilerParams(dimension_semantics=("parallel",)),
    )(x, mem, self_bias, cross_bias, ln, wqkv, bqkv, wso, bso,
      wcq, bcq, wckv, bckv, wco, bco, w1, b1, w2, b2)


def encode_head(params, gathered, pos_table):
    """Fused linear_hidden + key_linear + pol(positional encodings)."""
    b, n, dba = gathered.shape
    h = params["linear_hidden"]["w"].shape[1]
    wh, bh = _w16(params["linear_hidden"])
    wp, bp = _w16(params["pol"])
    wk, bk = _w16(params["key_linear"])
    rep2 = lambda i: (0, 0)
    out_spec = pl.BlockSpec((1, n, h), lambda i: (i, 0, 0))
    sen, pos, key = pl.pallas_call(
        _encode_head_kernel,
        grid=(b,),
        in_specs=[
            pl.BlockSpec((1, n, dba), lambda i: (i, 0, 0)),
            pl.BlockSpec((n, h), rep2),
            pl.BlockSpec((dba, h), rep2),
            pl.BlockSpec((1, h), rep2),
            pl.BlockSpec((h, h), rep2),
            pl.BlockSpec((1, h), rep2),
            pl.BlockSpec((h, h), rep2),
            pl.BlockSpec((1, h), rep2),
        ],
        out_specs=[out_spec, out_spec, out_spec],
        out_shape=[jax.ShapeDtypeStruct((b, n, h), jnp.float32) for _ in range(3)],
        compiler_params=pltpu.CompilerParams(dimension_semantics=("parallel",)),
    )(gathered, pos_table, wh, bh, wp, bp, wk, bk)
    return sen, pos, key


def pointer_loss(dec, key, q_lin, tanh_lin, target, lengths):
    """Fused query_linear + pointer scores + masked row/column NLL -> scalar."""
    b, n, h = dec.shape
    tgt = target.astype(jnp.int32).reshape(b, n, 1)
    wq = q_lin["w"].astype(jnp.bfloat16)
    bq = q_lin["b"].reshape(1, h)
    wt = tanh_lin["w"].reshape(1, h)
    bt = tanh_lin["b"].reshape(1, 1)
    grid_spec = pltpu.PrefetchScalarGridSpec(
        num_scalar_prefetch=1,
        grid=(1,),
        in_specs=[
            pl.BlockSpec((b, n, h), lambda i, lens: (0, 0, 0)),   # decoder output
            pl.BlockSpec((b, n, h), lambda i, lens: (0, 0, 0)),   # keys
            pl.BlockSpec((h, h), lambda i, lens: (0, 0)),         # query_linear w
            pl.BlockSpec((1, h), lambda i, lens: (0, 0)),         # query_linear b
            pl.BlockSpec((1, h), lambda i, lens: (0, 0)),         # tanh_linear w
            pl.BlockSpec((1, 1), lambda i, lens: (0, 0)),         # tanh_linear b
            pl.BlockSpec((b, n, 1), lambda i, lens: (0, 0, 0)),   # targets
        ],
        out_specs=pl.BlockSpec((1, 1), lambda i, lens: (0, 0)),
    )
    out = pl.pallas_call(
        functools.partial(_pointer_loss_kernel, batch=b),
        grid_spec=grid_spec,
        out_shape=jax.ShapeDtypeStruct((1, 1), jnp.float32),
        compiler_params=pltpu.CompilerParams(dimension_semantics=("arbitrary",)),
    )(lengths.astype(jnp.int32), dec, key, wq, bq, wt, bt, tgt)
    return out[0, 0]


# ============================ transformer sub-models ============================

def sinusoid_table(n, d):
    pos = jnp.arange(n, dtype=jnp.float32)[:, None]
    ch = jnp.arange(d)
    div = jnp.power(10000.0, (2 * (ch // 2)).astype(jnp.float32) / d)
    ang = pos / div[None, :]
    return jnp.where(ch[None, :] % 2 == 0, jnp.sin(ang), jnp.cos(ang)).astype(jnp.float32)


def bart_encode(p, input_ids, attention_mask):
    # TODO(synk): stands in for pretrained facebook/bart-large (12-layer encoder);
    # here: deterministic random weights, 1 fused encoder layer, hidden=H_BA.
    seq = input_ids.shape[1]
    x = p["tok_emb"][input_ids] + p["pos_emb"][None, :seq, :]
    bias = jnp.where(attention_mask[:, None, :] > 0, 0.0, NEG).astype(jnp.float32)
    layers = p["layers"]
    for li, lp in enumerate(layers):
        # embedding LayerNorm is fused into the first encoder-layer kernel
        x = encoder_layer(lp, x, bias, BART_HEADS,
                          in_ln=p["ln_emb"] if li == 0 else None)
    return x


# ================================ BertForOrdering ================================
# NOTE: dropout layers of the reference are omitted (inference semantics).

def encode(params, input_ids, attention_mask, passage_length, s_index):
    last_hidden = bart_encode(params["bart"], input_ids, attention_mask)      # (B,L,H_BA)
    gathered = jnp.take_along_axis(last_hidden, s_index[:, :, None], axis=1)  # (B,N,H_BA)

    n = gathered.shape[1]
    h = params["linear_hidden"]["w"].shape[1]
    sen_vec, pos_emb, key = encode_head(params, gathered, sinusoid_table(n, h))

    sent_valid = jnp.arange(n)[None, :] < passage_length[:, None]
    sents_bias = jnp.where(sent_valid, 0.0, NEG).astype(jnp.float32)[:, None, :]  # (B,1,N)

    para = sen_vec
    layers = params["encoder"]["layers"]
    n_layers = len(layers)
    for li, lp in enumerate(layers):
        # sentence-encoder output LayerNorm is fused into the last layer kernel
        para = encoder_layer(lp, para, sents_bias, HEADS,
                             out_ln=params["encoder"]["ln_out"]
                             if li == n_layers - 1 else None)
    return sen_vec, para, pos_emb, sents_bias, key


def forward(params, input_ids, attention_mask, passage_length, ground_truth, s_index):
    _, para_matrix, pos_emb, sents_bias, key = encode(
        params, input_ids, attention_mask, passage_length, s_index)

    dec = pos_emb
    for lp in params["decoder"]["layers"]:
        dec = decoder_layer(lp, dec, para_matrix, sents_bias, sents_bias, HEADS)

    # query_linear + tanh pointer + masked row/col NLL, fused into one kernel.
    return pointer_loss(dec, key, params["query_linear"], params["tanh_linear"],
                        ground_truth, passage_length)


# ================================ parameter init ================================

def _linear(key, din, dout, scale=0.02):
    kw, kb = jax.random.split(key)
    return {"w": scale * jax.random.normal(kw, (din, dout), jnp.float32),
            "b": scale * jax.random.normal(kb, (dout,), jnp.float32)}


def _ln(d):
    return {"g": jnp.ones((d,), jnp.float32), "b": jnp.zeros((d,), jnp.float32)}


def _attn(key, d):
    ks = jax.random.split(key, 4)
    return {"q": _linear(ks[0], d, d), "k": _linear(ks[1], d, d),
            "v": _linear(ks[2], d, d), "o": _linear(ks[3], d, d)}


def _enc_layer(key, d, dff):
    ks = jax.random.split(key, 3)
    return {"attn": _attn(ks[0], d), "ln1": _ln(d), "ln2": _ln(d),
            "ff1": _linear(ks[1], d, dff), "ff2": _linear(ks[2], dff, d)}


def _dec_layer(key, d, dff):
    ks = jax.random.split(key, 4)
    return {"self_attn": _attn(ks[0], d), "cross_attn": _attn(ks[1], d),
            "ln1": _ln(d), "ln2": _ln(d), "ln3": _ln(d),
            "ff1": _linear(ks[2], d, dff), "ff2": _linear(ks[3], dff, d)}


def init_params(key):
    ks = jax.random.split(key, 10)
    bart = {
        "tok_emb": 0.02 * jax.random.normal(ks[0], (V, H_BA), jnp.float32),
        "pos_emb": 0.02 * jax.random.normal(ks[1], (L, H_BA), jnp.float32),
        "ln_emb": _ln(H_BA),
        "layers": [_enc_layer(k, H_BA, BART_FF) for k in jax.random.split(ks[2], 1)],
    }
    return {
        "bart": bart,
        "linear_hidden": _linear(ks[3], H_BA, H),
        "pol": _linear(ks[4], H, H),
        "key_linear": _linear(ks[5], H, H),
        "query_linear": _linear(ks[6], H, H),
        "tanh_linear": _linear(ks[7], H, 1),
        "encoder": {"layers": [_enc_layer(k, H, FF_SIZE) for k in jax.random.split(ks[8], 1)],
                    "ln_out": _ln(H)},
        "decoder": {"layers": [_dec_layer(k, H, H) for k in jax.random.split(ks[9], 1)]},
    }


# ===================================== main =====================================

if __name__ == "__main__":
    root = jax.random.PRNGKey(0)
    kp, kd = jax.random.split(root)
    params = init_params(kp)

    input_ids = jax.random.randint(kd, (B, L), 0, V).astype(jnp.int32)
    attention_mask = jnp.ones((B, L), jnp.int32)
    passage_length = jnp.array([4, 3], jnp.int32)                      # sentences per document
    ground_truth = jnp.array([[2, 0, 3, 1], [1, 2, 0, 0]], jnp.int32)  # padded orderings
    s_index = jnp.array([[0, 4, 8, 12], [0, 5, 10, 10]], jnp.int32)    # sentence-boundary tokens

    loss_fn = jax.jit(forward)
    loss = loss_fn(params, input_ids, attention_mask, passage_length, ground_truth, s_index)
    jax.block_until_ready(loss)
    assert loss.shape == () and jnp.isfinite(loss)
    print("KERNEL_OK")
</pallas_src>

<mosaic_0001>
module attributes {stable_mosaic.version = 11 : i64} {
  func.func @_encoder_layer_kernel(%arg0: i32, %arg1: memref<1x4x32xf32, #tpu.memory_space<vmem>>, %arg2: memref<1x1x4xf32, #tpu.memory_space<vmem>>, %arg3: memref<6x32xf32, #tpu.memory_space<vmem>>, %arg4: memref<32x96xbf16, #tpu.memory_space<vmem>>, %arg5: memref<1x96xf32, #tpu.memory_space<vmem>>, %arg6: memref<32x32xbf16, #tpu.memory_space<vmem>>, %arg7: memref<1x32xf32, #tpu.memory_space<vmem>>, %arg8: memref<32x64xbf16, #tpu.memory_space<vmem>>, %arg9: memref<1x64xf32, #tpu.memory_space<vmem>>, %arg10: memref<64x32xbf16, #tpu.memory_space<vmem>>, %arg11: memref<1x32xf32, #tpu.memory_space<vmem>>, %arg12: memref<1x4x32xf32, #tpu.memory_space<vmem>>) attributes {dimension_semantics = [#tpu.dimension_semantics<parallel>], iteration_bounds = array<i64: 2>, scalar_prefetch = 0 : i64, scratch_operands = 0 : i64, tpu.core_type = #tpu.core_type<tc>, window_params = [{transform_indices = @transform_0, window_bounds = array<i64: 1, 4, 32>}, {transform_indices = @transform_1, window_bounds = array<i64: 1, 1, 4>}, {pipeline_mode = #tpu.pipeline_mode<synchronous>, transform_indices = @transform_2, window_bounds = array<i64: 6, 32>}, {pipeline_mode = #tpu.pipeline_mode<synchronous>, transform_indices = @transform_3, window_bounds = array<i64: 32, 96>}, {pipeline_mode = #tpu.pipeline_mode<synchronous>, transform_indices = @transform_4, window_bounds = array<i64: 1, 96>}, {pipeline_mode = #tpu.pipeline_mode<synchronous>, transform_indices = @transform_5, window_bounds = array<i64: 32, 32>}, {pipeline_mode = #tpu.pipeline_mode<synchronous>, transform_indices = @transform_6, window_bounds = array<i64: 1, 32>}, {pipeline_mode = #tpu.pipeline_mode<synchronous>, transform_indices = @transform_7, window_bounds = array<i64: 32, 64>}, {pipeline_mode = #tpu.pipeline_mode<synchronous>, transform_indices = @transform_8, window_bounds = array<i64: 1, 64>}, {pipeline_mode = #tpu.pipeline_mode<synchronous>, transform_indices = @transform_9, window_bounds = array<i64: 64, 32>}, {pipeline_mode = #tpu.pipeline_mode<synchronous>, transform_indices = @transform_10, window_bounds = array<i64: 1, 32>}, {transform_indices = @transform_11, window_bounds = array<i64: 1, 4, 32>}]} {
    %c0 = arith.constant 0 : index
    %c0_0 = arith.constant 0 : index
    %c0_1 = arith.constant 0 : index
    %0 = vector.load %arg1[%c0, %c0_0, %c0_1] : memref<1x4x32xf32, #tpu.memory_space<vmem>>, vector<1x4x32xf32>
    %1 = vector.shape_cast %0 : vector<1x4x32xf32> to vector<4x32xf32>
    %c0_2 = arith.constant 0 : index
    %c0_3 = arith.constant 0 : index
    %c0_4 = arith.constant 0 : index
    %2 = vector.load %arg2[%c0_2, %c0_3, %c0_4] : memref<1x1x4xf32, #tpu.memory_space<vmem>>, vector<1x1x4xf32>
    %3 = vector.shape_cast %2 : vector<1x1x4xf32> to vector<1x4xf32>
    %c0_5 = arith.constant 0 : index
    %c0_6 = arith.constant 0 : index
    %4 = vector.load %arg3[%c0_5, %c0_6] : memref<6x32xf32, #tpu.memory_space<vmem>>, vector<6x32xf32>
    %5 = vector.extract_strided_slice %4 {offsets = [0, 0], sizes = [1, 32], strides = [1, 1]} : vector<6x32xf32> to vector<1x32xf32>
    %6 = vector.extract_strided_slice %4 {offsets = [1, 0], sizes = [1, 32], strides = [1, 1]} : vector<6x32xf32> to vector<1x32xf32>
    %cst = arith.constant dense<0.000000e+00> : vector<4xf32>
    %7 = vector.multi_reduction <add>, %1, %cst [1] : vector<4x32xf32> to vector<4xf32>
    %8 = vector.shape_cast %7 : vector<4xf32> to vector<4x1xf32>
    %cst_7 = arith.constant 3.200000e+01 : f32
    %9 = vector.broadcast %cst_7 : f32 to vector<4x1xf32>
    %10 = arith.divf %8, %9 : vector<4x1xf32>
    %11 = vector.broadcast %10 : vector<4x1xf32> to vector<4x32xf32>
    %12 = arith.subf %1, %11 : vector<4x32xf32>
    %13 = arith.mulf %12, %12 : vector<4x32xf32>
    %cst_8 = arith.constant dense<0.000000e+00> : vector<4xf32>
    %14 = vector.multi_reduction <add>, %13, %cst_8 [1] : vector<4x32xf32> to vector<4xf32>
    %15 = vector.shape_cast %14 : vector<4xf32> to vector<4x1xf32>
    %cst_9 = arith.constant 3.200000e+01 : f32
    %16 = vector.broadcast %cst_9 : f32 to vector<4x1xf32>
    %17 = arith.divf %15, %16 : vector<4x1xf32>
    %18 = vector.broadcast %10 : vector<4x1xf32> to vector<4x32xf32>
    %19 = arith.subf %1, %18 : vector<4x32xf32>
    %cst_10 = arith.constant 9.99999974E-6 : f32
    %20 = vector.broadcast %cst_10 : f32 to vector<4x1xf32>
    %21 = arith.addf %17, %20 : vector<4x1xf32>
    %22 = math.rsqrt %21 : vector<4x1xf32>
    %23 = vector.broadcast %22 : vector<4x1xf32> to vector<4x32xf32>
    %24 = arith.mulf %19, %23 : vector<4x32xf32>
    %25 = vector.broadcast %5 : vector<1x32xf32> to vector<4x32xf32>
    %26 = arith.mulf %24, %25 : vector<4x32xf32>
    %27 = vector.broadcast %6 : vector<1x32xf32> to vector<4x32xf32>
    %28 = arith.addf %26, %27 : vector<4x32xf32>
    %29 = arith.truncf %28 : vector<4x32xf32> to vector<4x32xbf16>
    %c0_11 = arith.constant 0 : index
    %c0_12 = arith.constant 0 : index
    %30 = vector.load %arg4[%c0_11, %c0_12] : memref<32x96xbf16, #tpu.memory_space<vmem>>, vector<32x96xbf16>
    %cst_13 = arith.constant dense<0.000000e+00> : vector<4x96xf32>
    %31 = tpu.matmul %29, %30, %cst_13 {dimension_numbers = #tpu.dot_dimension_numbers<[1], [0], [0], [1], [0, 0, 1, 1], [], []>} : vector<4x32xbf16>, vector<32x96xbf16>, vector<4x96xf32> -> vector<4x96xf32>
    %c0_14 = arith.constant 0 : index
    %c0_15 = arith.constant 0 : index
    %32 = vector.load %arg5[%c0_14, %c0_15] : memref<1x96xf32, #tpu.memory_space<vmem>>, vector<1x96xf32>
    %33 = vector.broadcast %32 : vector<1x96xf32> to vector<4x96xf32>
    %34 = arith.addf %31, %33 : vector<4x96xf32>
    %35 = vector.extract_strided_slice %34 {offsets = [0, 0], sizes = [4, 32], strides = [1, 1]} : vector<4x96xf32> to vector<4x32xf32>
    %36 = vector.extract_strided_slice %34 {offsets = [0, 32], sizes = [4, 32], strides = [1, 1]} : vector<4x96xf32> to vector<4x32xf32>
    %37 = vector.extract_strided_slice %34 {offsets = [0, 64], sizes = [4, 32], strides = [1, 1]} : vector<4x96xf32> to vector<4x32xf32>
    %38 = vector.extract_strided_slice %35 {offsets = [0, 0], sizes = [4, 8], strides = [1, 1]} : vector<4x32xf32> to vector<4x8xf32>
    %39 = arith.truncf %38 : vector<4x8xf32> to vector<4x8xbf16>
    %40 = vector.extract_strided_slice %36 {offsets = [0, 0], sizes = [4, 8], strides = [1, 1]} : vector<4x32xf32> to vector<4x8xf32>
    %41 = arith.truncf %40 : vector<4x8xf32> to vector<4x8xbf16>
    %42 = vector.extract_strided_slice %37 {offsets = [0, 0], sizes = [4, 8], strides = [1, 1]} : vector<4x32xf32> to vector<4x8xf32>
    %43 = arith.truncf %42 : vector<4x8xf32> to vector<4x8xbf16>
    %cst_16 = arith.constant dense<0.000000e+00> : vector<4x4xf32>
    %44 = tpu.matmul %39, %41, %cst_16 {dimension_numbers = #tpu.dot_dimension_numbers<[1], [1], [0], [0], [0, 0, 1, 0], [], []>} : vector<4x8xbf16>, vector<4x8xbf16>, vector<4x4xf32> -> vector<4x4xf32>
    %cst_17 = arith.constant 0.353553385 : f32
    %45 = vector.broadcast %cst_17 : f32 to vector<4x4xf32>
    %46 = arith.mulf %44, %45 : vector<4x4xf32>
    %47 = vector.broadcast %3 : vector<1x4xf32> to vector<4x4xf32>
    %48 = arith.addf %46, %47 : vector<4x4xf32>
    %cst_18 = arith.constant dense<0xFF800000> : vector<4xf32>
    %49 = vector.multi_reduction <maximumf>, %48, %cst_18 [1] : vector<4x4xf32> to vector<4xf32>
    %50 = vector.shape_cast %49 : vector<4xf32> to vector<4x1xf32>
    %51 = vector.broadcast %50 : vector<4x1xf32> to vector<4x4xf32>
    %52 = arith.subf %48, %51 : vector<4x4xf32>
    %53 = math.exp %52 : vector<4x4xf32>
    %cst_19 = arith.constant dense<0.000000e+00> : vector<4xf32>
    %54 = vector.multi_reduction <add>, %53, %cst_19 [1] : vector<4x4xf32> to vector<4xf32>
    %55 = vector.shape_cast %54 : vector<4xf32> to vector<4x1xf32>
    %56 = tpu.reciprocal %55 {approx = true} : vector<4x1xf32> -> vector<4x1xf32>
    %57 = vector.broadcast %56 : vector<4x1xf32> to vector<4x4xf32>
    %58 = arith.mulf %53, %57 : vector<4x4xf32>
    %59 = arith.truncf %58 : vector<4x4xf32> to vector<4x4xbf16>
    %cst_20 = arith.constant dense<0.000000e+00> : vector<4x8xf32>
    %60 = tpu.matmul %59, %43, %cst_20 {dimension_numbers = #tpu.dot_dimension_numbers<[1], [0], [0], [1], [0, 0, 1, 1], [], []>} : vector<4x4xbf16>, vector<4x8xbf16>, vector<4x8xf32> -> vector<4x8xf32>
    %61 = vector.extract_strided_slice %35 {offsets = [0, 8], sizes = [4, 8], strides = [1, 1]} : vector<4x32xf32> to vector<4x8xf32>
    %62 = arith.truncf %61 : vector<4x8xf32> to vector<4x8xbf16>
    %63 = vector.extract_strided_slice %36 {offsets = [0, 8], sizes = [4, 8], strides = [1, 1]} : vector<4x32xf32> to vector<4x8xf32>
    %64 = arith.truncf %63 : vector<4x8xf32> to vector<4x8xbf16>
    %65 = vector.extract_strided_slice %37 {offsets = [0, 8], sizes = [4, 8], strides = [1, 1]} : vector<4x32xf32> to vector<4x8xf32>
    %66 = arith.truncf %65 : vector<4x8xf32> to vector<4x8xbf16>
    %cst_21 = arith.constant dense<0.000000e+00> : vector<4x4xf32>
    %67 = tpu.matmul %62, %64, %cst_21 {dimension_numbers = #tpu.dot_dimension_numbers<[1], [1], [0], [0], [0, 0, 1, 0], [], []>} : vector<4x8xbf16>, vector<4x8xbf16>, vector<4x4xf32> -> vector<4x4xf32>
    %cst_22 = arith.constant 0.353553385 : f32
    %68 = vector.broadcast %cst_22 : f32 to vector<4x4xf32>
    %69 = arith.mulf %67, %68 : vector<4x4xf32>
    %70 = vector.broadcast %3 : vector<1x4xf32> to vector<4x4xf32>
    %71 = arith.addf %69, %70 : vector<4x4xf32>
    %cst_23 = arith.constant dense<0xFF800000> : vector<4xf32>
    %72 = vector.multi_reduction <maximumf>, %71, %cst_23 [1] : vector<4x4xf32> to vector<4xf32>
    %73 = vector.shape_cast %72 : vector<4xf32> to vector<4x1xf32>
    %74 = vector.broadcast %73 : vector<4x1xf32> to vector<4x4xf32>
    %75 = arith.subf %71, %74 : vector<4x4xf32>
    %76 = math.exp %75 : vector<4x4xf32>
    %cst_24 = arith.constant dense<0.000000e+00> : vector<4xf32>
    %77 = vector.multi_reduction <add>, %76, %cst_24 [1] : vector<4x4xf32> to vector<4xf32>
    %78 = vector.shape_cast %77 : vector<4xf32> to vector<4x1xf32>
    %79 = tpu.reciprocal %78 {approx = true} : vector<4x1xf32> -> vector<4x1xf32>
    %80 = vector.broadcast %79 : vector<4x1xf32> to vector<4x4xf32>
    %81 = arith.mulf %76, %80 : vector<4x4xf32>
    %82 = arith.truncf %81 : vector<4x4xf32> to vector<4x4xbf16>
    %cst_25 = arith.constant dense<0.000000e+00> : vector<4x8xf32>
    %83 = tpu.matmul %82, %66, %cst_25 {dimension_numbers = #tpu.dot_dimension_numbers<[1], [0], [0], [1], [0, 0, 1, 1], [], []>} : vector<4x4xbf16>, vector<4x8xbf16>, vector<4x8xf32> -> vector<4x8xf32>
    %84 = vector.extract_strided_slice %35 {offsets = [0, 16], sizes = [4, 8], strides = [1, 1]} : vector<4x32xf32> to vector<4x8xf32>
    %85 = arith.truncf %84 : vector<4x8xf32> to vector<4x8xbf16>
    %86 = vector.extract_strided_slice %36 {offsets = [0, 16], sizes = [4, 8], strides = [1, 1]} : vector<4x32xf32> to vector<4x8xf32>
    %87 = arith.truncf %86 : vector<4x8xf32> to vector<4x8xbf16>
    %88 = vector.extract_strided_slice %37 {offsets = [0, 16], sizes = [4, 8], strides = [1, 1]} : vector<4x32xf32> to vector<4x8xf32>
    %89 = arith.truncf %88 : vector<4x8xf32> to vector<4x8xbf16>
    %cst_26 = arith.constant dense<0.000000e+00> : vector<4x4xf32>
    %90 = tpu.matmul %85, %87, %cst_26 {dimension_numbers = #tpu.dot_dimension_numbers<[1], [1], [0], [0], [0, 0, 1, 0], [], []>} : vector<4x8xbf16>, vector<4x8xbf16>, vector<4x4xf32> -> vector<4x4xf32>
    %cst_27 = arith.constant 0.353553385 : f32
    %91 = vector.broadcast %cst_27 : f32 to vector<4x4xf32>
    %92 = arith.mulf %90, %91 : vector<4x4xf32>
    %93 = vector.broadcast %3 : vector<1x4xf32> to vector<4x4xf32>
    %94 = arith.addf %92, %93 : vector<4x4xf32>
    %cst_28 = arith.constant dense<0xFF800000> : vector<4xf32>
    %95 = vector.multi_reduction <maximumf>, %94, %cst_28 [1] : vector<4x4xf32> to vector<4xf32>
    %96 = vector.shape_cast %95 : vector<4xf32> to vector<4x1xf32>
    %97 = vector.broadcast %96 : vector<4x1xf32> to vector<4x4xf32>
    %98 = arith.subf %94, %97 : vector<4x4xf32>
    %99 = math.exp %98 : vector<4x4xf32>
    %cst_29 = arith.constant dense<0.000000e+00> : vector<4xf32>
    %100 = vector.multi_reduction <add>, %99, %cst_29 [1] : vector<4x4xf32> to vector<4xf32>
    %101 = vector.shape_cast %100 : vector<4xf32> to vector<4x1xf32>
    %102 = tpu.reciprocal %101 {approx = true} : vector<4x1xf32> -> vector<4x1xf32>
    %103 = vector.broadcast %102 : vector<4x1xf32> to vector<4x4xf32>
    %104 = arith.mulf %99, %103 : vector<4x4xf32>
    %105 = arith.truncf %104 : vector<4x4xf32> to vector<4x4xbf16>
    %cst_30 = arith.constant dense<0.000000e+00> : vector<4x8xf32>
    %106 = tpu.matmul %105, %89, %cst_30 {dimension_numbers = #tpu.dot_dimension_numbers<[1], [0], [0], [1], [0, 0, 1, 1], [], []>} : vector<4x4xbf16>, vector<4x8xbf16>, vector<4x8xf32> -> vector<4x8xf32>
    %107 = vector.extract_strided_slice %35 {offsets = [0, 24], sizes = [4, 8], strides = [1, 1]} : vector<4x32xf32> to vector<4x8xf32>
    %108 = arith.truncf %107 : vector<4x8xf32> to vector<4x8xbf16>
    %109 = vector.extract_strided_slice %36 {offsets = [0, 24], sizes = [4, 8], strides = [1, 1]} : vector<4x32xf32> to vector<4x8xf32>
    %110 = arith.truncf %109 : vector<4x8xf32> to vector<4x8xbf16>
    %111 = vector.extract_strided_slice %37 {offsets = [0, 24], sizes = [4, 8], strides = [1, 1]} : vector<4x32xf32> to vector<4x8xf32>
    %112 = arith.truncf %111 : vector<4x8xf32> to vector<4x8xbf16>
    %cst_31 = arith.constant dense<0.000000e+00> : vector<4x4xf32>
    %113 = tpu.matmul %108, %110, %cst_31 {dimension_numbers = #tpu.dot_dimension_numbers<[1], [1], [0], [0], [0, 0, 1, 0], [], []>} : vector<4x8xbf16>, vector<4x8xbf16>, vector<4x4xf32> -> vector<4x4xf32>
    %cst_32 = arith.constant 0.353553385 : f32
    %114 = vector.broadcast %cst_32 : f32 to vector<4x4xf32>
    %115 = arith.mulf %113, %114 : vector<4x4xf32>
    %116 = vector.broadcast %3 : vector<1x4xf32> to vector<4x4xf32>
    %117 = arith.addf %115, %116 : vector<4x4xf32>
    %cst_33 = arith.constant dense<0xFF800000> : vector<4xf32>
    %118 = vector.multi_reduction <maximumf>, %117, %cst_33 [1] : vector<4x4xf32> to vector<4xf32>
    %119 = vector.shape_cast %118 : vector<4xf32> to vector<4x1xf32>
    %120 = vector.broadcast %119 : vector<4x1xf32> to vector<4x4xf32>
    %121 = arith.subf %117, %120 : vector<4x4xf32>
    %122 = math.exp %121 : vector<4x4xf32>
    %cst_34 = arith.constant dense<0.000000e+00> : vector<4xf32>
    %123 = vector.multi_reduction <add>, %122, %cst_34 [1] : vector<4x4xf32> to vector<4xf32>
    %124 = vector.shape_cast %123 : vector<4xf32> to vector<4x1xf32>
    %125 = tpu.reciprocal %124 {approx = true} : vector<4x1xf32> -> vector<4x1xf32>
    %126 = vector.broadcast %125 : vector<4x1xf32> to vector<4x4xf32>
    %127 = arith.mulf %122, %126 : vector<4x4xf32>
    %128 = arith.truncf %127 : vector<4x4xf32> to vector<4x4xbf16>
    %cst_35 = arith.constant dense<0.000000e+00> : vector<4x8xf32>
    %129 = tpu.matmul %128, %112, %cst_35 {dimension_numbers = #tpu.dot_dimension_numbers<[1], [0], [0], [1], [0, 0, 1, 1], [], []>} : vector<4x4xbf16>, vector<4x8xbf16>, vector<4x8xf32> -> vector<4x8xf32>
    %130 = tpu.concatenate %60, %83, %106, %129 in 1 : vector<4x8xf32>, vector<4x8xf32>, vector<4x8xf32>, vector<4x8xf32> -> vector<4x32xf32>
    %131 = arith.truncf %130 : vector<4x32xf32> to vector<4x32xbf16>
    %c0_36 = arith.constant 0 : index
    %c0_37 = arith.constant 0 : index
    %132 = vector.load %arg6[%c0_36, %c0_37] : memref<32x32xbf16, #tpu.memory_space<vmem>>, vector<32x32xbf16>
    %cst_38 = arith.constant dense<0.000000e+00> : vector<4x32xf32>
    %133 = tpu.matmul %131, %132, %cst_38 {dimension_numbers = #tpu.dot_dimension_numbers<[1], [0], [0], [1], [0, 0, 1, 1], [], []>} : vector<4x32xbf16>, vector<32x32xbf16>, vector<4x32xf32> -> vector<4x32xf32>
    %c0_39 = arith.constant 0 : index
    %c0_40 = arith.constant 0 : index
    %134 = vector.load %arg7[%c0_39, %c0_40] : memref<1x32xf32, #tpu.memory_space<vmem>>, vector<1x32xf32>
    %135 = vector.broadcast %134 : vector<1x32xf32> to vector<4x32xf32>
    %136 = arith.addf %133, %135 : vector<4x32xf32>
    %137 = arith.addf %1, %136 : vector<4x32xf32>
    %138 = vector.extract_strided_slice %4 {offsets = [2, 0], sizes = [1, 32], strides = [1, 1]} : vector<6x32xf32> to vector<1x32xf32>
    %139 = vector.extract_strided_slice %4 {offsets = [3, 0], sizes = [1, 32], strides = [1, 1]} : vector<6x32xf32> to vector<1x32xf32>
    %cst_41 = arith.constant dense<0.000000e+00> : vector<4xf32>
    %140 = vector.multi_reduction <add>, %137, %cst_41 [1] : vector<4x32xf32> to vector<4xf32>
    %141 = vector.shape_cast %140 : vector<4xf32> to vector<4x1xf32>
    %cst_42 = arith.constant 3.200000e+01 : f32
    %142 = vector.broadcast %cst_42 : f32 to vector<4x1xf32>
    %143 = arith.divf %141, %142 : vector<4x1xf32>
    %144 = vector.broadcast %143 : vector<4x1xf32> to vector<4x32xf32>
    %145 = arith.subf %137, %144 : vector<4x32xf32>
    %146 = arith.mulf %145, %145 : vector<4x32xf32>
    %cst_43 = arith.constant dense<0.000000e+00> : vector<4xf32>
    %147 = vector.multi_reduction <add>, %146, %cst_43 [1] : vector<4x32xf32> to vector<4xf32>
    %148 = vector.shape_cast %147 : vector<4xf32> to vector<4x1xf32>
    %cst_44 = arith.constant 3.200000e+01 : f32
    %149 = vector.broadcast %cst_44 : f32 to vector<4x1xf32>
    %150 = arith.divf %148, %149 : vector<4x1xf32>
    %151 = vector.broadcast %143 : vector<4x1xf32> to vector<4x32xf32>
    %152 = arith.subf %137, %151 : vector<4x32xf32>
    %cst_45 = arith.constant 9.99999974E-6 : f32
    %153 = vector.broadcast %cst_45 : f32 to vector<4x1xf32>
    %154 = arith.addf %150, %153 : vector<4x1xf32>
    %155 = math.rsqrt %154 : vector<4x1xf32>
    %156 = vector.broadcast %155 : vector<4x1xf32> to vector<4x32xf32>
    %157 = arith.mulf %152, %156 : vector<4x32xf32>
    %158 = vector.broadcast %138 : vector<1x32xf32> to vector<4x32xf32>
    %159 = arith.mulf %157, %158 : vector<4x32xf32>
    %160 = vector.broadcast %139 : vector<1x32xf32> to vector<4x32xf32>
    %161 = arith.addf %159, %160 : vector<4x32xf32>
    %162 = arith.truncf %161 : vector<4x32xf32> to vector<4x32xbf16>
    %c0_46 = arith.constant 0 : index
    %c0_47 = arith.constant 0 : index
    %163 = vector.load %arg8[%c0_46, %c0_47] : memref<32x64xbf16, #tpu.memory_space<vmem>>, vector<32x64xbf16>
    %cst_48 = arith.constant dense<0.000000e+00> : vector<4x64xf32>
    %164 = tpu.matmul %162, %163, %cst_48 {dimension_numbers = #tpu.dot_dimension_numbers<[1], [0], [0], [1], [0, 0, 1, 1], [], []>} : vector<4x32xbf16>, vector<32x64xbf16>, vector<4x64xf32> -> vector<4x64xf32>
    %c0_49 = arith.constant 0 : index
    %c0_50 = arith.constant 0 : index
    %165 = vector.load %arg9[%c0_49, %c0_50] : memref<1x64xf32, #tpu.memory_space<vmem>>, vector<1x64xf32>
    %166 = vector.broadcast %165 : vector<1x64xf32> to vector<4x64xf32>
    %167 = arith.addf %164, %166 : vector<4x64xf32>
    %cst_51 = arith.constant 0.000000e+00 : f32
    %168 = vector.broadcast %cst_51 : f32 to vector<4x64xf32>
    %169 = arith.maximumf %167, %168 : vector<4x64xf32>
    %170 = arith.truncf %169 : vector<4x64xf32> to vector<4x64xbf16>
    %c0_52 = arith.constant 0 : index
    %c0_53 = arith.constant 0 : index
    %171 = vector.load %arg10[%c0_52, %c0_53] : memref<64x32xbf16, #tpu.memory_space<vmem>>, vector<64x32xbf16>
    %cst_54 = arith.constant dense<0.000000e+00> : vector<4x32xf32>
    %172 = tpu.matmul %170, %171, %cst_54 {dimension_numbers = #tpu.dot_dimension_numbers<[1], [0], [0], [1], [0, 0, 1, 1], [], []>} : vector<4x64xbf16>, vector<64x32xbf16>, vector<4x32xf32> -> vector<4x32xf32>
    %c0_55 = arith.constant 0 : index
    %c0_56 = arith.constant 0 : index
    %173 = vector.load %arg11[%c0_55, %c0_56] : memref<1x32xf32, #tpu.memory_space<vmem>>, vector<1x32xf32>
    %174 = vector.broadcast %173 : vector<1x32xf32> to vector<4x32xf32>
    %175 = arith.addf %172, %174 : vector<4x32xf32>
    %176 = arith.addf %137, %175 : vector<4x32xf32>
    %177 = vector.extract_strided_slice %4 {offsets = [4, 0], sizes = [1, 32], strides = [1, 1]} : vector<6x32xf32> to vector<1x32xf32>
    %178 = vector.extract_strided_slice %4 {offsets = [5, 0], sizes = [1, 32], strides = [1, 1]} : vector<6x32xf32> to vector<1x32xf32>
    %cst_57 = arith.constant dense<0.000000e+00> : vector<4xf32>
    %179 = vector.multi_reduction <add>, %176, %cst_57 [1] : vector<4x32xf32> to vector<4xf32>
    %180 = vector.shape_cast %179 : vector<4xf32> to vector<4x1xf32>
    %cst_58 = arith.constant 3.200000e+01 : f32
    %181 = vector.broadcast %cst_58 : f32 to vector<4x1xf32>
    %182 = arith.divf %180, %181 : vector<4x1xf32>
    %183 = vector.broadcast %182 : vector<4x1xf32> to vector<4x32xf32>
    %184 = arith.subf %176, %183 : vector<4x32xf32>
    %185 = arith.mulf %184, %184 : vector<4x32xf32>
    %cst_59 = arith.constant dense<0.000000e+00> : vector<4xf32>
    %186 = vector.multi_reduction <add>, %185, %cst_59 [1] : vector<4x32xf32> to vector<4xf32>
    %187 = vector.shape_cast %186 : vector<4xf32> to vector<4x1xf32>
    %cst_60 = arith.constant 3.200000e+01 : f32
    %188 = vector.broadcast %cst_60 : f32 to vector<4x1xf32>
    %189 = arith.divf %187, %188 : vector<4x1xf32>
    %190 = vector.broadcast %182 : vector<4x1xf32> to vector<4x32xf32>
    %191 = arith.subf %176, %190 : vector<4x32xf32>
    %cst_61 = arith.constant 9.99999974E-6 : f32
    %192 = vector.broadcast %cst_61 : f32 to vector<4x1xf32>
    %193 = arith.addf %189, %192 : vector<4x1xf32>
    %194 = math.rsqrt %193 : vector<4x1xf32>
    %195 = vector.broadcast %194 : vector<4x1xf32> to vector<4x32xf32>
    %196 = arith.mulf %191, %195 : vector<4x32xf32>
    %197 = vector.broadcast %177 : vector<1x32xf32> to vector<4x32xf32>
    %198 = arith.mulf %196, %197 : vector<4x32xf32>
    %199 = vector.broadcast %178 : vector<1x32xf32> to vector<4x32xf32>
    %200 = arith.addf %198, %199 : vector<4x32xf32>
    %c0_62 = arith.constant 0 : index
    %c0_63 = arith.constant 0 : index
    %c0_64 = arith.constant 0 : index
    %201 = vector.load %arg12[%c0_62, %c0_63, %c0_64] : memref<1x4x32xf32, #tpu.memory_space<vmem>>, vector<1x4x32xf32>
    %202 = vector.shape_cast %201 : vector<1x4x32xf32> to vector<4x32xf32>
    %203 = vector.shape_cast %200 : vector<4x32xf32> to vector<1x4x32xf32>
    tpu.vector_store %arg12[%c0_62, %c0_63, %c0_64], %203 {strides = array<i32>} : memref<1x4x32xf32, #tpu.memory_space<vmem>>, vector<1x4x32xf32>,
    return
  }
  func.func @transform_0(%arg0: i32) -> (i32, i32, i32) {
    %c0_i32 = arith.constant 0 : i32
    %c0_i32_0 = arith.constant 0 : i32
    %c0_i32_1 = arith.constant 0 : i32
    return %arg0, %c0_i32, %c0_i32_0 : i32, i32, i32
  }
  func.func @transform_1(%arg0: i32) -> (i32, i32, i32) {
    %c0_i32 = arith.constant 0 : i32
    %c0_i32_0 = arith.constant 0 : i32
    %c0_i32_1 = arith.constant 0 : i32
    return %arg0, %c0_i32, %c0_i32_0 : i32, i32, i32
  }
  func.func @transform_2(%arg0: i32) -> (i32, i32) {
    %c0_i32 = arith.constant 0 : i32
    %c0_i32_0 = arith.constant 0 : i32
    %c0_i32_1 = arith.constant 0 : i32
    return %c0_i32, %c0_i32_0 : i32, i32
  }
  func.func @transform_3(%arg0: i32) -> (i32, i32) {
    %c0_i32 = arith.constant 0 : i32
    %c0_i32_0 = arith.constant 0 : i32
    %c0_i32_1 = arith.constant 0 : i32
    return %c0_i32, %c0_i32_0 : i32, i32
  }
  func.func @transform_4(%arg0: i32) -> (i32, i32) {
    %c0_i32 = arith.constant 0 : i32
    %c0_i32_0 = arith.constant 0 : i32
    %c0_i32_1 = arith.constant 0 : i32
    return %c0_i32, %c0_i32_0 : i32, i32
  }
  func.func @transform_5(%arg0: i32) -> (i32, i32) {
    %c0_i32 = arith.constant 0 : i32
    %c0_i32_0 = arith.constant 0 : i32
    %c0_i32_1 = arith.constant 0 : i32
    return %c0_i32, %c0_i32_0 : i32, i32
  }
  func.func @transform_6(%arg0: i32) -> (i32, i32) {
    %c0_i32 = arith.constant 0 : i32
    %c0_i32_0 = arith.constant 0 : i32
    %c0_i32_1 = arith.constant 0 : i32
    return %c0_i32, %c0_i32_0 : i32, i32
  }
  func.func @transform_7(%arg0: i32) -> (i32, i32) {
    %c0_i32 = arith.constant 0 : i32
    %c0_i32_0 = arith.constant 0 : i32
    %c0_i32_1 = arith.constant 0 : i32
    return %c0_i32, %c0_i32_0 : i32, i32
  }
  func.func @transform_8(%arg0: i32) -> (i32, i32) {
    %c0_i32 = arith.constant 0 : i32
    %c0_i32_0 = arith.constant 0 : i32
    %c0_i32_1 = arith.constant 0 : i32
    return %c0_i32, %c0_i32_0 : i32, i32
  }
  func.func @transform_9(%arg0: i32) -> (i32, i32) {
    %c0_i32 = arith.constant 0 : i32
    %c0_i32_0 = arith.constant 0 : i32
    %c0_i32_1 = arith.constant 0 : i32
    return %c0_i32, %c0_i32_0 : i32, i32
  }
  func.func @transform_10(%arg0: i32) -> (i32, i32) {
    %c0_i32 = arith.constant 0 : i32
    %c0_i32_0 = arith.constant 0 : i32
    %c0_i32_1 = arith.constant 0 : i32
    return %c0_i32, %c0_i32_0 : i32, i32
  }
  func.func @transform_11(%arg0: i32) -> (i32, i32, i32) {
    %c0_i32 = arith.constant 0 : i32
    %c0_i32_0 = arith.constant 0 : i32
    %c0_i32_1 = arith.constant 0 : i32
    return %arg0, %c0_i32, %c0_i32_0 : i32, i32, i32
  }
}

module attributes {stable_mosaic.version = 11 : i64} {
  func.func @_encoder_layer_kernel(%arg0: i32, %arg1: memref<1x16x64xf32, #tpu.memory_space<vmem>>, %arg2: memref<1x1x16xf32, #tpu.memory_space<vmem>>, %arg3: memref<6x64xf32, #tpu.memory_space<vmem>>, %arg4: memref<64x192xbf16, #tpu.memory_space<vmem>>, %arg5: memref<1x192xf32, #tpu.memory_space<vmem>>, %arg6: memref<64x64xbf16, #tpu.memory_space<vmem>>, %arg7: memref<1x64xf32, #tpu.memory_space<vmem>>, %arg8: memref<64x128xbf16, #tpu.memory_space<vmem>>, %arg9: memref<1x128xf32, #tpu.memory_space<vmem>>, %arg10: memref<128x64xbf16, #tpu.memory_space<vmem>>, %arg11: memref<1x64xf32, #tpu.memory_space<vmem>>, %arg12: memref<1x16x64xf32, #tpu.memory_space<vmem>>) attributes {dimension_semantics = [#tpu.dimension_semantics<parallel>], iteration_bounds = array<i64: 2>, scalar_prefetch = 0 : i64, scratch_operands = 0 : i64, tpu.core_type = #tpu.core_type<tc>, window_params = [{transform_indices = @transform_0, window_bounds = array<i64: 1, 16, 64>}, {transform_indices = @transform_1, window_bounds = array<i64: 1, 1, 16>}, {pipeline_mode = #tpu.pipeline_mode<synchronous>, transform_indices = @transform_2, window_bounds = array<i64: 6, 64>}, {pipeline_mode = #tpu.pipeline_mode<synchronous>, transform_indices = @transform_3, window_bounds = array<i64: 64, 192>}, {pipeline_mode = #tpu.pipeline_mode<synchronous>, transform_indices = @transform_4, window_bounds = array<i64: 1, 192>}, {pipeline_mode = #tpu.pipeline_mode<synchronous>, transform_indices = @transform_5, window_bounds = array<i64: 64, 64>}, {pipeline_mode = #tpu.pipeline_mode<synchronous>, transform_indices = @transform_6, window_bounds = array<i64: 1, 64>}, {pipeline_mode = #tpu.pipeline_mode<synchronous>, transform_indices = @transform_7, window_bounds = array<i64: 64, 128>}, {pipeline_mode = #tpu.pipeline_mode<synchronous>, transform_indices = @transform_8, window_bounds = array<i64: 1, 128>}, {pipeline_mode = #tpu.pipeline_mode<synchronous>, transform_indices = @transform_9, window_bounds = array<i64: 128, 64>}, {pipeline_mode = #tpu.pipeline_mode<synchronous>, transform_indices = @transform_10, window_bounds = array<i64: 1, 64>}, {transform_indices = @transform_11, window_bounds = array<i64: 1, 16, 64>}]} {
    %c0 = arith.constant 0 : index
    %c0_0 = arith.constant 0 : index
    %c0_1 = arith.constant 0 : index
    %0 = vector.load %arg1[%c0, %c0_0, %c0_1] : memref<1x16x64xf32, #tpu.memory_space<vmem>>, vector<1x16x64xf32>
    %1 = vector.shape_cast %0 : vector<1x16x64xf32> to vector<16x64xf32>
    %c0_2 = arith.constant 0 : index
    %c0_3 = arith.constant 0 : index
    %c0_4 = arith.constant 0 : index
    %2 = vector.load %arg2[%c0_2, %c0_3, %c0_4] : memref<1x1x16xf32, #tpu.memory_space<vmem>>, vector<1x1x16xf32>
    %3 = vector.shape_cast %2 : vector<1x1x16xf32> to vector<1x16xf32>
    %c0_5 = arith.constant 0 : index
    %c0_6 = arith.constant 0 : index
    %4 = vector.load %arg3[%c0_5, %c0_6] : memref<6x64xf32, #tpu.memory_space<vmem>>, vector<6x64xf32>
    %5 = vector.extract_strided_slice %4 {offsets = [4, 0], sizes = [1, 64], strides = [1, 1]} : vector<6x64xf32> to vector<1x64xf32>
    %6 = vector.extract_strided_slice %4 {offsets = [5, 0], sizes = [1, 64], strides = [1, 1]} : vector<6x64xf32> to vector<1x64xf32>
    %cst = arith.constant dense<0.000000e+00> : vector<16xf32>
    %7 = vector.multi_reduction <add>, %1, %cst [1] : vector<16x64xf32> to vector<16xf32>
    %8 = vector.shape_cast %7 : vector<16xf32> to vector<16x1xf32>
    %cst_7 = arith.constant 6.400000e+01 : f32
    %9 = vector.broadcast %cst_7 : f32 to vector<16x1xf32>
    %10 = arith.divf %8, %9 : vector<16x1xf32>
    %11 = vector.broadcast %10 : vector<16x1xf32> to vector<16x64xf32>
    %12 = arith.subf %1, %11 : vector<16x64xf32>
    %13 = arith.mulf %12, %12 : vector<16x64xf32>
    %cst_8 = arith.constant dense<0.000000e+00> : vector<16xf32>
    %14 = vector.multi_reduction <add>, %13, %cst_8 [1] : vector<16x64xf32> to vector<16xf32>
    %15 = vector.shape_cast %14 : vector<16xf32> to vector<16x1xf32>
    %cst_9 = arith.constant 6.400000e+01 : f32
    %16 = vector.broadcast %cst_9 : f32 to vector<16x1xf32>
    %17 = arith.divf %15, %16 : vector<16x1xf32>
    %18 = vector.broadcast %10 : vector<16x1xf32> to vector<16x64xf32>
    %19 = arith.subf %1, %18 : vector<16x64xf32>
    %cst_10 = arith.constant 9.99999974E-6 : f32
    %20 = vector.broadcast %cst_10 : f32 to vector<16x1xf32>
    %21 = arith.addf %17, %20 : vector<16x1xf32>
    %22 = math.rsqrt %21 : vector<16x1xf32>
    %23 = vector.broadcast %22 : vector<16x1xf32> to vector<16x64xf32>
    %24 = arith.mulf %19, %23 : vector<16x64xf32>
    %25 = vector.broadcast %5 : vector<1x64xf32> to vector<16x64xf32>
    %26 = arith.mulf %24, %25 : vector<16x64xf32>
    %27 = vector.broadcast %6 : vector<1x64xf32> to vector<16x64xf32>
    %28 = arith.addf %26, %27 : vector<16x64xf32>
    %29 = vector.extract_strided_slice %4 {offsets = [0, 0], sizes = [1, 64], strides = [1, 1]} : vector<6x64xf32> to vector<1x64xf32>
    %30 = vector.extract_strided_slice %4 {offsets = [1, 0], sizes = [1, 64], strides = [1, 1]} : vector<6x64xf32> to vector<1x64xf32>
    %cst_11 = arith.constant dense<0.000000e+00> : vector<16xf32>
    %31 = vector.multi_reduction <add>, %28, %cst_11 [1] : vector<16x64xf32> to vector<16xf32>
    %32 = vector.shape_cast %31 : vector<16xf32> to vector<16x1xf32>
    %cst_12 = arith.constant 6.400000e+01 : f32
    %33 = vector.broadcast %cst_12 : f32 to vector<16x1xf32>
    %34 = arith.divf %32, %33 : vector<16x1xf32>
    %35 = vector.broadcast %34 : vector<16x1xf32> to vector<16x64xf32>
    %36 = arith.subf %28, %35 : vector<16x64xf32>
    %37 = arith.mulf %36, %36 : vector<16x64xf32>
    %cst_13 = arith.constant dense<0.000000e+00> : vector<16xf32>
    %38 = vector.multi_reduction <add>, %37, %cst_13 [1] : vector<16x64xf32> to vector<16xf32>
    %39 = vector.shape_cast %38 : vector<16xf32> to vector<16x1xf32>
    %cst_14 = arith.constant 6.400000e+01 : f32
    %40 = vector.broadcast %cst_14 : f32 to vector<16x1xf32>
    %41 = arith.divf %39, %40 : vector<16x1xf32>
    %42 = vector.broadcast %34 : vector<16x1xf32> to vector<16x64xf32>
    %43 = arith.subf %28, %42 : vector<16x64xf32>
    %cst_15 = arith.constant 9.99999974E-6 : f32
    %44 = vector.broadcast %cst_15 : f32 to vector<16x1xf32>
    %45 = arith.addf %41, %44 : vector<16x1xf32>
    %46 = math.rsqrt %45 : vector<16x1xf32>
    %47 = vector.broadcast %46 : vector<16x1xf32> to vector<16x64xf32>
    %48 = arith.mulf %43, %47 : vector<16x64xf32>
    %49 = vector.broadcast %29 : vector<1x64xf32> to vector<16x64xf32>
    %50 = arith.mulf %48, %49 : vector<16x64xf32>
    %51 = vector.broadcast %30 : vector<1x64xf32> to vector<16x64xf32>
    %52 = arith.addf %50, %51 : vector<16x64xf32>
    %53 = arith.truncf %52 : vector<16x64xf32> to vector<16x64xbf16>
    %c0_16 = arith.constant 0 : index
    %c0_17 = arith.constant 0 : index
    %54 = vector.load %arg4[%c0_16, %c0_17] : memref<64x192xbf16, #tpu.memory_space<vmem>>, vector<64x192xbf16>
    %cst_18 = arith.constant dense<0.000000e+00> : vector<16x192xf32>
    %55 = tpu.matmul %53, %54, %cst_18 {dimension_numbers = #tpu.dot_dimension_numbers<[1], [0], [0], [1], [0, 0, 1, 1], [], []>} : vector<16x64xbf16>, vector<64x192xbf16>, vector<16x192xf32> -> vector<16x192xf32>
    %c0_19 = arith.constant 0 : index
    %c0_20 = arith.constant 0 : index
    %56 = vector.load %arg5[%c0_19, %c0_20] : memref<1x192xf32, #tpu.memory_space<vmem>>, vector<1x192xf32>
    %57 = vector.broadcast %56 : vector<1x192xf32> to vector<16x192xf32>
    %58 = arith.addf %55, %57 : vector<16x192xf32>
    %59 = vector.extract_strided_slice %58 {offsets = [0, 0], sizes = [16, 64], strides = [1, 1]} : vector<16x192xf32> to vector<16x64xf32>
    %60 = vector.extract_strided_slice %58 {offsets = [0, 64], sizes = [16, 64], strides = [1, 1]} : vector<16x192xf32> to vector<16x64xf32>
    %61 = vector.extract_strided_slice %58 {offsets = [0, 128], sizes = [16, 64], strides = [1, 1]} : vector<16x192xf32> to vector<16x64xf32>
    %62 = vector.extract_strided_slice %59 {offsets = [0, 0], sizes = [16, 16], strides = [1, 1]} : vector<16x64xf32> to vector<16x16xf32>
    %63 = arith.truncf %62 : vector<16x16xf32> to vector<16x16xbf16>
    %64 = vector.extract_strided_slice %60 {offsets = [0, 0], sizes = [16, 16], strides = [1, 1]} : vector<16x64xf32> to vector<16x16xf32>
    %65 = arith.truncf %64 : vector<16x16xf32> to vector<16x16xbf16>
    %66 = vector.extract_strided_slice %61 {offsets = [0, 0], sizes = [16, 16], strides = [1, 1]} : vector<16x64xf32> to vector<16x16xf32>
    %67 = arith.truncf %66 : vector<16x16xf32> to vector<16x16xbf16>
    %cst_21 = arith.constant dense<0.000000e+00> : vector<16x16xf32>
    %68 = tpu.matmul %63, %65, %cst_21 {dimension_numbers = #tpu.dot_dimension_numbers<[1], [1], [0], [0], [0, 0, 1, 0], [], []>} : vector<16x16xbf16>, vector<16x16xbf16>, vector<16x16xf32> -> vector<16x16xf32>
    %cst_22 = arith.constant 2.500000e-01 : f32
    %69 = vector.broadcast %cst_22 : f32 to vector<16x16xf32>
    %70 = arith.mulf %68, %69 : vector<16x16xf32>
    %71 = vector.broadcast %3 : vector<1x16xf32> to vector<16x16xf32>
    %72 = arith.addf %70, %71 : vector<16x16xf32>
    %cst_23 = arith.constant dense<0xFF800000> : vector<16xf32>
    %73 = vector.multi_reduction <maximumf>, %72, %cst_23 [1] : vector<16x16xf32> to vector<16xf32>
    %74 = vector.shape_cast %73 : vector<16xf32> to vector<16x1xf32>
    %75 = vector.broadcast %74 : vector<16x1xf32> to vector<16x16xf32>
    %76 = arith.subf %72, %75 : vector<16x16xf32>
    %77 = math.exp %76 : vector<16x16xf32>
    %cst_24 = arith.constant dense<0.000000e+00> : vector<16xf32>
    %78 = vector.multi_reduction <add>, %77, %cst_24 [1] : vector<16x16xf32> to vector<16xf32>
    %79 = vector.shape_cast %78 : vector<16xf32> to vector<16x1xf32>
    %80 = tpu.reciprocal %79 {approx = true} : vector<16x1xf32> -> vector<16x1xf32>
    %81 = vector.broadcast %80 : vector<16x1xf32> to vector<16x16xf32>
    %82 = arith.mulf %77, %81 : vector<16x16xf32>
    %83 = arith.truncf %82 : vector<16x16xf32> to vector<16x16xbf16>
    %cst_25 = arith.constant dense<0.000000e+00> : vector<16x16xf32>
    %84 = tpu.matmul %83, %67, %cst_25 {dimension_numbers = #tpu.dot_dimension_numbers<[1], [0], [0], [1], [0, 0, 1, 1], [], []>} : vector<16x16xbf16>, vector<16x16xbf16>, vector<16x16xf32> -> vector<16x16xf32>
    %85 = vector.extract_strided_slice %59 {offsets = [0, 16], sizes = [16, 16], strides = [1, 1]} : vector<16x64xf32> to vector<16x16xf32>
    %86 = arith.truncf %85 : vector<16x16xf32> to vector<16x16xbf16>
    %87 = vector.extract_strided_slice %60 {offsets = [0, 16], sizes = [16, 16], strides = [1, 1]} : vector<16x64xf32> to vector<16x16xf32>
    %88 = arith.truncf %87 : vector<16x16xf32> to vector<16x16xbf16>
    %89 = vector.extract_strided_slice %61 {offsets = [0, 16], sizes = [16, 16], strides = [1, 1]} : vector<16x64xf32> to vector<16x16xf32>
    %90 = arith.truncf %89 : vector<16x16xf32> to vector<16x16xbf16>
    %cst_26 = arith.constant dense<0.000000e+00> : vector<16x16xf32>
    %91 = tpu.matmul %86, %88, %cst_26 {dimension_numbers = #tpu.dot_dimension_numbers<[1], [1], [0], [0], [0, 0, 1, 0], [], []>} : vector<16x16xbf16>, vector<16x16xbf16>, vector<16x16xf32> -> vector<16x16xf32>
    %cst_27 = arith.constant 2.500000e-01 : f32
    %92 = vector.broadcast %cst_27 : f32 to vector<16x16xf32>
    %93 = arith.mulf %91, %92 : vector<16x16xf32>
    %94 = vector.broadcast %3 : vector<1x16xf32> to vector<16x16xf32>
    %95 = arith.addf %93, %94 : vector<16x16xf32>
    %cst_28 = arith.constant dense<0xFF800000> : vector<16xf32>
    %96 = vector.multi_reduction <maximumf>, %95, %cst_28 [1] : vector<16x16xf32> to vector<16xf32>
    %97 = vector.shape_cast %96 : vector<16xf32> to vector<16x1xf32>
    %98 = vector.broadcast %97 : vector<16x1xf32> to vector<16x16xf32>
    %99 = arith.subf %95, %98 : vector<16x16xf32>
    %100 = math.exp %99 : vector<16x16xf32>
    %cst_29 = arith.constant dense<0.000000e+00> : vector<16xf32>
    %101 = vector.multi_reduction <add>, %100, %cst_29 [1] : vector<16x16xf32> to vector<16xf32>
    %102 = vector.shape_cast %101 : vector<16xf32> to vector<16x1xf32>
    %103 = tpu.reciprocal %102 {approx = true} : vector<16x1xf32> -> vector<16x1xf32>
    %104 = vector.broadcast %103 : vector<16x1xf32> to vector<16x16xf32>
    %105 = arith.mulf %100, %104 : vector<16x16xf32>
    %106 = arith.truncf %105 : vector<16x16xf32> to vector<16x16xbf16>
    %cst_30 = arith.constant dense<0.000000e+00> : vector<16x16xf32>
    %107 = tpu.matmul %106, %90, %cst_30 {dimension_numbers = #tpu.dot_dimension_numbers<[1], [0], [0], [1], [0, 0, 1, 1], [], []>} : vector<16x16xbf16>, vector<16x16xbf16>, vector<16x16xf32> -> vector<16x16xf32>
    %108 = vector.extract_strided_slice %59 {offsets = [0, 32], sizes = [16, 16], strides = [1, 1]} : vector<16x64xf32> to vector<16x16xf32>
    %109 = arith.truncf %108 : vector<16x16xf32> to vector<16x16xbf16>
    %110 = vector.extract_strided_slice %60 {offsets = [0, 32], sizes = [16, 16], strides = [1, 1]} : vector<16x64xf32> to vector<16x16xf32>
    %111 = arith.truncf %110 : vector<16x16xf32> to vector<16x16xbf16>
    %112 = vector.extract_strided_slice %61 {offsets = [0, 32], sizes = [16, 16], strides = [1, 1]} : vector<16x64xf32> to vector<16x16xf32>
    %113 = arith.truncf %112 : vector<16x16xf32> to vector<16x16xbf16>
    %cst_31 = arith.constant dense<0.000000e+00> : vector<16x16xf32>
    %114 = tpu.matmul %109, %111, %cst_31 {dimension_numbers = #tpu.dot_dimension_numbers<[1], [1], [0], [0], [0, 0, 1, 0], [], []>} : vector<16x16xbf16>, vector<16x16xbf16>, vector<16x16xf32> -> vector<16x16xf32>
    %cst_32 = arith.constant 2.500000e-01 : f32
    %115 = vector.broadcast %cst_32 : f32 to vector<16x16xf32>
    %116 = arith.mulf %114, %115 : vector<16x16xf32>
    %117 = vector.broadcast %3 : vector<1x16xf32> to vector<16x16xf32>
    %118 = arith.addf %116, %117 : vector<16x16xf32>
    %cst_33 = arith.constant dense<0xFF800000> : vector<16xf32>
    %119 = vector.multi_reduction <maximumf>, %118, %cst_33 [1] : vector<16x16xf32> to vector<16xf32>
    %120 = vector.shape_cast %119 : vector<16xf32> to vector<16x1xf32>
    %121 = vector.broadcast %120 : vector<16x1xf32> to vector<16x16xf32>
    %122 = arith.subf %118, %121 : vector<16x16xf32>
    %123 = math.exp %122 : vector<16x16xf32>
    %cst_34 = arith.constant dense<0.000000e+00> : vector<16xf32>
    %124 = vector.multi_reduction <add>, %123, %cst_34 [1] : vector<16x16xf32> to vector<16xf32>
    %125 = vector.shape_cast %124 : vector<16xf32> to vector<16x1xf32>
    %126 = tpu.reciprocal %125 {approx = true} : vector<16x1xf32> -> vector<16x1xf32>
    %127 = vector.broadcast %126 : vector<16x1xf32> to vector<16x16xf32>
    %128 = arith.mulf %123, %127 : vector<16x16xf32>
    %129 = arith.truncf %128 : vector<16x16xf32> to vector<16x16xbf16>
    %cst_35 = arith.constant dense<0.000000e+00> : vector<16x16xf32>
    %130 = tpu.matmul %129, %113, %cst_35 {dimension_numbers = #tpu.dot_dimension_numbers<[1], [0], [0], [1], [0, 0, 1, 1], [], []>} : vector<16x16xbf16>, vector<16x16xbf16>, vector<16x16xf32> -> vector<16x16xf32>
    %131 = vector.extract_strided_slice %59 {offsets = [0, 48], sizes = [16, 16], strides = [1, 1]} : vector<16x64xf32> to vector<16x16xf32>
    %132 = arith.truncf %131 : vector<16x16xf32> to vector<16x16xbf16>
    %133 = vector.extract_strided_slice %60 {offsets = [0, 48], sizes = [16, 16], strides = [1, 1]} : vector<16x64xf32> to vector<16x16xf32>
    %134 = arith.truncf %133 : vector<16x16xf32> to vector<16x16xbf16>
    %135 = vector.extract_strided_slice %61 {offsets = [0, 48], sizes = [16, 16], strides = [1, 1]} : vector<16x64xf32> to vector<16x16xf32>
    %136 = arith.truncf %135 : vector<16x16xf32> to vector<16x16xbf16>
    %cst_36 = arith.constant dense<0.000000e+00> : vector<16x16xf32>
    %137 = tpu.matmul %132, %134, %cst_36 {dimension_numbers = #tpu.dot_dimension_numbers<[1], [1], [0], [0], [0, 0, 1, 0], [], []>} : vector<16x16xbf16>, vector<16x16xbf16>, vector<16x16xf32> -> vector<16x16xf32>
    %cst_37 = arith.constant 2.500000e-01 : f32
    %138 = vector.broadcast %cst_37 : f32 to vector<16x16xf32>
    %139 = arith.mulf %137, %138 : vector<16x16xf32>
    %140 = vector.broadcast %3 : vector<1x16xf32> to vector<16x16xf32>
    %141 = arith.addf %139, %140 : vector<16x16xf32>
    %cst_38 = arith.constant dense<0xFF800000> : vector<16xf32>
    %142 = vector.multi_reduction <maximumf>, %141, %cst_38 [1] : vector<16x16xf32> to vector<16xf32>
    %143 = vector.shape_cast %142 : vector<16xf32> to vector<16x1xf32>
    %144 = vector.broadcast %143 : vector<16x1xf32> to vector<16x16xf32>
    %145 = arith.subf %141, %144 : vector<16x16xf32>
    %146 = math.exp %145 : vector<16x16xf32>
    %cst_39 = arith.constant dense<0.000000e+00> : vector<16xf32>
    %147 = vector.multi_reduction <add>, %146, %cst_39 [1] : vector<16x16xf32> to vector<16xf32>
    %148 = vector.shape_cast %147 : vector<16xf32> to vector<16x1xf32>
    %149 = tpu.reciprocal %148 {approx = true} : vector<16x1xf32> -> vector<16x1xf32>
    %150 = vector.broadcast %149 : vector<16x1xf32> to vector<16x16xf32>
    %151 = arith.mulf %146, %150 : vector<16x16xf32>
    %152 = arith.truncf %151 : vector<16x16xf32> to vector<16x16xbf16>
    %cst_40 = arith.constant dense<0.000000e+00> : vector<16x16xf32>
    %153 = tpu.matmul %152, %136, %cst_40 {dimension_numbers = #tpu.dot_dimension_numbers<[1], [0], [0], [1], [0, 0, 1, 1], [], []>} : vector<16x16xbf16>, vector<16x16xbf16>, vector<16x16xf32> -> vector<16x16xf32>
    %154 = tpu.concatenate %84, %107, %130, %153 in 1 : vector<16x16xf32>, vector<16x16xf32>, vector<16x16xf32>, vector<16x16xf32> -> vector<16x64xf32>
    %155 = arith.truncf %154 : vector<16x64xf32> to vector<16x64xbf16>
    %c0_41 = arith.constant 0 : index
    %c0_42 = arith.constant 0 : index
    %156 = vector.load %arg6[%c0_41, %c0_42] : memref<64x64xbf16, #tpu.memory_space<vmem>>, vector<64x64xbf16>
    %cst_43 = arith.constant dense<0.000000e+00> : vector<16x64xf32>
    %157 = tpu.matmul %155, %156, %cst_43 {dimension_numbers = #tpu.dot_dimension_numbers<[1], [0], [0], [1], [0, 0, 1, 1], [], []>} : vector<16x64xbf16>, vector<64x64xbf16>, vector<16x64xf32> -> vector<16x64xf32>
    %c0_44 = arith.constant 0 : index
    %c0_45 = arith.constant 0 : index
    %158 = vector.load %arg7[%c0_44, %c0_45] : memref<1x64xf32, #tpu.memory_space<vmem>>, vector<1x64xf32>
    %159 = vector.broadcast %158 : vector<1x64xf32> to vector<16x64xf32>
    %160 = arith.addf %157, %159 : vector<16x64xf32>
    %161 = arith.addf %28, %160 : vector<16x64xf32>
    %162 = vector.extract_strided_slice %4 {offsets = [2, 0], sizes = [1, 64], strides = [1, 1]} : vector<6x64xf32> to vector<1x64xf32>
    %163 = vector.extract_strided_slice %4 {offsets = [3, 0], sizes = [1, 64], strides = [1, 1]} : vector<6x64xf32> to vector<1x64xf32>
    %cst_46 = arith.constant dense<0.000000e+00> : vector<16xf32>
    %164 = vector.multi_reduction <add>, %161, %cst_46 [1] : vector<16x64xf32> to vector<16xf32>
    %165 = vector.shape_cast %164 : vector<16xf32> to vector<16x1xf32>
    %cst_47 = arith.constant 6.400000e+01 : f32
    %166 = vector.broadcast %cst_47 : f32 to vector<16x1xf32>
    %167 = arith.divf %165, %166 : vector<16x1xf32>
    %168 = vector.broadcast %167 : vector<16x1xf32> to vector<16x64xf32>
    %169 = arith.subf %161, %168 : vector<16x64xf32>
    %170 = arith.mulf %169, %169 : vector<16x64xf32>
    %cst_48 = arith.constant dense<0.000000e+00> : vector<16xf32>
    %171 = vector.multi_reduction <add>, %170, %cst_48 [1] : vector<16x64xf32> to vector<16xf32>
    %172 = vector.shape_cast %171 : vector<16xf32> to vector<16x1xf32>
    %cst_49 = arith.constant 6.400000e+01 : f32
    %173 = vector.broadcast %cst_49 : f32 to vector<16x1xf32>
    %174 = arith.divf %172, %173 : vector<16x1xf32>
    %175 = vector.broadcast %167 : vector<16x1xf32> to vector<16x64xf32>
    %176 = arith.subf %161, %175 : vector<16x64xf32>
    %cst_50 = arith.constant 9.99999974E-6 : f32
    %177 = vector.broadcast %cst_50 : f32 to vector<16x1xf32>
    %178 = arith.addf %174, %177 : vector<16x1xf32>
    %179 = math.rsqrt %178 : vector<16x1xf32>
    %180 = vector.broadcast %179 : vector<16x1xf32> to vector<16x64xf32>
    %181 = arith.mulf %176, %180 : vector<16x64xf32>
    %182 = vector.broadcast %162 : vector<1x64xf32> to vector<16x64xf32>
    %183 = arith.mulf %181, %182 : vector<16x64xf32>
    %184 = vector.broadcast %163 : vector<1x64xf32> to vector<16x64xf32>
    %185 = arith.addf %183, %184 : vector<16x64xf32>
    %186 = arith.truncf %185 : vector<16x64xf32> to vector<16x64xbf16>
    %c0_51 = arith.constant 0 : index
    %c0_52 = arith.constant 0 : index
    %187 = vector.load %arg8[%c0_51, %c0_52] : memref<64x128xbf16, #tpu.memory_space<vmem>>, vector<64x128xbf16>
    %cst_53 = arith.constant dense<0.000000e+00> : vector<16x128xf32>
    %188 = tpu.matmul %186, %187, %cst_53 {dimension_numbers = #tpu.dot_dimension_numbers<[1], [0], [0], [1], [0, 0, 1, 1], [], []>} : vector<16x64xbf16>, vector<64x128xbf16>, vector<16x128xf32> -> vector<16x128xf32>
    %c0_54 = arith.constant 0 : index
    %c0_55 = arith.constant 0 : index
    %189 = vector.load %arg9[%c0_54, %c0_55] : memref<1x128xf32, #tpu.memory_space<vmem>>, vector<1x128xf32>
    %190 = vector.broadcast %189 : vector<1x128xf32> to vector<16x128xf32>
    %191 = arith.addf %188, %190 : vector<16x128xf32>
    %cst_56 = arith.constant 0.000000e+00 : f32
    %192 = vector.broadcast %cst_56 : f32 to vector<16x128xf32>
    %193 = arith.maximumf %191, %192 : vector<16x128xf32>
    %194 = arith.truncf %193 : vector<16x128xf32> to vector<16x128xbf16>
    %c0_57 = arith.constant 0 : index
    %c0_58 = arith.constant 0 : index
    %195 = vector.load %arg10[%c0_57, %c0_58] : memref<128x64xbf16, #tpu.memory_space<vmem>>, vector<128x64xbf16>
    %cst_59 = arith.constant dense<0.000000e+00> : vector<16x64xf32>
    %196 = tpu.matmul %194, %195, %cst_59 {dimension_numbers = #tpu.dot_dimension_numbers<[1], [0], [0], [1], [0, 0, 1, 1], [], []>} : vector<16x128xbf16>, vector<128x64xbf16>, vector<16x64xf32> -> vector<16x64xf32>
    %c0_60 = arith.constant 0 : index
    %c0_61 = arith.constant 0 : index
    %197 = vector.load %arg11[%c0_60, %c0_61] : memref<1x64xf32, #tpu.memory_space<vmem>>, vector<1x64xf32>
    %198 = vector.broadcast %197 : vector<1x64xf32> to vector<16x64xf32>
    %199 = arith.addf %196, %198 : vector<16x64xf32>
    %200 = arith.addf %161, %199 : vector<16x64xf32>
    %c0_62 = arith.constant 0 : index
    %c0_63 = arith.constant 0 : index
    %c0_64 = arith.constant 0 : index
    %201 = vector.load %arg12[%c0_62, %c0_63, %c0_64] : memref<1x16x64xf32, #tpu.memory_space<vmem>>, vector<1x16x64xf32>
    %202 = vector.shape_cast %201 : vector<1x16x64xf32> to vector<16x64xf32>
    %203 = vector.shape_cast %200 : vector<16x64xf32> to vector<1x16x64xf32>
    tpu.vector_store %arg12[%c0_62, %c0_63, %c0_64], %203 {strides = array<i32>} : memref<1x16x64xf32, #tpu.memory_space<vmem>>, vector<1x16x64xf32>,
    return
  }
  func.func @transform_0(%arg0: i32) -> (i32, i32, i32) {
    %c0_i32 = arith.constant 0 : i32
    %c0_i32_0 = arith.constant 0 : i32
    %c0_i32_1 = arith.constant 0 : i32
    return %arg0, %c0_i32, %c0_i32_0 : i32, i32, i32
  }
  func.func @transform_1(%arg0: i32) -> (i32, i32, i32) {
    %c0_i32 = arith.constant 0 : i32
    %c0_i32_0 = arith.constant 0 : i32
    %c0_i32_1 = arith.constant 0 : i32
    return %arg0, %c0_i32, %c0_i32_0 : i32, i32, i32
  }
  func.func @transform_2(%arg0: i32) -> (i32, i32) {
    %c0_i32 = arith.constant 0 : i32
    %c0_i32_0 = arith.constant 0 : i32
    %c0_i32_1 = arith.constant 0 : i32
    return %c0_i32, %c0_i32_0 : i32, i32
  }
  func.func @transform_3(%arg0: i32) -> (i32, i32) {
    %c0_i32 = arith.constant 0 : i32
    %c0_i32_0 = arith.constant 0 : i32
    %c0_i32_1 = arith.constant 0 : i32
    return %c0_i32, %c0_i32_0 : i32, i32
  }
  func.func @transform_4(%arg0: i32) -> (i32, i32) {
    %c0_i32 = arith.constant 0 : i32
    %c0_i32_0 = arith.constant 0 : i32
    %c0_i32_1 = arith.constant 0 : i32
    return %c0_i32, %c0_i32_0 : i32, i32
  }
  func.func @transform_5(%arg0: i32) -> (i32, i32) {
    %c0_i32 = arith.constant 0 : i32
    %c0_i32_0 = arith.constant 0 : i32
    %c0_i32_1 = arith.constant 0 : i32
    return %c0_i32, %c0_i32_0 : i32, i32
  }
  func.func @transform_6(%arg0: i32) -> (i32, i32) {
    %c0_i32 = arith.constant 0 : i32
    %c0_i32_0 = arith.constant 0 : i32
    %c0_i32_1 = arith.constant 0 : i32
    return %c0_i32, %c0_i32_0 : i32, i32
  }
  func.func @transform_7(%arg0: i32) -> (i32, i32) {
    %c0_i32 = arith.constant 0 : i32
    %c0_i32_0 = arith.constant 0 : i32
    %c0_i32_1 = arith.constant 0 : i32
    return %c0_i32, %c0_i32_0 : i32, i32
  }
  func.func @transform_8(%arg0: i32) -> (i32, i32) {
    %c0_i32 = arith.constant 0 : i32
    %c0_i32_0 = arith.constant 0 : i32
    %c0_i32_1 = arith.constant 0 : i32
    return %c0_i32, %c0_i32_0 : i32, i32
  }
  func.func @transform_9(%arg0: i32) -> (i32, i32) {
    %c0_i32 = arith.constant 0 : i32
    %c0_i32_0 = arith.constant 0 : i32
    %c0_i32_1 = arith.constant 0 : i32
    return %c0_i32, %c0_i32_0 : i32, i32
  }
  func.func @transform_10(%arg0: i32) -> (i32, i32) {
    %c0_i32 = arith.constant 0 : i32
    %c0_i32_0 = arith.constant 0 : i32
    %c0_i32_1 = arith.constant 0 : i32
    return %c0_i32, %c0_i32_0 : i32, i32
  }
  func.func @transform_11(%arg0: i32) -> (i32, i32, i32) {
    %c0_i32 = arith.constant 0 : i32
    %c0_i32_0 = arith.constant 0 : i32
    %c0_i32_1 = arith.constant 0 : i32
    return %arg0, %c0_i32, %c0_i32_0 : i32, i32, i32
  }
}

module attributes {stable_mosaic.version = 11 : i64} {
  func.func @_encode_head_kernel(%arg0: i32, %arg1: memref<1x4x64xf32, #tpu.memory_space<vmem>>, %arg2: memref<4x32xf32, #tpu.memory_space<vmem>>, %arg3: memref<64x32xbf16, #tpu.memory_space<vmem>>, %arg4: memref<1x32xf32, #tpu.memory_space<vmem>>, %arg5: memref<32x32xbf16, #tpu.memory_space<vmem>>, %arg6: memref<1x32xf32, #tpu.memory_space<vmem>>, %arg7: memref<32x32xbf16, #tpu.memory_space<vmem>>, %arg8: memref<1x32xf32, #tpu.memory_space<vmem>>, %arg9: memref<1x4x32xf32, #tpu.memory_space<vmem>>, %arg10: memref<1x4x32xf32, #tpu.memory_space<vmem>>, %arg11: memref<1x4x32xf32, #tpu.memory_space<vmem>>) attributes {dimension_semantics = [#tpu.dimension_semantics<parallel>], iteration_bounds = array<i64: 2>, scalar_prefetch = 0 : i64, scratch_operands = 0 : i64, tpu.core_type = #tpu.core_type<tc>, window_params = [{transform_indices = @transform_0, window_bounds = array<i64: 1, 4, 64>}, {pipeline_mode = #tpu.pipeline_mode<synchronous>, transform_indices = @transform_1, window_bounds = array<i64: 4, 32>}, {pipeline_mode = #tpu.pipeline_mode<synchronous>, transform_indices = @transform_2, window_bounds = array<i64: 64, 32>}, {pipeline_mode = #tpu.pipeline_mode<synchronous>, transform_indices = @transform_3, window_bounds = array<i64: 1, 32>}, {pipeline_mode = #tpu.pipeline_mode<synchronous>, transform_indices = @transform_4, window_bounds = array<i64: 32, 32>}, {pipeline_mode = #tpu.pipeline_mode<synchronous>, transform_indices = @transform_5, window_bounds = array<i64: 1, 32>}, {pipeline_mode = #tpu.pipeline_mode<synchronous>, transform_indices = @transform_6, window_bounds = array<i64: 32, 32>}, {pipeline_mode = #tpu.pipeline_mode<synchronous>, transform_indices = @transform_7, window_bounds = array<i64: 1, 32>}, {transform_indices = @transform_8, window_bounds = array<i64: 1, 4, 32>}, {transform_indices = @transform_9, window_bounds = array<i64: 1, 4, 32>}, {transform_indices = @transform_10, window_bounds = array<i64: 1, 4, 32>}]} {
    %c0 = arith.constant 0 : index
    %c0_0 = arith.constant 0 : index
    %c0_1 = arith.constant 0 : index
    %0 = vector.load %arg1[%c0, %c0_0, %c0_1] : memref<1x4x64xf32, #tpu.memory_space<vmem>>, vector<1x4x64xf32>
    %1 = vector.shape_cast %0 : vector<1x4x64xf32> to vector<4x64xf32>
    %2 = arith.truncf %1 : vector<4x64xf32> to vector<4x64xbf16>
    %c0_2 = arith.constant 0 : index
    %c0_3 = arith.constant 0 : index
    %3 = vector.load %arg3[%c0_2, %c0_3] : memref<64x32xbf16, #tpu.memory_space<vmem>>, vector<64x32xbf16>
    %cst = arith.constant dense<0.000000e+00> : vector<4x32xf32>
    %4 = tpu.matmul %2, %3, %cst {dimension_numbers = #tpu.dot_dimension_numbers<[1], [0], [0], [1], [0, 0, 1, 1], [], []>} : vector<4x64xbf16>, vector<64x32xbf16>, vector<4x32xf32> -> vector<4x32xf32>
    %c0_4 = arith.constant 0 : index
    %c0_5 = arith.constant 0 : index
    %5 = vector.load %arg4[%c0_4, %c0_5] : memref<1x32xf32, #tpu.memory_space<vmem>>, vector<1x32xf32>
    %6 = vector.broadcast %5 : vector<1x32xf32> to vector<4x32xf32>
    %7 = arith.addf %4, %6 : vector<4x32xf32>
    %c0_6 = arith.constant 0 : index
    %c0_7 = arith.constant 0 : index
    %c0_8 = arith.constant 0 : index
    %8 = vector.load %arg9[%c0_6, %c0_7, %c0_8] : memref<1x4x32xf32, #tpu.memory_space<vmem>>, vector<1x4x32xf32>
    %9 = vector.shape_cast %8 : vector<1x4x32xf32> to vector<4x32xf32>
    %10 = vector.shape_cast %7 : vector<4x32xf32> to vector<1x4x32xf32>
    tpu.vector_store %arg9[%c0_6, %c0_7, %c0_8], %10 {strides = array<i32>} : memref<1x4x32xf32, #tpu.memory_space<vmem>>, vector<1x4x32xf32>,
    %11 = arith.truncf %7 : vector<4x32xf32> to vector<4x32xbf16>
    %c0_9 = arith.constant 0 : index
    %c0_10 = arith.constant 0 : index
    %12 = vector.load %arg7[%c0_9, %c0_10] : memref<32x32xbf16, #tpu.memory_space<vmem>>, vector<32x32xbf16>
    %cst_11 = arith.constant dense<0.000000e+00> : vector<4x32xf32>
    %13 = tpu.matmul %11, %12, %cst_11 {dimension_numbers = #tpu.dot_dimension_numbers<[1], [0], [0], [1], [0, 0, 1, 1], [], []>} : vector<4x32xbf16>, vector<32x32xbf16>, vector<4x32xf32> -> vector<4x32xf32>
    %c0_12 = arith.constant 0 : index
    %c0_13 = arith.constant 0 : index
    %14 = vector.load %arg8[%c0_12, %c0_13] : memref<1x32xf32, #tpu.memory_space<vmem>>, vector<1x32xf32>
    %15 = vector.broadcast %14 : vector<1x32xf32> to vector<4x32xf32>
    %16 = arith.addf %13, %15 : vector<4x32xf32>
    %c0_14 = arith.constant 0 : index
    %c0_15 = arith.constant 0 : index
    %c0_16 = arith.constant 0 : index
    %17 = vector.load %arg11[%c0_14, %c0_15, %c0_16] : memref<1x4x32xf32, #tpu.memory_space<vmem>>, vector<1x4x32xf32>
    %18 = vector.shape_cast %17 : vector<1x4x32xf32> to vector<4x32xf32>
    %19 = vector.shape_cast %16 : vector<4x32xf32> to vector<1x4x32xf32>
    tpu.vector_store %arg11[%c0_14, %c0_15, %c0_16], %19 {strides = array<i32>} : memref<1x4x32xf32, #tpu.memory_space<vmem>>, vector<1x4x32xf32>,
    %c0_17 = arith.constant 0 : index
    %c0_18 = arith.constant 0 : index
    %20 = vector.load %arg2[%c0_17, %c0_18] : memref<4x32xf32, #tpu.memory_space<vmem>>, vector<4x32xf32>
    %21 = arith.truncf %20 : vector<4x32xf32> to vector<4x32xbf16>
    %c0_19 = arith.constant 0 : index
    %c0_20 = arith.constant 0 : index
    %22 = vector.load %arg5[%c0_19, %c0_20] : memref<32x32xbf16, #tpu.memory_space<vmem>>, vector<32x32xbf16>
    %cst_21 = arith.constant dense<0.000000e+00> : vector<4x32xf32>
    %23 = tpu.matmul %21, %22, %cst_21 {dimension_numbers = #tpu.dot_dimension_numbers<[1], [0], [0], [1], [0, 0, 1, 1], [], []>} : vector<4x32xbf16>, vector<32x32xbf16>, vector<4x32xf32> -> vector<4x32xf32>
    %c0_22 = arith.constant 0 : index
    %c0_23 = arith.constant 0 : index
    %24 = vector.load %arg6[%c0_22, %c0_23] : memref<1x32xf32, #tpu.memory_space<vmem>>, vector<1x32xf32>
    %25 = vector.broadcast %24 : vector<1x32xf32> to vector<4x32xf32>
    %26 = arith.addf %23, %25 : vector<4x32xf32>
    %c0_24 = arith.constant 0 : index
    %c0_25 = arith.constant 0 : index
    %c0_26 = arith.constant 0 : index
    %27 = vector.load %arg10[%c0_24, %c0_25, %c0_26] : memref<1x4x32xf32, #tpu.memory_space<vmem>>, vector<1x4x32xf32>
    %28 = vector.shape_cast %27 : vector<1x4x32xf32> to vector<4x32xf32>
    %29 = vector.shape_cast %26 : vector<4x32xf32> to vector<1x4x32xf32>
    tpu.vector_store %arg10[%c0_24, %c0_25, %c0_26], %29 {strides = array<i32>} : memref<1x4x32xf32, #tpu.memory_space<vmem>>, vector<1x4x32xf32>,
    return
  }
  func.func @transform_0(%arg0: i32) -> (i32, i32, i32) {
    %c0_i32 = arith.constant 0 : i32
    %c0_i32_0 = arith.constant 0 : i32
    %c0_i32_1 = arith.constant 0 : i32
    return %arg0, %c0_i32, %c0_i32_0 : i32, i32, i32
  }
  func.func @transform_1(%arg0: i32) -> (i32, i32) {
    %c0_i32 = arith.constant 0 : i32
    %c0_i32_0 = arith.constant 0 : i32
    %c0_i32_1 = arith.constant 0 : i32
    return %c0_i32, %c0_i32_0 : i32, i32
  }
  func.func @transform_2(%arg0: i32) -> (i32, i32) {
    %c0_i32 = arith.constant 0 : i32
    %c0_i32_0 = arith.constant 0 : i32
    %c0_i32_1 = arith.constant 0 : i32
    return %c0_i32, %c0_i32_0 : i32, i32
  }
  func.func @transform_3(%arg0: i32) -> (i32, i32) {
    %c0_i32 = arith.constant 0 : i32
    %c0_i32_0 = arith.constant 0 : i32
    %c0_i32_1 = arith.constant 0 : i32
    return %c0_i32, %c0_i32_0 : i32, i32
  }
  func.func @transform_4(%arg0: i32) -> (i32, i32) {
    %c0_i32 = arith.constant 0 : i32
    %c0_i32_0 = arith.constant 0 : i32
    %c0_i32_1 = arith.constant 0 : i32
    return %c0_i32, %c0_i32_0 : i32, i32
  }
  func.func @transform_5(%arg0: i32) -> (i32, i32) {
    %c0_i32 = arith.constant 0 : i32
    %c0_i32_0 = arith.constant 0 : i32
    %c0_i32_1 = arith.constant 0 : i32
    return %c0_i32, %c0_i32_0 : i32, i32
  }
  func.func @transform_6(%arg0: i32) -> (i32, i32) {
    %c0_i32 = arith.constant 0 : i32
    %c0_i32_0 = arith.constant 0 : i32
    %c0_i32_1 = arith.constant 0 : i32
    return %c0_i32, %c0_i32_0 : i32, i32
  }
  func.func @transform_7(%arg0: i32) -> (i32, i32) {
    %c0_i32 = arith.constant 0 : i32
    %c0_i32_0 = arith.constant 0 : i32
    %c0_i32_1 = arith.constant 0 : i32
    return %c0_i32, %c0_i32_0 : i32, i32
  }
  func.func @transform_8(%arg0: i32) -> (i32, i32, i32) {
    %c0_i32 = arith.constant 0 : i32
    %c0_i32_0 = arith.constant 0 : i32
    %c0_i32_1 = arith.constant 0 : i32
    return %arg0, %c0_i32, %c0_i32_0 : i32, i32, i32
  }
  func.func @transform_9(%arg0: i32) -> (i32, i32, i32) {
    %c0_i32 = arith.constant 0 : i32
    %c0_i32_0 = arith.constant 0 : i32
    %c0_i32_1 = arith.constant 0 : i32
    return %arg0, %c0_i32, %c0_i32_0 : i32, i32, i32
  }
  func.func @transform_10(%arg0: i32) -> (i32, i32, i32) {
    %c0_i32 = arith.constant 0 : i32
    %c0_i32_0 = arith.constant 0 : i32
    %c0_i32_1 = arith.constant 0 : i32
    return %arg0, %c0_i32, %c0_i32_0 : i32, i32, i32
  }
}

module attributes {stable_mosaic.version = 11 : i64} {
  func.func @_decoder_layer_kernel(%arg0: i32, %arg1: memref<1x4x32xf32, #tpu.memory_space<vmem>>, %arg2: memref<1x4x32xf32, #tpu.memory_space<vmem>>, %arg3: memref<1x1x4xf32, #tpu.memory_space<vmem>>, %arg4: memref<1x1x4xf32, #tpu.memory_space<vmem>>, %arg5: memref<6x32xf32, #tpu.memory_space<vmem>>, %arg6: memref<32x96xbf16, #tpu.memory_space<vmem>>, %arg7: memref<1x96xf32, #tpu.memory_space<vmem>>, %arg8: memref<32x32xbf16, #tpu.memory_space<vmem>>, %arg9: memref<1x32xf32, #tpu.memory_space<vmem>>, %arg10: memref<32x32xbf16, #tpu.memory_space<vmem>>, %arg11: memref<1x32xf32, #tpu.memory_space<vmem>>, %arg12: memref<32x64xbf16, #tpu.memory_space<vmem>>, %arg13: memref<1x64xf32, #tpu.memory_space<vmem>>, %arg14: memref<32x32xbf16, #tpu.memory_space<vmem>>, %arg15: memref<1x32xf32, #tpu.memory_space<vmem>>, %arg16: memref<32x32xbf16, #tpu.memory_space<vmem>>, %arg17: memref<1x32xf32, #tpu.memory_space<vmem>>, %arg18: memref<32x32xbf16, #tpu.memory_space<vmem>>, %arg19: memref<1x32xf32, #tpu.memory_space<vmem>>, %arg20: memref<1x4x32xf32, #tpu.memory_space<vmem>>) attributes {dimension_semantics = [#tpu.dimension_semantics<parallel>], iteration_bounds = array<i64: 2>, scalar_prefetch = 0 : i64, scratch_operands = 0 : i64, tpu.core_type = #tpu.core_type<tc>, window_params = [{transform_indices = @transform_0, window_bounds = array<i64: 1, 4, 32>}, {transform_indices = @transform_1, window_bounds = array<i64: 1, 4, 32>}, {transform_indices = @transform_2, window_bounds = array<i64: 1, 1, 4>}, {transform_indices = @transform_3, window_bounds = array<i64: 1, 1, 4>}, {pipeline_mode = #tpu.pipeline_mode<synchronous>, transform_indices = @transform_4, window_bounds = array<i64: 6, 32>}, {pipeline_mode = #tpu.pipeline_mode<synchronous>, transform_indices = @transform_5, window_bounds = array<i64: 32, 96>}, {pipeline_mode = #tpu.pipeline_mode<synchronous>, transform_indices = @transform_6, window_bounds = array<i64: 1, 96>}, {pipeline_mode = #tpu.pipeline_mode<synchronous>, transform_indices = @transform_7, window_bounds = array<i64: 32, 32>}, {pipeline_mode = #tpu.pipeline_mode<synchronous>, transform_indices = @transform_8, window_bounds = array<i64: 1, 32>}, {pipeline_mode = #tpu.pipeline_mode<synchronous>, transform_indices = @transform_9, window_bounds = array<i64: 32, 32>}, {pipeline_mode = #tpu.pipeline_mode<synchronous>, transform_indices = @transform_10, window_bounds = array<i64: 1, 32>}, {pipeline_mode = #tpu.pipeline_mode<synchronous>, transform_indices = @transform_11, window_bounds = array<i64: 32, 64>}, {pipeline_mode = #tpu.pipeline_mode<synchronous>, transform_indices = @transform_12, window_bounds = array<i64: 1, 64>}, {pipeline_mode = #tpu.pipeline_mode<synchronous>, transform_indices = @transform_13, window_bounds = array<i64: 32, 32>}, {pipeline_mode = #tpu.pipeline_mode<synchronous>, transform_indices = @transform_14, window_bounds = array<i64: 1, 32>}, {pipeline_mode = #tpu.pipeline_mode<synchronous>, transform_indices = @transform_15, window_bounds = array<i64: 32, 32>}, {pipeline_mode = #tpu.pipeline_mode<synchronous>, transform_indices = @transform_16, window_bounds = array<i64: 1, 32>}, {pipeline_mode = #tpu.pipeline_mode<synchronous>, transform_indices = @transform_17, window_bounds = array<i64: 32, 32>}, {pipeline_mode = #tpu.pipeline_mode<synchronous>, transform_indices = @transform_18, window_bounds = array<i64: 1, 32>}, {transform_indices = @transform_19, window_bounds = array<i64: 1, 4, 32>}]} {
    %c0 = arith.constant 0 : index
    %c0_0 = arith.constant 0 : index
    %c0_1 = arith.constant 0 : index
    %0 = vector.load %arg1[%c0, %c0_0, %c0_1] : memref<1x4x32xf32, #tpu.memory_space<vmem>>, vector<1x4x32xf32>
    %1 = vector.shape_cast %0 : vector<1x4x32xf32> to vector<4x32xf32>
    %c0_2 = arith.constant 0 : index
    %c0_3 = arith.constant 0 : index
    %c0_4 = arith.constant 0 : index
    %2 = vector.load %arg2[%c0_2, %c0_3, %c0_4] : memref<1x4x32xf32, #tpu.memory_space<vmem>>, vector<1x4x32xf32>
    %3 = vector.shape_cast %2 : vector<1x4x32xf32> to vector<4x32xf32>
    %c0_5 = arith.constant 0 : index
    %c0_6 = arith.constant 0 : index
    %c0_7 = arith.constant 0 : index
    %4 = vector.load %arg3[%c0_5, %c0_6, %c0_7] : memref<1x1x4xf32, #tpu.memory_space<vmem>>, vector<1x1x4xf32>
    %5 = vector.shape_cast %4 : vector<1x1x4xf32> to vector<1x4xf32>
    %c0_8 = arith.constant 0 : index
    %c0_9 = arith.constant 0 : index
    %c0_10 = arith.constant 0 : index
    %6 = vector.load %arg4[%c0_8, %c0_9, %c0_10] : memref<1x1x4xf32, #tpu.memory_space<vmem>>, vector<1x1x4xf32>
    %7 = vector.shape_cast %6 : vector<1x1x4xf32> to vector<1x4xf32>
    %c0_11 = arith.constant 0 : index
    %c0_12 = arith.constant 0 : index
    %8 = vector.load %arg5[%c0_11, %c0_12] : memref<6x32xf32, #tpu.memory_space<vmem>>, vector<6x32xf32>
    %9 = vector.extract_strided_slice %8 {offsets = [0, 0], sizes = [1, 32], strides = [1, 1]} : vector<6x32xf32> to vector<1x32xf32>
    %10 = vector.extract_strided_slice %8 {offsets = [1, 0], sizes = [1, 32], strides = [1, 1]} : vector<6x32xf32> to vector<1x32xf32>
    %cst = arith.constant dense<0.000000e+00> : vector<4xf32>
    %11 = vector.multi_reduction <add>, %1, %cst [1] : vector<4x32xf32> to vector<4xf32>
    %12 = vector.shape_cast %11 : vector<4xf32> to vector<4x1xf32>
    %cst_13 = arith.constant 3.200000e+01 : f32
    %13 = vector.broadcast %cst_13 : f32 to vector<4x1xf32>
    %14 = arith.divf %12, %13 : vector<4x1xf32>
    %15 = vector.broadcast %14 : vector<4x1xf32> to vector<4x32xf32>
    %16 = arith.subf %1, %15 : vector<4x32xf32>
    %17 = arith.mulf %16, %16 : vector<4x32xf32>
    %cst_14 = arith.constant dense<0.000000e+00> : vector<4xf32>
    %18 = vector.multi_reduction <add>, %17, %cst_14 [1] : vector<4x32xf32> to vector<4xf32>
    %19 = vector.shape_cast %18 : vector<4xf32> to vector<4x1xf32>
    %cst_15 = arith.constant 3.200000e+01 : f32
    %20 = vector.broadcast %cst_15 : f32 to vector<4x1xf32>
    %21 = arith.divf %19, %20 : vector<4x1xf32>
    %22 = vector.broadcast %14 : vector<4x1xf32> to vector<4x32xf32>
    %23 = arith.subf %1, %22 : vector<4x32xf32>
    %cst_16 = arith.constant 9.99999974E-6 : f32
    %24 = vector.broadcast %cst_16 : f32 to vector<4x1xf32>
    %25 = arith.addf %21, %24 : vector<4x1xf32>
    %26 = math.rsqrt %25 : vector<4x1xf32>
    %27 = vector.broadcast %26 : vector<4x1xf32> to vector<4x32xf32>
    %28 = arith.mulf %23, %27 : vector<4x32xf32>
    %29 = vector.broadcast %9 : vector<1x32xf32> to vector<4x32xf32>
    %30 = arith.mulf %28, %29 : vector<4x32xf32>
    %31 = vector.broadcast %10 : vector<1x32xf32> to vector<4x32xf32>
    %32 = arith.addf %30, %31 : vector<4x32xf32>
    %33 = arith.truncf %32 : vector<4x32xf32> to vector<4x32xbf16>
    %c0_17 = arith.constant 0 : index
    %c0_18 = arith.constant 0 : index
    %34 = vector.load %arg6[%c0_17, %c0_18] : memref<32x96xbf16, #tpu.memory_space<vmem>>, vector<32x96xbf16>
    %cst_19 = arith.constant dense<0.000000e+00> : vector<4x96xf32>
    %35 = tpu.matmul %33, %34, %cst_19 {dimension_numbers = #tpu.dot_dimension_numbers<[1], [0], [0], [1], [0, 0, 1, 1], [], []>} : vector<4x32xbf16>, vector<32x96xbf16>, vector<4x96xf32> -> vector<4x96xf32>
    %c0_20 = arith.constant 0 : index
    %c0_21 = arith.constant 0 : index
    %36 = vector.load %arg7[%c0_20, %c0_21] : memref<1x96xf32, #tpu.memory_space<vmem>>, vector<1x96xf32>
    %37 = vector.broadcast %36 : vector<1x96xf32> to vector<4x96xf32>
    %38 = arith.addf %35, %37 : vector<4x96xf32>
    %39 = vector.extract_strided_slice %38 {offsets = [0, 0], sizes = [4, 32], strides = [1, 1]} : vector<4x96xf32> to vector<4x32xf32>
    %40 = vector.extract_strided_slice %38 {offsets = [0, 32], sizes = [4, 32], strides = [1, 1]} : vector<4x96xf32> to vector<4x32xf32>
    %41 = vector.extract_strided_slice %38 {offsets = [0, 64], sizes = [4, 32], strides = [1, 1]} : vector<4x96xf32> to vector<4x32xf32>
    %42 = vector.extract_strided_slice %39 {offsets = [0, 0], sizes = [4, 8], strides = [1, 1]} : vector<4x32xf32> to vector<4x8xf32>
    %43 = arith.truncf %42 : vector<4x8xf32> to vector<4x8xbf16>
    %44 = vector.extract_strided_slice %40 {offsets = [0, 0], sizes = [4, 8], strides = [1, 1]} : vector<4x32xf32> to vector<4x8xf32>
    %45 = arith.truncf %44 : vector<4x8xf32> to vector<4x8xbf16>
    %46 = vector.extract_strided_slice %41 {offsets = [0, 0], sizes = [4, 8], strides = [1, 1]} : vector<4x32xf32> to vector<4x8xf32>
    %47 = arith.truncf %46 : vector<4x8xf32> to vector<4x8xbf16>
    %cst_22 = arith.constant dense<0.000000e+00> : vector<4x4xf32>
    %48 = tpu.matmul %43, %45, %cst_22 {dimension_numbers = #tpu.dot_dimension_numbers<[1], [1], [0], [0], [0, 0, 1, 0], [], []>} : vector<4x8xbf16>, vector<4x8xbf16>, vector<4x4xf32> -> vector<4x4xf32>
    %cst_23 = arith.constant 0.353553385 : f32
    %49 = vector.broadcast %cst_23 : f32 to vector<4x4xf32>
    %50 = arith.mulf %48, %49 : vector<4x4xf32>
    %51 = vector.broadcast %5 : vector<1x4xf32> to vector<4x4xf32>
    %52 = arith.addf %50, %51 : vector<4x4xf32>
    %cst_24 = arith.constant dense<0xFF800000> : vector<4xf32>
    %53 = vector.multi_reduction <maximumf>, %52, %cst_24 [1] : vector<4x4xf32> to vector<4xf32>
    %54 = vector.shape_cast %53 : vector<4xf32> to vector<4x1xf32>
    %55 = vector.broadcast %54 : vector<4x1xf32> to vector<4x4xf32>
    %56 = arith.subf %52, %55 : vector<4x4xf32>
    %57 = math.exp %56 : vector<4x4xf32>
    %cst_25 = arith.constant dense<0.000000e+00> : vector<4xf32>
    %58 = vector.multi_reduction <add>, %57, %cst_25 [1] : vector<4x4xf32> to vector<4xf32>
    %59 = vector.shape_cast %58 : vector<4xf32> to vector<4x1xf32>
    %60 = tpu.reciprocal %59 {approx = true} : vector<4x1xf32> -> vector<4x1xf32>
    %61 = vector.broadcast %60 : vector<4x1xf32> to vector<4x4xf32>
    %62 = arith.mulf %57, %61 : vector<4x4xf32>
    %63 = arith.truncf %62 : vector<4x4xf32> to vector<4x4xbf16>
    %cst_26 = arith.constant dense<0.000000e+00> : vector<4x8xf32>
    %64 = tpu.matmul %63, %47, %cst_26 {dimension_numbers = #tpu.dot_dimension_numbers<[1], [0], [0], [1], [0, 0, 1, 1], [], []>} : vector<4x4xbf16>, vector<4x8xbf16>, vector<4x8xf32> -> vector<4x8xf32>
    %65 = vector.extract_strided_slice %39 {offsets = [0, 8], sizes = [4, 8], strides = [1, 1]} : vector<4x32xf32> to vector<4x8xf32>
    %66 = arith.truncf %65 : vector<4x8xf32> to vector<4x8xbf16>
    %67 = vector.extract_strided_slice %40 {offsets = [0, 8], sizes = [4, 8], strides = [1, 1]} : vector<4x32xf32> to vector<4x8xf32>
    %68 = arith.truncf %67 : vector<4x8xf32> to vector<4x8xbf16>
    %69 = vector.extract_strided_slice %41 {offsets = [0, 8], sizes = [4, 8], strides = [1, 1]} : vector<4x32xf32> to vector<4x8xf32>
    %70 = arith.truncf %69 : vector<4x8xf32> to vector<4x8xbf16>
    %cst_27 = arith.constant dense<0.000000e+00> : vector<4x4xf32>
    %71 = tpu.matmul %66, %68, %cst_27 {dimension_numbers = #tpu.dot_dimension_numbers<[1], [1], [0], [0], [0, 0, 1, 0], [], []>} : vector<4x8xbf16>, vector<4x8xbf16>, vector<4x4xf32> -> vector<4x4xf32>
    %cst_28 = arith.constant 0.353553385 : f32
    %72 = vector.broadcast %cst_28 : f32 to vector<4x4xf32>
    %73 = arith.mulf %71, %72 : vector<4x4xf32>
    %74 = vector.broadcast %5 : vector<1x4xf32> to vector<4x4xf32>
    %75 = arith.addf %73, %74 : vector<4x4xf32>
    %cst_29 = arith.constant dense<0xFF800000> : vector<4xf32>
    %76 = vector.multi_reduction <maximumf>, %75, %cst_29 [1] : vector<4x4xf32> to vector<4xf32>
    %77 = vector.shape_cast %76 : vector<4xf32> to vector<4x1xf32>
    %78 = vector.broadcast %77 : vector<4x1xf32> to vector<4x4xf32>
    %79 = arith.subf %75, %78 : vector<4x4xf32>
    %80 = math.exp %79 : vector<4x4xf32>
    %cst_30 = arith.constant dense<0.000000e+00> : vector<4xf32>
    %81 = vector.multi_reduction <add>, %80, %cst_30 [1] : vector<4x4xf32> to vector<4xf32>
    %82 = vector.shape_cast %81 : vector<4xf32> to vector<4x1xf32>
    %83 = tpu.reciprocal %82 {approx = true} : vector<4x1xf32> -> vector<4x1xf32>
    %84 = vector.broadcast %83 : vector<4x1xf32> to vector<4x4xf32>
    %85 = arith.mulf %80, %84 : vector<4x4xf32>
    %86 = arith.truncf %85 : vector<4x4xf32> to vector<4x4xbf16>
    %cst_31 = arith.constant dense<0.000000e+00> : vector<4x8xf32>
    %87 = tpu.matmul %86, %70, %cst_31 {dimension_numbers = #tpu.dot_dimension_numbers<[1], [0], [0], [1], [0, 0, 1, 1], [], []>} : vector<4x4xbf16>, vector<4x8xbf16>, vector<4x8xf32> -> vector<4x8xf32>
    %88 = vector.extract_strided_slice %39 {offsets = [0, 16], sizes = [4, 8], strides = [1, 1]} : vector<4x32xf32> to vector<4x8xf32>
    %89 = arith.truncf %88 : vector<4x8xf32> to vector<4x8xbf16>
    %90 = vector.extract_strided_slice %40 {offsets = [0, 16], sizes = [4, 8], strides = [1, 1]} : vector<4x32xf32> to vector<4x8xf32>
    %91 = arith.truncf %90 : vector<4x8xf32> to vector<4x8xbf16>
    %92 = vector.extract_strided_slice %41 {offsets = [0, 16], sizes = [4, 8], strides = [1, 1]} : vector<4x32xf32> to vector<4x8xf32>
    %93 = arith.truncf %92 : vector<4x8xf32> to vector<4x8xbf16>
    %cst_32 = arith.constant dense<0.000000e+00> : vector<4x4xf32>
    %94 = tpu.matmul %89, %91, %cst_32 {dimension_numbers = #tpu.dot_dimension_numbers<[1], [1], [0], [0], [0, 0, 1, 0], [], []>} : vector<4x8xbf16>, vector<4x8xbf16>, vector<4x4xf32> -> vector<4x4xf32>
    %cst_33 = arith.constant 0.353553385 : f32
    %95 = vector.broadcast %cst_33 : f32 to vector<4x4xf32>
    %96 = arith.mulf %94, %95 : vector<4x4xf32>
    %97 = vector.broadcast %5 : vector<1x4xf32> to vector<4x4xf32>
    %98 = arith.addf %96, %97 : vector<4x4xf32>
    %cst_34 = arith.constant dense<0xFF800000> : vector<4xf32>
    %99 = vector.multi_reduction <maximumf>, %98, %cst_34 [1] : vector<4x4xf32> to vector<4xf32>
    %100 = vector.shape_cast %99 : vector<4xf32> to vector<4x1xf32>
    %101 = vector.broadcast %100 : vector<4x1xf32> to vector<4x4xf32>
    %102 = arith.subf %98, %101 : vector<4x4xf32>
    %103 = math.exp %102 : vector<4x4xf32>
    %cst_35 = arith.constant dense<0.000000e+00> : vector<4xf32>
    %104 = vector.multi_reduction <add>, %103, %cst_35 [1] : vector<4x4xf32> to vector<4xf32>
    %105 = vector.shape_cast %104 : vector<4xf32> to vector<4x1xf32>
    %106 = tpu.reciprocal %105 {approx = true} : vector<4x1xf32> -> vector<4x1xf32>
    %107 = vector.broadcast %106 : vector<4x1xf32> to vector<4x4xf32>
    %108 = arith.mulf %103, %107 : vector<4x4xf32>
    %109 = arith.truncf %108 : vector<4x4xf32> to vector<4x4xbf16>
    %cst_36 = arith.constant dense<0.000000e+00> : vector<4x8xf32>
    %110 = tpu.matmul %109, %93, %cst_36 {dimension_numbers = #tpu.dot_dimension_numbers<[1], [0], [0], [1], [0, 0, 1, 1], [], []>} : vector<4x4xbf16>, vector<4x8xbf16>, vector<4x8xf32> -> vector<4x8xf32>
    %111 = vector.extract_strided_slice %39 {offsets = [0, 24], sizes = [4, 8], strides = [1, 1]} : vector<4x32xf32> to vector<4x8xf32>
    %112 = arith.truncf %111 : vector<4x8xf32> to vector<4x8xbf16>
    %113 = vector.extract_strided_slice %40 {offsets = [0, 24], sizes = [4, 8], strides = [1, 1]} : vector<4x32xf32> to vector<4x8xf32>
    %114 = arith.truncf %113 : vector<4x8xf32> to vector<4x8xbf16>
    %115 = vector.extract_strided_slice %41 {offsets = [0, 24], sizes = [4, 8], strides = [1, 1]} : vector<4x32xf32> to vector<4x8xf32>
    %116 = arith.truncf %115 : vector<4x8xf32> to vector<4x8xbf16>
    %cst_37 = arith.constant dense<0.000000e+00> : vector<4x4xf32>
    %117 = tpu.matmul %112, %114, %cst_37 {dimension_numbers = #tpu.dot_dimension_numbers<[1], [1], [0], [0], [0, 0, 1, 0], [], []>} : vector<4x8xbf16>, vector<4x8xbf16>, vector<4x4xf32> -> vector<4x4xf32>
    %cst_38 = arith.constant 0.353553385 : f32
    %118 = vector.broadcast %cst_38 : f32 to vector<4x4xf32>
    %119 = arith.mulf %117, %118 : vector<4x4xf32>
    %120 = vector.broadcast %5 : vector<1x4xf32> to vector<4x4xf32>
    %121 = arith.addf %119, %120 : vector<4x4xf32>
    %cst_39 = arith.constant dense<0xFF800000> : vector<4xf32>
    %122 = vector.multi_reduction <maximumf>, %121, %cst_39 [1] : vector<4x4xf32> to vector<4xf32>
    %123 = vector.shape_cast %122 : vector<4xf32> to vector<4x1xf32>
    %124 = vector.broadcast %123 : vector<4x1xf32> to vector<4x4xf32>
    %125 = arith.subf %121, %124 : vector<4x4xf32>
    %126 = math.exp %125 : vector<4x4xf32>
    %cst_40 = arith.constant dense<0.000000e+00> : vector<4xf32>
    %127 = vector.multi_reduction <add>, %126, %cst_40 [1] : vector<4x4xf32> to vector<4xf32>
    %128 = vector.shape_cast %127 : vector<4xf32> to vector<4x1xf32>
    %129 = tpu.reciprocal %128 {approx = true} : vector<4x1xf32> -> vector<4x1xf32>
    %130 = vector.broadcast %129 : vector<4x1xf32> to vector<4x4xf32>
    %131 = arith.mulf %126, %130 : vector<4x4xf32>
    %132 = arith.truncf %131 : vector<4x4xf32> to vector<4x4xbf16>
    %cst_41 = arith.constant dense<0.000000e+00> : vector<4x8xf32>
    %133 = tpu.matmul %132, %116, %cst_41 {dimension_numbers = #tpu.dot_dimension_numbers<[1], [0], [0], [1], [0, 0, 1, 1], [], []>} : vector<4x4xbf16>, vector<4x8xbf16>, vector<4x8xf32> -> vector<4x8xf32>
    %134 = tpu.concatenate %64, %87, %110, %133 in 1 : vector<4x8xf32>, vector<4x8xf32>, vector<4x8xf32>, vector<4x8xf32> -> vector<4x32xf32>
    %135 = arith.truncf %134 : vector<4x32xf32> to vector<4x32xbf16>
    %c0_42 = arith.constant 0 : index
    %c0_43 = arith.constant 0 : index
    %136 = vector.load %arg8[%c0_42, %c0_43] : memref<32x32xbf16, #tpu.memory_space<vmem>>, vector<32x32xbf16>
    %cst_44 = arith.constant dense<0.000000e+00> : vector<4x32xf32>
    %137 = tpu.matmul %135, %136, %cst_44 {dimension_numbers = #tpu.dot_dimension_numbers<[1], [0], [0], [1], [0, 0, 1, 1], [], []>} : vector<4x32xbf16>, vector<32x32xbf16>, vector<4x32xf32> -> vector<4x32xf32>
    %c0_45 = arith.constant 0 : index
    %c0_46 = arith.constant 0 : index
    %138 = vector.load %arg9[%c0_45, %c0_46] : memref<1x32xf32, #tpu.memory_space<vmem>>, vector<1x32xf32>
    %139 = vector.broadcast %138 : vector<1x32xf32> to vector<4x32xf32>
    %140 = arith.addf %137, %139 : vector<4x32xf32>
    %141 = arith.addf %1, %140 : vector<4x32xf32>
    %142 = vector.extract_strided_slice %8 {offsets = [2, 0], sizes = [1, 32], strides = [1, 1]} : vector<6x32xf32> to vector<1x32xf32>
    %143 = vector.extract_strided_slice %8 {offsets = [3, 0], sizes = [1, 32], strides = [1, 1]} : vector<6x32xf32> to vector<1x32xf32>
    %cst_47 = arith.constant dense<0.000000e+00> : vector<4xf32>
    %144 = vector.multi_reduction <add>, %141, %cst_47 [1] : vector<4x32xf32> to vector<4xf32>
    %145 = vector.shape_cast %144 : vector<4xf32> to vector<4x1xf32>
    %cst_48 = arith.constant 3.200000e+01 : f32
    %146 = vector.broadcast %cst_48 : f32 to vector<4x1xf32>
    %147 = arith.divf %145, %146 : vector<4x1xf32>
    %148 = vector.broadcast %147 : vector<4x1xf32> to vector<4x32xf32>
    %149 = arith.subf %141, %148 : vector<4x32xf32>
    %150 = arith.mulf %149, %149 : vector<4x32xf32>
    %cst_49 = arith.constant dense<0.000000e+00> : vector<4xf32>
    %151 = vector.multi_reduction <add>, %150, %cst_49 [1] : vector<4x32xf32> to vector<4xf32>
    %152 = vector.shape_cast %151 : vector<4xf32> to vector<4x1xf32>
    %cst_50 = arith.constant 3.200000e+01 : f32
    %153 = vector.broadcast %cst_50 : f32 to vector<4x1xf32>
    %154 = arith.divf %152, %153 : vector<4x1xf32>
    %155 = vector.broadcast %147 : vector<4x1xf32> to vector<4x32xf32>
    %156 = arith.subf %141, %155 : vector<4x32xf32>
    %cst_51 = arith.constant 9.99999974E-6 : f32
    %157 = vector.broadcast %cst_51 : f32 to vector<4x1xf32>
    %158 = arith.addf %154, %157 : vector<4x1xf32>
    %159 = math.rsqrt %158 : vector<4x1xf32>
    %160 = vector.broadcast %159 : vector<4x1xf32> to vector<4x32xf32>
    %161 = arith.mulf %156, %160 : vector<4x32xf32>
    %162 = vector.broadcast %142 : vector<1x32xf32> to vector<4x32xf32>
    %163 = arith.mulf %161, %162 : vector<4x32xf32>
    %164 = vector.broadcast %143 : vector<1x32xf32> to vector<4x32xf32>
    %165 = arith.addf %163, %164 : vector<4x32xf32>
    %166 = arith.truncf %165 : vector<4x32xf32> to vector<4x32xbf16>
    %c0_52 = arith.constant 0 : index
    %c0_53 = arith.constant 0 : index
    %167 = vector.load %arg10[%c0_52, %c0_53] : memref<32x32xbf16, #tpu.memory_space<vmem>>, vector<32x32xbf16>
    %cst_54 = arith.constant dense<0.000000e+00> : vector<4x32xf32>
    %168 = tpu.matmul %166, %167, %cst_54 {dimension_numbers = #tpu.dot_dimension_numbers<[1], [0], [0], [1], [0, 0, 1, 1], [], []>} : vector<4x32xbf16>, vector<32x32xbf16>, vector<4x32xf32> -> vector<4x32xf32>
    %c0_55 = arith.constant 0 : index
    %c0_56 = arith.constant 0 : index
    %169 = vector.load %arg11[%c0_55, %c0_56] : memref<1x32xf32, #tpu.memory_space<vmem>>, vector<1x32xf32>
    %170 = vector.broadcast %169 : vector<1x32xf32> to vector<4x32xf32>
    %171 = arith.addf %168, %170 : vector<4x32xf32>
    %172 = arith.truncf %3 : vector<4x32xf32> to vector<4x32xbf16>
    %c0_57 = arith.constant 0 : index
    %c0_58 = arith.constant 0 : index
    %173 = vector.load %arg12[%c0_57, %c0_58] : memref<32x64xbf16, #tpu.memory_space<vmem>>, vector<32x64xbf16>
    %cst_59 = arith.constant dense<0.000000e+00> : vector<4x64xf32>
    %174 = tpu.matmul %172, %173, %cst_59 {dimension_numbers = #tpu.dot_dimension_numbers<[1], [0], [0], [1], [0, 0, 1, 1], [], []>} : vector<4x32xbf16>, vector<32x64xbf16>, vector<4x64xf32> -> vector<4x64xf32>
    %c0_60 = arith.constant 0 : index
    %c0_61 = arith.constant 0 : index
    %175 = vector.load %arg13[%c0_60, %c0_61] : memref<1x64xf32, #tpu.memory_space<vmem>>, vector<1x64xf32>
    %176 = vector.broadcast %175 : vector<1x64xf32> to vector<4x64xf32>
    %177 = arith.addf %174, %176 : vector<4x64xf32>
    %178 = vector.extract_strided_slice %177 {offsets = [0, 0], sizes = [4, 32], strides = [1, 1]} : vector<4x64xf32> to vector<4x32xf32>
    %179 = vector.extract_strided_slice %177 {offsets = [0, 32], sizes = [4, 32], strides = [1, 1]} : vector<4x64xf32> to vector<4x32xf32>
    %180 = vector.extract_strided_slice %171 {offsets = [0, 0], sizes = [4, 8], strides = [1, 1]} : vector<4x32xf32> to vector<4x8xf32>
    %181 = arith.truncf %180 : vector<4x8xf32> to vector<4x8xbf16>
    %182 = vector.extract_strided_slice %178 {offsets = [0, 0], sizes = [4, 8], strides = [1, 1]} : vector<4x32xf32> to vector<4x8xf32>
    %183 = arith.truncf %182 : vector<4x8xf32> to vector<4x8xbf16>
    %184 = vector.extract_strided_slice %179 {offsets = [0, 0], sizes = [4, 8], strides = [1, 1]} : vector<4x32xf32> to vector<4x8xf32>
    %185 = arith.truncf %184 : vector<4x8xf32> to vector<4x8xbf16>
    %cst_62 = arith.constant dense<0.000000e+00> : vector<4x4xf32>
    %186 = tpu.matmul %181, %183, %cst_62 {dimension_numbers = #tpu.dot_dimension_numbers<[1], [1], [0], [0], [0, 0, 1, 0], [], []>} : vector<4x8xbf16>, vector<4x8xbf16>, vector<4x4xf32> -> vector<4x4xf32>
    %cst_63 = arith.constant 0.353553385 : f32
    %187 = vector.broadcast %cst_63 : f32 to vector<4x4xf32>
    %188 = arith.mulf %186, %187 : vector<4x4xf32>
    %189 = vector.broadcast %7 : vector<1x4xf32> to vector<4x4xf32>
    %190 = arith.addf %188, %189 : vector<4x4xf32>
    %cst_64 = arith.constant dense<0xFF800000> : vector<4xf32>
    %191 = vector.multi_reduction <maximumf>, %190, %cst_64 [1] : vector<4x4xf32> to vector<4xf32>
    %192 = vector.shape_cast %191 : vector<4xf32> to vector<4x1xf32>
    %193 = vector.broadcast %192 : vector<4x1xf32> to vector<4x4xf32>
    %194 = arith.subf %190, %193 : vector<4x4xf32>
    %195 = math.exp %194 : vector<4x4xf32>
    %cst_65 = arith.constant dense<0.000000e+00> : vector<4xf32>
    %196 = vector.multi_reduction <add>, %195, %cst_65 [1] : vector<4x4xf32> to vector<4xf32>
    %197 = vector.shape_cast %196 : vector<4xf32> to vector<4x1xf32>
    %198 = tpu.reciprocal %197 {approx = true} : vector<4x1xf32> -> vector<4x1xf32>
    %199 = vector.broadcast %198 : vector<4x1xf32> to vector<4x4xf32>
    %200 = arith.mulf %195, %199 : vector<4x4xf32>
    %201 = arith.truncf %200 : vector<4x4xf32> to vector<4x4xbf16>
    %cst_66 = arith.constant dense<0.000000e+00> : vector<4x8xf32>
    %202 = tpu.matmul %201, %185, %cst_66 {dimension_numbers = #tpu.dot_dimension_numbers<[1], [0], [0], [1], [0, 0, 1, 1], [], []>} : vector<4x4xbf16>, vector<4x8xbf16>, vector<4x8xf32> -> vector<4x8xf32>
    %203 = vector.extract_strided_slice %171 {offsets = [0, 8], sizes = [4, 8], strides = [1, 1]} : vector<4x32xf32> to vector<4x8xf32>
    %204 = arith.truncf %203 : vector<4x8xf32> to vector<4x8xbf16>
    %205 = vector.extract_strided_slice %178 {offsets = [0, 8], sizes = [4, 8], strides = [1, 1]} : vector<4x32xf32> to vector<4x8xf32>
    %206 = arith.truncf %205 : vector<4x8xf32> to vector<4x8xbf16>
    %207 = vector.extract_strided_slice %179 {offsets = [0, 8], sizes = [4, 8], strides = [1, 1]} : vector<4x32xf32> to vector<4x8xf32>
    %208 = arith.truncf %207 : vector<4x8xf32> to vector<4x8xbf16>
    %cst_67 = arith.constant dense<0.000000e+00> : vector<4x4xf32>
    %209 = tpu.matmul %204, %206, %cst_67 {dimension_numbers = #tpu.dot_dimension_numbers<[1], [1], [0], [0], [0, 0, 1, 0], [], []>} : vector<4x8xbf16>, vector<4x8xbf16>, vector<4x4xf32> -> vector<4x4xf32>
    %cst_68 = arith.constant 0.353553385 : f32
    %210 = vector.broadcast %cst_68 : f32 to vector<4x4xf32>
    %211 = arith.mulf %209, %210 : vector<4x4xf32>
    %212 = vector.broadcast %7 : vector<1x4xf32> to vector<4x4xf32>
    %213 = arith.addf %211, %212 : vector<4x4xf32>
    %cst_69 = arith.constant dense<0xFF800000> : vector<4xf32>
    %214 = vector.multi_reduction <maximumf>, %213, %cst_69 [1] : vector<4x4xf32> to vector<4xf32>
    %215 = vector.shape_cast %214 : vector<4xf32> to vector<4x1xf32>
    %216 = vector.broadcast %215 : vector<4x1xf32> to vector<4x4xf32>
    %217 = arith.subf %213, %216 : vector<4x4xf32>
    %218 = math.exp %217 : vector<4x4xf32>
    %cst_70 = arith.constant dense<0.000000e+00> : vector<4xf32>
    %219 = vector.multi_reduction <add>, %218, %cst_70 [1] : vector<4x4xf32> to vector<4xf32>
    %220 = vector.shape_cast %219 : vector<4xf32> to vector<4x1xf32>
    %221 = tpu.reciprocal %220 {approx = true} : vector<4x1xf32> -> vector<4x1xf32>
    %222 = vector.broadcast %221 : vector<4x1xf32> to vector<4x4xf32>
    %223 = arith.mulf %218, %222 : vector<4x4xf32>
    %224 = arith.truncf %223 : vector<4x4xf32> to vector<4x4xbf16>
    %cst_71 = arith.constant dense<0.000000e+00> : vector<4x8xf32>
    %225 = tpu.matmul %224, %208, %cst_71 {dimension_numbers = #tpu.dot_dimension_numbers<[1], [0], [0], [1], [0, 0, 1, 1], [], []>} : vector<4x4xbf16>, vector<4x8xbf16>, vector<4x8xf32> -> vector<4x8xf32>
    %226 = vector.extract_strided_slice %171 {offsets = [0, 16], sizes = [4, 8], strides = [1, 1]} : vector<4x32xf32> to vector<4x8xf32>
    %227 = arith.truncf %226 : vector<4x8xf32> to vector<4x8xbf16>
    %228 = vector.extract_strided_slice %178 {offsets = [0, 16], sizes = [4, 8], strides = [1, 1]} : vector<4x32xf32> to vector<4x8xf32>
    %229 = arith.truncf %228 : vector<4x8xf32> to vector<4x8xbf16>
    %230 = vector.extract_strided_slice %179 {offsets = [0, 16], sizes = [4, 8], strides = [1, 1]} : vector<4x32xf32> to vector<4x8xf32>
    %231 = arith.truncf %230 : vector<4x8xf32> to vector<4x8xbf16>
    %cst_72 = arith.constant dense<0.000000e+00> : vector<4x4xf32>
    %232 = tpu.matmul %227, %229, %cst_72 {dimension_numbers = #tpu.dot_dimension_numbers<[1], [1], [0], [0], [0, 0, 1, 0], [], []>} : vector<4x8xbf16>, vector<4x8xbf16>, vector<4x4xf32> -> vector<4x4xf32>
    %cst_73 = arith.constant 0.353553385 : f32
    %233 = vector.broadcast %cst_73 : f32 to vector<4x4xf32>
    %234 = arith.mulf %232, %233 : vector<4x4xf32>
    %235 = vector.broadcast %7 : vector<1x4xf32> to vector<4x4xf32>
    %236 = arith.addf %234, %235 : vector<4x4xf32>
    %cst_74 = arith.constant dense<0xFF800000> : vector<4xf32>
    %237 = vector.multi_reduction <maximumf>, %236, %cst_74 [1] : vector<4x4xf32> to vector<4xf32>
    %238 = vector.shape_cast %237 : vector<4xf32> to vector<4x1xf32>
    %239 = vector.broadcast %238 : vector<4x1xf32> to vector<4x4xf32>
    %240 = arith.subf %236, %239 : vector<4x4xf32>
    %241 = math.exp %240 : vector<4x4xf32>
    %cst_75 = arith.constant dense<0.000000e+00> : vector<4xf32>
    %242 = vector.multi_reduction <add>, %241, %cst_75 [1] : vector<4x4xf32> to vector<4xf32>
    %243 = vector.shape_cast %242 : vector<4xf32> to vector<4x1xf32>
    %244 = tpu.reciprocal %243 {approx = true} : vector<4x1xf32> -> vector<4x1xf32>
    %245 = vector.broadcast %244 : vector<4x1xf32> to vector<4x4xf32>
    %246 = arith.mulf %241, %245 : vector<4x4xf32>
    %247 = arith.truncf %246 : vector<4x4xf32> to vector<4x4xbf16>
    %cst_76 = arith.constant dense<0.000000e+00> : vector<4x8xf32>
    %248 = tpu.matmul %247, %231, %cst_76 {dimension_numbers = #tpu.dot_dimension_numbers<[1], [0], [0], [1], [0, 0, 1, 1], [], []>} : vector<4x4xbf16>, vector<4x8xbf16>, vector<4x8xf32> -> vector<4x8xf32>
    %249 = vector.extract_strided_slice %171 {offsets = [0, 24], sizes = [4, 8], strides = [1, 1]} : vector<4x32xf32> to vector<4x8xf32>
    %250 = arith.truncf %249 : vector<4x8xf32> to vector<4x8xbf16>
    %251 = vector.extract_strided_slice %178 {offsets = [0, 24], sizes = [4, 8], strides = [1, 1]} : vector<4x32xf32> to vector<4x8xf32>
    %252 = arith.truncf %251 : vector<4x8xf32> to vector<4x8xbf16>
    %253 = vector.extract_strided_slice %179 {offsets = [0, 24], sizes = [4, 8], strides = [1, 1]} : vector<4x32xf32> to vector<4x8xf32>
    %254 = arith.truncf %253 : vector<4x8xf32> to vector<4x8xbf16>
    %cst_77 = arith.constant dense<0.000000e+00> : vector<4x4xf32>
    %255 = tpu.matmul %250, %252, %cst_77 {dimension_numbers = #tpu.dot_dimension_numbers<[1], [1], [0], [0], [0, 0, 1, 0], [], []>} : vector<4x8xbf16>, vector<4x8xbf16>, vector<4x4xf32> -> vector<4x4xf32>
    %cst_78 = arith.constant 0.353553385 : f32
    %256 = vector.broadcast %cst_78 : f32 to vector<4x4xf32>
    %257 = arith.mulf %255, %256 : vector<4x4xf32>
    %258 = vector.broadcast %7 : vector<1x4xf32> to vector<4x4xf32>
    %259 = arith.addf %257, %258 : vector<4x4xf32>
    %cst_79 = arith.constant dense<0xFF800000> : vector<4xf32>
    %260 = vector.multi_reduction <maximumf>, %259, %cst_79 [1] : vector<4x4xf32> to vector<4xf32>
    %261 = vector.shape_cast %260 : vector<4xf32> to vector<4x1xf32>
    %262 = vector.broadcast %261 : vector<4x1xf32> to vector<4x4xf32>
    %263 = arith.subf %259, %262 : vector<4x4xf32>
    %264 = math.exp %263 : vector<4x4xf32>
    %cst_80 = arith.constant dense<0.000000e+00> : vector<4xf32>
    %265 = vector.multi_reduction <add>, %264, %cst_80 [1] : vector<4x4xf32> to vector<4xf32>
    %266 = vector.shape_cast %265 : vector<4xf32> to vector<4x1xf32>
    %267 = tpu.reciprocal %266 {approx = true} : vector<4x1xf32> -> vector<4x1xf32>
    %268 = vector.broadcast %267 : vector<4x1xf32> to vector<4x4xf32>
    %269 = arith.mulf %264, %268 : vector<4x4xf32>
    %270 = arith.truncf %269 : vector<4x4xf32> to vector<4x4xbf16>
    %cst_81 = arith.constant dense<0.000000e+00> : vector<4x8xf32>
    %271 = tpu.matmul %270, %254, %cst_81 {dimension_numbers = #tpu.dot_dimension_numbers<[1], [0], [0], [1], [0, 0, 1, 1], [], []>} : vector<4x4xbf16>, vector<4x8xbf16>, vector<4x8xf32> -> vector<4x8xf32>
    %272 = tpu.concatenate %202, %225, %248, %271 in 1 : vector<4x8xf32>, vector<4x8xf32>, vector<4x8xf32>, vector<4x8xf32> -> vector<4x32xf32>
    %273 = arith.truncf %272 : vector<4x32xf32> to vector<4x32xbf16>
    %c0_82 = arith.constant 0 : index
    %c0_83 = arith.constant 0 : index
    %274 = vector.load %arg14[%c0_82, %c0_83] : memref<32x32xbf16, #tpu.memory_space<vmem>>, vector<32x32xbf16>
    %cst_84 = arith.constant dense<0.000000e+00> : vector<4x32xf32>
    %275 = tpu.matmul %273, %274, %cst_84 {dimension_numbers = #tpu.dot_dimension_numbers<[1], [0], [0], [1], [0, 0, 1, 1], [], []>} : vector<4x32xbf16>, vector<32x32xbf16>, vector<4x32xf32> -> vector<4x32xf32>
    %c0_85 = arith.constant 0 : index
    %c0_86 = arith.constant 0 : index
    %276 = vector.load %arg15[%c0_85, %c0_86] : memref<1x32xf32, #tpu.memory_space<vmem>>, vector<1x32xf32>
    %277 = vector.broadcast %276 : vector<1x32xf32> to vector<4x32xf32>
    %278 = arith.addf %275, %277 : vector<4x32xf32>
    %279 = arith.addf %141, %278 : vector<4x32xf32>
    %280 = vector.extract_strided_slice %8 {offsets = [4, 0], sizes = [1, 32], strides = [1, 1]} : vector<6x32xf32> to vector<1x32xf32>
    %281 = vector.extract_strided_slice %8 {offsets = [5, 0], sizes = [1, 32], strides = [1, 1]} : vector<6x32xf32> to vector<1x32xf32>
    %cst_87 = arith.constant dense<0.000000e+00> : vector<4xf32>
    %282 = vector.multi_reduction <add>, %279, %cst_87 [1] : vector<4x32xf32> to vector<4xf32>
    %283 = vector.shape_cast %282 : vector<4xf32> to vector<4x1xf32>
    %cst_88 = arith.constant 3.200000e+01 : f32
    %284 = vector.broadcast %cst_88 : f32 to vector<4x1xf32>
    %285 = arith.divf %283, %284 : vector<4x1xf32>
    %286 = vector.broadcast %285 : vector<4x1xf32> to vector<4x32xf32>
    %287 = arith.subf %279, %286 : vector<4x32xf32>
    %288 = arith.mulf %287, %287 : vector<4x32xf32>
    %cst_89 = arith.constant dense<0.000000e+00> : vector<4xf32>
    %289 = vector.multi_reduction <add>, %288, %cst_89 [1] : vector<4x32xf32> to vector<4xf32>
    %290 = vector.shape_cast %289 : vector<4xf32> to vector<4x1xf32>
    %cst_90 = arith.constant 3.200000e+01 : f32
    %291 = vector.broadcast %cst_90 : f32 to vector<4x1xf32>
    %292 = arith.divf %290, %291 : vector<4x1xf32>
    %293 = vector.broadcast %285 : vector<4x1xf32> to vector<4x32xf32>
    %294 = arith.subf %279, %293 : vector<4x32xf32>
    %cst_91 = arith.constant 9.99999974E-6 : f32
    %295 = vector.broadcast %cst_91 : f32 to vector<4x1xf32>
    %296 = arith.addf %292, %295 : vector<4x1xf32>
    %297 = math.rsqrt %296 : vector<4x1xf32>
    %298 = vector.broadcast %297 : vector<4x1xf32> to vector<4x32xf32>
    %299 = arith.mulf %294, %298 : vector<4x32xf32>
    %300 = vector.broadcast %280 : vector<1x32xf32> to vector<4x32xf32>
    %301 = arith.mulf %299, %300 : vector<4x32xf32>
    %302 = vector.broadcast %281 : vector<1x32xf32> to vector<4x32xf32>
    %303 = arith.addf %301, %302 : vector<4x32xf32>
    %304 = arith.truncf %303 : vector<4x32xf32> to vector<4x32xbf16>
    %c0_92 = arith.constant 0 : index
    %c0_93 = arith.constant 0 : index
    %305 = vector.load %arg16[%c0_92, %c0_93] : memref<32x32xbf16, #tpu.memory_space<vmem>>, vector<32x32xbf16>
    %cst_94 = arith.constant dense<0.000000e+00> : vector<4x32xf32>
    %306 = tpu.matmul %304, %305, %cst_94 {dimension_numbers = #tpu.dot_dimension_numbers<[1], [0], [0], [1], [0, 0, 1, 1], [], []>} : vector<4x32xbf16>, vector<32x32xbf16>, vector<4x32xf32> -> vector<4x32xf32>
    %c0_95 = arith.constant 0 : index
    %c0_96 = arith.constant 0 : index
    %307 = vector.load %arg17[%c0_95, %c0_96] : memref<1x32xf32, #tpu.memory_space<vmem>>, vector<1x32xf32>
    %308 = vector.broadcast %307 : vector<1x32xf32> to vector<4x32xf32>
    %309 = arith.addf %306, %308 : vector<4x32xf32>
    %cst_97 = arith.constant 0.000000e+00 : f32
    %310 = vector.broadcast %cst_97 : f32 to vector<4x32xf32>
    %311 = arith.maximumf %309, %310 : vector<4x32xf32>
    %312 = arith.truncf %311 : vector<4x32xf32> to vector<4x32xbf16>
    %c0_98 = arith.constant 0 : index
    %c0_99 = arith.constant 0 : index
    %313 = vector.load %arg18[%c0_98, %c0_99] : memref<32x32xbf16, #tpu.memory_space<vmem>>, vector<32x32xbf16>
    %cst_100 = arith.constant dense<0.000000e+00> : vector<4x32xf32>
    %314 = tpu.matmul %312, %313, %cst_100 {dimension_numbers = #tpu.dot_dimension_numbers<[1], [0], [0], [1], [0, 0, 1, 1], [], []>} : vector<4x32xbf16>, vector<32x32xbf16>, vector<4x32xf32> -> vector<4x32xf32>
    %c0_101 = arith.constant 0 : index
    %c0_102 = arith.constant 0 : index
    %315 = vector.load %arg19[%c0_101, %c0_102] : memref<1x32xf32, #tpu.memory_space<vmem>>, vector<1x32xf32>
    %316 = vector.broadcast %315 : vector<1x32xf32> to vector<4x32xf32>
    %317 = arith.addf %314, %316 : vector<4x32xf32>
    %318 = arith.addf %279, %317 : vector<4x32xf32>
    %c0_103 = arith.constant 0 : index
    %c0_104 = arith.constant 0 : index
    %c0_105 = arith.constant 0 : index
    %319 = vector.load %arg20[%c0_103, %c0_104, %c0_105] : memref<1x4x32xf32, #tpu.memory_space<vmem>>, vector<1x4x32xf32>
    %320 = vector.shape_cast %319 : vector<1x4x32xf32> to vector<4x32xf32>
    %321 = vector.shape_cast %318 : vector<4x32xf32> to vector<1x4x32xf32>
    tpu.vector_store %arg20[%c0_103, %c0_104, %c0_105], %321 {strides = array<i32>} : memref<1x4x32xf32, #tpu.memory_space<vmem>>, vector<1x4x32xf32>,
    return
  }
  func.func @transform_0(%arg0: i32) -> (i32, i32, i32) {
    %c0_i32 = arith.constant 0 : i32
    %c0_i32_0 = arith.constant 0 : i32
    %c0_i32_1 = arith.constant 0 : i32
    return %arg0, %c0_i32, %c0_i32_0 : i32, i32, i32
  }
  func.func @transform_1(%arg0: i32) -> (i32, i32, i32) {
    %c0_i32 = arith.constant 0 : i32
    %c0_i32_0 = arith.constant 0 : i32
    %c0_i32_1 = arith.constant 0 : i32
    return %arg0, %c0_i32, %c0_i32_0 : i32, i32, i32
  }
  func.func @transform_2(%arg0: i32) -> (i32, i32, i32) {
    %c0_i32 = arith.constant 0 : i32
    %c0_i32_0 = arith.constant 0 : i32
    %c0_i32_1 = arith.constant 0 : i32
    return %arg0, %c0_i32, %c0_i32_0 : i32, i32, i32
  }
  func.func @transform_3(%arg0: i32) -> (i32, i32, i32) {
    %c0_i32 = arith.constant 0 : i32
    %c0_i32_0 = arith.constant 0 : i32
    %c0_i32_1 = arith.constant 0 : i32
    return %arg0, %c0_i32, %c0_i32_0 : i32, i32, i32
  }
  func.func @transform_4(%arg0: i32) -> (i32, i32) {
    %c0_i32 = arith.constant 0 : i32
    %c0_i32_0 = arith.constant 0 : i32
    %c0_i32_1 = arith.constant 0 : i32
    return %c0_i32, %c0_i32_0 : i32, i32
  }
  func.func @transform_5(%arg0: i32) -> (i32, i32) {
    %c0_i32 = arith.constant 0 : i32
    %c0_i32_0 = arith.constant 0 : i32
    %c0_i32_1 = arith.constant 0 : i32
    return %c0_i32, %c0_i32_0 : i32, i32
  }
  func.func @transform_6(%arg0: i32) -> (i32, i32) {
    %c0_i32 = arith.constant 0 : i32
    %c0_i32_0 = arith.constant 0 : i32
    %c0_i32_1 = arith.constant 0 : i32
    return %c0_i32, %c0_i32_0 : i32, i32
  }
  func.func @transform_7(%arg0: i32) -> (i32, i32) {
    %c0_i32 = arith.constant 0 : i32
    %c0_i32_0 = arith.constant 0 : i32
    %c0_i32_1 = arith.constant 0 : i32
    return %c0_i32, %c0_i32_0 : i32, i32
  }
  func.func @transform_8(%arg0: i32) -> (i32, i32) {
    %c0_i32 = arith.constant 0 : i32
    %c0_i32_0 = arith.constant 0 : i32
    %c0_i32_1 = arith.constant 0 : i32
    return %c0_i32, %c0_i32_0 : i32, i32
  }
  func.func @transform_9(%arg0: i32) -> (i32, i32) {
    %c0_i32 = arith.constant 0 : i32
    %c0_i32_0 = arith.constant 0 : i32
    %c0_i32_1 = arith.constant 0 : i32
    return %c0_i32, %c0_i32_0 : i32, i32
  }
  func.func @transform_10(%arg0: i32) -> (i32, i32) {
    %c0_i32 = arith.constant 0 : i32
    %c0_i32_0 = arith.constant 0 : i32
    %c0_i32_1 = arith.constant 0 : i32
    return %c0_i32, %c0_i32_0 : i32, i32
  }
  func.func @transform_11(%arg0: i32) -> (i32, i32) {
    %c0_i32 = arith.constant 0 : i32
    %c0_i32_0 = arith.constant 0 : i32
    %c0_i32_1 = arith.constant 0 : i32
    return %c0_i32, %c0_i32_0 : i32, i32
  }
  func.func @transform_12(%arg0: i32) -> (i32, i32) {
    %c0_i32 = arith.constant 0 : i32
    %c0_i32_0 = arith.constant 0 : i32
    %c0_i32_1 = arith.constant 0 : i32
    return %c0_i32, %c0_i32_0 : i32, i32
  }
  func.func @transform_13(%arg0: i32) -> (i32, i32) {
    %c0_i32 = arith.constant 0 : i32
    %c0_i32_0 = arith.constant 0 : i32
    %c0_i32_1 = arith.constant 0 : i32
    return %c0_i32, %c0_i32_0 : i32, i32
  }
  func.func @transform_14(%arg0: i32) -> (i32, i32) {
    %c0_i32 = arith.constant 0 : i32
    %c0_i32_0 = arith.constant 0 : i32
    %c0_i32_1 = arith.constant 0 : i32
    return %c0_i32, %c0_i32_0 : i32, i32
  }
  func.func @transform_15(%arg0: i32) -> (i32, i32) {
    %c0_i32 = arith.constant 0 : i32
    %c0_i32_0 = arith.constant 0 : i32
    %c0_i32_1 = arith.constant 0 : i32
    return %c0_i32, %c0_i32_0 : i32, i32
  }
  func.func @transform_16(%arg0: i32) -> (i32, i32) {
    %c0_i32 = arith.constant 0 : i32
    %c0_i32_0 = arith.constant 0 : i32
    %c0_i32_1 = arith.constant 0 : i32
    return %c0_i32, %c0_i32_0 : i32, i32
  }
  func.func @transform_17(%arg0: i32) -> (i32, i32) {
    %c0_i32 = arith.constant 0 : i32
    %c0_i32_0 = arith.constant 0 : i32
    %c0_i32_1 = arith.constant 0 : i32
    return %c0_i32, %c0_i32_0 : i32, i32
  }
  func.func @transform_18(%arg0: i32) -> (i32, i32) {
    %c0_i32 = arith.constant 0 : i32
    %c0_i32_0 = arith.constant 0 : i32
    %c0_i32_1 = arith.constant 0 : i32
    return %c0_i32, %c0_i32_0 : i32, i32
  }
  func.func @transform_19(%arg0: i32) -> (i32, i32, i32) {
    %c0_i32 = arith.constant 0 : i32
    %c0_i32_0 = arith.constant 0 : i32
    %c0_i32_1 = arith.constant 0 : i32
    return %arg0, %c0_i32, %c0_i32_0 : i32, i32, i32
  }
}

module attributes {stable_mosaic.version = 11 : i64} {
  func.func @_pointer_loss_kernel(%arg0: i32, %arg1: memref<2xi32, #tpu.memory_space<smem>>, %arg2: memref<2x4x32xf32, #tpu.memory_space<vmem>>, %arg3: memref<2x4x32xf32, #tpu.memory_space<vmem>>, %arg4: memref<32x32xbf16, #tpu.memory_space<vmem>>, %arg5: memref<1x32xf32, #tpu.memory_space<vmem>>, %arg6: memref<1x32xf32, #tpu.memory_space<vmem>>, %arg7: memref<1x1xf32, #tpu.memory_space<vmem>>, %arg8: memref<2x4x1xi32, #tpu.memory_space<vmem>>, %arg9: memref<1x1xf32, #tpu.memory_space<vmem>>) attributes {dimension_semantics = [#tpu.dimension_semantics<arbitrary>], iteration_bounds = array<i64: 1>, scalar_prefetch = 1 : i64, scratch_operands = 0 : i64, tpu.core_type = #tpu.core_type<tc>, window_params = [{pipeline_mode = #tpu.pipeline_mode<synchronous>, transform_indices = @transform_0, window_bounds = array<i64: 2, 4, 32>}, {pipeline_mode = #tpu.pipeline_mode<synchronous>, transform_indices = @transform_1, window_bounds = array<i64: 2, 4, 32>}, {pipeline_mode = #tpu.pipeline_mode<synchronous>, transform_indices = @transform_2, window_bounds = array<i64: 32, 32>}, {pipeline_mode = #tpu.pipeline_mode<synchronous>, transform_indices = @transform_3, window_bounds = array<i64: 1, 32>}, {pipeline_mode = #tpu.pipeline_mode<synchronous>, transform_indices = @transform_4, window_bounds = array<i64: 1, 32>}, {pipeline_mode = #tpu.pipeline_mode<synchronous>, transform_indices = @transform_5, window_bounds = array<i64: 1, 1>}, {pipeline_mode = #tpu.pipeline_mode<synchronous>, transform_indices = @transform_6, window_bounds = array<i64: 2, 4, 1>}, {pipeline_mode = #tpu.pipeline_mode<synchronous>, transform_indices = @transform_7, window_bounds = array<i64: 1, 1>}]} {
    %0 = tpu.iota {dimensions = array<i32: 1>} : vector<4x4xi32>
    %1 = tpu.iota {dimensions = array<i32: 0>} : vector<4x4xi32>
    %2 = tpu.iota {dimensions = array<i32: 0>} : vector<4x1xi32>
    %3 = arith.cmpi slt, %0, %1 : vector<4x4xi32>
    %4 = arith.extui %3 : vector<4x4xi1> to vector<4x4xi32>
    %5 = arith.sitofp %4 : vector<4x4xi32> to vector<4x4xf32>
    %c0 = arith.constant 0 : index
    %c0_0 = arith.constant 0 : index
    %6 = vector.load %arg6[%c0, %c0_0] : memref<1x32xf32, #tpu.memory_space<vmem>>, vector<1x32xf32>
    %c0_1 = arith.constant 0 : index
    %c0_2 = arith.constant 0 : index
    %7 = vector.load %arg5[%c0_1, %c0_2] : memref<1x32xf32, #tpu.memory_space<vmem>>, vector<1x32xf32>
    %c0_3 = arith.constant 0 : index
    %8 = memref.load %arg1[%c0_3] : memref<2xi32, #tpu.memory_space<smem>>
    %c0_4 = arith.constant 0 : index
    %c0_5 = arith.constant 0 : index
    %c0_6 = arith.constant 0 : index
    %9 = vector.load %arg2[%c0_4, %c0_5, %c0_6] : memref<2x4x32xf32, #tpu.memory_space<vmem>>, vector<1x4x32xf32>
    %10 = vector.shape_cast %9 : vector<1x4x32xf32> to vector<4x32xf32>
    %c0_7 = arith.constant 0 : index
    %c0_8 = arith.constant 0 : index
    %c0_9 = arith.constant 0 : index
    %11 = vector.load %arg3[%c0_7, %c0_8, %c0_9] : memref<2x4x32xf32, #tpu.memory_space<vmem>>, vector<1x4x32xf32>
    %12 = vector.shape_cast %11 : vector<1x4x32xf32> to vector<4x32xf32>
    %13 = arith.truncf %10 : vector<4x32xf32> to vector<4x32xbf16>
    %c0_10 = arith.constant 0 : index
    %c0_11 = arith.constant 0 : index
    %14 = vector.load %arg4[%c0_10, %c0_11] : memref<32x32xbf16, #tpu.memory_space<vmem>>, vector<32x32xbf16>
    %cst = arith.constant dense<0.000000e+00> : vector<4x32xf32>
    %15 = tpu.matmul %13, %14, %cst {dimension_numbers = #tpu.dot_dimension_numbers<[1], [0], [0], [1], [0, 0, 1, 1], [], []>} : vector<4x32xbf16>, vector<32x32xbf16>, vector<4x32xf32> -> vector<4x32xf32>
    %16 = vector.broadcast %7 : vector<1x32xf32> to vector<4x32xf32>
    %17 = arith.addf %15, %16 : vector<4x32xf32>
    %18 = vector.shape_cast %17 : vector<4x32xf32> to vector<4x1x32xf32>
    %19 = vector.shape_cast %12 : vector<4x32xf32> to vector<1x4x32xf32>
    %20 = vector.broadcast %18 : vector<4x1x32xf32> to vector<4x4x32xf32>
    %21 = vector.broadcast %19 : vector<1x4x32xf32> to vector<4x4x32xf32>
    %22 = arith.addf %20, %21 : vector<4x4x32xf32>
    %23 = math.tanh %22 : vector<4x4x32xf32>
    %24 = vector.shape_cast %6 : vector<1x32xf32> to vector<1x1x32xf32>
    %25 = vector.broadcast %24 : vector<1x1x32xf32> to vector<4x4x32xf32>
    %26 = arith.mulf %23, %25 : vector<4x4x32xf32>
    %cst_12 = arith.constant dense<0.000000e+00> : vector<4x4xf32>
    %27 = vector.multi_reduction <add>, %26, %cst_12 [2] : vector<4x4x32xf32> to vector<4x4xf32>
    %c0_13 = arith.constant 0 : index
    %c0_14 = arith.constant 0 : index
    %28 = vector.load %arg7[%c0_13, %c0_14] : memref<1x1xf32, #tpu.memory_space<vmem>>, vector<1x1xf32>
    %29 = vector.broadcast %28 : vector<1x1xf32> to vector<4x4xf32>
    %30 = arith.addf %27, %29 : vector<4x4xf32>
    %c0_15 = arith.constant 0 : index
    %c0_16 = arith.constant 0 : index
    %c0_17 = arith.constant 0 : index
    %31 = vector.load %arg8[%c0_15, %c0_16, %c0_17] : memref<2x4x1xi32, #tpu.memory_space<vmem>>, vector<1x4x1xi32>
    %32 = vector.shape_cast %31 : vector<1x4x1xi32> to vector<4x1xi32>
    %33 = vector.broadcast %32 : vector<4x1xi32> to vector<4x4xi32>
    %34 = arith.cmpi eq, %33, %0 : vector<4x4xi32>
    %35 = arith.extui %34 : vector<4x4xi1> to vector<4x4xi32>
    %36 = arith.sitofp %35 : vector<4x4xi32> to vector<4x4xf32>
    %cst_18 = arith.constant dense<0.000000e+00> : vector<4x4xf32>
    %37 = tpu.matmul %5, %36, %cst_18 {dimension_numbers = #tpu.dot_dimension_numbers<[1], [0], [0], [1], [0, 0, 1, 1], [], []>} : vector<4x4xf32>, vector<4x4xf32>, vector<4x4xf32> -> vector<4x4xf32>
    %cst_19 = arith.constant 5.000000e-01 : f32
    %38 = vector.broadcast %cst_19 : f32 to vector<4x4xf32>
    %39 = arith.cmpf ogt, %37, %38 : vector<4x4xf32>
    %40 = vector.broadcast %8 : i32 to vector<4x4xi32>
    %41 = arith.cmpi slt, %0, %40 : vector<4x4xi32>
    %42 = vector.broadcast %8 : i32 to vector<4x4xi32>
    %43 = arith.cmpi slt, %1, %42 : vector<4x4xi32>
    %44 = arith.sitofp %8 : i32 to f32
    %45 = vector.broadcast %8 : i32 to vector<4x1xi32>
    %46 = arith.cmpi slt, %2, %45 : vector<4x1xi32>
    %47 = arith.extui %46 : vector<4x1xi1> to vector<4x1xi32>
    %48 = arith.sitofp %47 : vector<4x1xi32> to vector<4x1xf32>
    %cst_20 = arith.constant -1.000000e+09 : f32
    %49 = vector.broadcast %cst_20 : f32 to vector<4x4xf32>
    %50 = arith.select %39, %49, %30 : vector<4x4xi1>, vector<4x4xf32>
    %cst_21 = arith.constant -1.000000e+09 : f32
    %51 = vector.broadcast %cst_21 : f32 to vector<4x4xf32>
    %52 = arith.select %41, %50, %51 : vector<4x4xi1>, vector<4x4xf32>
    %cst_22 = arith.constant dense<0xFF800000> : vector<4xf32>
    %53 = vector.multi_reduction <maximumf>, %52, %cst_22 [1] : vector<4x4xf32> to vector<4xf32>
    %54 = vector.shape_cast %53 : vector<4xf32> to vector<4x1xf32>
    %55 = vector.broadcast %54 : vector<4x1xf32> to vector<4x4xf32>
    %56 = arith.subf %52, %55 : vector<4x4xf32>
    %57 = math.exp %56 : vector<4x4xf32>
    %cst_23 = arith.constant dense<0.000000e+00> : vector<4xf32>
    %58 = vector.multi_reduction <add>, %57, %cst_23 [1] : vector<4x4xf32> to vector<4xf32>
    %59 = vector.shape_cast %58 : vector<4xf32> to vector<4x1xf32>
    %60 = math.log %59 : vector<4x1xf32>
    %61 = arith.addf %60, %54 : vector<4x1xf32>
    %62 = vector.broadcast %61 : vector<4x1xf32> to vector<4x4xf32>
    %63 = arith.subf %52, %62 : vector<4x4xf32>
    %64 = arith.mulf %63, %36 : vector<4x4xf32>
    %cst_24 = arith.constant dense<0.000000e+00> : vector<4xf32>
    %65 = vector.multi_reduction <add>, %64, %cst_24 [1] : vector<4x4xf32> to vector<4xf32>
    %66 = vector.shape_cast %65 : vector<4xf32> to vector<4x1xf32>
    %cst_25 = arith.constant 0.000000e+00 : f32
    %67 = vector.broadcast %cst_25 : f32 to vector<4x1xf32>
    %68 = arith.subf %67, %66 : vector<4x1xf32>
    %69 = arith.mulf %68, %48 : vector<4x1xf32>
    %70 = vector.shape_cast %69 : vector<4x1xf32> to vector<1x4x1xf32>
    %cst_26 = arith.constant dense<0.000000e+00> : vector<1xf32>
    %71 = vector.multi_reduction <add>, %70, %cst_26 [1, 2] : vector<1x4x1xf32> to vector<1xf32>
    %72 = vector.shape_cast %71 : vector<1xf32> to vector<1x1x1xf32>
    %73 = vector.extract %72[0, 0, 0] : f32 from vector<1x1x1xf32>
    %cst_27 = arith.constant 9.99999968E-21 : f32
    %74 = arith.addf %44, %cst_27 : f32
    %cst_28 = arith.constant 1.000000e+00 : f32
    %75 = arith.subf %74, %cst_28 : f32
    %76 = arith.divf %73, %75 : f32
    %cst_29 = arith.constant -1.000000e+09 : f32
    %77 = vector.broadcast %cst_29 : f32 to vector<4x4xf32>
    %78 = arith.select %41, %30, %77 : vector<4x4xi1>, vector<4x4xf32>
    %cst_30 = arith.constant -1.000000e+09 : f32
    %79 = vector.broadcast %cst_30 : f32 to vector<4x4xf32>
    %80 = arith.select %43, %78, %79 : vector<4x4xi1>, vector<4x4xf32>
    %cst_31 = arith.constant dense<0xFF800000> : vector<4xf32>
    %81 = vector.multi_reduction <maximumf>, %80, %cst_31 [0] : vector<4x4xf32> to vector<4xf32>
    %82 = vector.shape_cast %81 : vector<4xf32> to vector<1x4xf32>
    %83 = vector.broadcast %82 : vector<1x4xf32> to vector<4x4xf32>
    %84 = arith.subf %80, %83 : vector<4x4xf32>
    %85 = math.exp %84 : vector<4x4xf32>
    %cst_32 = arith.constant dense<0.000000e+00> : vector<4xf32>
    %86 = vector.multi_reduction <add>, %85, %cst_32 [0] : vector<4x4xf32> to vector<4xf32>
    %87 = vector.shape_cast %86 : vector<4xf32> to vector<1x4xf32>
    %88 = math.log %87 : vector<1x4xf32>
    %89 = arith.addf %88, %82 : vector<1x4xf32>
    %90 = vector.broadcast %89 : vector<1x4xf32> to vector<4x4xf32>
    %91 = arith.subf %80, %90 : vector<4x4xf32>
    %92 = arith.mulf %91, %36 : vector<4x4xf32>
    %cst_33 = arith.constant dense<0.000000e+00> : vector<4xf32>
    %93 = vector.multi_reduction <add>, %92, %cst_33 [1] : vector<4x4xf32> to vector<4xf32>
    %94 = vector.shape_cast %93 : vector<4xf32> to vector<4x1xf32>
    %cst_34 = arith.constant 0.000000e+00 : f32
    %95 = vector.broadcast %cst_34 : f32 to vector<4x1xf32>
    %96 = arith.subf %95, %94 : vector<4x1xf32>
    %97 = arith.mulf %96, %48 : vector<4x1xf32>
    %98 = vector.shape_cast %97 : vector<4x1xf32> to vector<1x4x1xf32>
    %cst_35 = arith.constant dense<0.000000e+00> : vector<1xf32>
    %99 = vector.multi_reduction <add>, %98, %cst_35 [1, 2] : vector<1x4x1xf32> to vector<1xf32>
    %100 = vector.shape_cast %99 : vector<1xf32> to vector<1x1x1xf32>
    %101 = vector.extract %100[0, 0, 0] : f32 from vector<1x1x1xf32>
    %102 = arith.divf %101, %44 : f32
    %cst_36 = arith.constant 9.99999968E-21 : f32
    %103 = arith.addf %44, %cst_36 : f32
    %cst_37 = arith.constant 1.000000e+00 : f32
    %104 = arith.subf %103, %cst_37 : f32
    %105 = arith.divf %102, %104 : f32
    %cst_38 = arith.constant 0.000000e+00 : f32
    %106 = arith.addf %cst_38, %76 : f32
    %107 = arith.addf %106, %105 : f32
    %c1 = arith.constant 1 : index
    %108 = memref.load %arg1[%c1] : memref<2xi32, #tpu.memory_space<smem>>
    %c1_39 = arith.constant 1 : index
    %c0_40 = arith.constant 0 : index
    %c0_41 = arith.constant 0 : index
    %109 = vector.load %arg2[%c1_39, %c0_40, %c0_41] : memref<2x4x32xf32, #tpu.memory_space<vmem>>, vector<1x4x32xf32>
    %110 = vector.shape_cast %109 : vector<1x4x32xf32> to vector<4x32xf32>
    %c1_42 = arith.constant 1 : index
    %c0_43 = arith.constant 0 : index
    %c0_44 = arith.constant 0 : index
    %111 = vector.load %arg3[%c1_42, %c0_43, %c0_44] : memref<2x4x32xf32, #tpu.memory_space<vmem>>, vector<1x4x32xf32>
    %112 = vector.shape_cast %111 : vector<1x4x32xf32> to vector<4x32xf32>
    %113 = arith.truncf %110 : vector<4x32xf32> to vector<4x32xbf16>
    %c0_45 = arith.constant 0 : index
    %c0_46 = arith.constant 0 : index
    %114 = vector.load %arg4[%c0_45, %c0_46] : memref<32x32xbf16, #tpu.memory_space<vmem>>, vector<32x32xbf16>
    %cst_47 = arith.constant dense<0.000000e+00> : vector<4x32xf32>
    %115 = tpu.matmul %113, %114, %cst_47 {dimension_numbers = #tpu.dot_dimension_numbers<[1], [0], [0], [1], [0, 0, 1, 1], [], []>} : vector<4x32xbf16>, vector<32x32xbf16>, vector<4x32xf32> -> vector<4x32xf32>
    %116 = vector.broadcast %7 : vector<1x32xf32> to vector<4x32xf32>
    %117 = arith.addf %115, %116 : vector<4x32xf32>
    %118 = vector.shape_cast %117 : vector<4x32xf32> to vector<4x1x32xf32>
    %119 = vector.shape_cast %112 : vector<4x32xf32> to vector<1x4x32xf32>
    %120 = vector.broadcast %118 : vector<4x1x32xf32> to vector<4x4x32xf32>
    %121 = vector.broadcast %119 : vector<1x4x32xf32> to vector<4x4x32xf32>
    %122 = arith.addf %120, %121 : vector<4x4x32xf32>
    %123 = math.tanh %122 : vector<4x4x32xf32>
    %124 = vector.shape_cast %6 : vector<1x32xf32> to vector<1x1x32xf32>
    %125 = vector.broadcast %124 : vector<1x1x32xf32> to vector<4x4x32xf32>
    %126 = arith.mulf %123, %125 : vector<4x4x32xf32>
    %cst_48 = arith.constant dense<0.000000e+00> : vector<4x4xf32>
    %127 = vector.multi_reduction <add>, %126, %cst_48 [2] : vector<4x4x32xf32> to vector<4x4xf32>
    %c0_49 = arith.constant 0 : index
    %c0_50 = arith.constant 0 : index
    %128 = vector.load %arg7[%c0_49, %c0_50] : memref<1x1xf32, #tpu.memory_space<vmem>>, vector<1x1xf32>
    %129 = vector.broadcast %128 : vector<1x1xf32> to vector<4x4xf32>
    %130 = arith.addf %127, %129 : vector<4x4xf32>
    %c1_51 = arith.constant 1 : index
    %c0_52 = arith.constant 0 : index
    %c0_53 = arith.constant 0 : index
    %131 = vector.load %arg8[%c1_51, %c0_52, %c0_53] : memref<2x4x1xi32, #tpu.memory_space<vmem>>, vector<1x4x1xi32>
    %132 = vector.shape_cast %131 : vector<1x4x1xi32> to vector<4x1xi32>
    %133 = vector.broadcast %132 : vector<4x1xi32> to vector<4x4xi32>
    %134 = arith.cmpi eq, %133, %0 : vector<4x4xi32>
    %135 = arith.extui %134 : vector<4x4xi1> to vector<4x4xi32>
    %136 = arith.sitofp %135 : vector<4x4xi32> to vector<4x4xf32>
    %cst_54 = arith.constant dense<0.000000e+00> : vector<4x4xf32>
    %137 = tpu.matmul %5, %136, %cst_54 {dimension_numbers = #tpu.dot_dimension_numbers<[1], [0], [0], [1], [0, 0, 1, 1], [], []>} : vector<4x4xf32>, vector<4x4xf32>, vector<4x4xf32> -> vector<4x4xf32>
    %cst_55 = arith.constant 5.000000e-01 : f32
    %138 = vector.broadcast %cst_55 : f32 to vector<4x4xf32>
    %139 = arith.cmpf ogt, %137, %138 : vector<4x4xf32>
    %140 = vector.broadcast %108 : i32 to vector<4x4xi32>
    %141 = arith.cmpi slt, %0, %140 : vector<4x4xi32>
    %142 = vector.broadcast %108 : i32 to vector<4x4xi32>
    %143 = arith.cmpi slt, %1, %142 : vector<4x4xi32>
    %144 = arith.sitofp %108 : i32 to f32
    %145 = vector.broadcast %108 : i32 to vector<4x1xi32>
    %146 = arith.cmpi slt, %2, %145 : vector<4x1xi32>
    %147 = arith.extui %146 : vector<4x1xi1> to vector<4x1xi32>
    %148 = arith.sitofp %147 : vector<4x1xi32> to vector<4x1xf32>
    %cst_56 = arith.constant -1.000000e+09 : f32
    %149 = vector.broadcast %cst_56 : f32 to vector<4x4xf32>
    %150 = arith.select %139, %149, %130 : vector<4x4xi1>, vector<4x4xf32>
    %cst_57 = arith.constant -1.000000e+09 : f32
    %151 = vector.broadcast %cst_57 : f32 to vector<4x4xf32>
    %152 = arith.select %141, %150, %151 : vector<4x4xi1>, vector<4x4xf32>
    %cst_58 = arith.constant dense<0xFF800000> : vector<4xf32>
    %153 = vector.multi_reduction <maximumf>, %152, %cst_58 [1] : vector<4x4xf32> to vector<4xf32>
    %154 = vector.shape_cast %153 : vector<4xf32> to vector<4x1xf32>
    %155 = vector.broadcast %154 : vector<4x1xf32> to vector<4x4xf32>
    %156 = arith.subf %152, %155 : vector<4x4xf32>
    %157 = math.exp %156 : vector<4x4xf32>
    %cst_59 = arith.constant dense<0.000000e+00> : vector<4xf32>
    %158 = vector.multi_reduction <add>, %157, %cst_59 [1] : vector<4x4xf32> to vector<4xf32>
    %159 = vector.shape_cast %158 : vector<4xf32> to vector<4x1xf32>
    %160 = math.log %159 : vector<4x1xf32>
    %161 = arith.addf %160, %154 : vector<4x1xf32>
    %162 = vector.broadcast %161 : vector<4x1xf32> to vector<4x4xf32>
    %163 = arith.subf %152, %162 : vector<4x4xf32>
    %164 = arith.mulf %163, %136 : vector<4x4xf32>
    %cst_60 = arith.constant dense<0.000000e+00> : vector<4xf32>
    %165 = vector.multi_reduction <add>, %164, %cst_60 [1] : vector<4x4xf32> to vector<4xf32>
    %166 = vector.shape_cast %165 : vector<4xf32> to vector<4x1xf32>
    %cst_61 = arith.constant 0.000000e+00 : f32
    %167 = vector.broadcast %cst_61 : f32 to vector<4x1xf32>
    %168 = arith.subf %167, %166 : vector<4x1xf32>
    %169 = arith.mulf %168, %148 : vector<4x1xf32>
    %170 = vector.shape_cast %169 : vector<4x1xf32> to vector<1x4x1xf32>
    %cst_62 = arith.constant dense<0.000000e+00> : vector<1xf32>
    %171 = vector.multi_reduction <add>, %170, %cst_62 [1, 2] : vector<1x4x1xf32> to vector<1xf32>
    %172 = vector.shape_cast %171 : vector<1xf32> to vector<1x1x1xf32>
    %173 = vector.extract %172[0, 0, 0] : f32 from vector<1x1x1xf32>
    %cst_63 = arith.constant 9.99999968E-21 : f32
    %174 = arith.addf %144, %cst_63 : f32
    %cst_64 = arith.constant 1.000000e+00 : f32
    %175 = arith.subf %174, %cst_64 : f32
    %176 = arith.divf %173, %175 : f32
    %cst_65 = arith.constant -1.000000e+09 : f32
    %177 = vector.broadcast %cst_65 : f32 to vector<4x4xf32>
    %178 = arith.select %141, %130, %177 : vector<4x4xi1>, vector<4x4xf32>
    %cst_66 = arith.constant -1.000000e+09 : f32
    %179 = vector.broadcast %cst_66 : f32 to vector<4x4xf32>
    %180 = arith.select %143, %178, %179 : vector<4x4xi1>, vector<4x4xf32>
    %cst_67 = arith.constant dense<0xFF800000> : vector<4xf32>
    %181 = vector.multi_reduction <maximumf>, %180, %cst_67 [0] : vector<4x4xf32> to vector<4xf32>
    %182 = vector.shape_cast %181 : vector<4xf32> to vector<1x4xf32>
    %183 = vector.broadcast %182 : vector<1x4xf32> to vector<4x4xf32>
    %184 = arith.subf %180, %183 : vector<4x4xf32>
    %185 = math.exp %184 : vector<4x4xf32>
    %cst_68 = arith.constant dense<0.000000e+00> : vector<4xf32>
    %186 = vector.multi_reduction <add>, %185, %cst_68 [0] : vector<4x4xf32> to vector<4xf32>
    %187 = vector.shape_cast %186 : vector<4xf32> to vector<1x4xf32>
    %188 = math.log %187 : vector<1x4xf32>
    %189 = arith.addf %188, %182 : vector<1x4xf32>
    %190 = vector.broadcast %189 : vector<1x4xf32> to vector<4x4xf32>
    %191 = arith.subf %180, %190 : vector<4x4xf32>
    %192 = arith.mulf %191, %136 : vector<4x4xf32>
    %cst_69 = arith.constant dense<0.000000e+00> : vector<4xf32>
    %193 = vector.multi_reduction <add>, %192, %cst_69 [1] : vector<4x4xf32> to vector<4xf32>
    %194 = vector.shape_cast %193 : vector<4xf32> to vector<4x1xf32>
    %cst_70 = arith.constant 0.000000e+00 : f32
    %195 = vector.broadcast %cst_70 : f32 to vector<4x1xf32>
    %196 = arith.subf %195, %194 : vector<4x1xf32>
    %197 = arith.mulf %196, %148 : vector<4x1xf32>
    %198 = vector.shape_cast %197 : vector<4x1xf32> to vector<1x4x1xf32>
    %cst_71 = arith.constant dense<0.000000e+00> : vector<1xf32>
    %199 = vector.multi_reduction <add>, %198, %cst_71 [1, 2] : vector<1x4x1xf32> to vector<1xf32>
    %200 = vector.shape_cast %199 : vector<1xf32> to vector<1x1x1xf32>
    %201 = vector.extract %200[0, 0, 0] : f32 from vector<1x1x1xf32>
    %202 = arith.divf %201, %144 : f32
    %cst_72 = arith.constant 9.99999968E-21 : f32
    %203 = arith.addf %144, %cst_72 : f32
    %cst_73 = arith.constant 1.000000e+00 : f32
    %204 = arith.subf %203, %cst_73 : f32
    %205 = arith.divf %202, %204 : f32
    %206 = arith.addf %107, %176 : f32
    %207 = arith.addf %206, %205 : f32
    %cst_74 = arith.constant 2.000000e+00 : f32
    %208 = arith.divf %207, %cst_74 : f32
    %cst_75 = arith.constant 1.000000e+00 : f32
    %209 = vector.broadcast %cst_75 : f32 to vector<1x1xf32>
    %210 = vector.broadcast %208 : f32 to vector<1x1xf32>
    %211 = arith.mulf %210, %209 : vector<1x1xf32>
    %c0_76 = arith.constant 0 : index
    %c0_77 = arith.constant 0 : index
    %212 = vector.load %arg9[%c0_76, %c0_77] : memref<1x1xf32, #tpu.memory_space<vmem>>, vector<1x1xf32>
    tpu.vector_store %arg9[%c0_76, %c0_77], %211 {strides = array<i32>} : memref<1x1xf32, #tpu.memory_space<vmem>>, vector<1x1xf32>,
    return
  }
  func.func @transform_0(%arg0: i32, %arg1: memref<2xi32, #tpu.memory_space<smem>>) -> (i32, i32, i32) {
    %c0_i32 = arith.constant 0 : i32
    %c0_i32_0 = arith.constant 0 : i32
    %c0_i32_1 = arith.constant 0 : i32
    %c0_i32_2 = arith.constant 0 : i32
    return %c0_i32, %c0_i32_0, %c0_i32_1 : i32, i32, i32
  }
  func.func @transform_1(%arg0: i32, %arg1: memref<2xi32, #tpu.memory_space<smem>>) -> (i32, i32, i32) {
    %c0_i32 = arith.constant 0 : i32
    %c0_i32_0 = arith.constant 0 : i32
    %c0_i32_1 = arith.constant 0 : i32
    %c0_i32_2 = arith.constant 0 : i32
    return %c0_i32, %c0_i32_0, %c0_i32_1 : i32, i32, i32
  }
  func.func @transform_2(%arg0: i32, %arg1: memref<2xi32, #tpu.memory_space<smem>>) -> (i32, i32) {
    %c0_i32 = arith.constant 0 : i32
    %c0_i32_0 = arith.constant 0 : i32
    %c0_i32_1 = arith.constant 0 : i32
    return %c0_i32, %c0_i32_0 : i32, i32
  }
  func.func @transform_3(%arg0: i32, %arg1: memref<2xi32, #tpu.memory_space<smem>>) -> (i32, i32) {
    %c0_i32 = arith.constant 0 : i32
    %c0_i32_0 = arith.constant 0 : i32
    %c0_i32_1 = arith.constant 0 : i32
    return %c0_i32, %c0_i32_0 : i32, i32
  }
  func.func @transform_4(%arg0: i32, %arg1: memref<2xi32, #tpu.memory_space<smem>>) -> (i32, i32) {
    %c0_i32 = arith.constant 0 : i32
    %c0_i32_0 = arith.constant 0 : i32
    %c0_i32_1 = arith.constant 0 : i32
    return %c0_i32, %c0_i32_0 : i32, i32
  }
  func.func @transform_5(%arg0: i32, %arg1: memref<2xi32, #tpu.memory_space<smem>>) -> (i32, i32) {
    %c0_i32 = arith.constant 0 : i32
    %c0_i32_0 = arith.constant 0 : i32
    %c0_i32_1 = arith.constant 0 : i32
    return %c0_i32, %c0_i32_0 : i32, i32
  }
  func.func @transform_6(%arg0: i32, %arg1: memref<2xi32, #tpu.memory_space<smem>>) -> (i32, i32, i32) {
    %c0_i32 = arith.constant 0 : i32
    %c0_i32_0 = arith.constant 0 : i32
    %c0_i32_1 = arith.constant 0 : i32
    %c0_i32_2 = arith.constant 0 : i32
    return %c0_i32, %c0_i32_0, %c0_i32_1 : i32, i32, i32
  }
  func.func @transform_7(%arg0: i32, %arg1: memref<2xi32, #tpu.memory_space<smem>>) -> (i32, i32) {
    %c0_i32 = arith.constant 0 : i32
    %c0_i32_0 = arith.constant 0 : i32
    %c0_i32_1 = arith.constant 0 : i32
    return %c0_i32, %c0_i32_0 : i32, i32
  }
}

</mosaic_0001>

<llo_original>
// kernel: forward.6
$region0: #{forward.6}
  #allocation0 [shape = 'u32[]', space=smem, size = 0x4, offset = 0x4, fixed_abs, tag = 'smem constant byte address 0x4 - core index']
  #allocation1 [shape = 'u32[144,128]{1,0:T(1,128)}', space=vmem, size = 0x12000, scoped, tag = 'internal scratch']
  %s0 = inlined_call_operand.vmem [shape: f32[2,4,64], index: 0, kind: input, shape index: {}]
  %s1 = inlined_call_operand.vmem [shape: f32[4,32], index: 1, kind: input, shape index: {}]
  %s2 = inlined_call_operand.vmem [shape: bf16[64,32], index: 2, kind: input, shape index: {}]
  %s3 = inlined_call_operand.vmem [shape: f32[1,32], index: 3, kind: input, shape index: {}]
  %s4 = inlined_call_operand.vmem [shape: bf16[32,32], index: 4, kind: input, shape index: {}]
  %s5 = inlined_call_operand.vmem [shape: f32[1,32], index: 5, kind: input, shape index: {}]
  %s6 = inlined_call_operand.vmem [shape: bf16[32,32], index: 6, kind: input, shape index: {}]
  %s7 = inlined_call_operand.vmem [shape: f32[1,32], index: 7, kind: input, shape index: {}]
  %s8 = inlined_call_operand.vmem [shape: f32[2,4,32], index: 8, kind: output, shape index: {0}]
  %s9 = inlined_call_operand.vmem [shape: f32[2,4,32], index: 9, kind: output, shape index: {1}]
  %s10 = inlined_call_operand.vmem [shape: f32[2,4,32], index: 10, kind: output, shape index: {2}]
  %11 = xla_tuple %s8, %s9, %s10
  %s12 = sld [smem:[#allocation0]]
  $region81: #{forward.6} parent=0
    _
  %s14 = ssub.s32 1, %s12
  %s15 = scalar_select 0, %s14, %s12
  loop: start=0, step=1, limit=4
  $region2: #{forward.6} parent=0 // loop_pre_header
    _
  $region3: #{forward.6} parent=0 // loop_header
    %s17 = sphi 0, %s21
    %p18 = scmp.ge.s32.totalorder %s17, 4
    %s27 = sphi 0, %s29
    %s30 = sphi 0, %s27
    %s31 = sphi 0, %s30
    %s47 = sphi 0, %s31
    %s51 = sphi 0, %s51
    %s53 = sphi 0, %s51
    %s54 = sphi 0, %s53
    %s68 = sphi 0, %s54
    %s72 = sphi 0, %s72
    %s74 = sphi 0, %s72
    %s75 = sphi 0, %s74
    %s89 = sphi 0, %s75
    %s93 = sphi 0, %s93
    %s95 = sphi 0, %s93
    %s96 = sphi 0, %s95
    %s110 = sphi 0, %s96
    %s114 = sphi 0, %s114
    %s116 = sphi 0, %s114
    %s117 = sphi 0, %s116
    %s131 = sphi 0, %s117
    %s135 = sphi 0, %s135
    %s137 = sphi 0, %s135
    %s138 = sphi 0, %s137
    %s152 = sphi 0, %s138
    %s156 = sphi 0, %s156
    %s158 = sphi 0, %s156
    %s159 = sphi 0, %s158
    %s173 = sphi 0, %s159
    %s177 = sphi 0, %s177
    %s179 = sphi 0, %s177
    %s180 = sphi 0, %s179
    %s194 = sphi 0, %s180
    %s200 = sphi 0, %s202
    %s203 = sphi 0, %s200
    %s204 = sphi 0, %s203
    %s220 = sphi 0, %s204
    %s226 = sphi 0, %s228
    %s229 = sphi 0, %s226
    %s230 = sphi 0, %s229
    %s246 = sphi 0, %s230
    %s252 = sphi 0, %s254
    %s255 = sphi 0, %s252
    %s256 = sphi 0, %s255
    %s272 = sphi 0, %s256
  $region4: #{forward.6} parent=0 // loop_header_branch
    %20 = sbr.rel (%p18) target = $region8
  $region5: #{forward.6} parent=0 // loop_body
    %s22 = ssub.s32 %s17, 1
    %s23 = ssub.s32 %s17, 2
    %s24 = sadd.s32 %s17, 1
    %s25 = ssub.s32 %s17, %s24
    %p26 = scmp.eq.s32.totalorder %s25, 0
    %s28 = sadd.s32 %s27, 1
    %s29 = scalar_select %p26, %s27, %s28
    %p32 = pneg %p26
    %p33 = scmp.eq.s32.totalorder %s17, 1
    %p34 = por %p32, %p33
    %p35 = scmp.ne.s32.totalorder %s27, %s30
    %p36 = scmp.eq.s32.totalorder %s17, 0
    %p37 = por %p35, %p36
    %p38 = scmp.ne.s32.totalorder %s27, %s30
    %p39 = scmp.eq.s32.totalorder %s22, 1
    %p40 = por %p38, %p39
    %p41 = scmp.ne.s32.totalorder %s30, %s31
    %p42 = scmp.eq.s32.totalorder %s22, 0
    %p43 = por %p41, %p42
    %p44 = scmp.ne.s32.totalorder %s30, %s31
    %p45 = scmp.eq.s32.totalorder %s23, 1
    %p46 = por %p44, %p45
    %p48 = scmp.ne.s32.totalorder %s31, %s47
    %p49 = scmp.eq.s32.totalorder %s23, 0
    %p50 = por %p48, %p49
    %s52 = sadd.s32 %s51, 1
    %p55 = scmp.eq.s32.totalorder %s17, 1
    %p56 = scmp.ne.s32.totalorder %s51, %s53
    %p57 = scmp.eq.s32.totalorder %s17, 0
    %p58 = por %p56, %p57
    %p59 = scmp.ne.s32.totalorder %s51, %s53
    %p60 = scmp.eq.s32.totalorder %s22, 1
    %p61 = por %p59, %p60
    %p62 = scmp.ne.s32.totalorder %s53, %s54
    %p63 = scmp.eq.s32.totalorder %s22, 0
    %p64 = por %p62, %p63
    %p65 = scmp.ne.s32.totalorder %s53, %s54
    %p66 = scmp.eq.s32.totalorder %s23, 1
    %p67 = por %p65, %p66
    %p69 = scmp.ne.s32.totalorder %s54, %s68
    %p70 = scmp.eq.s32.totalorder %s23, 0
    %p71 = por %p69, %p70
    %s73 = sadd.s32 %s72, 1
    %p76 = scmp.eq.s32.totalorder %s17, 1
    %p77 = scmp.ne.s32.totalorder %s72, %s74
    %p78 = scmp.eq.s32.totalorder %s17, 0
    %p79 = por %p77, %p78
    %p80 = scmp.ne.s32.totalorder %s72, %s74
    %p81 = scmp.eq.s32.totalorder %s22, 1
    %p82 = por %p80, %p81
    %p83 = scmp.ne.s32.totalorder %s74, %s75
    %p84 = scmp.eq.s32.totalorder %s22, 0
    %p85 = por %p83, %p84
    %p86 = scmp.ne.s32.totalorder %s74, %s75
    %p87 = scmp.eq.s32.totalorder %s23, 1
    %p88 = por %p86, %p87
    %p90 = scmp.ne.s32.totalorder %s75, %s89
    %p91 = scmp.eq.s32.totalorder %s23, 0
    %p92 = por %p90, %p91
    %s94 = sadd.s32 %s93, 1
    %p97 = scmp.eq.s32.totalorder %s17, 1
    %p98 = scmp.ne.s32.totalorder %s93, %s95
    %p99 = scmp.eq.s32.totalorder %s17, 0
    %p100 = por %p98, %p99
    %p101 = scmp.ne.s32.totalorder %s93, %s95
    %p102 = scmp.eq.s32.totalorder %s22, 1
    %p103 = por %p101, %p102
    %p104 = scmp.ne.s32.totalorder %s95, %s96
    %p105 = scmp.eq.s32.totalorder %s22, 0
    %p106 = por %p104, %p105
    %p107 = scmp.ne.s32.totalorder %s95, %s96
    %p108 = scmp.eq.s32.totalorder %s23, 1
    %p109 = por %p107, %p108
    %p111 = scmp.ne.s32.totalorder %s96, %s110
    %p112 = scmp.eq.s32.totalorder %s23, 0
    %p113 = por %p111, %p112
    %s115 = sadd.s32 %s114, 1
    %p118 = scmp.eq.s32.totalorder %s17, 1
    %p119 = scmp.ne.s32.totalorder %s114, %s116
    %p120 = scmp.eq.s32.totalorder %s17, 0
    %p121 = por %p119, %p120
    %p122 = scmp.ne.s32.totalorder %s114, %s116
    %p123 = scmp.eq.s32.totalorder %s22, 1
    %p124 = por %p122, %p123
    %p125 = scmp.ne.s32.totalorder %s116, %s117
    %p126 = scmp.eq.s32.totalorder %s22, 0
    %p127 = por %p125, %p126
    %p128 = scmp.ne.s32.totalorder %s116, %s117
    %p129 = scmp.eq.s32.totalorder %s23, 1
    %p130 = por %p128, %p129
    %p132 = scmp.ne.s32.totalorder %s117, %s131
    %p133 = scmp.eq.s32.totalorder %s23, 0
    %p134 = por %p132, %p133
    %s136 = sadd.s32 %s135, 1
    %p139 = scmp.eq.s32.totalorder %s17, 1
    %p140 = scmp.ne.s32.totalorder %s135, %s137
    %p141 = scmp.eq.s32.totalorder %s17, 0
    %p142 = por %p140, %p141
    %p143 = scmp.ne.s32.totalorder %s135, %s137
    %p144 = scmp.eq.s32.totalorder %s22, 1
    %p145 = por %p143, %p144
    %p146 = scmp.ne.s32.totalorder %s137, %s138
    %p147 = scmp.eq.s32.totalorder %s22, 0
    %p148 = por %p146, %p147
    %p149 = scmp.ne.s32.totalorder %s137, %s138
    %p150 = scmp.eq.s32.totalorder %s23, 1
    %p151 = por %p149, %p150
    %p153 = scmp.ne.s32.totalorder %s138, %s152
    %p154 = scmp.eq.s32.totalorder %s23, 0
    %p155 = por %p153, %p154
    %s157 = sadd.s32 %s156, 1
    %p160 = scmp.eq.s32.totalorder %s17, 1
    %p161 = scmp.ne.s32.totalorder %s156, %s158
    %p162 = scmp.eq.s32.totalorder %s17, 0
    %p163 = por %p161, %p162
    %p164 = scmp.ne.s32.totalorder %s156, %s158
    %p165 = scmp.eq.s32.totalorder %s22, 1
    %p166 = por %p164, %p165
    %p167 = scmp.ne.s32.totalorder %s158, %s159
    %p168 = scmp.eq.s32.totalorder %s22, 0
    %p169 = por %p167, %p168
    %p170 = scmp.ne.s32.totalorder %s158, %s159
    %p171 = scmp.eq.s32.totalorder %s23, 1
    %p172 = por %p170, %p171
    %p174 = scmp.ne.s32.totalorder %s159, %s173
    %p175 = scmp.eq.s32.totalorder %s23, 0
    %p176 = por %p174, %p175
    %s178 = sadd.s32 %s177, 1
    %p181 = scmp.eq.s32.totalorder %s17, 1
    %p182 = scmp.ne.s32.totalorder %s177, %s179
    %p183 = scmp.eq.s32.totalorder %s17, 0
    %p184 = por %p182, %p183
    %p185 = scmp.ne.s32.totalorder %s177, %s179
    %p186 = scmp.eq.s32.totalorder %s22, 1
    %p187 = por %p185, %p186
    %p188 = scmp.ne.s32.totalorder %s179, %s180
    %p189 = scmp.eq.s32.totalorder %s22, 0
    %p190 = por %p188, %p189
    %p191 = scmp.ne.s32.totalorder %s179, %s180
    %p192 = scmp.eq.s32.totalorder %s23, 1
    %p193 = por %p191, %p192
    %p195 = scmp.ne.s32.totalorder %s180, %s194
    %p196 = scmp.eq.s32.totalorder %s23, 0
    %p197 = por %p195, %p196
    %s198 = ssub.s32 %s17, %s24
    %p199 = scmp.eq.s32.totalorder %s198, 0
    %s201 = sadd.s32 %s200, 1
    %s202 = scalar_select %p199, %s200, %s201
    %p205 = pneg %p199
    %p206 = scmp.eq.s32.totalorder %s17, 1
    %p207 = por %p205, %p206
    %p208 = scmp.ne.s32.totalorder %s200, %s203
    %p209 = scmp.eq.s32.totalorder %s17, 0
    %p210 = por %p208, %p209
    %p211 = scmp.ne.s32.totalorder %s200, %s203
    %p212 = scmp.eq.s32.totalorder %s22, 1
    %p213 = por %p211, %p212
    %p214 = scmp.ne.s32.totalorder %s203, %s204
    %p215 = scmp.eq.s32.totalorder %s22, 0
    %p216 = por %p214, %p215
    %p217 = scmp.ne.s32.totalorder %s203, %s204
    %p218 = scmp.eq.s32.totalorder %s23, 1
    %p219 = por %p217, %p218
    %p221 = scmp.ne.s32.totalorder %s204, %s220
    %p222 = scmp.eq.s32.totalorder %s23, 0
    %p223 = por %p221, %p222
    %s224 = ssub.s32 %s17, %s24
    %p225 = scmp.eq.s32.totalorder %s224, 0
    %s227 = sadd.s32 %s226, 1
    %s228 = scalar_select %p225, %s226, %s227
    %p231 = pneg %p225
    %p232 = scmp.eq.s32.totalorder %s17, 1
    %p233 = por %p231, %p232
    %p234 = scmp.ne.s32.totalorder %s226, %s229
    %p235 = scmp.eq.s32.totalorder %s17, 0
    %p236 = por %p234, %p235
    %p237 = scmp.ne.s32.totalorder %s226, %s229
    %p238 = scmp.eq.s32.totalorder %s22, 1
    %p239 = por %p237, %p238
    %p240 = scmp.ne.s32.totalorder %s229, %s230
    %p241 = scmp.eq.s32.totalorder %s22, 0
    %p242 = por %p240, %p241
    %p243 = scmp.ne.s32.totalorder %s229, %s230
    %p244 = scmp.eq.s32.totalorder %s23, 1
    %p245 = por %p243, %p244
    %p247 = scmp.ne.s32.totalorder %s230, %s246
    %p248 = scmp.eq.s32.totalorder %s23, 0
    %p249 = por %p247, %p248
    %s250 = ssub.s32 %s17, %s24
    %p251 = scmp.eq.s32.totalorder %s250, 0
    %s253 = sadd.s32 %s252, 1
    %s254 = scalar_select %p251, %s252, %s253
    %p257 = pneg %p251
    %p258 = scmp.eq.s32.totalorder %s17, 1
    %p259 = por %p257, %p258
    %p260 = scmp.ne.s32.totalorder %s252, %s255
    %p261 = scmp.eq.s32.totalorder %s17, 0
    %p262 = por %p260, %p261
    %p263 = scmp.ne.s32.totalorder %s252, %s255
    %p264 = scmp.eq.s32.totalorder %s22, 1
    %p265 = por %p263, %p264
    %p266 = scmp.ne.s32.totalorder %s255, %s256
    %p267 = scmp.eq.s32.totalorder %s22, 0
    %p268 = por %p266, %p267
    %p269 = scmp.ne.s32.totalorder %s255, %s256
    %p270 = scmp.eq.s32.totalorder %s23, 1
    %p271 = por %p269, %p270
    %p273 = scmp.ne.s32.totalorder %s256, %s272
    %p274 = scmp.eq.s32.totalorder %s23, 0
    %p275 = por %p273, %p274
    %p276 = scmp.le.s32.totalorder 1, %s17
    %p277 = scmp.lt.s32.totalorder %s17, 3
    %p278 = pnand %p276, %p277
    %p279 = pneg %p278
    // Predicated region
    $region9: #{forward.6} parent=5 // pred_check
      _
    $region10: #{forward.6} parent=5 // pred_check_branch
      %281 = sbr.rel (%p278) target = $region12
    $region11: #{forward.6} parent=5 // pred_region
      %s282 = ssub.s32 %s17, 1
      // Predicated region
      $region13: #{forward.6} parent=11 // pred_check
        %p283 = pneg %p64
      $region14: #{forward.6} parent=11 // pred_check_branch
        %285 = sbr.rel (%p283) target = $region16
      $region15: #{forward.6} parent=11 // pred_region
        _
      $region16: #{forward.6} parent=11 // pred_fallthru
        _
      // Predicated region
      $region17: #{forward.6} parent=11 // pred_check
        %p286 = pneg %p85
      $region18: #{forward.6} parent=11 // pred_check_branch
        %288 = sbr.rel (%p286) target = $region20
      $region19: #{forward.6} parent=11 // pred_region
        _
      $region20: #{forward.6} parent=11 // pred_fallthru
        _
      // Predicated region
      $region21: #{forward.6} parent=11 // pred_check
        %p289 = pneg %p106
      $region22: #{forward.6} parent=11 // pred_check_branch
        %291 = sbr.rel (%p289) target = $region24
      $region23: #{forward.6} parent=11 // pred_region
        _
      $region24: #{forward.6} parent=11 // pred_fallthru
        _
      // Predicated region
      $region25: #{forward.6} parent=11 // pred_check
        %p292 = pneg %p127
      $region26: #{forward.6} parent=11 // pred_check_branch
        %294 = sbr.rel (%p292) target = $region28
      $region27: #{forward.6} parent=11 // pred_region
        _
      $region28: #{forward.6} parent=11 // pred_fallthru
        _
      // Predicated region
      $region29: #{forward.6} parent=11 // pred_check
        %p295 = pneg %p148
      $region30: #{forward.6} parent=11 // pred_check_branch
        %297 = sbr.rel (%p295) target = $region32
      $region31: #{forward.6} parent=11 // pred_region
        _
      $region32: #{forward.6} parent=11 // pred_fallthru
        _
      // Predicated region
      $region33: #{forward.6} parent=11 // pred_check
        %p298 = pneg %p169
      $region34: #{forward.6} parent=11 // pred_check_branch
        %300 = sbr.rel (%p298) target = $region36
      $region35: #{forward.6} parent=11 // pred_region
        _
      $region36: #{forward.6} parent=11 // pred_fallthru
        _
      // Predicated region
      $region37: #{forward.6} parent=11 // pred_check
        %p301 = pneg %p190
      $region38: #{forward.6} parent=11 // pred_check_branch
        %303 = sbr.rel (%p301) target = $region40
      $region39: #{forward.6} parent=11 // pred_region
        _
      $region40: #{forward.6} parent=11 // pred_fallthru
        _
    $region12: #{forward.6} parent=5 // pred_fallthru
      _
    %p304 = scmp.lt.s32.totalorder %s17, 2
    // Predicated region
    $region41: #{forward.6} parent=5 // pred_check
      %p305 = pneg %p304
    $region42: #{forward.6} parent=5 // pred_check_branch
      %307 = sbr.rel (%p305) target = $region44
    $region43: #{forward.6} parent=5 // pred_region
      // Predicated region
      $region45: #{forward.6} parent=43 // pred_check
        %p308 = pneg %p37
      $region46: #{forward.6} parent=43 // pred_check_branch
        %310 = sbr.rel (%p308) target = $region48
      $region47: #{forward.6} parent=43 // pred_region
        %p311 = scmp.lt.s32.totalorder %s17, 1
        %s312 = scalar_select %p311, %s17, 1
        %s313 = smul.addr %s312, 4
        %s314 = scalar_lea.vmem %s0, %s313
      $region48: #{forward.6} parent=43 // pred_fallthru
        _
    $region44: #{forward.6} parent=5 // pred_fallthru
      _
    %p315 = scmp.le.s32.totalorder 1, %s17
    %p316 = scmp.lt.s32.totalorder %s17, 3
    %p317 = pnand %p315, %p316
    %p318 = pneg %p317
    // Predicated region
    $region49: #{forward.6} parent=5 // pred_check
      _
    $region50: #{forward.6} parent=5 // pred_check_branch
      %320 = sbr.rel (%p317) target = $region52
    $region51: #{forward.6} parent=5 // pred_region
      %s321 = ssub.s32 %s17, 1
      %p322 = scmp.lt.s32.totalorder %s22, 1
      %s323 = scalar_select %p322, %s22, 1
      %s324 = smul.addr %s323, 4
      %s325 = scalar_lea.vmem %s0, %s324
      %p326 = pneg %p43
      %p327 = pneg %p40
      %p328 = pneg %p64
      %p329 = pneg %p61
      %p330 = pneg %p85
      %p331 = pneg %p82
      %p332 = pneg %p106
      %p333 = pneg %p103
      %p334 = pneg %p127
      %p335 = pneg %p124
      %p336 = pneg %p148
      %p337 = pneg %p145
      %p338 = pneg %p169
      %p339 = pneg %p166
      %p340 = pneg %p190
      %p341 = pneg %p187
      %p342 = pneg %p216
      %p343 = pneg %p213
      %p344 = scmp.lt.s32.totalorder %s22, 1
      %s345 = scalar_select %p344, %s22, 1
      %s346 = smul.addr %s345, 4
      %s347 = scalar_lea.vmem %s8, %s346
      %p348 = pneg %p242
      %p349 = pneg %p239
      %p350 = scmp.lt.s32.totalorder %s22, 1
      %s351 = scalar_select %p350, %s22, 1
      %s352 = smul.addr %s351, 4
      %s353 = scalar_lea.vmem %s9, %s352
      %p354 = pneg %p268
      %p355 = pneg %p265
      %p356 = scmp.lt.s32.totalorder %s22, 1
      %s357 = scalar_select %p356, %s22, 1
      %s358 = smul.addr %s357, 4
      %s359 = scalar_lea.vmem %s10, %s358
      %p360 = scmp.lt.s32.totalorder %s22, 1
      %s361 = scalar_select %p360, %s22, 1
      %s362 = smul.addr %s361, 4
      %s363 = scalar_lea.vmem %s0, %s362
      %p364 = scmp.lt.s32.totalorder %s22, 1
      %s365 = scalar_select %p364, %s22, 1
      %s366 = smul.addr %s365, 4
      %s367 = scalar_lea.vmem %s8, %s366
      %p368 = scmp.lt.s32.totalorder %s22, 1
      %s369 = scalar_select %p368, %s22, 1
      %s370 = smul.addr %s369, 4
      %s371 = scalar_lea.vmem %s9, %s370
      %p372 = scmp.lt.s32.totalorder %s22, 1
      %s373 = scalar_select %p372, %s22, 1
      %s374 = smul.addr %s373, 4
      %s375 = scalar_lea.vmem %s10, %s374
      %v377 = vld [vmem:[%s363] sm:$0xf]
      %v378 = vpack.c.bf16 %v377, %v377
      %v379 = vld [vmem:[%s2] sm:$0xf]
      %v380 = vld [vmem:[%s2 + $0x4] sm:$0xf]
      %v381 = vld [vmem:[%s2 + $0x8] sm:$0xf]
      %v382 = vld [vmem:[%s2 + $0xc] sm:$0xf]
      %v383 = vld [vmem:[%s2 + $0x10] sm:$0xf]
      %v384 = vld [vmem:[%s2 + $0x14] sm:$0xf]
      %v385 = vld [vmem:[%s2 + $0x18] sm:$0xf]
      %v386 = vld [vmem:[%s2 + $0x1c] sm:$0xf]
      %v387 = vld [vmem:[%s3] sm:$0x1]
      %v389 = vlaneseq
      %v390 = vshrl.u32 %v389, 7
      %v391 = vsub.s32 0, %v390
      %v392 = vrot.slane %v387, %v391
      %v402 = vunpack.c.l.b16 %v379
      %v403 = vunpack.c.l.b16 %v380
      %v404 = vunpack.c.l.b16 %v381
      %v405 = vunpack.c.l.b16 %v382
      %v406 = vunpack.c.l.b16 %v383
      %v407 = vunpack.c.l.b16 %v384
      %v408 = vunpack.c.l.b16 %v385
      %v409 = vunpack.c.l.b16 %v386
      %v410 = vpack.c.b16 %v403, %v402
      %v411 = vpack.c.b16 %v405, %v404
      %v412 = vpack.c.b16 %v407, %v406
      %v413 = vpack.c.b16 %v409, %v408
      %vm418 = vcmask 523264
      %v420 = vsel %vm418, %v378, 0
      %422 = vmatprep.subr.bf16.mxu0 0
      %423 = vmatpush1.bf16.msra.mxu0 %v410
      %424 = vmatprep.subr.bf16.mxu0 0
      %425 = vmatpush1.bf16.msra.mxu0 %v411
      %426 = vmatprep.subr.bf16.mxu0 0
      %427 = vmatpush1.bf16.msra.mxu0 %v412
      %428 = vmatprep.subr.bf16.mxu0 0
      %429 = vmatpush1.bf16.msra.mxu0 %v413
      %430 = vmatprep.subr.bf16.mxu0 0
      %431 = vmatpush1.bf16.msra.mxu0 0
      %432 = vmatprep.subr.bf16.mxu0 0
      %433 = vmatpush1.bf16.msra.mxu0 0
      %434 = vmatprep.subr.bf16.mxu0 0
      %435 = vmatpush1.bf16.msra.mxu0 0
      %436 = vmatprep.subr.bf16.mxu0 0
      %437 = vmatpush1.bf16.msra.mxu0 0
      %438 = vmatprep.subr.bf16.mxu0 0
      %439 = vmatpush1.bf16.msra.mxu0 0
      %440 = vmatprep.subr.bf16.mxu0 0
      %441 = vmatpush1.bf16.msra.mxu0 0
      %442 = vmatprep.subr.bf16.mxu0 0
      %443 = vmatpush1.bf16.msra.mxu0 0
      %444 = vmatprep.subr.bf16.mxu0 0
      %445 = vmatpush1.bf16.msra.mxu0 0
      %446 = vmatprep.subr.bf16.mxu0 0
      %447 = vmatpush1.bf16.msra.mxu0 0
      %448 = vmatprep.subr.bf16.mxu0 0
      %449 = vmatpush1.bf16.msra.mxu0 0
      %450 = vmatprep.subr.bf16.mxu0 0
      %451 = vmatpush1.bf16.msra.mxu0 0
      %452 = vmatprep.subr.bf16.mxu0 0
      %453 = vmatpush1.bf16.msra.mxu0 0
      %454 = vmatprep.mubr.bf16.mxu0 0
      %455 = vmatmul.mubr.bf16.gmra.mrb[0].mxu0 %v420
      %v456 = vpop.f32.mrb[0].mxu0
      %v457 = vadd.f32 %v392, %v456
      %v458 = vpop.f32.mrb[0].mxu0
      %v459 = vpop.f32.mrb[0].mxu0
      %v460 = vpop.f32.mrb[0].mxu0
      %461 = vdwg.mxu0
      %vm462 = vcmask 257024
      %463 = vst.msk [vmem:[%s367] sm:$0xf] %vm462, %v457
      %v464 = vpack.c.bf16 %v457, %v457
      %v465 = vld [vmem:[%s6] sm:$0xf]
      %v466 = vld [vmem:[%s6 + $0x4] sm:$0xf]
      %v467 = vld [vmem:[%s6 + $0x8] sm:$0xf]
      %v468 = vld [vmem:[%s6 + $0xc] sm:$0xf]
      %v469 = vld [vmem:[%s7] sm:$0x1]
      %v471 = vlaneseq
      %v472 = vshrl.u32 %v471, 7
      %v473 = vsub.s32 0, %v472
      %v474 = vrot.slane %v469, %v473
      %v480 = vunpack.c.l.b16 %v465
      %v481 = vunpack.c.l.b16 %v466
      %v482 = vunpack.c.l.b16 %v467
      %v483 = vunpack.c.l.b16 %v468
      %v484 = vpack.c.b16 %v481, %v480
      %v485 = vpack.c.b16 %v483, %v482
      %vm488 = vcmask 261120
      %v490 = vsel %vm488, %v464, 0
      %492 = vmatprep.subr.bf16.mxu0 0
      %493 = vmatpush1.bf16.msra.mxu0 %v484
      %494 = vmatprep.subr.bf16.mxu0 0
      %495 = vmatpush1.bf16.msra.mxu0 %v485
      %496 = vmatprep.subr.bf16.mxu0 0
      %497 = vmatpush1.bf16.msra.mxu0 0
      %498 = vmatprep.subr.bf16.mxu0 0
      %499 = vmatpush1.bf16.msra.mxu0 0
      %500 = vmatprep.subr.bf16.mxu0 0
      %501 = vmatpush1.bf16.msra.mxu0 0
      %502 = vmatprep.subr.bf16.mxu0 0
      %503 = vmatpush1.bf16.msra.mxu0 0
      %504 = vmatprep.subr.bf16.mxu0 0
      %505 = vmatpush1.bf16.msra.mxu0 0
      %506 = vmatprep.subr.bf16.mxu0 0
      %507 = vmatpush1.bf16.msra.mxu0 0
      %508 = vmatprep.subr.bf16.mxu0 0
      %509 = vmatpush1.bf16.msra.mxu0 0
      %510 = vmatprep.subr.bf16.mxu0 0
      %511 = vmatpush1.bf16.msra.mxu0 0
      %512 = vmatprep.subr.bf16.mxu0 0
      %513 = vmatpush1.bf16.msra.mxu0 0
      %514 = vmatprep.subr.bf16.mxu0 0
      %515 = vmatpush1.bf16.msra.mxu0 0
      %516 = vmatprep.subr.bf16.mxu0 0
      %517 = vmatpush1.bf16.msra.mxu0 0
      %518 = vmatprep.subr.bf16.mxu0 0
      %519 = vmatpush1.bf16.msra.mxu0 0
      %520 = vmatprep.subr.bf16.mxu0 0
      %521 = vmatpush1.bf16.msra.mxu0 0
      %522 = vmatprep.subr.bf16.mxu0 0
      %523 = vmatpush1.bf16.msra.mxu0 0
      %524 = vmatprep.mubr.bf16.mxu0 0
      %525 = vmatmul.mubr.bf16.gmra.mrb[0].mxu0 %v490
      %v526 = vpop.f32.mrb[0].mxu0
      %v527 = vadd.f32 %v474, %v526
      %v528 = vpop.f32.mrb[0].mxu0
      %v529 = vpop.f32.mrb[0].mxu0
      %v530 = vpop.f32.mrb[0].mxu0
      %531 = vdwg.mxu0
      %532 = vst.msk [vmem:[%s375] sm:$0xf] %vm462, %v527
      %v533 = vld [vmem:[%s1] sm:$0xf]
      %v534 = vpack.c.bf16 %v533, %v533
      %v535 = vld [vmem:[%s4] sm:$0xf]
      %v536 = vld [vmem:[%s4 + $0x4] sm:$0xf]
      %v537 = vld [vmem:[%s4 + $0x8] sm:$0xf]
      %v538 = vld [vmem:[%s4 + $0xc] sm:$0xf]
      %v539 = vld [vmem:[%s5] sm:$0x1]
      %v541 = vlaneseq
      %v542 = vshrl.u32 %v541, 7
      %v543 = vsub.s32 0, %v542
      %v544 = vrot.slane %v539, %v543
      %v550 = vunpack.c.l.b16 %v535
      %v551 = vunpack.c.l.b16 %v536
      %v552 = vunpack.c.l.b16 %v537
      %v553 = vunpack.c.l.b16 %v538
      %v554 = vpack.c.b16 %v551, %v550
      %v555 = vpack.c.b16 %v553, %v552
      %v559 = vsel %vm488, %v534, 0
      %561 = vmatprep.subr.bf16.mxu0 0
      %562 = vmatpush1.bf16.msra.mxu0 %v554
      %563 = vmatprep.subr.bf16.mxu0 0
      %564 = vmatpush1.bf16.msra.mxu0 %v555
      %565 = vmatprep.subr.bf16.mxu0 0
      %566 = vmatpush1.bf16.msra.mxu0 0
      %567 = vmatprep.subr.bf16.mxu0 0
      %568 = vmatpush1.bf16.msra.mxu0 0
      %569 = vmatprep.subr.bf16.mxu0 0
      %570 = vmatpush1.bf16.msra.mxu0 0
      %571 = vmatprep.subr.bf16.mxu0 0
      %572 = vmatpush1.bf16.msra.mxu0 0
      %573 = vmatprep.subr.bf16.mxu0 0
      %574 = vmatpush1.bf16.msra.mxu0 0
      %575 = vmatprep.subr.bf16.mxu0 0
      %576 = vmatpush1.bf16.msra.mxu0 0
      %577 = vmatprep.subr.bf16.mxu0 0
      %578 = vmatpush1.bf16.msra.mxu0 0
      %579 = vmatprep.subr.bf16.mxu0 0
      %580 = vmatpush1.bf16.msra.mxu0 0
      %581 = vmatprep.subr.bf16.mxu0 0
      %582 = vmatpush1.bf16.msra.mxu0 0
      %583 = vmatprep.subr.bf16.mxu0 0
      %584 = vmatpush1.bf16.msra.mxu0 0
      %585 = vmatprep.subr.bf16.mxu0 0
      %586 = vmatpush1.bf16.msra.mxu0 0
      %587 = vmatprep.subr.bf16.mxu0 0
      %588 = vmatpush1.bf16.msra.mxu0 0
      %589 = vmatprep.subr.bf16.mxu0 0
      %590 = vmatpush1.bf16.msra.mxu0 0
      %591 = vmatprep.subr.bf16.mxu0 0
      %592 = vmatpush1.bf16.msra.mxu0 0
      %593 = vmatprep.mubr.bf16.mxu0 0
      %594 = vmatmul.mubr.bf16.gmra.mrb[0].mxu0 %v559
      %v595 = vpop.f32.mrb[0].mxu0
      %v596 = vadd.f32 %v544, %v595
      %v597 = vpop.f32.mrb[0].mxu0
      %v598 = vpop.f32.mrb[0].mxu0
      %v599 = vpop.f32.mrb[0].mxu0
      %600 = vdwg.mxu0
      %601 = vst.msk [vmem:[%s371] sm:$0xf] %vm462, %v596
      %p602 = scmp.lt.s32.totalorder %s22, 1
      %s603 = scalar_select %p602, %s22, 1
      %s604 = smul.addr %s603, 4
      %s605 = scalar_lea.vmem %s8, %s604
      %p606 = scmp.lt.s32.totalorder %s22, 1
      %s607 = scalar_select %p606, %s22, 1
      %s608 = smul.addr %s607, 4
      %s609 = scalar_lea.vmem %s9, %s608
      %p610 = scmp.lt.s32.totalorder %s22, 1
      %s611 = scalar_select %p610, %s22, 1
      %s612 = smul.addr %s611, 4
      %s613 = scalar_lea.vmem %s10, %s612
      // Predicated region
      $region53: #{forward.6} parent=51 // pred_check
        %p614 = pneg %p213
      $region54: #{forward.6} parent=51 // pred_check_branch
        %616 = sbr.rel (%p614) target = $region56
      $region55: #{forward.6} parent=51 // pred_region
        _
      $region56: #{forward.6} parent=51 // pred_fallthru
        _
      // Predicated region
      $region57: #{forward.6} parent=51 // pred_check
        %p617 = pneg %p239
      $region58: #{forward.6} parent=51 // pred_check_branch
        %619 = sbr.rel (%p617) target = $region60
      $region59: #{forward.6} parent=51 // pred_region
        _
      $region60: #{forward.6} parent=51 // pred_fallthru
        _
      // Predicated region
      $region61: #{forward.6} parent=51 // pred_check
        %p620 = pneg %p265
      $region62: #{forward.6} parent=51 // pred_check_branch
        %622 = sbr.rel (%p620) target = $region64
      $region63: #{forward.6} parent=51 // pred_region
        _
      $region64: #{forward.6} parent=51 // pred_fallthru
        _
    $region52: #{forward.6} parent=5 // pred_fallthru
      _
    %p623 = scmp.le.s32.totalorder 2, %s17
    // Predicated region
    $region65: #{forward.6} parent=5 // pred_check
      %p624 = pneg %p623
    $region66: #{forward.6} parent=5 // pred_check_branch
      %626 = sbr.rel (%p624) target = $region68
    $region67: #{forward.6} parent=5 // pred_region
      %s627 = ssub.s32 %s17, 2
      // Predicated region
      $region69: #{forward.6} parent=67 // pred_check
        %p628 = pneg %p219
      $region70: #{forward.6} parent=67 // pred_check_branch
        %630 = sbr.rel (%p628) target = $region72
      $region71: #{forward.6} parent=67 // pred_region
        %p631 = scmp.lt.s32.totalorder %s23, 1
        %s632 = scalar_select %p631, %s23, 1
        %s633 = smul.addr %s632, 4
        %s634 = scalar_lea.vmem %s8, %s633
      $region72: #{forward.6} parent=67 // pred_fallthru
        _
      // Predicated region
      $region73: #{forward.6} parent=67 // pred_check
        %p635 = pneg %p245
      $region74: #{forward.6} parent=67 // pred_check_branch
        %637 = sbr.rel (%p635) target = $region76
      $region75: #{forward.6} parent=67 // pred_region
        %p638 = scmp.lt.s32.totalorder %s23, 1
        %s639 = scalar_select %p638, %s23, 1
        %s640 = smul.addr %s639, 4
        %s641 = scalar_lea.vmem %s9, %s640
      $region76: #{forward.6} parent=67 // pred_fallthru
        _
      // Predicated region
      $region77: #{forward.6} parent=67 // pred_check
        %p642 = pneg %p271
      $region78: #{forward.6} parent=67 // pred_check_branch
        %644 = sbr.rel (%p642) target = $region80
      $region79: #{forward.6} parent=67 // pred_region
        %p645 = scmp.lt.s32.totalorder %s23, 1
        %s646 = scalar_select %p645, %s23, 1
        %s647 = smul.addr %s646, 4
        %s648 = scalar_lea.vmem %s10, %s647
      $region80: #{forward.6} parent=67 // pred_fallthru
        _
    $region68: #{forward.6} parent=5 // pred_fallthru
      _
  $region6: #{forward.6} parent=0 // loop_footer
    %s21 = sadd.s32 1, %s17
  $region7: #{forward.6} parent=0 // loop_footer_branch
    %16 = sbr.rel target = $region3
  $region8: #{forward.6} parent=0 // loop_exit
    _

// kernel: forward.7
$region0: #{forward.7}
  #allocation0 [shape = 'u32[]', space=smem, size = 0x4, offset = 0x4, fixed_abs, tag = 'smem constant byte address 0x4 - core index']
  #allocation1 [shape = 'u32[144,128]{1,0:T(1,128)}', space=vmem, size = 0x12000, scoped, tag = 'internal scratch']
  %s0 = inlined_call_operand.vmem [shape: f32[2,4,32], index: 0, kind: input, shape index: {}]
  %s1 = inlined_call_operand.vmem [shape: f32[2,1,4], index: 1, kind: input, shape index: {}]
  %s2 = inlined_call_operand.vmem [shape: f32[6,32], index: 2, kind: input, shape index: {}]
  %s3 = inlined_call_operand.vmem [shape: bf16[32,96], index: 3, kind: input, shape index: {}]
  %s4 = inlined_call_operand.vmem [shape: f32[1,96], index: 4, kind: input, shape index: {}]
  %s5 = inlined_call_operand.vmem [shape: bf16[32,32], index: 5, kind: input, shape index: {}]
  %s6 = inlined_call_operand.vmem [shape: f32[1,32], index: 6, kind: input, shape index: {}]
  %s7 = inlined_call_operand.vmem [shape: bf16[32,64], index: 7, kind: input, shape index: {}]
  %s8 = inlined_call_operand.vmem [shape: f32[1,64], index: 8, kind: input, shape index: {}]
  %s9 = inlined_call_operand.vmem [shape: bf16[64,32], index: 9, kind: input, shape index: {}]
  %s10 = inlined_call_operand.vmem [shape: f32[1,32], index: 10, kind: input, shape index: {}]
  %s11 = inlined_call_operand.vmem [shape: f32[2,4,32], index: 11, kind: output, shape index: {}]
  %s12 = sld [smem:[#allocation0]]
  $region77: #{forward.7} parent=0
    _
  %s14 = ssub.s32 1, %s12
  %s15 = scalar_select 0, %s14, %s12
  loop: start=0, step=1, limit=4
  $region2: #{forward.7} parent=0 // loop_pre_header
    _
  $region3: #{forward.7} parent=0 // loop_header
    %s17 = sphi 0, %s21
    %p18 = scmp.ge.s32.totalorder %s17, 4
    %s27 = sphi 0, %s29
    %s30 = sphi 0, %s27
    %s31 = sphi 0, %s30
    %s47 = sphi 0, %s31
    %s53 = sphi 0, %s55
    %s56 = sphi 0, %s53
    %s57 = sphi 0, %s56
    %s73 = sphi 0, %s57
    %s77 = sphi 0, %s77
    %s79 = sphi 0, %s77
    %s80 = sphi 0, %s79
    %s94 = sphi 0, %s80
    %s98 = sphi 0, %s98
    %s100 = sphi 0, %s98
    %s101 = sphi 0, %s100
    %s115 = sphi 0, %s101
    %s119 = sphi 0, %s119
    %s121 = sphi 0, %s119
    %s122 = sphi 0, %s121
    %s136 = sphi 0, %s122
    %s140 = sphi 0, %s140
    %s142 = sphi 0, %s140
    %s143 = sphi 0, %s142
    %s157 = sphi 0, %s143
    %s161 = sphi 0, %s161
    %s163 = sphi 0, %s161
    %s164 = sphi 0, %s163
    %s178 = sphi 0, %s164
    %s182 = sphi 0, %s182
    %s184 = sphi 0, %s182
    %s185 = sphi 0, %s184
    %s199 = sphi 0, %s185
    %s203 = sphi 0, %s203
    %s205 = sphi 0, %s203
    %s206 = sphi 0, %s205
    %s220 = sphi 0, %s206
    %s224 = sphi 0, %s224
    %s226 = sphi 0, %s224
    %s227 = sphi 0, %s226
    %s241 = sphi 0, %s227
    %s245 = sphi 0, %s245
    %s247 = sphi 0, %s245
    %s248 = sphi 0, %s247
    %s262 = sphi 0, %s248
    %s268 = sphi 0, %s270
    %s271 = sphi 0, %s268
    %s272 = sphi 0, %s271
    %s288 = sphi 0, %s272
  $region4: #{forward.7} parent=0 // loop_header_branch
    %20 = sbr.rel (%p18) target = $region8
  $region5: #{forward.7} parent=0 // loop_body
    %s22 = ssub.s32 %s17, 1
    %s23 = ssub.s32 %s17, 2
    %s24 = sadd.s32 %s17, 1
    %s25 = ssub.s32 %s17, %s24
    %p26 = scmp.eq.s32.totalorder %s25, 0
    %s28 = sadd.s32 %s27, 1
    %s29 = scalar_select %p26, %s27, %s28
    %p32 = pneg %p26
    %p33 = scmp.eq.s32.totalorder %s17, 1
    %p34 = por %p32, %p33
    %p35 = scmp.ne.s32.totalorder %s27, %s30
    %p36 = scmp.eq.s32.totalorder %s17, 0
    %p37 = por %p35, %p36
    %p38 = scmp.ne.s32.totalorder %s27, %s30
    %p39 = scmp.eq.s32.totalorder %s22, 1
    %p40 = por %p38, %p39
    %p41 = scmp.ne.s32.totalorder %s30, %s31
    %p42 = scmp.eq.s32.totalorder %s22, 0
    %p43 = por %p41, %p42
    %p44 = scmp.ne.s32.totalorder %s30, %s31
    %p45 = scmp.eq.s32.totalorder %s23, 1
    %p46 = por %p44, %p45
    %p48 = scmp.ne.s32.totalorder %s31, %s47
    %p49 = scmp.eq.s32.totalorder %s23, 0
    %p50 = por %p48, %p49
    %s51 = ssub.s32 %s17, %s24
    %p52 = scmp.eq.s32.totalorder %s51, 0
    %s54 = sadd.s32 %s53, 1
    %s55 = scalar_select %p52, %s53, %s54
    %p58 = pneg %p52
    %p59 = scmp.eq.s32.totalorder %s17, 1
    %p60 = por %p58, %p59
    %p61 = scmp.ne.s32.totalorder %s53, %s56
    %p62 = scmp.eq.s32.totalorder %s17, 0
    %p63 = por %p61, %p62
    %p64 = scmp.ne.s32.totalorder %s53, %s56
    %p65 = scmp.eq.s32.totalorder %s22, 1
    %p66 = por %p64, %p65
    %p67 = scmp.ne.s32.totalorder %s56, %s57
    %p68 = scmp.eq.s32.totalorder %s22, 0
    %p69 = por %p67, %p68
    %p70 = scmp.ne.s32.totalorder %s56, %s57
    %p71 = scmp.eq.s32.totalorder %s23, 1
    %p72 = por %p70, %p71
    %p74 = scmp.ne.s32.totalorder %s57, %s73
    %p75 = scmp.eq.s32.totalorder %s23, 0
    %p76 = por %p74, %p75
    %s78 = sadd.s32 %s77, 1
    %p81 = scmp.eq.s32.totalorder %s17, 1
    %p82 = scmp.ne.s32.totalorder %s77, %s79
    %p83 = scmp.eq.s32.totalorder %s17, 0
    %p84 = por %p82, %p83
    %p85 = scmp.ne.s32.totalorder %s77, %s79
    %p86 = scmp.eq.s32.totalorder %s22, 1
    %p87 = por %p85, %p86
    %p88 = scmp.ne.s32.totalorder %s79, %s80
    %p89 = scmp.eq.s32.totalorder %s22, 0
    %p90 = por %p88, %p89
    %p91 = scmp.ne.s32.totalorder %s79, %s80
    %p92 = scmp.eq.s32.totalorder %s23, 1
    %p93 = por %p91, %p92
    %p95 = scmp.ne.s32.totalorder %s80, %s94
    %p96 = scmp.eq.s32.totalorder %s23, 0
    %p97 = por %p95, %p96
    %s99 = sadd.s32 %s98, 1
    %p102 = scmp.eq.s32.totalorder %s17, 1
    %p103 = scmp.ne.s32.totalorder %s98, %s100
    %p104 = scmp.eq.s32.totalorder %s17, 0
    %p105 = por %p103, %p104
    %p106 = scmp.ne.s32.totalorder %s98, %s100
    %p107 = scmp.eq.s32.totalorder %s22, 1
    %p108 = por %p106, %p107
    %p109 = scmp.ne.s32.totalorder %s100, %s101
    %p110 = scmp.eq.s32.totalorder %s22, 0
    %p111 = por %p109, %p110
    %p112 = scmp.ne.s32.totalorder %s100, %s101
    %p113 = scmp.eq.s32.totalorder %s23, 1
    %p114 = por %p112, %p113
    %p116 = scmp.ne.s32.totalorder %s101, %s115
    %p117 = scmp.eq.s32.totalorder %s23, 0
    %p118 = por %p116, %p117
    %s120 = sadd.s32 %s119, 1
    %p123 = scmp.eq.s32.totalorder %s17, 1
    %p124 = scmp.ne.s32.totalorder %s119, %s121
    %p125 = scmp.eq.s32.totalorder %s17, 0
    %p126 = por %p124, %p125
    %p127 = scmp.ne.s32.totalorder %s119, %s121
    %p128 = scmp.eq.s32.totalorder %s22, 1
    %p129 = por %p127, %p128
    %p130 = scmp.ne.s32.totalorder %s121, %s122
    %p131 = scmp.eq.s32.totalorder %s22, 0
    %p132 = por %p130, %p131
    %p133 = scmp.ne.s32.totalorder %s121, %s122
    %p134 = scmp.eq.s32.totalorder %s23, 1
    %p135 = por %p133, %p134
    %p137 = scmp.ne.s32.totalorder %s122, %s136
    %p138 = scmp.eq.s32.totalorder %s23, 0
    %p139 = por %p137, %p138
    %s141 = sadd.s32 %s140, 1
    %p144 = scmp.eq.s32.totalorder %s17, 1
    %p145 = scmp.ne.s32.totalorder %s140, %s142
    %p146 = scmp.eq.s32.totalorder %s17, 0
    %p147 = por %p145, %p146
    %p148 = scmp.ne.s32.totalorder %s140, %s142
    %p149 = scmp.eq.s32.totalorder %s22, 1
    %p150 = por %p148, %p149
    %p151 = scmp.ne.s32.totalorder %s142, %s143
    %p152 = scmp.eq.s32.totalorder %s22, 0
    %p153 = por %p151, %p152
    %p154 = scmp.ne.s32.totalorder %s142, %s143
    %p155 = scmp.eq.s32.totalorder %s23, 1
    %p156 = por %p154, %p155
    %p158 = scmp.ne.s32.totalorder %s143, %s157
    %p159 = scmp.eq.s32.totalorder %s23, 0
    %p160 = por %p158, %p159
    %s162 = sadd.s32 %s161, 1
    %p165 = scmp.eq.s32.totalorder %s17, 1
    %p166 = scmp.ne.s32.totalorder %s161, %s163
    %p167 = scmp.eq.s32.totalorder %s17, 0
    %p168 = por %p166, %p167
    %p169 = scmp.ne.s32.totalorder %s161, %s163
    %p170 = scmp.eq.s32.totalorder %s22, 1
    %p171 = por %p169, %p170
    %p172 = scmp.ne.s32.totalorder %s163, %s164
    %p173 = scmp.eq.s32.totalorder %s22, 0
    %p174 = por %p172, %p173
    %p175 = scmp.ne.s32.totalorder %s163, %s164
    %p176 = scmp.eq.s32.totalorder %s23, 1
    %p177 = por %p175, %p176
    %p179 = scmp.ne.s32.totalorder %s164, %s178
    %p180 = scmp.eq.s32.totalorder %s23, 0
    %p181 = por %p179, %p180
    %s183 = sadd.s32 %s182, 1
    %p186 = scmp.eq.s32.totalorder %s17, 1
    %p187 = scmp.ne.s32.totalorder %s182, %s184
    %p188 = scmp.eq.s32.totalorder %s17, 0
    %p189 = por %p187, %p188
    %p190 = scmp.ne.s32.totalorder %s182, %s184
    %p191 = scmp.eq.s32.totalorder %s22, 1
    %p192 = por %p190, %p191
    %p193 = scmp.ne.s32.totalorder %s184, %s185
    %p194 = scmp.eq.s32.totalorder %s22, 0
    %p195 = por %p193, %p194
    %p196 = scmp.ne.s32.totalorder %s184, %s185
    %p197 = scmp.eq.s32.totalorder %s23, 1
    %p198 = por %p196, %p197
    %p200 = scmp.ne.s32.totalorder %s185, %s199
    %p201 = scmp.eq.s32.totalorder %s23, 0
    %p202 = por %p200, %p201
    %s204 = sadd.s32 %s203, 1
    %p207 = scmp.eq.s32.totalorder %s17, 1
    %p208 = scmp.ne.s32.totalorder %s203, %s205
    %p209 = scmp.eq.s32.totalorder %s17, 0
    %p210 = por %p208, %p209
    %p211 = scmp.ne.s32.totalorder %s203, %s205
    %p212 = scmp.eq.s32.totalorder %s22, 1
    %p213 = por %p211, %p212
    %p214 = scmp.ne.s32.totalorder %s205, %s206
    %p215 = scmp.eq.s32.totalorder %s22, 0
    %p216 = por %p214, %p215
    %p217 = scmp.ne.s32.totalorder %s205, %s206
    %p218 = scmp.eq.s32.totalorder %s23, 1
    %p219 = por %p217, %p218
    %p221 = scmp.ne.s32.totalorder %s206, %s220
    %p222 = scmp.eq.s32.totalorder %s23, 0
    %p223 = por %p221, %p222
    %s225 = sadd.s32 %s224, 1
    %p228 = scmp.eq.s32.totalorder %s17, 1
    %p229 = scmp.ne.s32.totalorder %s224, %s226
    %p230 = scmp.eq.s32.totalorder %s17, 0
    %p231 = por %p229, %p230
    %p232 = scmp.ne.s32.totalorder %s224, %s226
    %p233 = scmp.eq.s32.totalorder %s22, 1
    %p234 = por %p232, %p233
    %p235 = scmp.ne.s32.totalorder %s226, %s227
    %p236 = scmp.eq.s32.totalorder %s22, 0
    %p237 = por %p235, %p236
    %p238 = scmp.ne.s32.totalorder %s226, %s227
    %p239 = scmp.eq.s32.totalorder %s23, 1
    %p240 = por %p238, %p239
    %p242 = scmp.ne.s32.totalorder %s227, %s241
    %p243 = scmp.eq.s32.totalorder %s23, 0
    %p244 = por %p242, %p243
    %s246 = sadd.s32 %s245, 1
    %p249 = scmp.eq.s32.totalorder %s17, 1
    %p250 = scmp.ne.s32.totalorder %s245, %s247
    %p251 = scmp.eq.s32.totalorder %s17, 0
    %p252 = por %p250, %p251
    %p253 = scmp.ne.s32.totalorder %s245, %s247
    %p254 = scmp.eq.s32.totalorder %s22, 1
    %p255 = por %p253, %p254
    %p256 = scmp.ne.s32.totalorder %s247, %s248
    %p257 = scmp.eq.s32.totalorder %s22, 0
    %p258 = por %p256, %p257
    %p259 = scmp.ne.s32.totalorder %s247, %s248
    %p260 = scmp.eq.s32.totalorder %s23, 1
    %p261 = por %p259, %p260
    %p263 = scmp.ne.s32.totalorder %s248, %s262
    %p264 = scmp.eq.s32.totalorder %s23, 0
    %p265 = por %p263, %p264
    %s266 = ssub.s32 %s17, %s24
    %p267 = scmp.eq.s32.totalorder %s266, 0
    %s269 = sadd.s32 %s268, 1
    %s270 = scalar_select %p267, %s268, %s269
    %p273 = pneg %p267
    %p274 = scmp.eq.s32.totalorder %s17, 1
    %p275 = por %p273, %p274
    %p276 = scmp.ne.s32.totalorder %s268, %s271
    %p277 = scmp.eq.s32.totalorder %s17, 0
    %p278 = por %p276, %p277
    %p279 = scmp.ne.s32.totalorder %s268, %s271
    %p280 = scmp.eq.s32.totalorder %s22, 1
    %p281 = por %p279, %p280
    %p282 = scmp.ne.s32.totalorder %s271, %s272
    %p283 = scmp.eq.s32.totalorder %s22, 0
    %p284 = por %p282, %p283
    %p285 = scmp.ne.s32.totalorder %s271, %s272
    %p286 = scmp.eq.s32.totalorder %s23, 1
    %p287 = por %p285, %p286
    %p289 = scmp.ne.s32.totalorder %s272, %s288
    %p290 = scmp.eq.s32.totalorder %s23, 0
    %p291 = por %p289, %p290
    %p292 = scmp.le.s32.totalorder 1, %s17
    %p293 = scmp.lt.s32.totalorder %s17, 3
    %p294 = pnand %p292, %p293
    %p295 = pneg %p294
    // Predicated region
    $region9: #{forward.7} parent=5 // pred_check
      _
    $region10: #{forward.7} parent=5 // pred_check_branch
      %297 = sbr.rel (%p294) target = $region12
    $region11: #{forward.7} parent=5 // pred_region
      %s298 = ssub.s32 %s17, 1
      // Predicated region
      $region13: #{forward.7} parent=11 // pred_check
        %p299 = pneg %p90
      $region14: #{forward.7} parent=11 // pred_check_branch
        %301 = sbr.rel (%p299) target = $region16
      $region15: #{forward.7} parent=11 // pred_region
        _
      $region16: #{forward.7} parent=11 // pred_fallthru
        _
      // Predicated region
      $region17: #{forward.7} parent=11 // pred_check
        %p302 = pneg %p111
      $region18: #{forward.7} parent=11 // pred_check_branch
        %304 = sbr.rel (%p302) target = $region20
      $region19: #{forward.7} parent=11 // pred_region
        _
      $region20: #{forward.7} parent=11 // pred_fallthru
        _
      // Predicated region
      $region21: #{forward.7} parent=11 // pred_check
        %p305 = pneg %p132
      $region22: #{forward.7} parent=11 // pred_check_branch
        %307 = sbr.rel (%p305) target = $region24
      $region23: #{forward.7} parent=11 // pred_region
        _
      $region24: #{forward.7} parent=11 // pred_fallthru
        _
      // Predicated region
      $region25: #{forward.7} parent=11 // pred_check
        %p308 = pneg %p153
      $region26: #{forward.7} parent=11 // pred_check_branch
        %310 = sbr.rel (%p308) target = $region28
      $region27: #{forward.7} parent=11 // pred_region
        _
      $region28: #{forward.7} parent=11 // pred_fallthru
        _
      // Predicated region
      $region29: #{forward.7} parent=11 // pred_check
        %p311 = pneg %p174
      $region30: #{forward.7} parent=11 // pred_check_branch
        %313 = sbr.rel (%p311) target = $region32
      $region31: #{forward.7} parent=11 // pred_region
        _
      $region32: #{forward.7} parent=11 // pred_fallthru
        _
      // Predicated region
      $region33: #{forward.7} parent=11 // pred_check
        %p314 = pneg %p195
      $region34: #{forward.7} parent=11 // pred_check_branch
        %316 = sbr.rel (%p314) target = $region36
      $region35: #{forward.7} parent=11 // pred_region
        _
      $region36: #{forward.7} parent=11 // pred_fallthru
        _
      // Predicated region
      $region37: #{forward.7} parent=11 // pred_check
        %p317 = pneg %p216
      $region38: #{forward.7} parent=11 // pred_check_branch
        %319 = sbr.rel (%p317) target = $region40
      $region39: #{forward.7} parent=11 // pred_region
        _
      $region40: #{forward.7} parent=11 // pred_fallthru
        _
      // Predicated region
      $region41: #{forward.7} parent=11 // pred_check
        %p320 = pneg %p237
      $region42: #{forward.7} parent=11 // pred_check_branch
        %322 = sbr.rel (%p320) target = $region44
      $region43: #{forward.7} parent=11 // pred_region
        _
      $region44: #{forward.7} parent=11 // pred_fallthru
        _
      // Predicated region
      $region45: #{forward.7} parent=11 // pred_check
        %p323 = pneg %p258
      $region46: #{forward.7} parent=11 // pred_check_branch
        %325 = sbr.rel (%p323) target = $region48
      $region47: #{forward.7} parent=11 // pred_region
        _
      $region48: #{forward.7} parent=11 // pred_fallthru
        _
    $region12: #{forward.7} parent=5 // pred_fallthru
      _
    %p326 = scmp.lt.s32.totalorder %s17, 2
    // Predicated region
    $region49: #{forward.7} parent=5 // pred_check
      %p327 = pneg %p326
    $region50: #{forward.7} parent=5 // pred_check_branch
      %329 = sbr.rel (%p327) target = $region52
    $region51: #{forward.7} parent=5 // pred_region
      // Predicated region
      $region53: #{forward.7} parent=51 // pred_check
        %p330 = pneg %p37
      $region54: #{forward.7} parent=51 // pred_check_branch
        %332 = sbr.rel (%p330) target = $region56
      $region55: #{forward.7} parent=51 // pred_region
        %p333 = scmp.lt.s32.totalorder %s17, 1
        %s334 = scalar_select %p333, %s17, 1
        %s335 = smul.addr %s334, 4
        %s336 = scalar_lea.vmem %s0, %s335
      $region56: #{forward.7} parent=51 // pred_fallthru
        _
      // Predicated region
      $region57: #{forward.7} parent=51 // pred_check
        %p337 = pneg %p63
      $region58: #{forward.7} parent=51 // pred_check_branch
        %339 = sbr.rel (%p337) target = $region60
      $region59: #{forward.7} parent=51 // pred_region
        %p340 = scmp.lt.s32.totalorder %s17, 1
        %s341 = scalar_select %p340, %s17, 1
        %s342 = scalar_lea.vmem %s1, %s341
      $region60: #{forward.7} parent=51 // pred_fallthru
        _
    $region52: #{forward.7} parent=5 // pred_fallthru
      _
    %p343 = scmp.le.s32.totalorder 1, %s17
    %p344 = scmp.lt.s32.totalorder %s17, 3
    %p345 = pnand %p343, %p344
    %p346 = pneg %p345
    // Predicated region
    $region61: #{forward.7} parent=5 // pred_check
      _
    $region62: #{forward.7} parent=5 // pred_check_branch
      %348 = sbr.rel (%p345) target = $region64
    $region63: #{forward.7} parent=5 // pred_region
      %s349 = ssub.s32 %s17, 1
      %p350 = scmp.lt.s32.totalorder %s22, 1
      %s351 = scalar_select %p350, %s22, 1
      %s352 = smul.addr %s351, 4
      %s353 = scalar_lea.vmem %s0, %s352
      %p354 = pneg %p43
      %p355 = pneg %p40
      %p356 = scmp.lt.s32.totalorder %s22, 1
      %s357 = scalar_select %p356, %s22, 1
      %s358 = scalar_lea.vmem %s1, %s357
      %p359 = pneg %p69
      %p360 = pneg %p66
      %p361 = pneg %p90
      %p362 = pneg %p87
      %p363 = pneg %p111
      %p364 = pneg %p108
      %p365 = pneg %p132
      %p366 = pneg %p129
      %p367 = pneg %p153
      %p368 = pneg %p150
      %p369 = pneg %p174
      %p370 = pneg %p171
      %p371 = pneg %p195
      %p372 = pneg %p192
      %p373 = pneg %p216
      %p374 = pneg %p213
      %p375 = pneg %p237
      %p376 = pneg %p234
      %p377 = pneg %p258
      %p378 = pneg %p255
      %p379 = pneg %p284
      %p380 = pneg %p281
      %p381 = scmp.lt.s32.totalorder %s22, 1
      %s382 = scalar_select %p381, %s22, 1
      %s383 = smul.addr %s382, 4
      %s384 = scalar_lea.vmem %s11, %s383
      %p385 = scmp.lt.s32.totalorder %s22, 1
      %s386 = scalar_select %p385, %s22, 1
      %s387 = smul.addr %s386, 4
      %s388 = scalar_lea.vmem %s0, %s387
      %p389 = scmp.lt.s32.totalorder %s22, 1
      %s390 = scalar_select %p389, %s22, 1
      %s391 = scalar_lea.vmem %s1, %s390
      %p392 = scmp.lt.s32.totalorder %s22, 1
      %s393 = scalar_select %p392, %s22, 1
      %s394 = smul.addr %s393, 4
      %s395 = scalar_lea.vmem %s11, %s394
      %v397 = vld [vmem:[%s388] sm:$0xf]
      %v398 = vld [vmem:[%s391] sm:$0x1]
      %v399 = vld [vmem:[%s2] sm:$0x3f]
      %vm400 = vcmask 257024
      %v401 = vsel %vm400, %v397, 0.0
      %402 = vadd.xlane.f32.xlu0 %v401
      %v403 = vpop.xlane.xlu0 %402
      %v404 = vrcp.pop 32.0
      %v405 = vmul.f32 %v403, %v404
      %v406 = vsub.f32 %v397, %v405
      %v407 = vmul.f32 %v406, %v406
      %v408 = vsel %vm400, %v407, 0.0
      %409 = vadd.xlane.f32.xlu0 %v408
      %v410 = vpop.xlane.xlu0 %409
      %v411 = vmul.f32 %v410, %v404
      %v412 = vadd.f32 %v411, 1e-05
      %v413 = vrsqrt.pop %v412
      %v414 = vmul.f32 %v406, %v413
      %v415 = vlaneseq
      %v416 = vshrl.u32 %v415, 7
      %v417 = vsub.s32 0, %v416
      %v418 = vrot.slane %v399, %v417
      %v419 = vmul.f32 %v414, %v418
      %v420 = vlaneseq
      %v421 = vshrl.u32 %v420, 7
      %v422 = vsub.s32 1, %v421
      %v423 = vrot.slane %v399, %v422
      %v424 = vadd.f32 %v419, %v423
      %v425 = vpack.c.bf16 %v424, %v424
      %v426 = vld [vmem:[%s3] sm:$0xf]
      %v427 = vld [vmem:[%s3 + $0x4] sm:$0xf]
      %v428 = vld [vmem:[%s3 + $0x8] sm:$0xf]
      %v429 = vld [vmem:[%s3 + $0xc] sm:$0xf]
      %v430 = vld [vmem:[%s4] sm:$0x1]
      %v432 = vlaneseq
      %v433 = vshrl.u32 %v432, 7
      %v434 = vsub.s32 0, %v433
      %v435 = vrot.slane %v430, %v434
      %v441 = vunpack.c.l.b16 %v426
      %v442 = vunpack.c.l.b16 %v427
      %v443 = vunpack.c.l.b16 %v428
      %v444 = vunpack.c.l.b16 %v429
      %v445 = vpack.c.b16 %v442, %v441
      %v446 = vpack.c.b16 %v444, %v443
      %vm449 = vcmask 261120
      %v451 = vsel %vm449, %v425, 0
      %453 = vmatprep.subr.bf16.mxu0 0
      %454 = vmatpush1.bf16.msra.mxu0 %v445
      %455 = vmatprep.subr.bf16.mxu0 0
      %456 = vmatpush1.bf16.msra.mxu0 %v446
      %457 = vmatprep.subr.bf16.mxu0 0
      %458 = vmatpush1.bf16.msra.mxu0 0
      %459 = vmatprep.subr.bf16.mxu0 0
      %460 = vmatpush1.bf16.msra.mxu0 0
      %461 = vmatprep.subr.bf16.mxu0 0
      %462 = vmatpush1.bf16.msra.mxu0 0
      %463 = vmatprep.subr.bf16.mxu0 0
      %464 = vmatpush1.bf16.msra.mxu0 0
      %465 = vmatprep.subr.bf16.mxu0 0
      %466 = vmatpush1.bf16.msra.mxu0 0
      %467 = vmatprep.subr.bf16.mxu0 0
      %468 = vmatpush1.bf16.msra.mxu0 0
      %469 = vmatprep.subr.bf16.mxu0 0
      %470 = vmatpush1.bf16.msra.mxu0 0
      %471 = vmatprep.subr.bf16.mxu0 0
      %472 = vmatpush1.bf16.msra.mxu0 0
      %473 = vmatprep.subr.bf16.mxu0 0
      %474 = vmatpush1.bf16.msra.mxu0 0
      %475 = vmatprep.subr.bf16.mxu0 0
      %476 = vmatpush1.bf16.msra.mxu0 0
      %477 = vmatprep.subr.bf16.mxu0 0
      %478 = vmatpush1.bf16.msra.mxu0 0
      %479 = vmatprep.subr.bf16.mxu0 0
      %480 = vmatpush1.bf16.msra.mxu0 0
      %481 = vmatprep.subr.bf16.mxu0 0
      %482 = vmatpush1.bf16.msra.mxu0 0
      %483 = vmatprep.subr.bf16.mxu0 0
      %484 = vmatpush1.bf16.msra.mxu0 0
      %485 = vmatprep.mubr.bf16.mxu0 0
      %486 = vmatmul.mubr.bf16.gmra.mrb[0].mxu0 %v451
      %v487 = vpop.f32.mrb[0].mxu0
      %v488 = vadd.f32 %v435, %v487
      %v489 = vpop.f32.mrb[0].mxu0
      %v490 = vpop.f32.mrb[0].mxu0
      %v491 = vpop.f32.mrb[0].mxu0
      %492 = vdwg.mxu0
      %v493 = vpack.c.bf16 %v488, %v488
      %495 = vrot.lane.b32.xlu0 %v493, 96
      %v496 = vpop.permute.xlu0 %495
      %vm497 = vcmask 64512
      %v499 = vsel %vm497, %v493, 0
      %v502 = vsel %vm497, %v496, 0
      %504 = vmatprep.subr.bf16.mxu0 0
      %505 = vmatpush1.bf16.xpose.msra.mxu0 %v502
      %506 = vmatprep.subr.bf16.mxu0 0
      %507 = vmatpush1.bf16.xpose.msra.mxu0 0
      %508 = vmatprep.subr.bf16.mxu0 0
      %509 = vmatpush1.bf16.xpose.msra.mxu0 0
      %510 = vmatprep.subr.bf16.mxu0 0
      %511 = vmatpush1.bf16.xpose.msra.mxu0 0
      %512 = vmatprep.subr.bf16.mxu0 0
      %513 = vmatpush1.bf16.xpose.msra.mxu0 0
      %514 = vmatprep.subr.bf16.mxu0 0
      %515 = vmatpush1.bf16.xpose.msra.mxu0 0
      %516 = vmatprep.subr.bf16.mxu0 0
      %517 = vmatpush1.bf16.xpose.msra.mxu0 0
      %518 = vmatprep.subr.bf16.mxu0 0
      %519 = vmatpush1.bf16.xpose.msra.mxu0 0
      %520 = vmatprep.subr.bf16.mxu0 0
      %521 = vmatpush1.bf16.xpose.msra.mxu0 0
      %522 = vmatprep.subr.bf16.mxu0 0
      %523 = vmatpush1.bf16.xpose.msra.mxu0 0
      %524 = vmatprep.subr.bf16.mxu0 0
      %525 = vmatpush1.bf16.xpose.msra.mxu0 0
      %526 = vmatprep.subr.bf16.mxu0 0
      %527 = vmatpush1.bf16.xpose.msra.mxu0 0
      %528 = vmatprep.subr.bf16.mxu0 0
      %529 = vmatpush1.bf16.xpose.msra.mxu0 0
      %530 = vmatprep.subr.bf16.mxu0 0
      %531 = vmatpush1.bf16.xpose.msra.mxu0 0
      %532 = vmatprep.subr.bf16.mxu0 0
      %533 = vmatpush1.bf16.xpose.msra.mxu0 0
      %534 = vmatprep.subr.bf16.mxu0 0
      %535 = vmatpush1.bf16.xpose.msra.mxu0 0
      %536 = vmatprep.mubr.bf16.mxu0 0
      %537 = vmatmul.mubr.bf16.gmra.mrb[0].mxu0 %v499
      %v538 = vpop.f32.mrb[0].mxu0
      %v539 = vadd.f32 0.0, %v538
      %v540 = vpop.f32.mrb[0].mxu0
      %v541 = vpop.f32.mrb[0].mxu0
      %v542 = vpop.f32.mrb[0].mxu0
      %543 = vdwg.mxu0
      %v544 = vmul.f32 %v539, 0.35355338
      %v546 = vlaneseq
      %v547 = vshrl.u32 %v546, 7
      %v548 = vsub.s32 0, %v547
      %v549 = vrot.slane %v398, %v548
      %v551 = vadd.f32 %v544, %v549
      %vm552 = vcmask 27648
      %v553 = vsel %vm552, %v551, -inf
      %554 = vmax.xlane.f32.xlu0 %v553
      %v555 = vpop.xlane.xlu0 %554
      %v556 = vsub.f32 %v551, %v555
      %v557 = vmul.f32 %v556, 1.442695
      %v558 = vpow.pop %v557
      %v559 = vsel %vm552, %v558, 0.0
      %560 = vadd.xlane.f32.xlu0 %v559
      %v561 = vpop.xlane.xlu0 %560
      %v562 = vrcp.pop %v561
      %v563 = vmul.f32 %v558, %v562
      %v564 = vpack.c.bf16 %v563, %v563
      %565 = vrot.lane.b32.xlu0 %v493, 64
      %v566 = vpop.permute.xlu0 %565
      %vm567 = vcmask 31744
      %v569 = vsel %vm567, %v564, 0
      %vm571 = vcmask 1041408
      %v573 = vsel %vm571, %v566, 0
      %575 = vmatprep.subr.bf16.mxu0 0
      %576 = vmatpush1.bf16.msra.mxu0 %v573
      %577 = vmatprep.subr.bf16.mxu0 0
      %578 = vmatpush1.bf16.msra.mxu0 0
      %579 = vmatprep.subr.bf16.mxu0 0
      %580 = vmatpush1.bf16.msra.mxu0 0
      %581 = vmatprep.subr.bf16.mxu0 0
      %582 = vmatpush1.bf16.msra.mxu0 0
      %583 = vmatprep.subr.bf16.mxu0 0
      %584 = vmatpush1.bf16.msra.mxu0 0
      %585 = vmatprep.subr.bf16.mxu0 0
      %586 = vmatpush1.bf16.msra.mxu0 0
      %587 = vmatprep.subr.bf16.mxu0 0
      %588 = vmatpush1.bf16.msra.mxu0 0
      %589 = vmatprep.subr.bf16.mxu0 0
      %590 = vmatpush1.bf16.msra.mxu0 0
      %591 = vmatprep.subr.bf16.mxu0 0
      %592 = vmatpush1.bf16.msra.mxu0 0
      %593 = vmatprep.subr.bf16.mxu0 0
      %594 = vmatpush1.bf16.msra.mxu0 0
      %595 = vmatprep.subr.bf16.mxu0 0
      %596 = vmatpush1.bf16.msra.mxu0 0
      %597 = vmatprep.subr.bf16.mxu0 0
      %598 = vmatpush1.bf16.msra.mxu0 0
      %599 = vmatprep.subr.bf16.mxu0 0
      %600 = vmatpush1.bf16.msra.mxu0 0
      %601 = vmatprep.subr.bf16.mxu0 0
      %602 = vmatpush1.bf16.msra.mxu0 0
      %603 = vmatprep.subr.bf16.mxu0 0
      %604 = vmatpush1.bf16.msra.mxu0 0
      %605 = vmatprep.subr.bf16.mxu0 0
      %606 = vmatpush1.bf16.msra.mxu0 0
      %607 = vmatprep.mubr.bf16.mxu0 0
      %608 = vmatmul.mubr.bf16.gmra.mrb[0].mxu0 %v569
      %v609 = vpop.f32.mrb[0].mxu0
      %v610 = vadd.f32 0.0, %v609
      %v611 = vpop.f32.mrb[0].mxu0
      %v612 = vpop.f32.mrb[0].mxu0
      %v613 = vpop.f32.mrb[0].mxu0
      %614 = vdwg.mxu0
      %615 = vrot.lane.b32.xlu0 %v493, 120
      %v616 = vpop.permute.xlu0 %615
      %617 = vrot.lane.b32.xlu0 %v493, 88
      %v618 = vpop.permute.xlu0 %617
      %v620 = vsel %vm497, %v616, 0
      %v623 = vsel %vm497, %v618, 0
      %625 = vmatprep.subr.bf16.mxu0 0
      %626 = vmatpush1.bf16.xpose.msra.mxu0 %v623
      %627 = vmatprep.subr.bf16.mxu0 0
      %628 = vmatpush1.bf16.xpose.msra.mxu0 0
      %629 = vmatprep.subr.bf16.mxu0 0
      %630 = vmatpush1.bf16.xpose.msra.mxu0 0
      %631 = vmatprep.subr.bf16.mxu0 0
      %632 = vmatpush1.bf16.xpose.msra.mxu0 0
      %633 = vmatprep.subr.bf16.mxu0 0
      %634 = vmatpush1.bf16.xpose.msra.mxu0 0
      %635 = vmatprep.subr.bf16.mxu0 0
      %636 = vmatpush1.bf16.xpose.msra.mxu0 0
      %637 = vmatprep.subr.bf16.mxu0 0
      %638 = vmatpush1.bf16.xpose.msra.mxu0 0
      %639 = vmatprep.subr.bf16.mxu0 0
      %640 = vmatpush1.bf16.xpose.msra.mxu0 0
      %641 = vmatprep.subr.bf16.mxu0 0
      %642 = vmatpush1.bf16.xpose.msra.mxu0 0
      %643 = vmatprep.subr.bf16.mxu0 0
      %644 = vmatpush1.bf16.xpose.msra.mxu0 0
      %645 = vmatprep.subr.bf16.mxu0 0
      %646 = vmatpush1.bf16.xpose.msra.mxu0 0
      %647 = vmatprep.subr.bf16.mxu0 0
      %648 = vmatpush1.bf16.xpose.msra.mxu0 0
      %649 = vmatprep.subr.bf16.mxu0 0
      %650 = vmatpush1.bf16.xpose.msra.mxu0 0
      %651 = vmatprep.subr.bf16.mxu0 0
      %652 = vmatpush1.bf16.xpose.msra.mxu0 0
      %653 = vmatprep.subr.bf16.mxu0 0
      %654 = vmatpush1.bf16.xpose.msra.mxu0 0
      %655 = vmatprep.subr.bf16.mxu0 0
      %656 = vmatpush1.bf16.xpose.msra.mxu0 0
      %657 = vmatprep.mubr.bf16.mxu0 0
      %658 = vmatmul.mubr.bf16.gmra.mrb[0].mxu0 %v620
      %v659 = vpop.f32.mrb[0].mxu0
      %v660 = vadd.f32 0.0, %v659
      %v661 = vpop.f32.mrb[0].mxu0
      %v662 = vpop.f32.mrb[0].mxu0
      %v663 = vpop.f32.mrb[0].mxu0
      %664 = vdwg.mxu0
      %v665 = vmul.f32 %v660, 0.35355338
      %v666 = vadd.f32 %v665, %v549
      %v667 = vsel %vm552, %v666, -inf
      %668 = vmax.xlane.f32.xlu0 %v667
      %v669 = vpop.xlane.xlu0 %668
      %v670 = vsub.f32 %v666, %v669
      %v671 = vmul.f32 %v670, 1.442695
      %v672 = vpow.pop %v671
      %v673 = vsel %vm552, %v672, 0.0
      %674 = vadd.xlane.f32.xlu0 %v673
      %v675 = vpop.xlane.xlu0 %674
      %v676 = vrcp.pop %v675
      %v677 = vmul.f32 %v672, %v676
      %v678 = vpack.c.bf16 %v677, %v677
      %679 = vrot.lane.b32.xlu0 %v493, 56
      %v680 = vpop.permute.xlu0 %679
      %v682 = vsel %vm567, %v678, 0
      %v685 = vsel %vm571, %v680, 0
      %687 = vmatprep.subr.bf16.mxu0 0
      %688 = vmatpush1.bf16.msra.mxu0 %v685
      %689 = vmatprep.subr.bf16.mxu0 0
      %690 = vmatpush1.bf16.msra.mxu0 0
      %691 = vmatprep.subr.bf16.mxu0 0
      %692 = vmatpush1.bf16.msra.mxu0 0
      %693 = vmatprep.subr.bf16.mxu0 0
      %694 = vmatpush1.bf16.msra.mxu0 0
      %695 = vmatprep.subr.bf16.mxu0 0
      %696 = vmatpush1.bf16.msra.mxu0 0
      %697 = vmatprep.subr.bf16.mxu0 0
      %698 = vmatpush1.bf16.msra.mxu0 0
      %699 = vmatprep.subr.bf16.mxu0 0
      %700 = vmatpush1.bf16.msra.mxu0 0
      %701 = vmatprep.subr.bf16.mxu0 0
      %702 = vmatpush1.bf16.msra.mxu0 0
      %703 = vmatprep.subr.bf16.mxu0 0
      %704 = vmatpush1.bf16.msra.mxu0 0
      %705 = vmatprep.subr.bf16.mxu0 0
      %706 = vmatpush1.bf16.msra.mxu0 0
      %707 = vmatprep.subr.bf16.mxu0 0
      %708 = vmatpush1.bf16.msra.mxu0 0
      %709 = vmatprep.subr.bf16.mxu0 0
      %710 = vmatpush1.bf16.msra.mxu0 0
      %711 = vmatprep.subr.bf16.mxu0 0
      %712 = vmatpush1.bf16.msra.mxu0 0
      %713 = vmatprep.subr.bf16.mxu0 0
      %714 = vmatpush1.bf16.msra.mxu0 0
      %715 = vmatprep.subr.bf16.mxu0 0
      %716 = vmatpush1.bf16.msra.mxu0 0
      %717 = vmatprep.subr.bf16.mxu0 0
      %718 = vmatpush1.bf16.msra.mxu0 0
      %719 = vmatprep.mubr.bf16.mxu0 0
      %720 = vmatmul.mubr.bf16.gmra.mrb[0].mxu0 %v682
      %v721 = vpop.f32.mrb[0].mxu0
      %v722 = vadd.f32 0.0, %v721
      %v723 = vpop.f32.mrb[0].mxu0
      %v724 = vpop.f32.mrb[0].mxu0
      %v725 = vpop.f32.mrb[0].mxu0
      %726 = vdwg.mxu0
      %727 = vrot.lane.b32.xlu0 %v493, 112
      %v728 = vpop.permute.xlu0 %727
      %729 = vrot.lane.b32.xlu0 %v493, 80
      %v730 = vpop.permute.xlu0 %729
      %v732 = vsel %vm497, %v728, 0
      %v735 = vsel %vm497, %v730, 0
      %737 = vmatprep.subr.bf16.mxu0 0
      %738 = vmatpush1.bf16.xpose.msra.mxu0 %v735
      %739 = vmatprep.subr.bf16.mxu0 0
      %740 = vmatpush1.bf16.xpose.msra.mxu0 0
      %741 = vmatprep.subr.bf16.mxu0 0
      %742 = vmatpush1.bf16.xpose.msra.mxu0 0
      %743 = vmatprep.subr.bf16.mxu0 0
      %744 = vmatpush1.bf16.xpose.msra.mxu0 0
      %745 = vmatprep.subr.bf16.mxu0 0
      %746 = vmatpush1.bf16.xpose.msra.mxu0 0
      %747 = vmatprep.subr.bf16.mxu0 0
      %748 = vmatpush1.bf16.xpose.msra.mxu0 0
      %749 = vmatprep.subr.bf16.mxu0 0
      %750 = vmatpush1.bf16.xpose.msra.mxu0 0
      %751 = vmatprep.subr.bf16.mxu0 0
      %752 = vmatpush1.bf16.xpose.msra.mxu0 0
      %753 = vmatprep.subr.bf16.mxu0 0
      %754 = vmatpush1.bf16.xpose.msra.mxu0 0
      %755 = vmatprep.subr.bf16.mxu0 0
      %756 = vmatpush1.bf16.xpose.msra.mxu0 0
      %757 = vmatprep.subr.bf16.mxu0 0
      %758 = vmatpush1.bf16.xpose.msra.mxu0 0
      %759 = vmatprep.subr.bf16.mxu0 0
      %760 = vmatpush1.bf16.xpose.msra.mxu0 0
      %761 = vmatprep.subr.bf16.mxu0 0
      %762 = vmatpush1.bf16.xpose.msra.mxu0 0
      %763 = vmatprep.subr.bf16.mxu0 0
      %764 = vmatpush1.bf16.xpose.msra.mxu0 0
      %765 = vmatprep.subr.bf16.mxu0 0
      %766 = vmatpush1.bf16.xpose.msra.mxu0 0
      %767 = vmatprep.subr.bf16.mxu0 0
      %768 = vmatpush1.bf16.xpose.msra.mxu0 0
      %769 = vmatprep.mubr.bf16.mxu0 0
      %770 = vmatmul.mubr.bf16.gmra.mrb[0].mxu0 %v732
      %v771 = vpop.f32.mrb[0].mxu0
      %v772 = vadd.f32 0.0, %v771
      %v773 = vpop.f32.mrb[0].mxu0
      %v774 = vpop.f32.mrb[0].mxu0
      %v775 = vpop.f32.mrb[0].mxu0
      %776 = vdwg.mxu0
      %v777 = vmul.f32 %v772, 0.35355338
      %v778 = vadd.f32 %v777, %v549
      %v779 = vsel %vm552, %v778, -inf
      %780 = vmax.xlane.f32.xlu0 %v779
      %v781 = vpop.xlane.xlu0 %780
      %v782 = vsub.f32 %v778, %v781
      %v783 = vmul.f32 %v782, 1.442695
      %v784 = vpow.pop %v783
      %v785 = vsel %vm552, %v784, 0.0
      %786 = vadd.xlane.f32.xlu0 %v785
      %v787 = vpop.xlane.xlu0 %786
      %v788 = vrcp.pop %v787
      %v789 = vmul.f32 %v784, %v788
      %v790 = vpack.c.bf16 %v789, %v789
      %791 = vrot.lane.b32.xlu0 %v493, 48
      %v792 = vpop.permute.xlu0 %791
      %v794 = vsel %vm567, %v790, 0
      %v797 = vsel %vm571, %v792, 0
      %799 = vmatprep.subr.bf16.mxu0 0
      %800 = vmatpush1.bf16.msra.mxu0 %v797
      %801 = vmatprep.subr.bf16.mxu0 0
      %802 = vmatpush1.bf16.msra.mxu0 0
      %803 = vmatprep.subr.bf16.mxu0 0
      %804 = vmatpush1.bf16.msra.mxu0 0
      %805 = vmatprep.subr.bf16.mxu0 0
      %806 = vmatpush1.bf16.msra.mxu0 0
      %807 = vmatprep.subr.bf16.mxu0 0
      %808 = vmatpush1.bf16.msra.mxu0 0
      %809 = vmatprep.subr.bf16.mxu0 0
      %810 = vmatpush1.bf16.msra.mxu0 0
      %811 = vmatprep.subr.bf16.mxu0 0
      %812 = vmatpush1.bf16.msra.mxu0 0
      %813 = vmatprep.subr.bf16.mxu0 0
      %814 = vmatpush1.bf16.msra.mxu0 0
      %815 = vmatprep.subr.bf16.mxu0 0
      %816 = vmatpush1.bf16.msra.mxu0 0
      %817 = vmatprep.subr.bf16.mxu0 0
      %818 = vmatpush1.bf16.msra.mxu0 0
      %819 = vmatprep.subr.bf16.mxu0 0
      %820 = vmatpush1.bf16.msra.mxu0 0
      %821 = vmatprep.subr.bf16.mxu0 0
      %822 = vmatpush1.bf16.msra.mxu0 0
      %823 = vmatprep.subr.bf16.mxu0 0
      %824 = vmatpush1.bf16.msra.mxu0 0
      %825 = vmatprep.subr.bf16.mxu0 0
      %826 = vmatpush1.bf16.msra.mxu0 0
      %827 = vmatprep.subr.bf16.mxu0 0
      %828 = vmatpush1.bf16.msra.mxu0 0
      %829 = vmatprep.subr.bf16.mxu0 0
      %830 = vmatpush1.bf16.msra.mxu0 0
      %831 = vmatprep.mubr.bf16.mxu0 0
      %832 = vmatmul.mubr.bf16.gmra.mrb[0].mxu0 %v794
      %v833 = vpop.f32.mrb[0].mxu0
      %v834 = vadd.f32 0.0, %v833
      %v835 = vpop.f32.mrb[0].mxu0
      %v836 = vpop.f32.mrb[0].mxu0
      %v837 = vpop.f32.mrb[0].mxu0
      %838 = vdwg.mxu0
      %839 = vrot.lane.b32.xlu0 %v493, 104
      %v840 = vpop.permute.xlu0 %839
      %841 = vrot.lane.b32.xlu0 %v493, 72
      %v842 = vpop.permute.xlu0 %841
      %v844 = vsel %vm497, %v840, 0
      %v847 = vsel %vm497, %v842, 0
      %849 = vmatprep.subr.bf16.mxu0 0
      %850 = vmatpush1.bf16.xpose.msra.mxu0 %v847
      %851 = vmatprep.subr.bf16.mxu0 0
      %852 = vmatpush1.bf16.xpose.msra.mxu0 0
      %853 = vmatprep.subr.bf16.mxu0 0
      %854 = vmatpush1.bf16.xpose.msra.mxu0 0
      %855 = vmatprep.subr.bf16.mxu0 0
      %856 = vmatpush1.bf16.xpose.msra.mxu0 0
      %857 = vmatprep.subr.bf16.mxu0 0
      %858 = vmatpush1.bf16.xpose.msra.mxu0 0
      %859 = vmatprep.subr.bf16.mxu0 0
      %860 = vmatpush1.bf16.xpose.msra.mxu0 0
      %861 = vmatprep.subr.bf16.mxu0 0
      %862 = vmatpush1.bf16.xpose.msra.mxu0 0
      %863 = vmatprep.subr.bf16.mxu0 0
      %864 = vmatpush1.bf16.xpose.msra.mxu0 0
      %865 = vmatprep.subr.bf16.mxu0 0
      %866 = vmatpush1.bf16.xpose.msra.mxu0 0
      %867 = vmatprep.subr.bf16.mxu0 0
      %868 = vmatpush1.bf16.xpose.msra.mxu0 0
      %869 = vmatprep.subr.bf16.mxu0 0
      %870 = vmatpush1.bf16.xpose.msra.mxu0 0
      %871 = vmatprep.subr.bf16.mxu0 0
      %872 = vmatpush1.bf16.xpose.msra.mxu0 0
      %873 = vmatprep.subr.bf16.mxu0 0
      %874 = vmatpush1.bf16.xpose.msra.mxu0 0
      %875 = vmatprep.subr.bf16.mxu0 0
      %876 = vmatpush1.bf16.xpose.msra.mxu0 0
      %877 = vmatprep.subr.bf16.mxu0 0
      %878 = vmatpush1.bf16.xpose.msra.mxu0 0
      %879 = vmatprep.subr.bf16.mxu0 0
      %880 = vmatpush1.bf16.xpose.msra.mxu0 0
      %881 = vmatprep.mubr.bf16.mxu0 0
      %882 = vmatmul.mubr.bf16.gmra.mrb[0].mxu0 %v844
      %v883 = vpop.f32.mrb[0].mxu0
      %v884 = vadd.f32 0.0, %v883
      %v885 = vpop.f32.mrb[0].mxu0
      %v886 = vpop.f32.mrb[0].mxu0
      %v887 = vpop.f32.mrb[0].mxu0
      %888 = vdwg.mxu0
      %v889 = vmul.f32 %v884, 0.35355338
      %v890 = vadd.f32 %v889, %v549
      %v891 = vsel %vm552, %v890, -inf
      %892 = vmax.xlane.f32.xlu0 %v891
      %v893 = vpop.xlane.xlu0 %892
      %v894 = vsub.f32 %v890, %v893
      %v895 = vmul.f32 %v894, 1.442695
      %v896 = vpow.pop %v895
      %v897 = vsel %vm552, %v896, 0.0
      %898 = vadd.xlane.f32.xlu0 %v897
      %v899 = vpop.xlane.xlu0 %898
      %v900 = vrcp.pop %v899
      %v901 = vmul.f32 %v896, %v900
      %v902 = vpack.c.bf16 %v901, %v901
      %903 = vrot.lane.b32.xlu0 %v493, 40
      %v904 = vpop.permute.xlu0 %903
      %v906 = vsel %vm567, %v902, 0
      %v909 = vsel %vm571, %v904, 0
      %911 = vmatprep.subr.bf16.mxu0 0
      %912 = vmatpush1.bf16.msra.mxu0 %v909
      %913 = vmatprep.subr.bf16.mxu0 0
      %914 = vmatpush1.bf16.msra.mxu0 0
      %915 = vmatprep.subr.bf16.mxu0 0
      %916 = vmatpush1.bf16.msra.mxu0 0
      %917 = vmatprep.subr.bf16.mxu0 0
      %918 = vmatpush1.bf16.msra.mxu0 0
      %919 = vmatprep.subr.bf16.mxu0 0
      %920 = vmatpush1.bf16.msra.mxu0 0
      %921 = vmatprep.subr.bf16.mxu0 0
      %922 = vmatpush1.bf16.msra.mxu0 0
      %923 = vmatprep.subr.bf16.mxu0 0
      %924 = vmatpush1.bf16.msra.mxu0 0
      %925 = vmatprep.subr.bf16.mxu0 0
      %926 = vmatpush1.bf16.msra.mxu0 0
      %927 = vmatprep.subr.bf16.mxu0 0
      %928 = vmatpush1.bf16.msra.mxu0 0
      %929 = vmatprep.subr.bf16.mxu0 0
      %930 = vmatpush1.bf16.msra.mxu0 0
      %931 = vmatprep.subr.bf16.mxu0 0
      %932 = vmatpush1.bf16.msra.mxu0 0
      %933 = vmatprep.subr.bf16.mxu0 0
      %934 = vmatpush1.bf16.msra.mxu0 0
      %935 = vmatprep.subr.bf16.mxu0 0
      %936 = vmatpush1.bf16.msra.mxu0 0
      %937 = vmatprep.subr.bf16.mxu0 0
      %938 = vmatpush1.bf16.msra.mxu0 0
      %939 = vmatprep.subr.bf16.mxu0 0
      %940 = vmatpush1.bf16.msra.mxu0 0
      %941 = vmatprep.subr.bf16.mxu0 0
      %942 = vmatpush1.bf16.msra.mxu0 0
      %943 = vmatprep.mubr.bf16.mxu0 0
      %944 = vmatmul.mubr.bf16.gmra.mrb[0].mxu0 %v906
      %v945 = vpop.f32.mrb[0].mxu0
      %v946 = vadd.f32 0.0, %v945
      %v947 = vpop.f32.mrb[0].mxu0
      %v948 = vpop.f32.mrb[0].mxu0
      %v949 = vpop.f32.mrb[0].mxu0
      %950 = vdwg.mxu0
      %952 = vrot.lane.b32.xlu0 %v722, 8
      %v953 = vpop.permute.xlu0 %952
      %956 = vrot.lane.b32.xlu0 %v834, 16
      %v957 = vpop.permute.xlu0 %956
      %960 = vrot.lane.b32.xlu0 %v946, 24
      %v961 = vpop.permute.xlu0 %960
      %v963 = vsel %vm497, %v610, %v953
      %vm964 = vcmask 130048
      %v965 = vsel %vm964, %v963, %v957
      %vm966 = vcmask 195584
      %v967 = vsel %vm966, %v965, %v961
      %v968 = vpack.c.bf16 %v967, %v967
      %v969 = vld [vmem:[%s5] sm:$0xf]
      %v970 = vld [vmem:[%s5 + $0x4] sm:$0xf]
      %v971 = vld [vmem:[%s5 + $0x8] sm:$0xf]
      %v972 = vld [vmem:[%s5 + $0xc] sm:$0xf]
      %v973 = vld [vmem:[%s6] sm:$0x1]
      %v975 = vlaneseq
      %v976 = vshrl.u32 %v975, 7
      %v977 = vsub.s32 0, %v976
      %v978 = vrot.slane %v973, %v977
      %v984 = vunpack.c.l.b16 %v969
      %v985 = vunpack.c.l.b16 %v970
      %v986 = vunpack.c.l.b16 %v971
      %v987 = vunpack.c.l.b16 %v972
      %v988 = vpack.c.b16 %v985, %v984
      %v989 = vpack.c.b16 %v987, %v986
      %v993 = vsel %vm449, %v968, 0
      %995 = vmatprep.subr.bf16.mxu0 0
      %996 = vmatpush1.bf16.msra.mxu0 %v988
      %997 = vmatprep.subr.bf16.mxu0 0
      %998 = vmatpush1.bf16.msra.mxu0 %v989
      %999 = vmatprep.subr.bf16.mxu0 0
      %1000 = vmatpush1.bf16.msra.mxu0 0
      %1001 = vmatprep.subr.bf16.mxu0 0
      %1002 = vmatpush1.bf16.msra.mxu0 0
      %1003 = vmatprep.subr.bf16.mxu0 0
      %1004 = vmatpush1.bf16.msra.mxu0 0
      %1005 = vmatprep.subr.bf16.mxu0 0
      %1006 = vmatpush1.bf16.msra.mxu0 0
      %1007 = vmatprep.subr.bf16.mxu0 0
      %1008 = vmatpush1.bf16.msra.mxu0 0
      %1009 = vmatprep.subr.bf16.mxu0 0
      %1010 = vmatpush1.bf16.msra.mxu0 0
      %1011 = vmatprep.subr.bf16.mxu0 0
      %1012 = vmatpush1.bf16.msra.mxu0 0
      %1013 = vmatprep.subr.bf16.mxu0 0
      %1014 = vmatpush1.bf16.msra.mxu0 0
      %1015 = vmatprep.subr.bf16.mxu0 0
      %1016 = vmatpush1.bf16.msra.mxu0 0
      %1017 = vmatprep.subr.bf16.mxu0 0
      %1018 = vmatpush1.bf16.msra.mxu0 0
      %1019 = vmatprep.subr.bf16.mxu0 0
      %1020 = vmatpush1.bf16.msra.mxu0 0
      %1021 = vmatprep.subr.bf16.mxu0 0
      %1022 = vmatpush1.bf16.msra.mxu0 0
      %1023 = vmatprep.subr.bf16.mxu0 0
      %1024 = vmatpush1.bf16.msra.mxu0 0
      %1025 = vmatprep.subr.bf16.mxu0 0
      %1026 = vmatpush1.bf16.msra.mxu0 0
      %1027 = vmatprep.mubr.bf16.mxu0 0
      %1028 = vmatmul.mubr.bf16.gmra.mrb[0].mxu0 %v993
      %v1029 = vpop.f32.mrb[0].mxu0
      %v1030 = vadd.f32 %v978, %v1029
      %v1031 = vpop.f32.mrb[0].mxu0
      %v1032 = vpop.f32.mrb[0].mxu0
      %v1033 = vpop.f32.mrb[0].mxu0
      %1034 = vdwg.mxu0
      %v1035 = vadd.f32 %v397, %v1030
      %v1036 = vsel %vm400, %v1035, 0.0
      %1037 = vadd.xlane.f32.xlu0 %v1036
      %v1038 = vpop.xlane.xlu0 %1037
      %v1039 = vmul.f32 %v1038, %v404
      %v1040 = vsub.f32 %v1035, %v1039
      %v1041 = vmul.f32 %v1040, %v1040
      %v1042 = vsel %vm400, %v1041, 0.0
      %1043 = vadd.xlane.f32.xlu0 %v1042
      %v1044 = vpop.xlane.xlu0 %1043
      %v1045 = vmul.f32 %v1044, %v404
      %v1046 = vadd.f32 %v1045, 1e-05
      %v1047 = vrsqrt.pop %v1046
      %v1048 = vmul.f32 %v1040, %v1047
      %v1049 = vlaneseq
      %v1050 = vshrl.u32 %v1049, 7
      %v1051 = vsub.s32 2, %v1050
      %v1052 = vrot.slane %v399, %v1051
      %v1053 = vmul.f32 %v1048, %v1052
      %v1054 = vlaneseq
      %v1055 = vshrl.u32 %v1054, 7
      %v1056 = vsub.s32 3, %v1055
      %v1057 = vrot.slane %v399, %v1056
      %v1058 = vadd.f32 %v1053, %v1057
      %v1059 = vpack.c.bf16 %v1058, %v1058
      %v1060 = vld [vmem:[%s7] sm:$0xf]
      %v1061 = vld [vmem:[%s7 + $0x4] sm:$0xf]
      %v1062 = vld [vmem:[%s7 + $0x8] sm:$0xf]
      %v1063 = vld [vmem:[%s7 + $0xc] sm:$0xf]
      %v1064 = vld [vmem:[%s8] sm:$0x1]
      %v1066 = vlaneseq
      %v1067 = vshrl.u32 %v1066, 7
      %v1068 = vsub.s32 0, %v1067
      %v1069 = vrot.slane %v1064, %v1068
      %v1075 = vunpack.c.l.b16 %v1060
      %v1076 = vunpack.c.l.b16 %v1061
      %v1077 = vunpack.c.l.b16 %v1062
      %v1078 = vunpack.c.l.b16 %v1063
      %v1079 = vpack.c.b16 %v1076, %v1075
      %v1080 = vpack.c.b16 %v1078, %v1077
      %v1084 = vsel %vm449, %v1059, 0
      %1086 = vmatprep.subr.bf16.mxu0 0
      %1087 = vmatpush1.bf16.msra.mxu0 %v1079
      %1088 = vmatprep.subr.bf16.mxu0 0
      %1089 = vmatpush1.bf16.msra.mxu0 %v1080
      %1090 = vmatprep.subr.bf16.mxu0 0
      %1091 = vmatpush1.bf16.msra.mxu0 0
      %1092 = vmatprep.subr.bf16.mxu0 0
      %1093 = vmatpush1.bf16.msra.mxu0 0
      %1094 = vmatprep.subr.bf16.mxu0 0
      %1095 = vmatpush1.bf16.msra.mxu0 0
      %1096 = vmatprep.subr.bf16.mxu0 0
      %1097 = vmatpush1.bf16.msra.mxu0 0
      %1098 = vmatprep.subr.bf16.mxu0 0
      %1099 = vmatpush1.bf16.msra.mxu0 0
      %1100 = vmatprep.subr.bf16.mxu0 0
      %1101 = vmatpush1.bf16.msra.mxu0 0
      %1102 = vmatprep.subr.bf16.mxu0 0
      %1103 = vmatpush1.bf16.msra.mxu0 0
      %1104 = vmatprep.subr.bf16.mxu0 0
      %1105 = vmatpush1.bf16.msra.mxu0 0
      %1106 = vmatprep.subr.bf16.mxu0 0
      %1107 = vmatpush1.bf16.msra.mxu0 0
      %1108 = vmatprep.subr.bf16.mxu0 0
      %1109 = vmatpush1.bf16.msra.mxu0 0
      %1110 = vmatprep.subr.bf16.mxu0 0
      %1111 = vmatpush1.bf16.msra.mxu0 0
      %1112 = vmatprep.subr.bf16.mxu0 0
      %1113 = vmatpush1.bf16.msra.mxu0 0
      %1114 = vmatprep.subr.bf16.mxu0 0
      %1115 = vmatpush1.bf16.msra.mxu0 0
      %1116 = vmatprep.subr.bf16.mxu0 0
      %1117 = vmatpush1.bf16.msra.mxu0 0
      %1118 = vmatprep.mubr.bf16.mxu0 0
      %1119 = vmatmul.mubr.bf16.gmra.mrb[0].mxu0 %v1084
      %v1120 = vpop.f32.mrb[0].mxu0
      %v1121 = vadd.f32 %v1069, %v1120
      %v1122 = vpop.f32.mrb[0].mxu0
      %v1123 = vpop.f32.mrb[0].mxu0
      %v1124 = vpop.f32.mrb[0].mxu0
      %1125 = vdwg.mxu0
      %v1126 = vmax.f32 %v1121, 0.0
      %v1127 = vpack.c.bf16 %v1126, %v1126
      %v1128 = vld [vmem:[%s9] sm:$0xf]
      %v1129 = vld [vmem:[%s9 + $0x4] sm:$0xf]
      %v1130 = vld [vmem:[%s9 + $0x8] sm:$0xf]
      %v1131 = vld [vmem:[%s9 + $0xc] sm:$0xf]
      %v1132 = vld [vmem:[%s9 + $0x10] sm:$0xf]
      %v1133 = vld [vmem:[%s9 + $0x14] sm:$0xf]
      %v1134 = vld [vmem:[%s9 + $0x18] sm:$0xf]
      %v1135 = vld [vmem:[%s9 + $0x1c] sm:$0xf]
      %v1136 = vld [vmem:[%s10] sm:$0x1]
      %v1138 = vlaneseq
      %v1139 = vshrl.u32 %v1138, 7
      %v1140 = vsub.s32 0, %v1139
      %v1141 = vrot.slane %v1136, %v1140
      %v1151 = vunpack.c.l.b16 %v1128
      %v1152 = vunpack.c.l.b16 %v1129
      %v1153 = vunpack.c.l.b16 %v1130
      %v1154 = vunpack.c.l.b16 %v1131
      %v1155 = vunpack.c.l.b16 %v1132
      %v1156 = vunpack.c.l.b16 %v1133
      %v1157 = vunpack.c.l.b16 %v1134
      %v1158 = vunpack.c.l.b16 %v1135
      %v1159 = vpack.c.b16 %v1152, %v1151
      %v1160 = vpack.c.b16 %v1154, %v1153
      %v1161 = vpack.c.b16 %v1156, %v1155
      %v1162 = vpack.c.b16 %v1158, %v1157
      %vm1167 = vcmask 523264
      %v1169 = vsel %vm1167, %v1127, 0
      %1171 = vmatprep.subr.bf16.mxu0 0
      %1172 = vmatpush1.bf16.msra.mxu0 %v1159
      %1173 = vmatprep.subr.bf16.mxu0 0
      %1174 = vmatpush1.bf16.msra.mxu0 %v1160
      %1175 = vmatprep.subr.bf16.mxu0 0
      %1176 = vmatpush1.bf16.msra.mxu0 %v1161
      %1177 = vmatprep.subr.bf16.mxu0 0
      %1178 = vmatpush1.bf16.msra.mxu0 %v1162
      %1179 = vmatprep.subr.bf16.mxu0 0
      %1180 = vmatpush1.bf16.msra.mxu0 0
      %1181 = vmatprep.subr.bf16.mxu0 0
      %1182 = vmatpush1.bf16.msra.mxu0 0
      %1183 = vmatprep.subr.bf16.mxu0 0
      %1184 = vmatpush1.bf16.msra.mxu0 0
      %1185 = vmatprep.subr.bf16.mxu0 0
      %1186 = vmatpush1.bf16.msra.mxu0 0
      %1187 = vmatprep.subr.bf16.mxu0 0
      %1188 = vmatpush1.bf16.msra.mxu0 0
      %1189 = vmatprep.subr.bf16.mxu0 0
      %1190 = vmatpush1.bf16.msra.mxu0 0
      %1191 = vmatprep.subr.bf16.mxu0 0
      %1192 = vmatpush1.bf16.msra.mxu0 0
      %1193 = vmatprep.subr.bf16.mxu0 0
      %1194 = vmatpush1.bf16.msra.mxu0 0
      %1195 = vmatprep.subr.bf16.mxu0 0
      %1196 = vmatpush1.bf16.msra.mxu0 0
      %1197 = vmatprep.subr.bf16.mxu0 0
      %1198 = vmatpush1.bf16.msra.mxu0 0
      %1199 = vmatprep.subr.bf16.mxu0 0
      %1200 = vmatpush1.bf16.msra.mxu0 0
      %1201 = vmatprep.subr.bf16.mxu0 0
      %1202 = vmatpush1.bf16.msra.mxu0 0
      %1203 = vmatprep.mubr.bf16.mxu0 0
      %1204 = vmatmul.mubr.bf16.gmra.mrb[0].mxu0 %v1169
      %v1205 = vpop.f32.mrb[0].mxu0
      %v1206 = vadd.f32 %v1141, %v1205
      %v1207 = vpop.f32.mrb[0].mxu0
      %v1208 = vpop.f32.mrb[0].mxu0
      %v1209 = vpop.f32.mrb[0].mxu0
      %1210 = vdwg.mxu0
      %v1211 = vadd.f32 %v1035, %v1206
      %v1212 = vsel %vm400, %v1211, 0.0
      %1213 = vadd.xlane.f32.xlu0 %v1212
      %v1214 = vpop.xlane.xlu0 %1213
      %v1215 = vmul.f32 %v1214, %v404
      %v1216 = vsub.f32 %v1211, %v1215
      %v1217 = vmul.f32 %v1216, %v1216
      %v1218 = vsel %vm400, %v1217, 0.0
      %1219 = vadd.xlane.f32.xlu0 %v1218
      %v1220 = vpop.xlane.xlu0 %1219
      %v1221 = vmul.f32 %v1220, %v404
      %v1222 = vadd.f32 %v1221, 1e-05
      %v1223 = vrsqrt.pop %v1222
      %v1224 = vmul.f32 %v1216, %v1223
      %v1225 = vlaneseq
      %v1226 = vshrl.u32 %v1225, 7
      %v1227 = vsub.s32 4, %v1226
      %v1228 = vrot.slane %v399, %v1227
      %v1229 = vmul.f32 %v1224, %v1228
      %v1230 = vlaneseq
      %v1231 = vshrl.u32 %v1230, 7
      %v1232 = vsub.s32 5, %v1231
      %v1233 = vrot.slane %v399, %v1232
      %v1234 = vadd.f32 %v1229, %v1233
      %1235 = vst.msk [vmem:[%s395] sm:$0xf] %vm400, %v1234
      %p1236 = scmp.lt.s32.totalorder %s22, 1
      %s1237 = scalar_select %p1236, %s22, 1
      %s1238 = smul.addr %s1237, 4
      %s1239 = scalar_lea.vmem %s11, %s1238
      // Predicated region
      $region65: #{forward.7} parent=63 // pred_check
        %p1240 = pneg %p281
      $region66: #{forward.7} parent=63 // pred_check_branch
        %1242 = sbr.rel (%p1240) target = $region68
      $region67: #{forward.7} parent=63 // pred_region
        _
      $region68: #{forward.7} parent=63 // pred_fallthru
        _
    $region64: #{forward.7} parent=5 // pred_fallthru
      _
    %p1243 = scmp.le.s32.totalorder 2, %s17
    // Predicated region
    $region69: #{forward.7} parent=5 // pred_check
      %p1244 = pneg %p1243
    $region70: #{forward.7} parent=5 // pred_check_branch
      %1246 = sbr.rel (%p1244) target = $region72
    $region71: #{forward.7} parent=5 // pred_region
      %s1247 = ssub.s32 %s17, 2
      // Predicated region
      $region73: #{forward.7} parent=71 // pred_check
        %p1248 = pneg %p287
      $region74: #{forward.7} parent=71 // pred_check_branch
        %1250 = sbr.rel (%p1248) target = $region76
      $region75: #{forward.7} parent=71 // pred_region
        %p1251 = scmp.lt.s32.totalorder %s23, 1
        %s1252 = scalar_select %p1251, %s23, 1
        %s1253 = smul.addr %s1252, 4
        %s1254 = scalar_lea.vmem %s11, %s1253
      $region76: #{forward.7} parent=71 // pred_fallthru
        _
    $region72: #{forward.7} parent=5 // pred_fallthru
      _
  $region6: #{forward.7} parent=0 // loop_footer
    %s21 = sadd.s32 1, %s17
  $region7: #{forward.7} parent=0 // loop_footer_branch
    %16 = sbr.rel target = $region3
  $region8: #{forward.7} parent=0 // loop_exit
    _

// kernel: forward.5
$region0: #{forward.5}
  #allocation0 [shape = 'u32[]', space=smem, size = 0x4, offset = 0x4, fixed_abs, tag = 'smem constant byte address 0x4 - core index']
  #allocation1 [shape = 'u32[144,128]{1,0:T(1,128)}', space=vmem, size = 0x12000, scoped, tag = 'internal scratch']
  %s0 = inlined_call_operand.vmem [shape: f32[2,16,64], index: 0, kind: input, shape index: {}]
  %s1 = inlined_call_operand.vmem [shape: f32[2,1,16], index: 1, kind: input, shape index: {}]
  %s2 = inlined_call_operand.vmem [shape: f32[6,64], index: 2, kind: input, shape index: {}]
  %s3 = inlined_call_operand.vmem [shape: bf16[64,192], index: 3, kind: input, shape index: {}]
  %s4 = inlined_call_operand.vmem [shape: f32[1,192], index: 4, kind: input, shape index: {}]
  %s5 = inlined_call_operand.vmem [shape: bf16[64,64], index: 5, kind: input, shape index: {}]
  %s6 = inlined_call_operand.vmem [shape: f32[1,64], index: 6, kind: input, shape index: {}]
  %s7 = inlined_call_operand.vmem [shape: bf16[64,128], index: 7, kind: input, shape index: {}]
  %s8 = inlined_call_operand.vmem [shape: f32[1,128], index: 8, kind: input, shape index: {}]
  %s9 = inlined_call_operand.vmem [shape: bf16[128,64], index: 9, kind: input, shape index: {}]
  %s10 = inlined_call_operand.vmem [shape: f32[1,64], index: 10, kind: input, shape index: {}]
  %s11 = inlined_call_operand.vmem [shape: f32[2,16,64], index: 11, kind: output, shape index: {}]
  %s12 = sld [smem:[#allocation0]]
  $region77: #{forward.5} parent=0
    _
  %s14 = ssub.s32 1, %s12
  %s15 = scalar_select 0, %s14, %s12
  loop: start=0, step=1, limit=4
  $region2: #{forward.5} parent=0 // loop_pre_header
    _
  $region3: #{forward.5} parent=0 // loop_header
    %s17 = sphi 0, %s21
    %p18 = scmp.ge.s32.totalorder %s17, 4
    %s27 = sphi 0, %s29
    %s30 = sphi 0, %s27
    %s31 = sphi 0, %s30
    %s47 = sphi 0, %s31
    %s53 = sphi 0, %s55
    %s56 = sphi 0, %s53
    %s57 = sphi 0, %s56
    %s73 = sphi 0, %s57
    %s77 = sphi 0, %s77
    %s79 = sphi 0, %s77
    %s80 = sphi 0, %s79
    %s94 = sphi 0, %s80
    %s98 = sphi 0, %s98
    %s100 = sphi 0, %s98
    %s101 = sphi 0, %s100
    %s115 = sphi 0, %s101
    %s119 = sphi 0, %s119
    %s121 = sphi 0, %s119
    %s122 = sphi 0, %s121
    %s136 = sphi 0, %s122
    %s140 = sphi 0, %s140
    %s142 = sphi 0, %s140
    %s143 = sphi 0, %s142
    %s157 = sphi 0, %s143
    %s161 = sphi 0, %s161
    %s163 = sphi 0, %s161
    %s164 = sphi 0, %s163
    %s178 = sphi 0, %s164
    %s182 = sphi 0, %s182
    %s184 = sphi 0, %s182
    %s185 = sphi 0, %s184
    %s199 = sphi 0, %s185
    %s203 = sphi 0, %s203
    %s205 = sphi 0, %s203
    %s206 = sphi 0, %s205
    %s220 = sphi 0, %s206
    %s224 = sphi 0, %s224
    %s226 = sphi 0, %s224
    %s227 = sphi 0, %s226
    %s241 = sphi 0, %s227
    %s245 = sphi 0, %s245
    %s247 = sphi 0, %s245
    %s248 = sphi 0, %s247
    %s262 = sphi 0, %s248
    %s268 = sphi 0, %s270
    %s271 = sphi 0, %s268
    %s272 = sphi 0, %s271
    %s288 = sphi 0, %s272
  $region4: #{forward.5} parent=0 // loop_header_branch
    %20 = sbr.rel (%p18) target = $region8
  $region5: #{forward.5} parent=0 // loop_body
    %s22 = ssub.s32 %s17, 1
    %s23 = ssub.s32 %s17, 2
    %s24 = sadd.s32 %s17, 1
    %s25 = ssub.s32 %s17, %s24
    %p26 = scmp.eq.s32.totalorder %s25, 0
    %s28 = sadd.s32 %s27, 1
    %s29 = scalar_select %p26, %s27, %s28
    %p32 = pneg %p26
    %p33 = scmp.eq.s32.totalorder %s17, 1
    %p34 = por %p32, %p33
    %p35 = scmp.ne.s32.totalorder %s27, %s30
    %p36 = scmp.eq.s32.totalorder %s17, 0
    %p37 = por %p35, %p36
    %p38 = scmp.ne.s32.totalorder %s27, %s30
    %p39 = scmp.eq.s32.totalorder %s22, 1
    %p40 = por %p38, %p39
    %p41 = scmp.ne.s32.totalorder %s30, %s31
    %p42 = scmp.eq.s32.totalorder %s22, 0
    %p43 = por %p41, %p42
    %p44 = scmp.ne.s32.totalorder %s30, %s31
    %p45 = scmp.eq.s32.totalorder %s23, 1
    %p46 = por %p44, %p45
    %p48 = scmp.ne.s32.totalorder %s31, %s47
    %p49 = scmp.eq.s32.totalorder %s23, 0
    %p50 = por %p48, %p49
    %s51 = ssub.s32 %s17, %s24
    %p52 = scmp.eq.s32.totalorder %s51, 0
    %s54 = sadd.s32 %s53, 1
    %s55 = scalar_select %p52, %s53, %s54
    %p58 = pneg %p52
    %p59 = scmp.eq.s32.totalorder %s17, 1
    %p60 = por %p58, %p59
    %p61 = scmp.ne.s32.totalorder %s53, %s56
    %p62 = scmp.eq.s32.totalorder %s17, 0
    %p63 = por %p61, %p62
    %p64 = scmp.ne.s32.totalorder %s53, %s56
    %p65 = scmp.eq.s32.totalorder %s22, 1
    %p66 = por %p64, %p65
    %p67 = scmp.ne.s32.totalorder %s56, %s57
    %p68 = scmp.eq.s32.totalorder %s22, 0
    %p69 = por %p67, %p68
    %p70 = scmp.ne.s32.totalorder %s56, %s57
    %p71 = scmp.eq.s32.totalorder %s23, 1
    %p72 = por %p70, %p71
    %p74 = scmp.ne.s32.totalorder %s57, %s73
    %p75 = scmp.eq.s32.totalorder %s23, 0
    %p76 = por %p74, %p75
    %s78 = sadd.s32 %s77, 1
    %p81 = scmp.eq.s32.totalorder %s17, 1
    %p82 = scmp.ne.s32.totalorder %s77, %s79
    %p83 = scmp.eq.s32.totalorder %s17, 0
    %p84 = por %p82, %p83
    %p85 = scmp.ne.s32.totalorder %s77, %s79
    %p86 = scmp.eq.s32.totalorder %s22, 1
    %p87 = por %p85, %p86
    %p88 = scmp.ne.s32.totalorder %s79, %s80
    %p89 = scmp.eq.s32.totalorder %s22, 0
    %p90 = por %p88, %p89
    %p91 = scmp.ne.s32.totalorder %s79, %s80
    %p92 = scmp.eq.s32.totalorder %s23, 1
    %p93 = por %p91, %p92
    %p95 = scmp.ne.s32.totalorder %s80, %s94
    %p96 = scmp.eq.s32.totalorder %s23, 0
    %p97 = por %p95, %p96
    %s99 = sadd.s32 %s98, 1
    %p102 = scmp.eq.s32.totalorder %s17, 1
    %p103 = scmp.ne.s32.totalorder %s98, %s100
    %p104 = scmp.eq.s32.totalorder %s17, 0
    %p105 = por %p103, %p104
    %p106 = scmp.ne.s32.totalorder %s98, %s100
    %p107 = scmp.eq.s32.totalorder %s22, 1
    %p108 = por %p106, %p107
    %p109 = scmp.ne.s32.totalorder %s100, %s101
    %p110 = scmp.eq.s32.totalorder %s22, 0
    %p111 = por %p109, %p110
    %p112 = scmp.ne.s32.totalorder %s100, %s101
    %p113 = scmp.eq.s32.totalorder %s23, 1
    %p114 = por %p112, %p113
    %p116 = scmp.ne.s32.totalorder %s101, %s115
    %p117 = scmp.eq.s32.totalorder %s23, 0
    %p118 = por %p116, %p117
    %s120 = sadd.s32 %s119, 1
    %p123 = scmp.eq.s32.totalorder %s17, 1
    %p124 = scmp.ne.s32.totalorder %s119, %s121
    %p125 = scmp.eq.s32.totalorder %s17, 0
    %p126 = por %p124, %p125
    %p127 = scmp.ne.s32.totalorder %s119, %s121
    %p128 = scmp.eq.s32.totalorder %s22, 1
    %p129 = por %p127, %p128
    %p130 = scmp.ne.s32.totalorder %s121, %s122
    %p131 = scmp.eq.s32.totalorder %s22, 0
    %p132 = por %p130, %p131
    %p133 = scmp.ne.s32.totalorder %s121, %s122
    %p134 = scmp.eq.s32.totalorder %s23, 1
    %p135 = por %p133, %p134
    %p137 = scmp.ne.s32.totalorder %s122, %s136
    %p138 = scmp.eq.s32.totalorder %s23, 0
    %p139 = por %p137, %p138
    %s141 = sadd.s32 %s140, 1
    %p144 = scmp.eq.s32.totalorder %s17, 1
    %p145 = scmp.ne.s32.totalorder %s140, %s142
    %p146 = scmp.eq.s32.totalorder %s17, 0
    %p147 = por %p145, %p146
    %p148 = scmp.ne.s32.totalorder %s140, %s142
    %p149 = scmp.eq.s32.totalorder %s22, 1
    %p150 = por %p148, %p149
    %p151 = scmp.ne.s32.totalorder %s142, %s143
    %p152 = scmp.eq.s32.totalorder %s22, 0
    %p153 = por %p151, %p152
    %p154 = scmp.ne.s32.totalorder %s142, %s143
    %p155 = scmp.eq.s32.totalorder %s23, 1
    %p156 = por %p154, %p155
    %p158 = scmp.ne.s32.totalorder %s143, %s157
    %p159 = scmp.eq.s32.totalorder %s23, 0
    %p160 = por %p158, %p159
    %s162 = sadd.s32 %s161, 1
    %p165 = scmp.eq.s32.totalorder %s17, 1
    %p166 = scmp.ne.s32.totalorder %s161, %s163
    %p167 = scmp.eq.s32.totalorder %s17, 0
    %p168 = por %p166, %p167
    %p169 = scmp.ne.s32.totalorder %s161, %s163
    %p170 = scmp.eq.s32.totalorder %s22, 1
    %p171 = por %p169, %p170
    %p172 = scmp.ne.s32.totalorder %s163, %s164
    %p173 = scmp.eq.s32.totalorder %s22, 0
    %p174 = por %p172, %p173
    %p175 = scmp.ne.s32.totalorder %s163, %s164
    %p176 = scmp.eq.s32.totalorder %s23, 1
    %p177 = por %p175, %p176
    %p179 = scmp.ne.s32.totalorder %s164, %s178
    %p180 = scmp.eq.s32.totalorder %s23, 0
    %p181 = por %p179, %p180
    %s183 = sadd.s32 %s182, 1
    %p186 = scmp.eq.s32.totalorder %s17, 1
    %p187 = scmp.ne.s32.totalorder %s182, %s184
    %p188 = scmp.eq.s32.totalorder %s17, 0
    %p189 = por %p187, %p188
    %p190 = scmp.ne.s32.totalorder %s182, %s184
    %p191 = scmp.eq.s32.totalorder %s22, 1
    %p192 = por %p190, %p191
    %p193 = scmp.ne.s32.totalorder %s184, %s185
    %p194 = scmp.eq.s32.totalorder %s22, 0
    %p195 = por %p193, %p194
    %p196 = scmp.ne.s32.totalorder %s184, %s185
    %p197 = scmp.eq.s32.totalorder %s23, 1
    %p198 = por %p196, %p197
    %p200 = scmp.ne.s32.totalorder %s185, %s199
    %p201 = scmp.eq.s32.totalorder %s23, 0
    %p202 = por %p200, %p201
    %s204 = sadd.s32 %s203, 1
    %p207 = scmp.eq.s32.totalorder %s17, 1
    %p208 = scmp.ne.s32.totalorder %s203, %s205
    %p209 = scmp.eq.s32.totalorder %s17, 0
    %p210 = por %p208, %p209
    %p211 = scmp.ne.s32.totalorder %s203, %s205
    %p212 = scmp.eq.s32.totalorder %s22, 1
    %p213 = por %p211, %p212
    %p214 = scmp.ne.s32.totalorder %s205, %s206
    %p215 = scmp.eq.s32.totalorder %s22, 0
    %p216 = por %p214, %p215
    %p217 = scmp.ne.s32.totalorder %s205, %s206
    %p218 = scmp.eq.s32.totalorder %s23, 1
    %p219 = por %p217, %p218
    %p221 = scmp.ne.s32.totalorder %s206, %s220
    %p222 = scmp.eq.s32.totalorder %s23, 0
    %p223 = por %p221, %p222
    %s225 = sadd.s32 %s224, 1
    %p228 = scmp.eq.s32.totalorder %s17, 1
    %p229 = scmp.ne.s32.totalorder %s224, %s226
    %p230 = scmp.eq.s32.totalorder %s17, 0
    %p231 = por %p229, %p230
    %p232 = scmp.ne.s32.totalorder %s224, %s226
    %p233 = scmp.eq.s32.totalorder %s22, 1
    %p234 = por %p232, %p233
    %p235 = scmp.ne.s32.totalorder %s226, %s227
    %p236 = scmp.eq.s32.totalorder %s22, 0
    %p237 = por %p235, %p236
    %p238 = scmp.ne.s32.totalorder %s226, %s227
    %p239 = scmp.eq.s32.totalorder %s23, 1
    %p240 = por %p238, %p239
    %p242 = scmp.ne.s32.totalorder %s227, %s241
    %p243 = scmp.eq.s32.totalorder %s23, 0
    %p244 = por %p242, %p243
    %s246 = sadd.s32 %s245, 1
    %p249 = scmp.eq.s32.totalorder %s17, 1
    %p250 = scmp.ne.s32.totalorder %s245, %s247
    %p251 = scmp.eq.s32.totalorder %s17, 0
    %p252 = por %p250, %p251
    %p253 = scmp.ne.s32.totalorder %s245, %s247
    %p254 = scmp.eq.s32.totalorder %s22, 1
    %p255 = por %p253, %p254
    %p256 = scmp.ne.s32.totalorder %s247, %s248
    %p257 = scmp.eq.s32.totalorder %s22, 0
    %p258 = por %p256, %p257
    %p259 = scmp.ne.s32.totalorder %s247, %s248
    %p260 = scmp.eq.s32.totalorder %s23, 1
    %p261 = por %p259, %p260
    %p263 = scmp.ne.s32.totalorder %s248, %s262
    %p264 = scmp.eq.s32.totalorder %s23, 0
    %p265 = por %p263, %p264
    %s266 = ssub.s32 %s17, %s24
    %p267 = scmp.eq.s32.totalorder %s266, 0
    %s269 = sadd.s32 %s268, 1
    %s270 = scalar_select %p267, %s268, %s269
    %p273 = pneg %p267
    %p274 = scmp.eq.s32.totalorder %s17, 1
    %p275 = por %p273, %p274
    %p276 = scmp.ne.s32.totalorder %s268, %s271
    %p277 = scmp.eq.s32.totalorder %s17, 0
    %p278 = por %p276, %p277
    %p279 = scmp.ne.s32.totalorder %s268, %s271
    %p280 = scmp.eq.s32.totalorder %s22, 1
    %p281 = por %p279, %p280
    %p282 = scmp.ne.s32.totalorder %s271, %s272
    %p283 = scmp.eq.s32.totalorder %s22, 0
    %p284 = por %p282, %p283
    %p285 = scmp.ne.s32.totalorder %s271, %s272
    %p286 = scmp.eq.s32.totalorder %s23, 1
    %p287 = por %p285, %p286
    %p289 = scmp.ne.s32.totalorder %s272, %s288
    %p290 = scmp.eq.s32.totalorder %s23, 0
    %p291 = por %p289, %p290
    %p292 = scmp.le.s32.totalorder 1, %s17
    %p293 = scmp.lt.s32.totalorder %s17, 3
    %p294 = pnand %p292, %p293
    %p295 = pneg %p294
    // Predicated region
    $region9: #{forward.5} parent=5 // pred_check
      _
    $region10: #{forward.5} parent=5 // pred_check_branch
      %297 = sbr.rel (%p294) target = $region12
    $region11: #{forward.5} parent=5 // pred_region
      %s298 = ssub.s32 %s17, 1
      // Predicated region
      $region13: #{forward.5} parent=11 // pred_check
        %p299 = pneg %p90
      $region14: #{forward.5} parent=11 // pred_check_branch
        %301 = sbr.rel (%p299) target = $region16
      $region15: #{forward.5} parent=11 // pred_region
        _
      $region16: #{forward.5} parent=11 // pred_fallthru
        _
      // Predicated region
      $region17: #{forward.5} parent=11 // pred_check
        %p302 = pneg %p111
      $region18: #{forward.5} parent=11 // pred_check_branch
        %304 = sbr.rel (%p302) target = $region20
      $region19: #{forward.5} parent=11 // pred_region
        _
      $region20: #{forward.5} parent=11 // pred_fallthru
        _
      // Predicated region
      $region21: #{forward.5} parent=11 // pred_check
        %p305 = pneg %p132
      $region22: #{forward.5} parent=11 // pred_check_branch
        %307 = sbr.rel (%p305) target = $region24
      $region23: #{forward.5} parent=11 // pred_region
        _
      $region24: #{forward.5} parent=11 // pred_fallthru
        _
      // Predicated region
      $region25: #{forward.5} parent=11 // pred_check
        %p308 = pneg %p153
      $region26: #{forward.5} parent=11 // pred_check_branch
        %310 = sbr.rel (%p308) target = $region28
      $region27: #{forward.5} parent=11 // pred_region
        _
      $region28: #{forward.5} parent=11 // pred_fallthru
        _
      // Predicated region
      $region29: #{forward.5} parent=11 // pred_check
        %p311 = pneg %p174
      $region30: #{forward.5} parent=11 // pred_check_branch
        %313 = sbr.rel (%p311) target = $region32
      $region31: #{forward.5} parent=11 // pred_region
        _
      $region32: #{forward.5} parent=11 // pred_fallthru
        _
      // Predicated region
      $region33: #{forward.5} parent=11 // pred_check
        %p314 = pneg %p195
      $region34: #{forward.5} parent=11 // pred_check_branch
        %316 = sbr.rel (%p314) target = $region36
      $region35: #{forward.5} parent=11 // pred_region
        _
      $region36: #{forward.5} parent=11 // pred_fallthru
        _
      // Predicated region
      $region37: #{forward.5} parent=11 // pred_check
        %p317 = pneg %p216
      $region38: #{forward.5} parent=11 // pred_check_branch
        %319 = sbr.rel (%p317) target = $region40
      $region39: #{forward.5} parent=11 // pred_region
        _
      $region40: #{forward.5} parent=11 // pred_fallthru
        _
      // Predicated region
      $region41: #{forward.5} parent=11 // pred_check
        %p320 = pneg %p237
      $region42: #{forward.5} parent=11 // pred_check_branch
        %322 = sbr.rel (%p320) target = $region44
      $region43: #{forward.5} parent=11 // pred_region
        _
      $region44: #{forward.5} parent=11 // pred_fallthru
        _
      // Predicated region
      $region45: #{forward.5} parent=11 // pred_check
        %p323 = pneg %p258
      $region46: #{forward.5} parent=11 // pred_check_branch
        %325 = sbr.rel (%p323) target = $region48
      $region47: #{forward.5} parent=11 // pred_region
        _
      $region48: #{forward.5} parent=11 // pred_fallthru
        _
    $region12: #{forward.5} parent=5 // pred_fallthru
      _
    %p326 = scmp.lt.s32.totalorder %s17, 2
    // Predicated region
    $region49: #{forward.5} parent=5 // pred_check
      %p327 = pneg %p326
    $region50: #{forward.5} parent=5 // pred_check_branch
      %329 = sbr.rel (%p327) target = $region52
    $region51: #{forward.5} parent=5 // pred_region
      // Predicated region
      $region53: #{forward.5} parent=51 // pred_check
        %p330 = pneg %p37
      $region54: #{forward.5} parent=51 // pred_check_branch
        %332 = sbr.rel (%p330) target = $region56
      $region55: #{forward.5} parent=51 // pred_region
        %p333 = scmp.lt.s32.totalorder %s17, 1
        %s334 = scalar_select %p333, %s17, 1
        %s335 = smul.addr %s334, 2
        %s336 = smul.addr %s335, 8
        %s337 = scalar_lea.vmem %s0, %s336
      $region56: #{forward.5} parent=51 // pred_fallthru
        _
      // Predicated region
      $region57: #{forward.5} parent=51 // pred_check
        %p338 = pneg %p63
      $region58: #{forward.5} parent=51 // pred_check_branch
        %340 = sbr.rel (%p338) target = $region60
      $region59: #{forward.5} parent=51 // pred_region
        %p341 = scmp.lt.s32.totalorder %s17, 1
        %s342 = scalar_select %p341, %s17, 1
        %s343 = scalar_lea.vmem %s1, %s342
      $region60: #{forward.5} parent=51 // pred_fallthru
        _
    $region52: #{forward.5} parent=5 // pred_fallthru
      _
    %p344 = scmp.le.s32.totalorder 1, %s17
    %p345 = scmp.lt.s32.totalorder %s17, 3
    %p346 = pnand %p344, %p345
    %p347 = pneg %p346
    // Predicated region
    $region61: #{forward.5} parent=5 // pred_check
      _
    $region62: #{forward.5} parent=5 // pred_check_branch
      %349 = sbr.rel (%p346) target = $region64
    $region63: #{forward.5} parent=5 // pred_region
      %s350 = ssub.s32 %s17, 1
      %p351 = scmp.lt.s32.totalorder %s22, 1
      %s352 = scalar_select %p351, %s22, 1
      %s353 = smul.addr %s352, 2
      %s354 = smul.addr %s353, 8
      %s355 = scalar_lea.vmem %s0, %s354
      %p356 = pneg %p43
      %p357 = pneg %p40
      %p358 = scmp.lt.s32.totalorder %s22, 1
      %s359 = scalar_select %p358, %s22, 1
      %s360 = scalar_lea.vmem %s1, %s359
      %p361 = pneg %p69
      %p362 = pneg %p66
      %p363 = pneg %p90
      %p364 = pneg %p87
      %p365 = pneg %p111
      %p366 = pneg %p108
      %p367 = pneg %p132
      %p368 = pneg %p129
      %p369 = pneg %p153
      %p370 = pneg %p150
      %p371 = pneg %p174
      %p372 = pneg %p171
      %p373 = pneg %p195
      %p374 = pneg %p192
      %p375 = pneg %p216
      %p376 = pneg %p213
      %p377 = pneg %p237
      %p378 = pneg %p234
      %p379 = pneg %p258
      %p380 = pneg %p255
      %p381 = pneg %p284
      %p382 = pneg %p281
      %p383 = scmp.lt.s32.totalorder %s22, 1
      %s384 = scalar_select %p383, %s22, 1
      %s385 = smul.addr %s384, 2
      %s386 = smul.addr %s385, 8
      %s387 = scalar_lea.vmem %s11, %s386
      %p388 = scmp.lt.s32.totalorder %s22, 1
      %s389 = scalar_select %p388, %s22, 1
      %s390 = smul.addr %s389, 2
      %s391 = smul.addr %s390, 8
      %s392 = scalar_lea.vmem %s0, %s391
      %p393 = scmp.lt.s32.totalorder %s22, 1
      %s394 = scalar_select %p393, %s22, 1
      %s395 = scalar_lea.vmem %s1, %s394
      %p396 = scmp.lt.s32.totalorder %s22, 1
      %s397 = scalar_select %p396, %s22, 1
      %s398 = smul.addr %s397, 2
      %s399 = smul.addr %s398, 8
      %s400 = scalar_lea.vmem %s11, %s399
      %v402 = vld [vmem:[%s392] sm:$0xff]
      %v403 = vld [vmem:[%s392 + $0x8] sm:$0xff]
      %v404 = vld [vmem:[%s395] sm:$0x1]
      %v405 = vld [vmem:[%s2] sm:$0x3f]
      %vm406 = vcmask 523264
      %v407 = vsel %vm406, %v402, 0.0
      %408 = vadd.xlane.f32.xlu0 %v407
      %v409 = vpop.xlane.xlu0 %408
      %v410 = vsel %vm406, %v403, 0.0
      %411 = vadd.xlane.f32.xlu0 %v410
      %v412 = vpop.xlane.xlu0 %411
      %v413 = vrcp.pop 64.0
      %v414 = vmul.f32 %v409, %v413
      %v415 = vmul.f32 %v412, %v413
      %v416 = vsub.f32 %v402, %v414
      %v417 = vsub.f32 %v403, %v415
      %v418 = vmul.f32 %v416, %v416
      %v419 = vmul.f32 %v417, %v417
      %v420 = vsel %vm406, %v418, 0.0
      %421 = vadd.xlane.f32.xlu0 %v420
      %v422 = vpop.xlane.xlu0 %421
      %v423 = vsel %vm406, %v419, 0.0
      %424 = vadd.xlane.f32.xlu0 %v423
      %v425 = vpop.xlane.xlu0 %424
      %v426 = vmul.f32 %v422, %v413
      %v427 = vmul.f32 %v425, %v413
      %v428 = vadd.f32 %v426, 1e-05
      %v429 = vadd.f32 %v427, 1e-05
      %v430 = vrsqrt.pop %v428
      %v431 = vrsqrt.pop %v429
      %v432 = vmul.f32 %v416, %v430
      %v433 = vmul.f32 %v417, %v431
      %v434 = vlaneseq
      %v435 = vshrl.u32 %v434, 7
      %v436 = vsub.s32 4, %v435
      %v437 = vrot.slane %v405, %v436
      %v438 = vmul.f32 %v432, %v437
      %v439 = vmul.f32 %v433, %v437
      %v440 = vlaneseq
      %v441 = vshrl.u32 %v440, 7
      %v442 = vsub.s32 5, %v441
      %v443 = vrot.slane %v405, %v442
      %v444 = vadd.f32 %v438, %v443
      %v445 = vadd.f32 %v439, %v443
      %v446 = vsel %vm406, %v444, 0.0
      %447 = vadd.xlane.f32.xlu0 %v446
      %v448 = vpop.xlane.xlu0 %447
      %v449 = vsel %vm406, %v445, 0.0
      %450 = vadd.xlane.f32.xlu0 %v449
      %v451 = vpop.xlane.xlu0 %450
      %v452 = vmul.f32 %v448, %v413
      %v453 = vmul.f32 %v451, %v413
      %v454 = vsub.f32 %v444, %v452
      %v455 = vsub.f32 %v445, %v453
      %v456 = vmul.f32 %v454, %v454
      %v457 = vmul.f32 %v455, %v455
      %v458 = vsel %vm406, %v456, 0.0
      %459 = vadd.xlane.f32.xlu0 %v458
      %v460 = vpop.xlane.xlu0 %459
      %v461 = vsel %vm406, %v457, 0.0
      %462 = vadd.xlane.f32.xlu0 %v461
      %v463 = vpop.xlane.xlu0 %462
      %v464 = vmul.f32 %v460, %v413
      %v465 = vmul.f32 %v463, %v413
      %v466 = vadd.f32 %v464, 1e-05
      %v467 = vadd.f32 %v465, 1e-05
      %v468 = vrsqrt.pop %v466
      %v469 = vrsqrt.pop %v467
      %v470 = vmul.f32 %v454, %v468
      %v471 = vmul.f32 %v455, %v469
      %v472 = vlaneseq
      %v473 = vshrl.u32 %v472, 7
      %v474 = vsub.s32 0, %v473
      %v475 = vrot.slane %v405, %v474
      %v476 = vmul.f32 %v470, %v475
      %v477 = vmul.f32 %v471, %v475
      %v478 = vlaneseq
      %v479 = vshrl.u32 %v478, 7
      %v480 = vsub.s32 1, %v479
      %v481 = vrot.slane %v405, %v480
      %v482 = vadd.f32 %v476, %v481
      %v483 = vadd.f32 %v477, %v481
      %v484 = vpack.c.bf16 %v483, %v482
      %v485 = vld [vmem:[%s3] sm:$0xff]
      %v486 = vld [vmem:[%s3 + $0x8] sm:$0xff]
      %v487 = vld [vmem:[%s3 + $0x10] sm:$0xff]
      %v488 = vld [vmem:[%s3 + $0x18] sm:$0xff]
      %v489 = vld [vmem:[%s3 + $0x20] sm:$0xff]
      %v490 = vld [vmem:[%s3 + $0x28] sm:$0xff]
      %v491 = vld [vmem:[%s3 + $0x30] sm:$0xff]
      %v492 = vld [vmem:[%s3 + $0x38] sm:$0xff]
      %v493 = vld [vmem:[%s4] sm:$0x3]
      %v495 = vlaneseq
      %v496 = vshrl.u32 %v495, 7
      %v497 = vsub.s32 0, %v496
      %v498 = vrot.slane %v493, %v497
      %v499 = vlaneseq
      %v500 = vshrl.u32 %v499, 7
      %v501 = vsub.s32 1, %v500
      %v502 = vrot.slane %v493, %v501
      %v513 = vunpack.c.l.b16 %v485
      %v514 = vunpack.c.h.b16 %v485
      %v515 = vunpack.c.l.b16 %v486
      %v516 = vunpack.c.h.b16 %v486
      %v517 = vunpack.c.l.b16 %v487
      %v518 = vunpack.c.h.b16 %v487
      %v519 = vunpack.c.l.b16 %v488
      %v520 = vunpack.c.h.b16 %v488
      %v521 = vunpack.c.l.b16 %v489
      %v522 = vunpack.c.h.b16 %v489
      %v523 = vunpack.c.l.b16 %v490
      %v524 = vunpack.c.h.b16 %v490
      %v525 = vunpack.c.l.b16 %v491
      %v526 = vunpack.c.h.b16 %v491
      %v527 = vunpack.c.l.b16 %v492
      %v528 = vunpack.c.h.b16 %v492
      %v529 = vpack.c.b16 %v515, %v513
      %v530 = vpack.c.b16 %v516, %v514
      %v531 = vpack.c.b16 %v519, %v517
      %v532 = vpack.c.b16 %v520, %v518
      %v533 = vpack.c.b16 %v523, %v521
      %v534 = vpack.c.b16 %v524, %v522
      %v535 = vpack.c.b16 %v527, %v525
      %v536 = vpack.c.b16 %v528, %v526
      %v546 = vsel %vm406, %v484, 0
      %548 = vmatprep.subr.bf16.mxu0 %v530
      %549 = vmatpush1.bf16.msra.mxu0 %v529
      %550 = vmatprep.subr.bf16.mxu0 %v532
      %551 = vmatpush1.bf16.msra.mxu0 %v531
      %552 = vmatprep.subr.bf16.mxu0 %v534
      %553 = vmatpush1.bf16.msra.mxu0 %v533
      %554 = vmatprep.subr.bf16.mxu0 %v536
      %555 = vmatpush1.bf16.msra.mxu0 %v535
      %556 = vmatprep.subr.bf16.mxu0 0
      %557 = vmatpush1.bf16.msra.mxu0 0
      %558 = vmatprep.subr.bf16.mxu0 0
      %559 = vmatpush1.bf16.msra.mxu0 0
      %560 = vmatprep.subr.bf16.mxu0 0
      %561 = vmatpush1.bf16.msra.mxu0 0
      %562 = vmatprep.subr.bf16.mxu0 0
      %563 = vmatpush1.bf16.msra.mxu0 0
      %564 = vmatprep.subr.bf16.mxu0 0
      %565 = vmatpush1.bf16.msra.mxu0 0
      %566 = vmatprep.subr.bf16.mxu0 0
      %567 = vmatpush1.bf16.msra.mxu0 0
      %568 = vmatprep.subr.bf16.mxu0 0
      %569 = vmatpush1.bf16.msra.mxu0 0
      %570 = vmatprep.subr.bf16.mxu0 0
      %571 = vmatpush1.bf16.msra.mxu0 0
      %572 = vmatprep.subr.bf16.mxu0 0
      %573 = vmatpush1.bf16.msra.mxu0 0
      %574 = vmatprep.subr.bf16.mxu0 0
      %575 = vmatpush1.bf16.msra.mxu0 0
      %576 = vmatprep.subr.bf16.mxu0 0
      %577 = vmatpush1.bf16.msra.mxu0 0
      %578 = vmatprep.subr.bf16.mxu0 0
      %579 = vmatpush1.bf16.msra.mxu0 0
      %580 = vmatprep.mubr.bf16.mxu0 0
      %581 = vmatmul.mubr.bf16.gmra.mrb[0].mxu0 %v546
      %v582 = vpop.f32.mrb[0].mxu0
      %v583 = vadd.f32 %v498, %v582
      %v584 = vpop.f32.mrb[0].mxu0
      %v585 = vadd.f32 %v502, %v584
      %v586 = vpop.f32.mrb[0].mxu0
      %v587 = vadd.f32 %v498, %v586
      %v588 = vpop.f32.mrb[0].mxu0
      %v589 = vadd.f32 %v502, %v588
      %590 = vdwg.mxu0
      %v591 = vpack.c.bf16 %v587, %v583
      %v592 = vpack.c.bf16 %v589, %v585
      %594 = vrot.lane.b32.xlu0 %v591, 64
      %v595 = vpop.permute.xlu0 %594
      %vm596 = vcmask 130048
      %v598 = vsel %vm596, %v591, 0
      %v601 = vsel %vm596, %v595, 0
      %603 = vmatprep.subr.bf16.mxu0 0
      %604 = vmatpush1.bf16.xpose.msra.mxu0 %v601
      %605 = vmatprep.subr.bf16.mxu0 0
      %606 = vmatpush1.bf16.xpose.msra.mxu0 0
      %607 = vmatprep.subr.bf16.mxu0 0
      %608 = vmatpush1.bf16.xpose.msra.mxu0 0
      %609 = vmatprep.subr.bf16.mxu0 0
      %610 = vmatpush1.bf16.xpose.msra.mxu0 0
      %611 = vmatprep.subr.bf16.mxu0 0
      %612 = vmatpush1.bf16.xpose.msra.mxu0 0
      %613 = vmatprep.subr.bf16.mxu0 0
      %614 = vmatpush1.bf16.xpose.msra.mxu0 0
      %615 = vmatprep.subr.bf16.mxu0 0
      %616 = vmatpush1.bf16.xpose.msra.mxu0 0
      %617 = vmatprep.subr.bf16.mxu0 0
      %618 = vmatpush1.bf16.xpose.msra.mxu0 0
      %619 = vmatprep.subr.bf16.mxu0 0
      %620 = vmatpush1.bf16.xpose.msra.mxu0 0
      %621 = vmatprep.subr.bf16.mxu0 0
      %622 = vmatpush1.bf16.xpose.msra.mxu0 0
      %623 = vmatprep.subr.bf16.mxu0 0
      %624 = vmatpush1.bf16.xpose.msra.mxu0 0
      %625 = vmatprep.subr.bf16.mxu0 0
      %626 = vmatpush1.bf16.xpose.msra.mxu0 0
      %627 = vmatprep.subr.bf16.mxu0 0
      %628 = vmatpush1.bf16.xpose.msra.mxu0 0
      %629 = vmatprep.subr.bf16.mxu0 0
      %630 = vmatpush1.bf16.xpose.msra.mxu0 0
      %631 = vmatprep.subr.bf16.mxu0 0
      %632 = vmatpush1.bf16.xpose.msra.mxu0 0
      %633 = vmatprep.subr.bf16.mxu0 0
      %634 = vmatpush1.bf16.xpose.msra.mxu0 0
      %635 = vmatprep.mubr.bf16.mxu0 0
      %636 = vmatmul.mubr.bf16.gmra.mrb[0].mxu0 %v598
      %v637 = vpop.f32.mrb[0].mxu0
      %v638 = vadd.f32 0.0, %v637
      %v639 = vpop.f32.mrb[0].mxu0
      %v640 = vpop.f32.mrb[0].mxu0
      %v641 = vadd.f32 0.0, %v640
      %v642 = vpop.f32.mrb[0].mxu0
      %643 = vdwg.mxu0
      %v644 = vmul.f32 %v638, 0.25
      %v645 = vmul.f32 %v641, 0.25
      %v647 = vlaneseq
      %v648 = vshrl.u32 %v647, 7
      %v649 = vsub.s32 0, %v648
      %v650 = vrot.slane %v404, %v649
      %v652 = vadd.f32 %v644, %v650
      %v653 = vadd.f32 %v645, %v650
      %v654 = vsel %vm596, %v652, -inf
      %655 = vmax.xlane.f32.xlu0 %v654
      %v656 = vpop.xlane.xlu0 %655
      %v657 = vsel %vm596, %v653, -inf
      %658 = vmax.xlane.f32.xlu0 %v657
      %v659 = vpop.xlane.xlu0 %658
      %v660 = vsub.f32 %v652, %v656
      %v661 = vsub.f32 %v653, %v659
      %v662 = vmul.f32 %v660, 1.442695
      %v663 = vpow.pop %v662
      %v664 = vmul.f32 %v661, 1.442695
      %v665 = vpow.pop %v664
      %v666 = vsel %vm596, %v663, 0.0
      %667 = vadd.xlane.f32.xlu0 %v666
      %v668 = vpop.xlane.xlu0 %667
      %v669 = vsel %vm596, %v665, 0.0
      %670 = vadd.xlane.f32.xlu0 %v669
      %v671 = vpop.xlane.xlu0 %670
      %v672 = vrcp.pop %v668
      %v673 = vrcp.pop %v671
      %v674 = vmul.f32 %v663, %v672
      %v675 = vmul.f32 %v665, %v673
      %v676 = vpack.c.bf16 %v675, %v674
      %v678 = vsel %vm596, %v676, 0
      %680 = vmatprep.subr.bf16.mxu0 0
      %681 = vmatpush1.bf16.msra.mxu0 %v592
      %682 = vmatprep.subr.bf16.mxu0 0
      %683 = vmatpush1.bf16.msra.mxu0 0
      %684 = vmatprep.subr.bf16.mxu0 0
      %685 = vmatpush1.bf16.msra.mxu0 0
      %686 = vmatprep.subr.bf16.mxu0 0
      %687 = vmatpush1.bf16.msra.mxu0 0
      %688 = vmatprep.subr.bf16.mxu0 0
      %689 = vmatpush1.bf16.msra.mxu0 0
      %690 = vmatprep.subr.bf16.mxu0 0
      %691 = vmatpush1.bf16.msra.mxu0 0
      %692 = vmatprep.subr.bf16.mxu0 0
      %693 = vmatpush1.bf16.msra.mxu0 0
      %694 = vmatprep.subr.bf16.mxu0 0
      %695 = vmatpush1.bf16.msra.mxu0 0
      %696 = vmatprep.subr.bf16.mxu0 0
      %697 = vmatpush1.bf16.msra.mxu0 0
      %698 = vmatprep.subr.bf16.mxu0 0
      %699 = vmatpush1.bf16.msra.mxu0 0
      %700 = vmatprep.subr.bf16.mxu0 0
      %701 = vmatpush1.bf16.msra.mxu0 0
      %702 = vmatprep.subr.bf16.mxu0 0
      %703 = vmatpush1.bf16.msra.mxu0 0
      %704 = vmatprep.subr.bf16.mxu0 0
      %705 = vmatpush1.bf16.msra.mxu0 0
      %706 = vmatprep.subr.bf16.mxu0 0
      %707 = vmatpush1.bf16.msra.mxu0 0
      %708 = vmatprep.subr.bf16.mxu0 0
      %709 = vmatpush1.bf16.msra.mxu0 0
      %710 = vmatprep.subr.bf16.mxu0 0
      %711 = vmatpush1.bf16.msra.mxu0 0
      %712 = vmatprep.mubr.bf16.mxu0 0
      %713 = vmatmul.mubr.bf16.gmra.mrb[0].mxu0 %v678
      %v714 = vpop.f32.mrb[0].mxu0
      %v715 = vadd.f32 0.0, %v714
      %v716 = vpop.f32.mrb[0].mxu0
      %v717 = vpop.f32.mrb[0].mxu0
      %v718 = vadd.f32 0.0, %v717
      %v719 = vpop.f32.mrb[0].mxu0
      %720 = vdwg.mxu0
      %721 = vrot.lane.b32.xlu0 %v591, 112
      %v722 = vpop.permute.xlu0 %721
      %723 = vrot.lane.b32.xlu0 %v591, 48
      %v724 = vpop.permute.xlu0 %723
      %v726 = vsel %vm596, %v722, 0
      %v729 = vsel %vm596, %v724, 0
      %731 = vmatprep.subr.bf16.mxu0 0
      %732 = vmatpush1.bf16.xpose.msra.mxu0 %v729
      %733 = vmatprep.subr.bf16.mxu0 0
      %734 = vmatpush1.bf16.xpose.msra.mxu0 0
      %735 = vmatprep.subr.bf16.mxu0 0
      %736 = vmatpush1.bf16.xpose.msra.mxu0 0
      %737 = vmatprep.subr.bf16.mxu0 0
      %738 = vmatpush1.bf16.xpose.msra.mxu0 0
      %739 = vmatprep.subr.bf16.mxu0 0
      %740 = vmatpush1.bf16.xpose.msra.mxu0 0
      %741 = vmatprep.subr.bf16.mxu0 0
      %742 = vmatpush1.bf16.xpose.msra.mxu0 0
      %743 = vmatprep.subr.bf16.mxu0 0
      %744 = vmatpush1.bf16.xpose.msra.mxu0 0
      %745 = vmatprep.subr.bf16.mxu0 0
      %746 = vmatpush1.bf16.xpose.msra.mxu0 0
      %747 = vmatprep.subr.bf16.mxu0 0
      %748 = vmatpush1.bf16.xpose.msra.mxu0 0
      %749 = vmatprep.subr.bf16.mxu0 0
      %750 = vmatpush1.bf16.xpose.msra.mxu0 0
      %751 = vmatprep.subr.bf16.mxu0 0
      %752 = vmatpush1.bf16.xpose.msra.mxu0 0
      %753 = vmatprep.subr.bf16.mxu0 0
      %754 = vmatpush1.bf16.xpose.msra.mxu0 0
      %755 = vmatprep.subr.bf16.mxu0 0
      %756 = vmatpush1.bf16.xpose.msra.mxu0 0
      %757 = vmatprep.subr.bf16.mxu0 0
      %758 = vmatpush1.bf16.xpose.msra.mxu0 0
      %759 = vmatprep.subr.bf16.mxu0 0
      %760 = vmatpush1.bf16.xpose.msra.mxu0 0
      %761 = vmatprep.subr.bf16.mxu0 0
      %762 = vmatpush1.bf16.xpose.msra.mxu0 0
      %763 = vmatprep.mubr.bf16.mxu0 0
      %764 = vmatmul.mubr.bf16.gmra.mrb[0].mxu0 %v726
      %v765 = vpop.f32.mrb[0].mxu0
      %v766 = vadd.f32 0.0, %v765
      %v767 = vpop.f32.mrb[0].mxu0
      %v768 = vpop.f32.mrb[0].mxu0
      %v769 = vadd.f32 0.0, %v768
      %v770 = vpop.f32.mrb[0].mxu0
      %771 = vdwg.mxu0
      %v772 = vmul.f32 %v766, 0.25
      %v773 = vmul.f32 %v769, 0.25
      %v774 = vadd.f32 %v772, %v650
      %v775 = vadd.f32 %v773, %v650
      %v776 = vsel %vm596, %v774, -inf
      %777 = vmax.xlane.f32.xlu0 %v776
      %v778 = vpop.xlane.xlu0 %777
      %v779 = vsel %vm596, %v775, -inf
      %780 = vmax.xlane.f32.xlu0 %v779
      %v781 = vpop.xlane.xlu0 %780
      %v782 = vsub.f32 %v774, %v778
      %v783 = vsub.f32 %v775, %v781
      %v784 = vmul.f32 %v782, 1.442695
      %v785 = vpow.pop %v784
      %v786 = vmul.f32 %v783, 1.442695
      %v787 = vpow.pop %v786
      %v788 = vsel %vm596, %v785, 0.0
      %789 = vadd.xlane.f32.xlu0 %v788
      %v790 = vpop.xlane.xlu0 %789
      %v791 = vsel %vm596, %v787, 0.0
      %792 = vadd.xlane.f32.xlu0 %v791
      %v793 = vpop.xlane.xlu0 %792
      %v794 = vrcp.pop %v790
      %v795 = vrcp.pop %v793
      %v796 = vmul.f32 %v785, %v794
      %v797 = vmul.f32 %v787, %v795
      %v798 = vpack.c.bf16 %v797, %v796
      %800 = vrot.lane.b32.xlu0 %v592, 112
      %v801 = vpop.permute.xlu0 %800
      %v804 = vsel %vm596, %v798, 0
      %806 = vmatprep.subr.bf16.mxu0 0
      %807 = vmatpush1.bf16.msra.mxu0 %v801
      %808 = vmatprep.subr.bf16.mxu0 0
      %809 = vmatpush1.bf16.msra.mxu0 0
      %810 = vmatprep.subr.bf16.mxu0 0
      %811 = vmatpush1.bf16.msra.mxu0 0
      %812 = vmatprep.subr.bf16.mxu0 0
      %813 = vmatpush1.bf16.msra.mxu0 0
      %814 = vmatprep.subr.bf16.mxu0 0
      %815 = vmatpush1.bf16.msra.mxu0 0
      %816 = vmatprep.subr.bf16.mxu0 0
      %817 = vmatpush1.bf16.msra.mxu0 0
      %818 = vmatprep.subr.bf16.mxu0 0
      %819 = vmatpush1.bf16.msra.mxu0 0
      %820 = vmatprep.subr.bf16.mxu0 0
      %821 = vmatpush1.bf16.msra.mxu0 0
      %822 = vmatprep.subr.bf16.mxu0 0
      %823 = vmatpush1.bf16.msra.mxu0 0
      %824 = vmatprep.subr.bf16.mxu0 0
      %825 = vmatpush1.bf16.msra.mxu0 0
      %826 = vmatprep.subr.bf16.mxu0 0
      %827 = vmatpush1.bf16.msra.mxu0 0
      %828 = vmatprep.subr.bf16.mxu0 0
      %829 = vmatpush1.bf16.msra.mxu0 0
      %830 = vmatprep.subr.bf16.mxu0 0
      %831 = vmatpush1.bf16.msra.mxu0 0
      %832 = vmatprep.subr.bf16.mxu0 0
      %833 = vmatpush1.bf16.msra.mxu0 0
      %834 = vmatprep.subr.bf16.mxu0 0
      %835 = vmatpush1.bf16.msra.mxu0 0
      %836 = vmatprep.subr.bf16.mxu0 0
      %837 = vmatpush1.bf16.msra.mxu0 0
      %838 = vmatprep.mubr.bf16.mxu0 0
      %839 = vmatmul.mubr.bf16.gmra.mrb[0].mxu0 %v804
      %v840 = vpop.f32.mrb[0].mxu0
      %v841 = vadd.f32 0.0, %v840
      %v842 = vpop.f32.mrb[0].mxu0
      %v843 = vpop.f32.mrb[0].mxu0
      %v844 = vadd.f32 0.0, %v843
      %v845 = vpop.f32.mrb[0].mxu0
      %846 = vdwg.mxu0
      %847 = vrot.lane.b32.xlu0 %v591, 96
      %v848 = vpop.permute.xlu0 %847
      %849 = vrot.lane.b32.xlu0 %v591, 32
      %v850 = vpop.permute.xlu0 %849
      %v852 = vsel %vm596, %v848, 0
      %v855 = vsel %vm596, %v850, 0
      %857 = vmatprep.subr.bf16.mxu0 0
      %858 = vmatpush1.bf16.xpose.msra.mxu0 %v855
      %859 = vmatprep.subr.bf16.mxu0 0
      %860 = vmatpush1.bf16.xpose.msra.mxu0 0
      %861 = vmatprep.subr.bf16.mxu0 0
      %862 = vmatpush1.bf16.xpose.msra.mxu0 0
      %863 = vmatprep.subr.bf16.mxu0 0
      %864 = vmatpush1.bf16.xpose.msra.mxu0 0
      %865 = vmatprep.subr.bf16.mxu0 0
      %866 = vmatpush1.bf16.xpose.msra.mxu0 0
      %867 = vmatprep.subr.bf16.mxu0 0
      %868 = vmatpush1.bf16.xpose.msra.mxu0 0
      %869 = vmatprep.subr.bf16.mxu0 0
      %870 = vmatpush1.bf16.xpose.msra.mxu0 0
      %871 = vmatprep.subr.bf16.mxu0 0
      %872 = vmatpush1.bf16.xpose.msra.mxu0 0
      %873 = vmatprep.subr.bf16.mxu0 0
      %874 = vmatpush1.bf16.xpose.msra.mxu0 0
      %875 = vmatprep.subr.bf16.mxu0 0
      %876 = vmatpush1.bf16.xpose.msra.mxu0 0
      %877 = vmatprep.subr.bf16.mxu0 0
      %878 = vmatpush1.bf16.xpose.msra.mxu0 0
      %879 = vmatprep.subr.bf16.mxu0 0
      %880 = vmatpush1.bf16.xpose.msra.mxu0 0
      %881 = vmatprep.subr.bf16.mxu0 0
      %882 = vmatpush1.bf16.xpose.msra.mxu0 0
      %883 = vmatprep.subr.bf16.mxu0 0
      %884 = vmatpush1.bf16.xpose.msra.mxu0 0
      %885 = vmatprep.subr.bf16.mxu0 0
      %886 = vmatpush1.bf16.xpose.msra.mxu0 0
      %887 = vmatprep.subr.bf16.mxu0 0
      %888 = vmatpush1.bf16.xpose.msra.mxu0 0
      %889 = vmatprep.mubr.bf16.mxu0 0
      %890 = vmatmul.mubr.bf16.gmra.mrb[0].mxu0 %v852
      %v891 = vpop.f32.mrb[0].mxu0
      %v892 = vadd.f32 0.0, %v891
      %v893 = vpop.f32.mrb[0].mxu0
      %v894 = vpop.f32.mrb[0].mxu0
      %v895 = vadd.f32 0.0, %v894
      %v896 = vpop.f32.mrb[0].mxu0
      %897 = vdwg.mxu0
      %v898 = vmul.f32 %v892, 0.25
      %v899 = vmul.f32 %v895, 0.25
      %v900 = vadd.f32 %v898, %v650
      %v901 = vadd.f32 %v899, %v650
      %v902 = vsel %vm596, %v900, -inf
      %903 = vmax.xlane.f32.xlu0 %v902
      %v904 = vpop.xlane.xlu0 %903
      %v905 = vsel %vm596, %v901, -inf
      %906 = vmax.xlane.f32.xlu0 %v905
      %v907 = vpop.xlane.xlu0 %906
      %v908 = vsub.f32 %v900, %v904
      %v909 = vsub.f32 %v901, %v907
      %v910 = vmul.f32 %v908, 1.442695
      %v911 = vpow.pop %v910
      %v912 = vmul.f32 %v909, 1.442695
      %v913 = vpow.pop %v912
      %v914 = vsel %vm596, %v911, 0.0
      %915 = vadd.xlane.f32.xlu0 %v914
      %v916 = vpop.xlane.xlu0 %915
      %v917 = vsel %vm596, %v913, 0.0
      %918 = vadd.xlane.f32.xlu0 %v917
      %v919 = vpop.xlane.xlu0 %918
      %v920 = vrcp.pop %v916
      %v921 = vrcp.pop %v919
      %v922 = vmul.f32 %v911, %v920
      %v923 = vmul.f32 %v913, %v921
      %v924 = vpack.c.bf16 %v923, %v922
      %925 = vrot.lane.b32.xlu0 %v592, 96
      %v926 = vpop.permute.xlu0 %925
      %v929 = vsel %vm596, %v924, 0
      %931 = vmatprep.subr.bf16.mxu0 0
      %932 = vmatpush1.bf16.msra.mxu0 %v926
      %933 = vmatprep.subr.bf16.mxu0 0
      %934 = vmatpush1.bf16.msra.mxu0 0
      %935 = vmatprep.subr.bf16.mxu0 0
      %936 = vmatpush1.bf16.msra.mxu0 0
      %937 = vmatprep.subr.bf16.mxu0 0
      %938 = vmatpush1.bf16.msra.mxu0 0
      %939 = vmatprep.subr.bf16.mxu0 0
      %940 = vmatpush1.bf16.msra.mxu0 0
      %941 = vmatprep.subr.bf16.mxu0 0
      %942 = vmatpush1.bf16.msra.mxu0 0
      %943 = vmatprep.subr.bf16.mxu0 0
      %944 = vmatpush1.bf16.msra.mxu0 0
      %945 = vmatprep.subr.bf16.mxu0 0
      %946 = vmatpush1.bf16.msra.mxu0 0
      %947 = vmatprep.subr.bf16.mxu0 0
      %948 = vmatpush1.bf16.msra.mxu0 0
      %949 = vmatprep.subr.bf16.mxu0 0
      %950 = vmatpush1.bf16.msra.mxu0 0
      %951 = vmatprep.subr.bf16.mxu0 0
      %952 = vmatpush1.bf16.msra.mxu0 0
      %953 = vmatprep.subr.bf16.mxu0 0
      %954 = vmatpush1.bf16.msra.mxu0 0
      %955 = vmatprep.subr.bf16.mxu0 0
      %956 = vmatpush1.bf16.msra.mxu0 0
      %957 = vmatprep.subr.bf16.mxu0 0
      %958 = vmatpush1.bf16.msra.mxu0 0
      %959 = vmatprep.subr.bf16.mxu0 0
      %960 = vmatpush1.bf16.msra.mxu0 0
      %961 = vmatprep.subr.bf16.mxu0 0
      %962 = vmatpush1.bf16.msra.mxu0 0
      %963 = vmatprep.mubr.bf16.mxu0 0
      %964 = vmatmul.mubr.bf16.gmra.mrb[0].mxu0 %v929
      %v965 = vpop.f32.mrb[0].mxu0
      %v966 = vadd.f32 0.0, %v965
      %v967 = vpop.f32.mrb[0].mxu0
      %v968 = vpop.f32.mrb[0].mxu0
      %v969 = vadd.f32 0.0, %v968
      %v970 = vpop.f32.mrb[0].mxu0
      %971 = vdwg.mxu0
      %972 = vrot.lane.b32.xlu0 %v591, 80
      %v973 = vpop.permute.xlu0 %972
      %974 = vrot.lane.b32.xlu0 %v591, 16
      %v975 = vpop.permute.xlu0 %974
      %v977 = vsel %vm596, %v973, 0
      %v980 = vsel %vm596, %v975, 0
      %982 = vmatprep.subr.bf16.mxu0 0
      %983 = vmatpush1.bf16.xpose.msra.mxu0 %v980
      %984 = vmatprep.subr.bf16.mxu0 0
      %985 = vmatpush1.bf16.xpose.msra.mxu0 0
      %986 = vmatprep.subr.bf16.mxu0 0
      %987 = vmatpush1.bf16.xpose.msra.mxu0 0
      %988 = vmatprep.subr.bf16.mxu0 0
      %989 = vmatpush1.bf16.xpose.msra.mxu0 0
      %990 = vmatprep.subr.bf16.mxu0 0
      %991 = vmatpush1.bf16.xpose.msra.mxu0 0
      %992 = vmatprep.subr.bf16.mxu0 0
      %993 = vmatpush1.bf16.xpose.msra.mxu0 0
      %994 = vmatprep.subr.bf16.mxu0 0
      %995 = vmatpush1.bf16.xpose.msra.mxu0 0
      %996 = vmatprep.subr.bf16.mxu0 0
      %997 = vmatpush1.bf16.xpose.msra.mxu0 0
      %998 = vmatprep.subr.bf16.mxu0 0
      %999 = vmatpush1.bf16.xpose.msra.mxu0 0
      %1000 = vmatprep.subr.bf16.mxu0 0
      %1001 = vmatpush1.bf16.xpose.msra.mxu0 0
      %1002 = vmatprep.subr.bf16.mxu0 0
      %1003 = vmatpush1.bf16.xpose.msra.mxu0 0
      %1004 = vmatprep.subr.bf16.mxu0 0
      %1005 = vmatpush1.bf16.xpose.msra.mxu0 0
      %1006 = vmatprep.subr.bf16.mxu0 0
      %1007 = vmatpush1.bf16.xpose.msra.mxu0 0
      %1008 = vmatprep.subr.bf16.mxu0 0
      %1009 = vmatpush1.bf16.xpose.msra.mxu0 0
      %1010 = vmatprep.subr.bf16.mxu0 0
      %1011 = vmatpush1.bf16.xpose.msra.mxu0 0
      %1012 = vmatprep.subr.bf16.mxu0 0
      %1013 = vmatpush1.bf16.xpose.msra.mxu0 0
      %1014 = vmatprep.mubr.bf16.mxu0 0
      %1015 = vmatmul.mubr.bf16.gmra.mrb[0].mxu0 %v977
      %v1016 = vpop.f32.mrb[0].mxu0
      %v1017 = vadd.f32 0.0, %v1016
      %v1018 = vpop.f32.mrb[0].mxu0
      %v1019 = vpop.f32.mrb[0].mxu0
      %v1020 = vadd.f32 0.0, %v1019
      %v1021 = vpop.f32.mrb[0].mxu0
      %1022 = vdwg.mxu0
      %v1023 = vmul.f32 %v1017, 0.25
      %v1024 = vmul.f32 %v1020, 0.25
      %v1025 = vadd.f32 %v1023, %v650
      %v1026 = vadd.f32 %v1024, %v650
      %v1027 = vsel %vm596, %v1025, -inf
      %1028 = vmax.xlane.f32.xlu0 %v1027
      %v1029 = vpop.xlane.xlu0 %1028
      %v1030 = vsel %vm596, %v1026, -inf
      %1031 = vmax.xlane.f32.xlu0 %v1030
      %v1032 = vpop.xlane.xlu0 %1031
      %v1033 = vsub.f32 %v1025, %v1029
      %v1034 = vsub.f32 %v1026, %v1032
      %v1035 = vmul.f32 %v1033, 1.442695
      %v1036 = vpow.pop %v1035
      %v1037 = vmul.f32 %v1034, 1.442695
      %v1038 = vpow.pop %v1037
      %v1039 = vsel %vm596, %v1036, 0.0
      %1040 = vadd.xlane.f32.xlu0 %v1039
      %v1041 = vpop.xlane.xlu0 %1040
      %v1042 = vsel %vm596, %v1038, 0.0
      %1043 = vadd.xlane.f32.xlu0 %v1042
      %v1044 = vpop.xlane.xlu0 %1043
      %v1045 = vrcp.pop %v1041
      %v1046 = vrcp.pop %v1044
      %v1047 = vmul.f32 %v1036, %v1045
      %v1048 = vmul.f32 %v1038, %v1046
      %v1049 = vpack.c.bf16 %v1048, %v1047
      %1050 = vrot.lane.b32.xlu0 %v592, 80
      %v1051 = vpop.permute.xlu0 %1050
      %v1054 = vsel %vm596, %v1049, 0
      %1056 = vmatprep.subr.bf16.mxu0 0
      %1057 = vmatpush1.bf16.msra.mxu0 %v1051
      %1058 = vmatprep.subr.bf16.mxu0 0
      %1059 = vmatpush1.bf16.msra.mxu0 0
      %1060 = vmatprep.subr.bf16.mxu0 0
      %1061 = vmatpush1.bf16.msra.mxu0 0
      %1062 = vmatprep.subr.bf16.mxu0 0
      %1063 = vmatpush1.bf16.msra.mxu0 0
      %1064 = vmatprep.subr.bf16.mxu0 0
      %1065 = vmatpush1.bf16.msra.mxu0 0
      %1066 = vmatprep.subr.bf16.mxu0 0
      %1067 = vmatpush1.bf16.msra.mxu0 0
      %1068 = vmatprep.subr.bf16.mxu0 0
      %1069 = vmatpush1.bf16.msra.mxu0 0
      %1070 = vmatprep.subr.bf16.mxu0 0
      %1071 = vmatpush1.bf16.msra.mxu0 0
      %1072 = vmatprep.subr.bf16.mxu0 0
      %1073 = vmatpush1.bf16.msra.mxu0 0
      %1074 = vmatprep.subr.bf16.mxu0 0
      %1075 = vmatpush1.bf16.msra.mxu0 0
      %1076 = vmatprep.subr.bf16.mxu0 0
      %1077 = vmatpush1.bf16.msra.mxu0 0
      %1078 = vmatprep.subr.bf16.mxu0 0
      %1079 = vmatpush1.bf16.msra.mxu0 0
      %1080 = vmatprep.subr.bf16.mxu0 0
      %1081 = vmatpush1.bf16.msra.mxu0 0
      %1082 = vmatprep.subr.bf16.mxu0 0
      %1083 = vmatpush1.bf16.msra.mxu0 0
      %1084 = vmatprep.subr.bf16.mxu0 0
      %1085 = vmatpush1.bf16.msra.mxu0 0
      %1086 = vmatprep.subr.bf16.mxu0 0
      %1087 = vmatpush1.bf16.msra.mxu0 0
      %1088 = vmatprep.mubr.bf16.mxu0 0
      %1089 = vmatmul.mubr.bf16.gmra.mrb[0].mxu0 %v1054
      %v1090 = vpop.f32.mrb[0].mxu0
      %v1091 = vadd.f32 0.0, %v1090
      %v1092 = vpop.f32.mrb[0].mxu0
      %v1093 = vpop.f32.mrb[0].mxu0
      %v1094 = vadd.f32 0.0, %v1093
      %v1095 = vpop.f32.mrb[0].mxu0
      %1096 = vdwg.mxu0
      %1099 = vrot.lane.b32.xlu0 %v841, 16
      %v1100 = vpop.permute.xlu0 %1099
      %1101 = vrot.lane.b32.xlu0 %v844, 16
      %v1102 = vpop.permute.xlu0 %1101
      %1107 = vrot.lane.b32.xlu0 %v966, 32
      %v1108 = vpop.permute.xlu0 %1107
      %1109 = vrot.lane.b32.xlu0 %v969, 32
      %v1110 = vpop.permute.xlu0 %1109
      %1115 = vrot.lane.b32.xlu0 %v1091, 48
      %v1116 = vpop.permute.xlu0 %1115
      %1117 = vrot.lane.b32.xlu0 %v1094, 48
      %v1118 = vpop.permute.xlu0 %1117
      %v1121 = vsel %vm596, %v715, %v1100
      %v1122 = vsel %vm596, %v718, %v1102
      %vm1123 = vcmask 261120
      %v1124 = vsel %vm1123, %v1121, %v1108
      %v1125 = vsel %vm1123, %v1122, %v1110
      %vm1126 = vcmask 392192
      %v1127 = vsel %vm1126, %v1124, %v1116
      %v1128 = vsel %vm1126, %v1125, %v1118
      %v1129 = vpack.c.bf16 %v1128, %v1127
      %v1130 = vld [vmem:[%s5] sm:$0xf]
      %v1131 = vld [vmem:[%s5 + $0x4] sm:$0xf]
      %v1132 = vld [vmem:[%s5 + $0x8] sm:$0xf]
      %v1133 = vld [vmem:[%s5 + $0xc] sm:$0xf]
      %v1134 = vld [vmem:[%s5 + $0x10] sm:$0xf]
      %v1135 = vld [vmem:[%s5 + $0x14] sm:$0xf]
      %v1136 = vld [vmem:[%s5 + $0x18] sm:$0xf]
      %v1137 = vld [vmem:[%s5 + $0x1c] sm:$0xf]
      %v1138 = vld [vmem:[%s6] sm:$0x1]
      %v1140 = vlaneseq
      %v1141 = vshrl.u32 %v1140, 7
      %v1142 = vsub.s32 0, %v1141
      %v1143 = vrot.slane %v1138, %v1142
      %v1153 = vunpack.c.l.b16 %v1130
      %v1154 = vunpack.c.l.b16 %v1131
      %v1155 = vunpack.c.l.b16 %v1132
      %v1156 = vunpack.c.l.b16 %v1133
      %v1157 = vunpack.c.l.b16 %v1134
      %v1158 = vunpack.c.l.b16 %v1135
      %v1159 = vunpack.c.l.b16 %v1136
      %v1160 = vunpack.c.l.b16 %v1137
      %v1161 = vpack.c.b16 %v1154, %v1153
      %v1162 = vpack.c.b16 %v1156, %v1155
      %v1163 = vpack.c.b16 %v1158, %v1157
      %v1164 = vpack.c.b16 %v1160, %v1159
      %v1170 = vsel %vm406, %v1129, 0
      %1172 = vmatprep.subr.bf16.mxu0 0
      %1173 = vmatpush1.bf16.msra.mxu0 %v1161
      %1174 = vmatprep.subr.bf16.mxu0 0
      %1175 = vmatpush1.bf16.msra.mxu0 %v1162
      %1176 = vmatprep.subr.bf16.mxu0 0
      %1177 = vmatpush1.bf16.msra.mxu0 %v1163
      %1178 = vmatprep.subr.bf16.mxu0 0
      %1179 = vmatpush1.bf16.msra.mxu0 %v1164
      %1180 = vmatprep.subr.bf16.mxu0 0
      %1181 = vmatpush1.bf16.msra.mxu0 0
      %1182 = vmatprep.subr.bf16.mxu0 0
      %1183 = vmatpush1.bf16.msra.mxu0 0
      %1184 = vmatprep.subr.bf16.mxu0 0
      %1185 = vmatpush1.bf16.msra.mxu0 0
      %1186 = vmatprep.subr.bf16.mxu0 0
      %1187 = vmatpush1.bf16.msra.mxu0 0
      %1188 = vmatprep.subr.bf16.mxu0 0
      %1189 = vmatpush1.bf16.msra.mxu0 0
      %1190 = vmatprep.subr.bf16.mxu0 0
      %1191 = vmatpush1.bf16.msra.mxu0 0
      %1192 = vmatprep.subr.bf16.mxu0 0
      %1193 = vmatpush1.bf16.msra.mxu0 0
      %1194 = vmatprep.subr.bf16.mxu0 0
      %1195 = vmatpush1.bf16.msra.mxu0 0
      %1196 = vmatprep.subr.bf16.mxu0 0
      %1197 = vmatpush1.bf16.msra.mxu0 0
      %1198 = vmatprep.subr.bf16.mxu0 0
      %1199 = vmatpush1.bf16.msra.mxu0 0
      %1200 = vmatprep.subr.bf16.mxu0 0
      %1201 = vmatpush1.bf16.msra.mxu0 0
      %1202 = vmatprep.subr.bf16.mxu0 0
      %1203 = vmatpush1.bf16.msra.mxu0 0
      %1204 = vmatprep.mubr.bf16.mxu0 0
      %1205 = vmatmul.mubr.bf16.gmra.mrb[0].mxu0 %v1170
      %v1206 = vpop.f32.mrb[0].mxu0
      %v1207 = vadd.f32 %v1143, %v1206
      %v1208 = vpop.f32.mrb[0].mxu0
      %v1209 = vpop.f32.mrb[0].mxu0
      %v1210 = vadd.f32 %v1143, %v1209
      %v1211 = vpop.f32.mrb[0].mxu0
      %1212 = vdwg.mxu0
      %v1213 = vadd.f32 %v444, %v1207
      %v1214 = vadd.f32 %v445, %v1210
      %v1215 = vsel %vm406, %v1213, 0.0
      %1216 = vadd.xlane.f32.xlu0 %v1215
      %v1217 = vpop.xlane.xlu0 %1216
      %v1218 = vsel %vm406, %v1214, 0.0
      %1219 = vadd.xlane.f32.xlu0 %v1218
      %v1220 = vpop.xlane.xlu0 %1219
      %v1221 = vmul.f32 %v1217, %v413
      %v1222 = vmul.f32 %v1220, %v413
      %v1223 = vsub.f32 %v1213, %v1221
      %v1224 = vsub.f32 %v1214, %v1222
      %v1225 = vmul.f32 %v1223, %v1223
      %v1226 = vmul.f32 %v1224, %v1224
      %v1227 = vsel %vm406, %v1225, 0.0
      %1228 = vadd.xlane.f32.xlu0 %v1227
      %v1229 = vpop.xlane.xlu0 %1228
      %v1230 = vsel %vm406, %v1226, 0.0
      %1231 = vadd.xlane.f32.xlu0 %v1230
      %v1232 = vpop.xlane.xlu0 %1231
      %v1233 = vmul.f32 %v1229, %v413
      %v1234 = vmul.f32 %v1232, %v413
      %v1235 = vadd.f32 %v1233, 1e-05
      %v1236 = vadd.f32 %v1234, 1e-05
      %v1237 = vrsqrt.pop %v1235
      %v1238 = vrsqrt.pop %v1236
      %v1239 = vmul.f32 %v1223, %v1237
      %v1240 = vmul.f32 %v1224, %v1238
      %v1241 = vlaneseq
      %v1242 = vshrl.u32 %v1241, 7
      %v1243 = vsub.s32 2, %v1242
      %v1244 = vrot.slane %v405, %v1243
      %v1245 = vmul.f32 %v1239, %v1244
      %v1246 = vmul.f32 %v1240, %v1244
      %v1247 = vlaneseq
      %v1248 = vshrl.u32 %v1247, 7
      %v1249 = vsub.s32 3, %v1248
      %v1250 = vrot.slane %v405, %v1249
      %v1251 = vadd.f32 %v1245, %v1250
      %v1252 = vadd.f32 %v1246, %v1250
      %v1253 = vpack.c.bf16 %v1252, %v1251
      %v1254 = vld [vmem:[%s7] sm:$0xf]
      %v1255 = vld [vmem:[%s7 + $0x4] sm:$0xf]
      %v1256 = vld [vmem:[%s7 + $0x8] sm:$0xf]
      %v1257 = vld [vmem:[%s7 + $0xc] sm:$0xf]
      %v1258 = vld [vmem:[%s7 + $0x10] sm:$0xf]
      %v1259 = vld [vmem:[%s7 + $0x14] sm:$0xf]
      %v1260 = vld [vmem:[%s7 + $0x18] sm:$0xf]
      %v1261 = vld [vmem:[%s7 + $0x1c] sm:$0xf]
      %v1262 = vld [vmem:[%s8] sm:$0x1]
      %v1264 = vlaneseq
      %v1265 = vshrl.u32 %v1264, 7
      %v1266 = vsub.s32 0, %v1265
      %v1267 = vrot.slane %v1262, %v1266
      %v1277 = vunpack.c.l.b16 %v1254
      %v1278 = vunpack.c.l.b16 %v1255
      %v1279 = vunpack.c.l.b16 %v1256
      %v1280 = vunpack.c.l.b16 %v1257
      %v1281 = vunpack.c.l.b16 %v1258
      %v1282 = vunpack.c.l.b16 %v1259
      %v1283 = vunpack.c.l.b16 %v1260
      %v1284 = vunpack.c.l.b16 %v1261
      %v1285 = vpack.c.b16 %v1278, %v1277
      %v1286 = vpack.c.b16 %v1280, %v1279
      %v1287 = vpack.c.b16 %v1282, %v1281
      %v1288 = vpack.c.b16 %v1284, %v1283
      %v1294 = vsel %vm406, %v1253, 0
      %1296 = vmatprep.subr.bf16.mxu0 0
      %1297 = vmatpush1.bf16.msra.mxu0 %v1285
      %1298 = vmatprep.subr.bf16.mxu0 0
      %1299 = vmatpush1.bf16.msra.mxu0 %v1286
      %1300 = vmatprep.subr.bf16.mxu0 0
      %1301 = vmatpush1.bf16.msra.mxu0 %v1287
      %1302 = vmatprep.subr.bf16.mxu0 0
      %1303 = vmatpush1.bf16.msra.mxu0 %v1288
      %1304 = vmatprep.subr.bf16.mxu0 0
      %1305 = vmatpush1.bf16.msra.mxu0 0
      %1306 = vmatprep.subr.bf16.mxu0 0
      %1307 = vmatpush1.bf16.msra.mxu0 0
      %1308 = vmatprep.subr.bf16.mxu0 0
      %1309 = vmatpush1.bf16.msra.mxu0 0
      %1310 = vmatprep.subr.bf16.mxu0 0
      %1311 = vmatpush1.bf16.msra.mxu0 0
      %1312 = vmatprep.subr.bf16.mxu0 0
      %1313 = vmatpush1.bf16.msra.mxu0 0
      %1314 = vmatprep.subr.bf16.mxu0 0
      %1315 = vmatpush1.bf16.msra.mxu0 0
      %1316 = vmatprep.subr.bf16.mxu0 0
      %1317 = vmatpush1.bf16.msra.mxu0 0
      %1318 = vmatprep.subr.bf16.mxu0 0
      %1319 = vmatpush1.bf16.msra.mxu0 0
      %1320 = vmatprep.subr.bf16.mxu0 0
      %1321 = vmatpush1.bf16.msra.mxu0 0
      %1322 = vmatprep.subr.bf16.mxu0 0
      %1323 = vmatpush1.bf16.msra.mxu0 0
      %1324 = vmatprep.subr.bf16.mxu0 0
      %1325 = vmatpush1.bf16.msra.mxu0 0
      %1326 = vmatprep.subr.bf16.mxu0 0
      %1327 = vmatpush1.bf16.msra.mxu0 0
      %1328 = vmatprep.mubr.bf16.mxu0 0
      %1329 = vmatmul.mubr.bf16.gmra.mrb[0].mxu0 %v1294
      %v1330 = vpop.f32.mrb[0].mxu0
      %v1331 = vadd.f32 %v1267, %v1330
      %v1332 = vpop.f32.mrb[0].mxu0
      %v1333 = vpop.f32.mrb[0].mxu0
      %v1334 = vadd.f32 %v1267, %v1333
      %v1335 = vpop.f32.mrb[0].mxu0
      %1336 = vdwg.mxu0
      %v1337 = vmax.f32 %v1331, 0.0
      %v1338 = vmax.f32 %v1334, 0.0
      %v1339 = vpack.c.bf16 %v1338, %v1337
      %v1340 = vld [vmem:[%s9] sm:$0xf]
      %v1341 = vld [vmem:[%s9 + $0x4] sm:$0xf]
      %v1342 = vld [vmem:[%s9 + $0x8] sm:$0xf]
      %v1343 = vld [vmem:[%s9 + $0xc] sm:$0xf]
      %v1344 = vld [vmem:[%s9 + $0x10] sm:$0xf]
      %v1345 = vld [vmem:[%s9 + $0x14] sm:$0xf]
      %v1346 = vld [vmem:[%s9 + $0x18] sm:$0xf]
      %v1347 = vld [vmem:[%s9 + $0x1c] sm:$0xf]
      %v1348 = vld [vmem:[%s9 + $0x20] sm:$0xf]
      %v1349 = vld [vmem:[%s9 + $0x24] sm:$0xf]
      %v1350 = vld [vmem:[%s9 + $0x28] sm:$0xf]
      %v1351 = vld [vmem:[%s9 + $0x2c] sm:$0xf]
      %v1352 = vld [vmem:[%s9 + $0x30] sm:$0xf]
      %v1353 = vld [vmem:[%s9 + $0x34] sm:$0xf]
      %v1354 = vld [vmem:[%s9 + $0x38] sm:$0xf]
      %v1355 = vld [vmem:[%s9 + $0x3c] sm:$0xf]
      %v1356 = vld [vmem:[%s10] sm:$0x1]
      %v1358 = vlaneseq
      %v1359 = vshrl.u32 %v1358, 7
      %v1360 = vsub.s32 0, %v1359
      %v1361 = vrot.slane %v1356, %v1360
      %v1379 = vunpack.c.l.b16 %v1340
      %v1380 = vunpack.c.l.b16 %v1341
      %v1381 = vunpack.c.l.b16 %v1342
      %v1382 = vunpack.c.l.b16 %v1343
      %v1383 = vunpack.c.l.b16 %v1344
      %v1384 = vunpack.c.l.b16 %v1345
      %v1385 = vunpack.c.l.b16 %v1346
      %v1386 = vunpack.c.l.b16 %v1347
      %v1387 = vunpack.c.l.b16 %v1348
      %v1388 = vunpack.c.l.b16 %v1349
      %v1389 = vunpack.c.l.b16 %v1350
      %v1390 = vunpack.c.l.b16 %v1351
      %v1391 = vunpack.c.l.b16 %v1352
      %v1392 = vunpack.c.l.b16 %v1353
      %v1393 = vunpack.c.l.b16 %v1354
      %v1394 = vunpack.c.l.b16 %v1355
      %v1395 = vpack.c.b16 %v1380, %v1379
      %v1396 = vpack.c.b16 %v1382, %v1381
      %v1397 = vpack.c.b16 %v1384, %v1383
      %v1398 = vpack.c.b16 %v1386, %v1385
      %v1399 = vpack.c.b16 %v1388, %v1387
      %v1400 = vpack.c.b16 %v1390, %v1389
      %v1401 = vpack.c.b16 %v1392, %v1391
      %v1402 = vpack.c.b16 %v1394, %v1393
      %1411 = vmatprep.subr.bf16.mxu0 0
      %1412 = vmatpush1.bf16.msra.mxu0 %v1395
      %1413 = vmatprep.subr.bf16.mxu0 0
      %1414 = vmatpush1.bf16.msra.mxu0 %v1396
      %1415 = vmatprep.subr.bf16.mxu0 0
      %1416 = vmatpush1.bf16.msra.mxu0 %v1397
      %1417 = vmatprep.subr.bf16.mxu0 0
      %1418 = vmatpush1.bf16.msra.mxu0 %v1398
      %1419 = vmatprep.subr.bf16.mxu0 0
      %1420 = vmatpush1.bf16.msra.mxu0 %v1399
      %1421 = vmatprep.subr.bf16.mxu0 0
      %1422 = vmatpush1.bf16.msra.mxu0 %v1400
      %1423 = vmatprep.subr.bf16.mxu0 0
      %1424 = vmatpush1.bf16.msra.mxu0 %v1401
      %1425 = vmatprep.subr.bf16.mxu0 0
      %1426 = vmatpush1.bf16.msra.mxu0 %v1402
      %1427 = vmatprep.subr.bf16.mxu0 0
      %1428 = vmatpush1.bf16.msra.mxu0 0
      %1429 = vmatprep.subr.bf16.mxu0 0
      %1430 = vmatpush1.bf16.msra.mxu0 0
      %1431 = vmatprep.subr.bf16.mxu0 0
      %1432 = vmatpush1.bf16.msra.mxu0 0
      %1433 = vmatprep.subr.bf16.mxu0 0
      %1434 = vmatpush1.bf16.msra.mxu0 0
      %1435 = vmatprep.subr.bf16.mxu0 0
      %1436 = vmatpush1.bf16.msra.mxu0 0
      %1437 = vmatprep.subr.bf16.mxu0 0
      %1438 = vmatpush1.bf16.msra.mxu0 0
      %1439 = vmatprep.subr.bf16.mxu0 0
      %1440 = vmatpush1.bf16.msra.mxu0 0
      %1441 = vmatprep.subr.bf16.mxu0 0
      %1442 = vmatpush1.bf16.msra.mxu0 0
      %1443 = vmatprep.mubr.bf16.mxu0 0
      %1444 = vmatmul.mubr.bf16.gmra.mrb[0].mxu0 %v1339
      %v1445 = vpop.f32.mrb[0].mxu0
      %v1446 = vadd.f32 %v1361, %v1445
      %v1447 = vpop.f32.mrb[0].mxu0
      %v1448 = vpop.f32.mrb[0].mxu0
      %v1449 = vadd.f32 %v1361, %v1448
      %v1450 = vpop.f32.mrb[0].mxu0
      %1451 = vdwg.mxu0
      %v1452 = vadd.f32 %v1213, %v1446
      %v1453 = vadd.f32 %v1214, %v1449
      %1454 = vst.msk [vmem:[%s400] sm:$0xff] %vm406, %v1452
      %1455 = vst.msk [vmem:[%s400 + $0x8] sm:$0xff] %vm406, %v1453
      %p1456 = scmp.lt.s32.totalorder %s22, 1
      %s1457 = scalar_select %p1456, %s22, 1
      %s1458 = smul.addr %s1457, 2
      %s1459 = smul.addr %s1458, 8
      %s1460 = scalar_lea.vmem %s11, %s1459
      // Predicated region
      $region65: #{forward.5} parent=63 // pred_check
        %p1461 = pneg %p281
      $region66: #{forward.5} parent=63 // pred_check_branch
        %1463 = sbr.rel (%p1461) target = $region68
      $region67: #{forward.5} parent=63 // pred_region
        _
      $region68: #{forward.5} parent=63 // pred_fallthru
        _
    $region64: #{forward.5} parent=5 // pred_fallthru
      _
    %p1464 = scmp.le.s32.totalorder 2, %s17
    // Predicated region
    $region69: #{forward.5} parent=5 // pred_check
      %p1465 = pneg %p1464
    $region70: #{forward.5} parent=5 // pred_check_branch
      %1467 = sbr.rel (%p1465) target = $region72
    $region71: #{forward.5} parent=5 // pred_region
      %s1468 = ssub.s32 %s17, 2
      // Predicated region
      $region73: #{forward.5} parent=71 // pred_check
        %p1469 = pneg %p287
      $region74: #{forward.5} parent=71 // pred_check_branch
        %1471 = sbr.rel (%p1469) target = $region76
      $region75: #{forward.5} parent=71 // pred_region
        %p1472 = scmp.lt.s32.totalorder %s23, 1
        %s1473 = scalar_select %p1472, %s23, 1
        %s1474 = smul.addr %s1473, 2
        %s1475 = smul.addr %s1474, 8
        %s1476 = scalar_lea.vmem %s11, %s1475
      $region76: #{forward.5} parent=71 // pred_fallthru
        _
    $region72: #{forward.5} parent=5 // pred_fallthru
      _
  $region6: #{forward.5} parent=0 // loop_footer
    %s21 = sadd.s32 1, %s17
  $region7: #{forward.5} parent=0 // loop_footer_branch
    %16 = sbr.rel target = $region3
  $region8: #{forward.5} parent=0 // loop_exit
    _

// kernel: forward.9
$region0: #{forward.9}
  #allocation0 [shape = 'u32[]', space=smem, size = 0x4, offset = 0x4, fixed_abs, tag = 'smem constant byte address 0x4 - core index']
  #allocation1 [shape = 'u32[144,128]{1,0:T(1,128)}', space=vmem, size = 0x12000, scoped, tag = 'internal scratch']
  #allocation2 [shape = 's32[1]{0}', space=sflag, size = 0x4, scoped, tag = 'scoped memory for forward.9']
  #allocation3 [shape = 'u8[512]{0}', space=smem, size = 0x200, scoped, tag = 'prefetched SMEM operand 0']
  #allocation4 [shape = 'f32[1,1]{1,0:T(1,128)S(1)}', space=vmem, size = 0x200, scoped, tag = 'scoped memory for forward.9']
  %s0 = inlined_call_operand.vmem [shape: s32[2], index: 0, kind: input, shape index: {}]
  %s1 = inlined_call_operand.vmem [shape: f32[2,4,32], index: 1, kind: input, shape index: {}]
  %s2 = inlined_call_operand.vmem [shape: f32[2,4,32], index: 2, kind: input, shape index: {}]
  %s3 = inlined_call_operand.vmem [shape: bf16[32,32], index: 3, kind: input, shape index: {}]
  %s4 = inlined_call_operand.vmem [shape: f32[1,32], index: 4, kind: input, shape index: {}]
  %s5 = inlined_call_operand.vmem [shape: f32[1,32], index: 5, kind: input, shape index: {}]
  %s6 = inlined_call_operand.<no memory space> [shape: f32[1,1], index: 6, kind: input, shape index: {}]
  %s7 = inlined_call_operand.vmem [shape: s32[2,4,1], index: 7, kind: input, shape index: {}]
  %s8 = inlined_call_operand.hbm [shape: f32[1,1], index: 8, kind: output, shape index: {}]
  %s9 = sld [smem:[#allocation0]]
  $region38: #{forward.9} parent=0
    _
  %s11 = ssub.s32 1, %s9
  %s12 = scalar_select 0, %s11, %s9
  %s13 = sshll.u32 %s0, 4
  %s14 = int_to_ptr.vmem [resolvable:$true] %s13
  %16 = dma.vmem_to_smem %s14, 16, [#allocation3], [#allocation2]
  %v17 = vstv %s6
  %18 = vst [vmem:[#allocation4] sm:$0x1] %v17
  %19 = dma.done [#allocation2], 16
  %20 = sfence
  $region1: #{forward.9} parent=0
    #allocation5 [shape = 'u8[512]{0}', space=vmem, size = 0x400, scoped, tag = 'output window, operand 0, single buffered']
    #allocation6 [shape = 's32[1]{0}', space=sflag, size = 0x4, scoped, tag = 'scoped memory for forward.9']
    %21 = vsyncpa [#allocation6], 0
    // Predicated region
    $region2: #{forward.9} parent=1 // pred_check
      _
    $region3: #{forward.9} parent=1 // pred_check_branch
      %23 = sbr.rel (0) target = $region5
    $region4: #{forward.9} parent=1 // pred_region
      _
    $region5: #{forward.9} parent=1 // pred_fallthru
      _
    // Predicated region
    $region6: #{forward.9} parent=1 // pred_check
      _
    $region7: #{forward.9} parent=1 // pred_check_branch
      %25 = sbr.rel (0) target = $region9
    $region8: #{forward.9} parent=1 // pred_region
      _
    $region9: #{forward.9} parent=1 // pred_fallthru
      _
    // Predicated region
    $region10: #{forward.9} parent=1 // pred_check
      _
    $region11: #{forward.9} parent=1 // pred_check_branch
      %27 = sbr.rel (0) target = $region13
    $region12: #{forward.9} parent=1 // pred_region
      _
    $region13: #{forward.9} parent=1 // pred_fallthru
      _
    // Predicated region
    $region14: #{forward.9} parent=1 // pred_check
      _
    $region15: #{forward.9} parent=1 // pred_check_branch
      %29 = sbr.rel (0) target = $region17
    $region16: #{forward.9} parent=1 // pred_region
      _
    $region17: #{forward.9} parent=1 // pred_fallthru
      _
    // Predicated region
    $region18: #{forward.9} parent=1 // pred_check
      _
    $region19: #{forward.9} parent=1 // pred_check_branch
      %31 = sbr.rel (0) target = $region21
    $region20: #{forward.9} parent=1 // pred_region
      _
    $region21: #{forward.9} parent=1 // pred_fallthru
      _
    // Predicated region
    $region22: #{forward.9} parent=1 // pred_check
      _
    $region23: #{forward.9} parent=1 // pred_check_branch
      %33 = sbr.rel (0) target = $region25
    $region24: #{forward.9} parent=1 // pred_region
      _
    $region25: #{forward.9} parent=1 // pred_fallthru
      _
    // Predicated region
    $region26: #{forward.9} parent=1 // pred_check
      _
    $region27: #{forward.9} parent=1 // pred_check_branch
      %35 = sbr.rel (0) target = $region29
    $region28: #{forward.9} parent=1 // pred_region
      _
    $region29: #{forward.9} parent=1 // pred_fallthru
      _
    %v37 = vlaneseq
    %v38 = vand.u32 %v37, 127
    %v39 = vlaneseq
    %v40 = vshrl.u32 %v39, 7
    %vm41 = vcmp.lt.s32.totalorder %v38, %v40
    %v42 = vsel %vm41, 1, 0
    %v43 = vcvt.s32.f32 %v42
    %v44 = vld [vmem:[%s5] sm:$0x1]
    %v45 = vld [vmem:[%s4] sm:$0x1]
    %s46 = sld [smem:[#allocation3]]
    %v47 = vld [vmem:[%s1] sm:$0xf]
    %v48 = vld [vmem:[%s2] sm:$0xf]
    %v49 = vpack.c.bf16 %v47, %v47
    %v50 = vld [vmem:[%s3] sm:$0xf]
    %v51 = vld [vmem:[%s3 + $0x4] sm:$0xf]
    %v52 = vld [vmem:[%s3 + $0x8] sm:$0xf]
    %v53 = vld [vmem:[%s3 + $0xc] sm:$0xf]
    %v55 = vlaneseq
    %v56 = vshrl.u32 %v55, 7
    %v57 = vsub.s32 0, %v56
    %v58 = vrot.slane %v45, %v57
    %v64 = vunpack.c.l.b16 %v50
    %v65 = vunpack.c.l.b16 %v51
    %v66 = vunpack.c.l.b16 %v52
    %v67 = vunpack.c.l.b16 %v53
    %v68 = vpack.c.b16 %v65, %v64
    %v69 = vpack.c.b16 %v67, %v66
    %vm72 = vcmask 261120
    %v74 = vsel %vm72, %v49, 0
    %76 = vmatprep.subr.bf16.mxu0 0
    %77 = vmatpush1.bf16.msra.mxu0 %v68
    %78 = vmatprep.subr.bf16.mxu0 0
    %79 = vmatpush1.bf16.msra.mxu0 %v69
    %80 = vmatprep.subr.bf16.mxu0 0
    %81 = vmatpush1.bf16.msra.mxu0 0
    %82 = vmatprep.subr.bf16.mxu0 0
    %83 = vmatpush1.bf16.msra.mxu0 0
    %84 = vmatprep.subr.bf16.mxu0 0
    %85 = vmatpush1.bf16.msra.mxu0 0
    %86 = vmatprep.subr.bf16.mxu0 0
    %87 = vmatpush1.bf16.msra.mxu0 0
    %88 = vmatprep.subr.bf16.mxu0 0
    %89 = vmatpush1.bf16.msra.mxu0 0
    %90 = vmatprep.subr.bf16.mxu0 0
    %91 = vmatpush1.bf16.msra.mxu0 0
    %92 = vmatprep.subr.bf16.mxu0 0
    %93 = vmatpush1.bf16.msra.mxu0 0
    %94 = vmatprep.subr.bf16.mxu0 0
    %95 = vmatpush1.bf16.msra.mxu0 0
    %96 = vmatprep.subr.bf16.mxu0 0
    %97 = vmatpush1.bf16.msra.mxu0 0
    %98 = vmatprep.subr.bf16.mxu0 0
    %99 = vmatpush1.bf16.msra.mxu0 0
    %100 = vmatprep.subr.bf16.mxu0 0
    %101 = vmatpush1.bf16.msra.mxu0 0
    %102 = vmatprep.subr.bf16.mxu0 0
    %103 = vmatpush1.bf16.msra.mxu0 0
    %104 = vmatprep.subr.bf16.mxu0 0
    %105 = vmatpush1.bf16.msra.mxu0 0
    %106 = vmatprep.subr.bf16.mxu0 0
    %107 = vmatpush1.bf16.msra.mxu0 0
    %108 = vmatprep.mubr.bf16.mxu0 0
    %109 = vmatmul.mubr.bf16.gmra.mrb[0].mxu0 %v74
    %v110 = vpop.f32.mrb[0].mxu0
    %v111 = vadd.f32 %v58, %v110
    %v112 = vpop.f32.mrb[0].mxu0
    %v113 = vpop.f32.mrb[0].mxu0
    %v114 = vpop.f32.mrb[0].mxu0
    %115 = vdwg.mxu0
    %v118 = vunpack.c.l.s4 1966171168
    %v119 = vunpack.c.0.s8 %v118
    %v120 = vlaneseq
    %v121 = vshrl.u32 %v120, 7
    %v122 = vsub.s32 %v119, %v121
    %v123 = vrot.slane %v111, %v122
    %v124 = vcombine.high %v123, %v123
    %v126 = vunpack.c.l.s4 1966171168
    %v127 = vunpack.c.0.s8 %v126
    %v128 = vlaneseq
    %v129 = vshrl.u32 %v128, 7
    %v130 = vsub.s32 %v127, %v129
    %v131 = vrot.slane %v123, %v130
    %v133 = vunpack.c.l.s4 1966171168
    %v134 = vunpack.c.0.s8 %v133
    %v135 = vlaneseq
    %v136 = vshrl.u32 %v135, 7
    %v137 = vsub.s32 %v134, %v136
    %v138 = vrot.slane %v124, %v137
    %v139 = vcombine.high %v131, %v131
    %v140 = vcombine.high %v138, %v138
    %v141 = vlaneseq
    %v142 = vshrl.u32 %v141, 7
    %v143 = vsub.s32 0, %v142
    %v144 = vrot.slane %v131, %v143
    %v145 = vlaneseq
    %v146 = vshrl.u32 %v145, 7
    %v147 = vsub.s32 0, %v146
    %v148 = vrot.slane %v138, %v147
    %v149 = vlaneseq
    %v150 = vshrl.u32 %v149, 7
    %v151 = vsub.s32 0, %v150
    %v152 = vrot.slane %v139, %v151
    %v153 = vlaneseq
    %v154 = vshrl.u32 %v153, 7
    %v155 = vsub.s32 0, %v154
    %v156 = vrot.slane %v140, %v155
    %v161 = vadd.f32 %v144, %v48
    %v162 = vadd.f32 %v148, %v48
    %v163 = vadd.f32 %v152, %v48
    %v164 = vadd.f32 %v156, %v48
    %v165 = vtanh.pop %v161
    %v166 = vtanh.pop %v162
    %v167 = vtanh.pop %v163
    %v168 = vtanh.pop %v164
    %v170 = vlaneseq
    %v171 = vshrl.u32 %v170, 7
    %v172 = vsub.s32 0, %v171
    %v173 = vrot.slane %v44, %v172
    %v175 = vmul.f32 %v165, %v173
    %v176 = vmul.f32 %v166, %v173
    %v177 = vmul.f32 %v167, %v173
    %v178 = vmul.f32 %v168, %v173
    %vm179 = vcmask 257024
    %v180 = vsel %vm179, %v175, 0.0
    %181 = vadd.xlane.f32.xlu0 %v180
    %v182 = vpop.xlane.xlu0 %181
    %v183 = vsel %vm179, %v176, 0.0
    %184 = vadd.xlane.f32.xlu0 %v183
    %v185 = vpop.xlane.xlu0 %184
    %v186 = vsel %vm179, %v177, 0.0
    %187 = vadd.xlane.f32.xlu0 %v186
    %v188 = vpop.xlane.xlu0 %187
    %v189 = vsel %vm179, %v178, 0.0
    %190 = vadd.xlane.f32.xlu0 %v189
    %v191 = vpop.xlane.xlu0 %190
    %v192 = vld [vmem:[#allocation4] sm:$0x1]
    %v194 = vlaneseq
    %v195 = vshrl.u32 %v194, 7
    %v196 = vsub.s32 0, %v195
    %v197 = vrot.slane %v192, %v196
    %198 = vset.pattern.permute.xlu0 0
    %199 = vperm.xlu0 %198, %v197
    %v200 = vpop.permute.xlu0 %199
    %v202 = vadd.f32 %v182, %v200
    %v203 = vadd.f32 %v185, %v200
    %v204 = vadd.f32 %v188, %v200
    %v205 = vadd.f32 %v191, %v200
    %v206 = vld [vmem:[%s7] sm:$0xf]
    %207 = vset.pattern.permute.xlu0 0
    %208 = vperm.xlu0 %207, %v206
    %v209 = vpop.permute.xlu0 %208
    %vm210 = vcmp.eq.s32.totalorder %v209, %v38
    %v211 = vsel %vm210, 1, 0
    %v212 = vcvt.s32.f32 %v211
    %vm213 = vcmask 31744
    %v215 = vsel %vm213, %v43, 0
    %vm217 = vcmask 1043456
    %v219 = vsel %vm217, %v212, 0
    %221 = vmatprep.subr.mxu0 0.0
    %222 = vmatpush1.msra.mxu0 %v219
    %223 = vmatprep.subr.mxu0 0.0
    %224 = vmatpush1.msra.mxu0 0.0
    %225 = vmatprep.subr.mxu0 0.0
    %226 = vmatpush1.msra.mxu0 0.0
    %227 = vmatprep.subr.mxu0 0.0
    %228 = vmatpush1.msra.mxu0 0.0
    %229 = vmatprep.subr.mxu0 0.0
    %230 = vmatpush1.msra.mxu0 0.0
    %231 = vmatprep.subr.mxu0 0.0
    %232 = vmatpush1.msra.mxu0 0.0
    %233 = vmatprep.subr.mxu0 0.0
    %234 = vmatpush1.msra.mxu0 0.0
    %235 = vmatprep.subr.mxu0 0.0
    %236 = vmatpush1.msra.mxu0 0.0
    %237 = vmatprep.subr.mxu0 0.0
    %238 = vmatpush1.msra.mxu0 0.0
    %239 = vmatprep.subr.mxu0 0.0
    %240 = vmatpush1.msra.mxu0 0.0
    %241 = vmatprep.subr.mxu0 0.0
    %242 = vmatpush1.msra.mxu0 0.0
    %243 = vmatprep.subr.mxu0 0.0
    %244 = vmatpush1.msra.mxu0 0.0
    %245 = vmatprep.subr.mxu0 0.0
    %246 = vmatpush1.msra.mxu0 0.0
    %247 = vmatprep.subr.mxu0 0.0
    %248 = vmatpush1.msra.mxu0 0.0
    %249 = vmatprep.subr.mxu0 0.0
    %250 = vmatpush1.msra.mxu0 0.0
    %251 = vmatprep.subr.mxu0 0.0
    %252 = vmatpush1.msra.mxu0 0.0
    %253 = vmatprep.subr.mxu0 0.0
    %254 = vmatpush1.msra.mxu0 0.0
    %255 = vmatprep.subr.mxu0 0.0
    %256 = vmatpush1.msra.mxu0 0.0
    %257 = vmatprep.subr.mxu0 0.0
    %258 = vmatpush1.msra.mxu0 0.0
    %259 = vmatprep.subr.mxu0 0.0
    %260 = vmatpush1.msra.mxu0 0.0
    %261 = vmatprep.subr.mxu0 0.0
    %262 = vmatpush1.msra.mxu0 0.0
    %263 = vmatprep.subr.mxu0 0.0
    %264 = vmatpush1.msra.mxu0 0.0
    %265 = vmatprep.subr.mxu0 0.0
    %266 = vmatpush1.msra.mxu0 0.0
    %267 = vmatprep.subr.mxu0 0.0
    %268 = vmatpush1.msra.mxu0 0.0
    %269 = vmatprep.subr.mxu0 0.0
    %270 = vmatpush1.msra.mxu0 0.0
    %271 = vmatprep.subr.mxu0 0.0
    %272 = vmatpush1.msra.mxu0 0.0
    %273 = vmatprep.subr.mxu0 0.0
    %274 = vmatpush1.msra.mxu0 0.0
    %275 = vmatprep.subr.mxu0 0.0
    %276 = vmatpush1.msra.mxu0 0.0
    %277 = vmatprep.subr.mxu0 0.0
    %278 = vmatpush1.msra.mxu0 0.0
    %279 = vmatprep.subr.mxu0 0.0
    %280 = vmatpush1.msra.mxu0 0.0
    %281 = vmatprep.subr.mxu0 0.0
    %282 = vmatpush1.msra.mxu0 0.0
    %283 = vmatprep.subr.mxu0 0.0
    %284 = vmatpush1.msra.mxu0 0.0
    %285 = vmatprep.mubr.f32.mxu0 0.0
    %286 = vmatmul.mubr.f32.gmra.mrb[0].mxu0 %v215
    %v287 = vpop.f32.mrb[0].mxu0
    %v288 = vadd.f32 0.0, %v287
    %v289 = vpop.f32.mrb[0].mxu0
    %290 = vdwg.mxu0
    %vm291 = vcmp.gt.f32.partialorder %v288, 0.5
    %v292 = vstv %s46
    %vm293 = vcmp.lt.s32.totalorder %v38, %v292
    %vm294 = vcmp.lt.s32.totalorder %v40, %v292
    %s295 = scvt.s32.f32 %s46
    %v296 = vsel %vm294, 1, 0
    %v297 = vcvt.s32.f32 %v296
    %v302 = vlaneseq
    %v303 = vshrl.u32 %v302, 7
    %v304 = vsub.s32 %v38, %v303
    %v305 = vrot.slane %v202, %v304
    %v306 = vlaneseq
    %v307 = vshrl.u32 %v306, 7
    %v308 = vsub.s32 %v38, %v307
    %v309 = vrot.slane %v203, %v308
    %v310 = vlaneseq
    %v311 = vshrl.u32 %v310, 7
    %v312 = vsub.s32 %v38, %v311
    %v313 = vrot.slane %v204, %v312
    %v314 = vlaneseq
    %v315 = vshrl.u32 %v314, 7
    %v316 = vsub.s32 %v38, %v315
    %v317 = vrot.slane %v205, %v316
    %vm318 = vcmask 1041409
    %v319 = vsel %vm318, %v309, %v305
    %vm320 = vcmask 1042434
    %v321 = vsel %vm320, %v313, %v319
    %vm322 = vcmask 1043459
    %v323 = vsel %vm322, %v317, %v321
    %v325 = vsel %vm291, -1e+09, %v323
    %v326 = vsel %vm293, %v325, -1e+09
    %vm327 = vcmask 27648
    %v328 = vsel %vm327, %v326, -inf
    %329 = vmax.xlane.f32.xlu0 %v328
    %v330 = vpop.xlane.xlu0 %329
    %v331 = vsub.f32 %v326, %v330
    %v332 = vmul.f32 %v331, 1.442695
    %v333 = vpow.pop %v332
    %v334 = vsel %vm327, %v333, 0.0
    %335 = vadd.xlane.f32.xlu0 %v334
    %v336 = vpop.xlane.xlu0 %335
    %v337 = vlog2.pop %v336
    %v338 = vmul.f32 %v337, 0.6931472
    %v339 = vadd.f32 %v338, %v330
    %v340 = vsub.f32 %v326, %v339
    %v341 = vmul.f32 %v340, %v212
    %v342 = vsel %vm327, %v341, 0.0
    %343 = vadd.xlane.f32.xlu0 %v342
    %v344 = vpop.xlane.xlu0 %343
    %v345 = vsub.f32 0.0, %v344
    %v346 = vmul.f32 %v345, %v297
    %vm347 = vcmask 3072
    %v348 = vsel %vm347, %v346, 0.0
    %349 = vadd.xlane.f32.xlu0 %v348
    %v350 = vpop.xlane.xlu0 %349
    %v351 = vrot.slane %v350, 4
    %v352 = vadd.f32 %v350, %v351
    %v353 = vrot.slane %v352, 2
    %v354 = vadd.f32 %v352, %v353
    %v355 = vrot.slane %v354, 1
    %v356 = vadd.f32 %v354, %v355
    %s357 = vtos %v356
    %s358 = sadd.f32 %s295, 1e-20
    %s359 = ssub.f32 %s358, 1.0
    %v360 = vstv %s359
    %v361 = vrcp.pop %v360
    %s362 = vtos %v361
    %s363 = smul.f32 %s357, %s362
    %v364 = vsel %vm293, %v323, -1e+09
    %v365 = vsel %vm294, %v364, -1e+09
    %v366 = vsel %vm327, %v365, -inf
    %v367 = vrot.slane %v366, 4
    %v368 = vmax.f32 %v366, %v367
    %v369 = vrot.slane %v368, 2
    %v370 = vmax.f32 %v368, %v369
    %v371 = vrot.slane %v370, 1
    %v372 = vmax.f32 %v370, %v371
    %v373 = vsub.f32 %v365, %v372
    %v374 = vmul.f32 %v373, 1.442695
    %v375 = vpow.pop %v374
    %v376 = vsel %vm327, %v375, 0.0
    %v377 = vrot.slane %v376, 4
    %v378 = vadd.f32 %v376, %v377
    %v379 = vrot.slane %v378, 2
    %v380 = vadd.f32 %v378, %v379
    %v381 = vrot.slane %v380, 1
    %v382 = vadd.f32 %v380, %v381
    %v383 = vlog2.pop %v382
    %v384 = vmul.f32 %v383, 0.6931472
    %v385 = vadd.f32 %v384, %v372
    %v386 = vsub.f32 %v365, %v385
    %v387 = vmul.f32 %v386, %v212
    %v388 = vsel %vm327, %v387, 0.0
    %389 = vadd.xlane.f32.xlu0 %v388
    %v390 = vpop.xlane.xlu0 %389
    %v391 = vsub.f32 0.0, %v390
    %v392 = vmul.f32 %v391, %v297
    %v393 = vsel %vm347, %v392, 0.0
    %394 = vadd.xlane.f32.xlu0 %v393
    %v395 = vpop.xlane.xlu0 %394
    %v396 = vrot.slane %v395, 4
    %v397 = vadd.f32 %v395, %v396
    %v398 = vrot.slane %v397, 2
    %v399 = vadd.f32 %v397, %v398
    %v400 = vrot.slane %v399, 1
    %v401 = vadd.f32 %v399, %v400
    %s402 = vtos %v401
    %v403 = vstv %s295
    %v404 = vrcp.pop %v403
    %s405 = vtos %v404
    %s406 = smul.f32 %s402, %s405
    %v407 = vstv %s359
    %v408 = vrcp.pop %v407
    %s409 = vtos %v408
    %s410 = smul.f32 %s406, %s409
    %s411 = sadd.f32 %s363, 0.0
    %s412 = sadd.f32 %s411, %s410
    %s413 = sld [smem:[#allocation3 + $0x1]]
    %s414 = scalar_lea.vmem %s1, 4
    %v415 = vld [vmem:[%s414] sm:$0xf]
    %s416 = scalar_lea.vmem %s2, 4
    %v417 = vld [vmem:[%s416] sm:$0xf]
    %v418 = vpack.c.bf16 %v415, %v415
    %v420 = vsel %vm72, %v418, 0
    %422 = vmatprep.subr.bf16.mxu0 0
    %423 = vmatpush1.bf16.msra.mxu0 %v68
    %424 = vmatprep.subr.bf16.mxu0 0
    %425 = vmatpush1.bf16.msra.mxu0 %v69
    %426 = vmatprep.subr.bf16.mxu0 0
    %427 = vmatpush1.bf16.msra.mxu0 0
    %428 = vmatprep.subr.bf16.mxu0 0
    %429 = vmatpush1.bf16.msra.mxu0 0
    %430 = vmatprep.subr.bf16.mxu0 0
    %431 = vmatpush1.bf16.msra.mxu0 0
    %432 = vmatprep.subr.bf16.mxu0 0
    %433 = vmatpush1.bf16.msra.mxu0 0
    %434 = vmatprep.subr.bf16.mxu0 0
    %435 = vmatpush1.bf16.msra.mxu0 0
    %436 = vmatprep.subr.bf16.mxu0 0
    %437 = vmatpush1.bf16.msra.mxu0 0
    %438 = vmatprep.subr.bf16.mxu0 0
    %439 = vmatpush1.bf16.msra.mxu0 0
    %440 = vmatprep.subr.bf16.mxu0 0
    %441 = vmatpush1.bf16.msra.mxu0 0
    %442 = vmatprep.subr.bf16.mxu0 0
    %443 = vmatpush1.bf16.msra.mxu0 0
    %444 = vmatprep.subr.bf16.mxu0 0
    %445 = vmatpush1.bf16.msra.mxu0 0
    %446 = vmatprep.subr.bf16.mxu0 0
    %447 = vmatpush1.bf16.msra.mxu0 0
    %448 = vmatprep.subr.bf16.mxu0 0
    %449 = vmatpush1.bf16.msra.mxu0 0
    %450 = vmatprep.subr.bf16.mxu0 0
    %451 = vmatpush1.bf16.msra.mxu0 0
    %452 = vmatprep.subr.bf16.mxu0 0
    %453 = vmatpush1.bf16.msra.mxu0 0
    %454 = vmatprep.mubr.bf16.mxu0 0
    %455 = vmatmul.mubr.bf16.gmra.mrb[0].mxu0 %v420
    %v456 = vpop.f32.mrb[0].mxu0
    %v457 = vadd.f32 %v58, %v456
    %v458 = vpop.f32.mrb[0].mxu0
    %v459 = vpop.f32.mrb[0].mxu0
    %v460 = vpop.f32.mrb[0].mxu0
    %461 = vdwg.mxu0
    %v464 = vunpack.c.l.s4 1966171168
    %v465 = vunpack.c.0.s8 %v464
    %v466 = vlaneseq
    %v467 = vshrl.u32 %v466, 7
    %v468 = vsub.s32 %v465, %v467
    %v469 = vrot.slane %v457, %v468
    %v470 = vcombine.high %v469, %v469
    %v472 = vunpack.c.l.s4 1966171168
    %v473 = vunpack.c.0.s8 %v472
    %v474 = vlaneseq
    %v475 = vshrl.u32 %v474, 7
    %v476 = vsub.s32 %v473, %v475
    %v477 = vrot.slane %v469, %v476
    %v479 = vunpack.c.l.s4 1966171168
    %v480 = vunpack.c.0.s8 %v479
    %v481 = vlaneseq
    %v482 = vshrl.u32 %v481, 7
    %v483 = vsub.s32 %v480, %v482
    %v484 = vrot.slane %v470, %v483
    %v485 = vcombine.high %v477, %v477
    %v486 = vcombine.high %v484, %v484
    %v487 = vlaneseq
    %v488 = vshrl.u32 %v487, 7
    %v489 = vsub.s32 0, %v488
    %v490 = vrot.slane %v477, %v489
    %v491 = vlaneseq
    %v492 = vshrl.u32 %v491, 7
    %v493 = vsub.s32 0, %v492
    %v494 = vrot.slane %v484, %v493
    %v495 = vlaneseq
    %v496 = vshrl.u32 %v495, 7
    %v497 = vsub.s32 0, %v496
    %v498 = vrot.slane %v485, %v497
    %v499 = vlaneseq
    %v500 = vshrl.u32 %v499, 7
    %v501 = vsub.s32 0, %v500
    %v502 = vrot.slane %v486, %v501
    %v507 = vadd.f32 %v490, %v417
    %v508 = vadd.f32 %v494, %v417
    %v509 = vadd.f32 %v498, %v417
    %v510 = vadd.f32 %v502, %v417
    %v511 = vtanh.pop %v507
    %v512 = vtanh.pop %v508
    %v513 = vtanh.pop %v509
    %v514 = vtanh.pop %v510
    %v515 = vmul.f32 %v511, %v173
    %v516 = vmul.f32 %v512, %v173
    %v517 = vmul.f32 %v513, %v173
    %v518 = vmul.f32 %v514, %v173
    %v519 = vsel %vm179, %v515, 0.0
    %520 = vadd.xlane.f32.xlu0 %v519
    %v521 = vpop.xlane.xlu0 %520
    %v522 = vsel %vm179, %v516, 0.0
    %523 = vadd.xlane.f32.xlu0 %v522
    %v524 = vpop.xlane.xlu0 %523
    %v525 = vsel %vm179, %v517, 0.0
    %526 = vadd.xlane.f32.xlu0 %v525
    %v527 = vpop.xlane.xlu0 %526
    %v528 = vsel %vm179, %v518, 0.0
    %529 = vadd.xlane.f32.xlu0 %v528
    %v530 = vpop.xlane.xlu0 %529
    %v531 = vadd.f32 %v521, %v200
    %v532 = vadd.f32 %v524, %v200
    %v533 = vadd.f32 %v527, %v200
    %v534 = vadd.f32 %v530, %v200
    %s535 = scalar_lea.vmem %s7, 4
    %v536 = vld [vmem:[%s535] sm:$0xf]
    %537 = vset.pattern.permute.xlu0 0
    %538 = vperm.xlu0 %537, %v536
    %v539 = vpop.permute.xlu0 %538
    %vm540 = vcmp.eq.s32.totalorder %v539, %v38
    %v541 = vsel %vm540, 1, 0
    %v542 = vcvt.s32.f32 %v541
    %v544 = vsel %vm217, %v542, 0
    %546 = vmatprep.subr.mxu0 0.0
    %547 = vmatpush1.msra.mxu0 %v544
    %548 = vmatprep.subr.mxu0 0.0
    %549 = vmatpush1.msra.mxu0 0.0
    %550 = vmatprep.subr.mxu0 0.0
    %551 = vmatpush1.msra.mxu0 0.0
    %552 = vmatprep.subr.mxu0 0.0
    %553 = vmatpush1.msra.mxu0 0.0
    %554 = vmatprep.subr.mxu0 0.0
    %555 = vmatpush1.msra.mxu0 0.0
    %556 = vmatprep.subr.mxu0 0.0
    %557 = vmatpush1.msra.mxu0 0.0
    %558 = vmatprep.subr.mxu0 0.0
    %559 = vmatpush1.msra.mxu0 0.0
    %560 = vmatprep.subr.mxu0 0.0
    %561 = vmatpush1.msra.mxu0 0.0
    %562 = vmatprep.subr.mxu0 0.0
    %563 = vmatpush1.msra.mxu0 0.0
    %564 = vmatprep.subr.mxu0 0.0
    %565 = vmatpush1.msra.mxu0 0.0
    %566 = vmatprep.subr.mxu0 0.0
    %567 = vmatpush1.msra.mxu0 0.0
    %568 = vmatprep.subr.mxu0 0.0
    %569 = vmatpush1.msra.mxu0 0.0
    %570 = vmatprep.subr.mxu0 0.0
    %571 = vmatpush1.msra.mxu0 0.0
    %572 = vmatprep.subr.mxu0 0.0
    %573 = vmatpush1.msra.mxu0 0.0
    %574 = vmatprep.subr.mxu0 0.0
    %575 = vmatpush1.msra.mxu0 0.0
    %576 = vmatprep.subr.mxu0 0.0
    %577 = vmatpush1.msra.mxu0 0.0
    %578 = vmatprep.subr.mxu0 0.0
    %579 = vmatpush1.msra.mxu0 0.0
    %580 = vmatprep.subr.mxu0 0.0
    %581 = vmatpush1.msra.mxu0 0.0
    %582 = vmatprep.subr.mxu0 0.0
    %583 = vmatpush1.msra.mxu0 0.0
    %584 = vmatprep.subr.mxu0 0.0
    %585 = vmatpush1.msra.mxu0 0.0
    %586 = vmatprep.subr.mxu0 0.0
    %587 = vmatpush1.msra.mxu0 0.0
    %588 = vmatprep.subr.mxu0 0.0
    %589 = vmatpush1.msra.mxu0 0.0
    %590 = vmatprep.subr.mxu0 0.0
    %591 = vmatpush1.msra.mxu0 0.0
    %592 = vmatprep.subr.mxu0 0.0
    %593 = vmatpush1.msra.mxu0 0.0
    %594 = vmatprep.subr.mxu0 0.0
    %595 = vmatpush1.msra.mxu0 0.0
    %596 = vmatprep.subr.mxu0 0.0
    %597 = vmatpush1.msra.mxu0 0.0
    %598 = vmatprep.subr.mxu0 0.0
    %599 = vmatpush1.msra.mxu0 0.0
    %600 = vmatprep.subr.mxu0 0.0
    %601 = vmatpush1.msra.mxu0 0.0
    %602 = vmatprep.subr.mxu0 0.0
    %603 = vmatpush1.msra.mxu0 0.0
    %604 = vmatprep.subr.mxu0 0.0
    %605 = vmatpush1.msra.mxu0 0.0
    %606 = vmatprep.subr.mxu0 0.0
    %607 = vmatpush1.msra.mxu0 0.0
    %608 = vmatprep.subr.mxu0 0.0
    %609 = vmatpush1.msra.mxu0 0.0
    %610 = vmatprep.mubr.f32.mxu0 0.0
    %611 = vmatmul.mubr.f32.gmra.mrb[0].mxu0 %v215
    %v612 = vpop.f32.mrb[0].mxu0
    %v613 = vadd.f32 0.0, %v612
    %v614 = vpop.f32.mrb[0].mxu0
    %615 = vdwg.mxu0
    %vm616 = vcmp.gt.f32.partialorder %v613, 0.5
    %v617 = vstv %s413
    %vm618 = vcmp.lt.s32.totalorder %v38, %v617
    %vm619 = vcmp.lt.s32.totalorder %v40, %v617
    %s620 = scvt.s32.f32 %s413
    %v621 = vsel %vm619, 1, 0
    %v622 = vcvt.s32.f32 %v621
    %v627 = vlaneseq
    %v628 = vshrl.u32 %v627, 7
    %v629 = vsub.s32 %v38, %v628
    %v630 = vrot.slane %v531, %v629
    %v631 = vlaneseq
    %v632 = vshrl.u32 %v631, 7
    %v633 = vsub.s32 %v38, %v632
    %v634 = vrot.slane %v532, %v633
    %v635 = vlaneseq
    %v636 = vshrl.u32 %v635, 7
    %v637 = vsub.s32 %v38, %v636
    %v638 = vrot.slane %v533, %v637
    %v639 = vlaneseq
    %v640 = vshrl.u32 %v639, 7
    %v641 = vsub.s32 %v38, %v640
    %v642 = vrot.slane %v534, %v641
    %v643 = vsel %vm318, %v634, %v630
    %v644 = vsel %vm320, %v638, %v643
    %v645 = vsel %vm322, %v642, %v644
    %v647 = vsel %vm616, -1e+09, %v645
    %v648 = vsel %vm618, %v647, -1e+09
    %v649 = vsel %vm327, %v648, -inf
    %650 = vmax.xlane.f32.xlu0 %v649
    %v651 = vpop.xlane.xlu0 %650
    %v652 = vsub.f32 %v648, %v651
    %v653 = vmul.f32 %v652, 1.442695
    %v654 = vpow.pop %v653
    %v655 = vsel %vm327, %v654, 0.0
    %656 = vadd.xlane.f32.xlu0 %v655
    %v657 = vpop.xlane.xlu0 %656
    %v658 = vlog2.pop %v657
    %v659 = vmul.f32 %v658, 0.6931472
    %v660 = vadd.f32 %v659, %v651
    %v661 = vsub.f32 %v648, %v660
    %v662 = vmul.f32 %v661, %v542
    %v663 = vsel %vm327, %v662, 0.0
    %664 = vadd.xlane.f32.xlu0 %v663
    %v665 = vpop.xlane.xlu0 %664
    %v666 = vsub.f32 0.0, %v665
    %v667 = vmul.f32 %v666, %v622
    %v668 = vsel %vm347, %v667, 0.0
    %669 = vadd.xlane.f32.xlu0 %v668
    %v670 = vpop.xlane.xlu0 %669
    %v671 = vrot.slane %v670, 4
    %v672 = vadd.f32 %v670, %v671
    %v673 = vrot.slane %v672, 2
    %v674 = vadd.f32 %v672, %v673
    %v675 = vrot.slane %v674, 1
    %v676 = vadd.f32 %v674, %v675
    %s677 = vtos %v676
    %s678 = sadd.f32 %s620, 1e-20
    %s679 = ssub.f32 %s678, 1.0
    %v680 = vstv %s679
    %v681 = vrcp.pop %v680
    %s682 = vtos %v681
    %s683 = smul.f32 %s677, %s682
    %v684 = vsel %vm618, %v645, -1e+09
    %v685 = vsel %vm619, %v684, -1e+09
    %v686 = vsel %vm327, %v685, -inf
    %v687 = vrot.slane %v686, 4
    %v688 = vmax.f32 %v686, %v687
    %v689 = vrot.slane %v688, 2
    %v690 = vmax.f32 %v688, %v689
    %v691 = vrot.slane %v690, 1
    %v692 = vmax.f32 %v690, %v691
    %v693 = vsub.f32 %v685, %v692
    %v694 = vmul.f32 %v693, 1.442695
    %v695 = vpow.pop %v694
    %v696 = vsel %vm327, %v695, 0.0
    %v697 = vrot.slane %v696, 4
    %v698 = vadd.f32 %v696, %v697
    %v699 = vrot.slane %v698, 2
    %v700 = vadd.f32 %v698, %v699
    %v701 = vrot.slane %v700, 1
    %v702 = vadd.f32 %v700, %v701
    %v703 = vlog2.pop %v702
    %v704 = vmul.f32 %v703, 0.6931472
    %v705 = vadd.f32 %v704, %v692
    %v706 = vsub.f32 %v685, %v705
    %v707 = vmul.f32 %v706, %v542
    %v708 = vsel %vm327, %v707, 0.0
    %709 = vadd.xlane.f32.xlu0 %v708
    %v710 = vpop.xlane.xlu0 %709
    %v711 = vsub.f32 0.0, %v710
    %v712 = vmul.f32 %v711, %v622
    %v713 = vsel %vm347, %v712, 0.0
    %714 = vadd.xlane.f32.xlu0 %v713
    %v715 = vpop.xlane.xlu0 %714
    %v716 = vrot.slane %v715, 4
    %v717 = vadd.f32 %v715, %v716
    %v718 = vrot.slane %v717, 2
    %v719 = vadd.f32 %v717, %v718
    %v720 = vrot.slane %v719, 1
    %v721 = vadd.f32 %v719, %v720
    %s722 = vtos %v721
    %v723 = vstv %s620
    %v724 = vrcp.pop %v723
    %s725 = vtos %v724
    %s726 = smul.f32 %s722, %s725
    %v727 = vstv %s679
    %v728 = vrcp.pop %v727
    %s729 = vtos %v728
    %s730 = smul.f32 %s726, %s729
    %s731 = sadd.f32 %s412, %s683
    %s732 = sadd.f32 %s731, %s730
    %v733 = vrcp.pop 2.0
    %s734 = vtos %v733
    %s735 = smul.f32 %s732, %s734
    %v736 = vstv %s735
    %vm737 = vcmask 0
    %738 = vst.msk [vmem:[#allocation5] sm:$0x1] %vm737, %v736
    // Predicated region
    $region30: #{forward.9} parent=1 // pred_check
      _
    $region31: #{forward.9} parent=1 // pred_check_branch
      %740 = sbr.rel (0) target = $region33
    $region32: #{forward.9} parent=1 // pred_region
      %s742 = ssub.s32 16, 16
      %743 = vsyncadd [#allocation6], %s742
      %s745 = sshll.u32 [#allocation5], 4
      %s746 = int_to_ptr.vmem [resolvable:$true] %s745
      %748 = dma.vmem_to_hbm [thread:$0]  %s746, 16, %s8, [#allocation6]
    $region33: #{forward.9} parent=1 // pred_fallthru
      _
    // Predicated region
    $region34: #{forward.9} parent=1 // pred_check
      _
    $region35: #{forward.9} parent=1 // pred_check_branch
      %750 = sbr.rel (0) target = $region37
    $region36: #{forward.9} parent=1 // pred_region
      %751 = dma.done [#allocation6], 16
    $region37: #{forward.9} parent=1 // pred_fallthru
      _
    %752 = vsyncpa [#allocation6], 1

// kernel: forward.8
$region0: #{forward.8}
  #allocation0 [shape = 'u32[]', space=smem, size = 0x4, offset = 0x4, fixed_abs, tag = 'smem constant byte address 0x4 - core index']
  #allocation1 [shape = 'u32[144,128]{1,0:T(1,128)}', space=vmem, size = 0x12000, scoped, tag = 'internal scratch']
  %s0 = inlined_call_operand.vmem [shape: f32[2,4,32], index: 0, kind: input, shape index: {}]
  %s1 = inlined_call_operand.vmem [shape: f32[2,4,32], index: 1, kind: input, shape index: {}]
  %s2 = inlined_call_operand.vmem [shape: f32[2,1,4], index: 2, kind: input, shape index: {}, may-alias: {2,3}]
  %s3 = inlined_call_operand.vmem [shape: f32[2,1,4], index: 3, kind: input, shape index: {}, may-alias: {2,3}]
  %s4 = inlined_call_operand.vmem [shape: f32[6,32], index: 4, kind: input, shape index: {}]
  %s5 = inlined_call_operand.vmem [shape: bf16[32,96], index: 5, kind: input, shape index: {}]
  %s6 = inlined_call_operand.vmem [shape: f32[1,96], index: 6, kind: input, shape index: {}]
  %s7 = inlined_call_operand.vmem [shape: bf16[32,32], index: 7, kind: input, shape index: {}]
  %s8 = inlined_call_operand.vmem [shape: f32[1,32], index: 8, kind: input, shape index: {}]
  %s9 = inlined_call_operand.vmem [shape: bf16[32,32], index: 9, kind: input, shape index: {}]
  %s10 = inlined_call_operand.vmem [shape: f32[1,32], index: 10, kind: input, shape index: {}]
  %s11 = inlined_call_operand.vmem [shape: bf16[32,64], index: 11, kind: input, shape index: {}]
  %s12 = inlined_call_operand.vmem [shape: f32[1,64], index: 12, kind: input, shape index: {}]
  %s13 = inlined_call_operand.vmem [shape: bf16[32,32], index: 13, kind: input, shape index: {}]
  %s14 = inlined_call_operand.vmem [shape: f32[1,32], index: 14, kind: input, shape index: {}]
  %s15 = inlined_call_operand.vmem [shape: bf16[32,32], index: 15, kind: input, shape index: {}]
  %s16 = inlined_call_operand.vmem [shape: f32[1,32], index: 16, kind: input, shape index: {}]
  %s17 = inlined_call_operand.vmem [shape: bf16[32,32], index: 17, kind: input, shape index: {}]
  %s18 = inlined_call_operand.vmem [shape: f32[1,32], index: 18, kind: input, shape index: {}]
  %s19 = inlined_call_operand.vmem [shape: f32[2,4,32], index: 19, kind: output, shape index: {}]
  %s20 = sld [smem:[#allocation0]]
  $region109: #{forward.8} parent=0
    _
  %s22 = ssub.s32 1, %s20
  %s23 = scalar_select 0, %s22, %s20
  loop: start=0, step=1, limit=4
  $region2: #{forward.8} parent=0 // loop_pre_header
    _
  $region3: #{forward.8} parent=0 // loop_header
    %s25 = sphi 0, %s29
    %p26 = scmp.ge.s32.totalorder %s25, 4
    %s35 = sphi 0, %s37
    %s38 = sphi 0, %s35
    %s39 = sphi 0, %s38
    %s55 = sphi 0, %s39
    %s61 = sphi 0, %s63
    %s64 = sphi 0, %s61
    %s65 = sphi 0, %s64
    %s81 = sphi 0, %s65
    %s87 = sphi 0, %s89
    %s90 = sphi 0, %s87
    %s91 = sphi 0, %s90
    %s107 = sphi 0, %s91
    %s113 = sphi 0, %s115
    %s116 = sphi 0, %s113
    %s117 = sphi 0, %s116
    %s133 = sphi 0, %s117
    %s137 = sphi 0, %s137
    %s139 = sphi 0, %s137
    %s140 = sphi 0, %s139
    %s154 = sphi 0, %s140
    %s158 = sphi 0, %s158
    %s160 = sphi 0, %s158
    %s161 = sphi 0, %s160
    %s175 = sphi 0, %s161
    %s179 = sphi 0, %s179
    %s181 = sphi 0, %s179
    %s182 = sphi 0, %s181
    %s196 = sphi 0, %s182
    %s200 = sphi 0, %s200
    %s202 = sphi 0, %s200
    %s203 = sphi 0, %s202
    %s217 = sphi 0, %s203
    %s221 = sphi 0, %s221
    %s223 = sphi 0, %s221
    %s224 = sphi 0, %s223
    %s238 = sphi 0, %s224
    %s242 = sphi 0, %s242
    %s244 = sphi 0, %s242
    %s245 = sphi 0, %s244
    %s259 = sphi 0, %s245
    %s263 = sphi 0, %s263
    %s265 = sphi 0, %s263
    %s266 = sphi 0, %s265
    %s280 = sphi 0, %s266
    %s284 = sphi 0, %s284
    %s286 = sphi 0, %s284
    %s287 = sphi 0, %s286
    %s301 = sphi 0, %s287
    %s305 = sphi 0, %s305
    %s307 = sphi 0, %s305
    %s308 = sphi 0, %s307
    %s322 = sphi 0, %s308
    %s326 = sphi 0, %s326
    %s328 = sphi 0, %s326
    %s329 = sphi 0, %s328
    %s343 = sphi 0, %s329
    %s347 = sphi 0, %s347
    %s349 = sphi 0, %s347
    %s350 = sphi 0, %s349
    %s364 = sphi 0, %s350
    %s368 = sphi 0, %s368
    %s370 = sphi 0, %s368
    %s371 = sphi 0, %s370
    %s385 = sphi 0, %s371
    %s389 = sphi 0, %s389
    %s391 = sphi 0, %s389
    %s392 = sphi 0, %s391
    %s406 = sphi 0, %s392
    %s410 = sphi 0, %s410
    %s412 = sphi 0, %s410
    %s413 = sphi 0, %s412
    %s427 = sphi 0, %s413
    %s431 = sphi 0, %s431
    %s433 = sphi 0, %s431
    %s434 = sphi 0, %s433
    %s448 = sphi 0, %s434
    %s454 = sphi 0, %s456
    %s457 = sphi 0, %s454
    %s458 = sphi 0, %s457
    %s474 = sphi 0, %s458
  $region4: #{forward.8} parent=0 // loop_header_branch
    %28 = sbr.rel (%p26) target = $region8
  $region5: #{forward.8} parent=0 // loop_body
    %s30 = ssub.s32 %s25, 1
    %s31 = ssub.s32 %s25, 2
    %s32 = sadd.s32 %s25, 1
    %s33 = ssub.s32 %s25, %s32
    %p34 = scmp.eq.s32.totalorder %s33, 0
    %s36 = sadd.s32 %s35, 1
    %s37 = scalar_select %p34, %s35, %s36
    %p40 = pneg %p34
    %p41 = scmp.eq.s32.totalorder %s25, 1
    %p42 = por %p40, %p41
    %p43 = scmp.ne.s32.totalorder %s35, %s38
    %p44 = scmp.eq.s32.totalorder %s25, 0
    %p45 = por %p43, %p44
    %p46 = scmp.ne.s32.totalorder %s35, %s38
    %p47 = scmp.eq.s32.totalorder %s30, 1
    %p48 = por %p46, %p47
    %p49 = scmp.ne.s32.totalorder %s38, %s39
    %p50 = scmp.eq.s32.totalorder %s30, 0
    %p51 = por %p49, %p50
    %p52 = scmp.ne.s32.totalorder %s38, %s39
    %p53 = scmp.eq.s32.totalorder %s31, 1
    %p54 = por %p52, %p53
    %p56 = scmp.ne.s32.totalorder %s39, %s55
    %p57 = scmp.eq.s32.totalorder %s31, 0
    %p58 = por %p56, %p57
    %s59 = ssub.s32 %s25, %s32
    %p60 = scmp.eq.s32.totalorder %s59, 0
    %s62 = sadd.s32 %s61, 1
    %s63 = scalar_select %p60, %s61, %s62
    %p66 = pneg %p60
    %p67 = scmp.eq.s32.totalorder %s25, 1
    %p68 = por %p66, %p67
    %p69 = scmp.ne.s32.totalorder %s61, %s64
    %p70 = scmp.eq.s32.totalorder %s25, 0
    %p71 = por %p69, %p70
    %p72 = scmp.ne.s32.totalorder %s61, %s64
    %p73 = scmp.eq.s32.totalorder %s30, 1
    %p74 = por %p72, %p73
    %p75 = scmp.ne.s32.totalorder %s64, %s65
    %p76 = scmp.eq.s32.totalorder %s30, 0
    %p77 = por %p75, %p76
    %p78 = scmp.ne.s32.totalorder %s64, %s65
    %p79 = scmp.eq.s32.totalorder %s31, 1
    %p80 = por %p78, %p79
    %p82 = scmp.ne.s32.totalorder %s65, %s81
    %p83 = scmp.eq.s32.totalorder %s31, 0
    %p84 = por %p82, %p83
    %s85 = ssub.s32 %s25, %s32
    %p86 = scmp.eq.s32.totalorder %s85, 0
    %s88 = sadd.s32 %s87, 1
    %s89 = scalar_select %p86, %s87, %s88
    %p92 = pneg %p86
    %p93 = scmp.eq.s32.totalorder %s25, 1
    %p94 = por %p92, %p93
    %p95 = scmp.ne.s32.totalorder %s87, %s90
    %p96 = scmp.eq.s32.totalorder %s25, 0
    %p97 = por %p95, %p96
    %p98 = scmp.ne.s32.totalorder %s87, %s90
    %p99 = scmp.eq.s32.totalorder %s30, 1
    %p100 = por %p98, %p99
    %p101 = scmp.ne.s32.totalorder %s90, %s91
    %p102 = scmp.eq.s32.totalorder %s30, 0
    %p103 = por %p101, %p102
    %p104 = scmp.ne.s32.totalorder %s90, %s91
    %p105 = scmp.eq.s32.totalorder %s31, 1
    %p106 = por %p104, %p105
    %p108 = scmp.ne.s32.totalorder %s91, %s107
    %p109 = scmp.eq.s32.totalorder %s31, 0
    %p110 = por %p108, %p109
    %s111 = ssub.s32 %s25, %s32
    %p112 = scmp.eq.s32.totalorder %s111, 0
    %s114 = sadd.s32 %s113, 1
    %s115 = scalar_select %p112, %s113, %s114
    %p118 = pneg %p112
    %p119 = scmp.eq.s32.totalorder %s25, 1
    %p120 = por %p118, %p119
    %p121 = scmp.ne.s32.totalorder %s113, %s116
    %p122 = scmp.eq.s32.totalorder %s25, 0
    %p123 = por %p121, %p122
    %p124 = scmp.ne.s32.totalorder %s113, %s116
    %p125 = scmp.eq.s32.totalorder %s30, 1
    %p126 = por %p124, %p125
    %p127 = scmp.ne.s32.totalorder %s116, %s117
    %p128 = scmp.eq.s32.totalorder %s30, 0
    %p129 = por %p127, %p128
    %p130 = scmp.ne.s32.totalorder %s116, %s117
    %p131 = scmp.eq.s32.totalorder %s31, 1
    %p132 = por %p130, %p131
    %p134 = scmp.ne.s32.totalorder %s117, %s133
    %p135 = scmp.eq.s32.totalorder %s31, 0
    %p136 = por %p134, %p135
    %s138 = sadd.s32 %s137, 1
    %p141 = scmp.eq.s32.totalorder %s25, 1
    %p142 = scmp.ne.s32.totalorder %s137, %s139
    %p143 = scmp.eq.s32.totalorder %s25, 0
    %p144 = por %p142, %p143
    %p145 = scmp.ne.s32.totalorder %s137, %s139
    %p146 = scmp.eq.s32.totalorder %s30, 1
    %p147 = por %p145, %p146
    %p148 = scmp.ne.s32.totalorder %s139, %s140
    %p149 = scmp.eq.s32.totalorder %s30, 0
    %p150 = por %p148, %p149
    %p151 = scmp.ne.s32.totalorder %s139, %s140
    %p152 = scmp.eq.s32.totalorder %s31, 1
    %p153 = por %p151, %p152
    %p155 = scmp.ne.s32.totalorder %s140, %s154
    %p156 = scmp.eq.s32.totalorder %s31, 0
    %p157 = por %p155, %p156
    %s159 = sadd.s32 %s158, 1
    %p162 = scmp.eq.s32.totalorder %s25, 1
    %p163 = scmp.ne.s32.totalorder %s158, %s160
    %p164 = scmp.eq.s32.totalorder %s25, 0
    %p165 = por %p163, %p164
    %p166 = scmp.ne.s32.totalorder %s158, %s160
    %p167 = scmp.eq.s32.totalorder %s30, 1
    %p168 = por %p166, %p167
    %p169 = scmp.ne.s32.totalorder %s160, %s161
    %p170 = scmp.eq.s32.totalorder %s30, 0
    %p171 = por %p169, %p170
    %p172 = scmp.ne.s32.totalorder %s160, %s161
    %p173 = scmp.eq.s32.totalorder %s31, 1
    %p174 = por %p172, %p173
    %p176 = scmp.ne.s32.totalorder %s161, %s175
    %p177 = scmp.eq.s32.totalorder %s31, 0
    %p178 = por %p176, %p177
    %s180 = sadd.s32 %s179, 1
    %p183 = scmp.eq.s32.totalorder %s25, 1
    %p184 = scmp.ne.s32.totalorder %s179, %s181
    %p185 = scmp.eq.s32.totalorder %s25, 0
    %p186 = por %p184, %p185
    %p187 = scmp.ne.s32.totalorder %s179, %s181
    %p188 = scmp.eq.s32.totalorder %s30, 1
    %p189 = por %p187, %p188
    %p190 = scmp.ne.s32.totalorder %s181, %s182
    %p191 = scmp.eq.s32.totalorder %s30, 0
    %p192 = por %p190, %p191
    %p193 = scmp.ne.s32.totalorder %s181, %s182
    %p194 = scmp.eq.s32.totalorder %s31, 1
    %p195 = por %p193, %p194
    %p197 = scmp.ne.s32.totalorder %s182, %s196
    %p198 = scmp.eq.s32.totalorder %s31, 0
    %p199 = por %p197, %p198
    %s201 = sadd.s32 %s200, 1
    %p204 = scmp.eq.s32.totalorder %s25, 1
    %p205 = scmp.ne.s32.totalorder %s200, %s202
    %p206 = scmp.eq.s32.totalorder %s25, 0
    %p207 = por %p205, %p206
    %p208 = scmp.ne.s32.totalorder %s200, %s202
    %p209 = scmp.eq.s32.totalorder %s30, 1
    %p210 = por %p208, %p209
    %p211 = scmp.ne.s32.totalorder %s202, %s203
    %p212 = scmp.eq.s32.totalorder %s30, 0
    %p213 = por %p211, %p212
    %p214 = scmp.ne.s32.totalorder %s202, %s203
    %p215 = scmp.eq.s32.totalorder %s31, 1
    %p216 = por %p214, %p215
    %p218 = scmp.ne.s32.totalorder %s203, %s217
    %p219 = scmp.eq.s32.totalorder %s31, 0
    %p220 = por %p218, %p219
    %s222 = sadd.s32 %s221, 1
    %p225 = scmp.eq.s32.totalorder %s25, 1
    %p226 = scmp.ne.s32.totalorder %s221, %s223
    %p227 = scmp.eq.s32.totalorder %s25, 0
    %p228 = por %p226, %p227
    %p229 = scmp.ne.s32.totalorder %s221, %s223
    %p230 = scmp.eq.s32.totalorder %s30, 1
    %p231 = por %p229, %p230
    %p232 = scmp.ne.s32.totalorder %s223, %s224
    %p233 = scmp.eq.s32.totalorder %s30, 0
    %p234 = por %p232, %p233
    %p235 = scmp.ne.s32.totalorder %s223, %s224
    %p236 = scmp.eq.s32.totalorder %s31, 1
    %p237 = por %p235, %p236
    %p239 = scmp.ne.s32.totalorder %s224, %s238
    %p240 = scmp.eq.s32.totalorder %s31, 0
    %p241 = por %p239, %p240
    %s243 = sadd.s32 %s242, 1
    %p246 = scmp.eq.s32.totalorder %s25, 1
    %p247 = scmp.ne.s32.totalorder %s242, %s244
    %p248 = scmp.eq.s32.totalorder %s25, 0
    %p249 = por %p247, %p248
    %p250 = scmp.ne.s32.totalorder %s242, %s244
    %p251 = scmp.eq.s32.totalorder %s30, 1
    %p252 = por %p250, %p251
    %p253 = scmp.ne.s32.totalorder %s244, %s245
    %p254 = scmp.eq.s32.totalorder %s30, 0
    %p255 = por %p253, %p254
    %p256 = scmp.ne.s32.totalorder %s244, %s245
    %p257 = scmp.eq.s32.totalorder %s31, 1
    %p258 = por %p256, %p257
    %p260 = scmp.ne.s32.totalorder %s245, %s259
    %p261 = scmp.eq.s32.totalorder %s31, 0
    %p262 = por %p260, %p261
    %s264 = sadd.s32 %s263, 1
    %p267 = scmp.eq.s32.totalorder %s25, 1
    %p268 = scmp.ne.s32.totalorder %s263, %s265
    %p269 = scmp.eq.s32.totalorder %s25, 0
    %p270 = por %p268, %p269
    %p271 = scmp.ne.s32.totalorder %s263, %s265
    %p272 = scmp.eq.s32.totalorder %s30, 1
    %p273 = por %p271, %p272
    %p274 = scmp.ne.s32.totalorder %s265, %s266
    %p275 = scmp.eq.s32.totalorder %s30, 0
    %p276 = por %p274, %p275
    %p277 = scmp.ne.s32.totalorder %s265, %s266
    %p278 = scmp.eq.s32.totalorder %s31, 1
    %p279 = por %p277, %p278
    %p281 = scmp.ne.s32.totalorder %s266, %s280
    %p282 = scmp.eq.s32.totalorder %s31, 0
    %p283 = por %p281, %p282
    %s285 = sadd.s32 %s284, 1
    %p288 = scmp.eq.s32.totalorder %s25, 1
    %p289 = scmp.ne.s32.totalorder %s284, %s286
    %p290 = scmp.eq.s32.totalorder %s25, 0
    %p291 = por %p289, %p290
    %p292 = scmp.ne.s32.totalorder %s284, %s286
    %p293 = scmp.eq.s32.totalorder %s30, 1
    %p294 = por %p292, %p293
    %p295 = scmp.ne.s32.totalorder %s286, %s287
    %p296 = scmp.eq.s32.totalorder %s30, 0
    %p297 = por %p295, %p296
    %p298 = scmp.ne.s32.totalorder %s286, %s287
    %p299 = scmp.eq.s32.totalorder %s31, 1
    %p300 = por %p298, %p299
    %p302 = scmp.ne.s32.totalorder %s287, %s301
    %p303 = scmp.eq.s32.totalorder %s31, 0
    %p304 = por %p302, %p303
    %s306 = sadd.s32 %s305, 1
    %p309 = scmp.eq.s32.totalorder %s25, 1
    %p310 = scmp.ne.s32.totalorder %s305, %s307
    %p311 = scmp.eq.s32.totalorder %s25, 0
    %p312 = por %p310, %p311
    %p313 = scmp.ne.s32.totalorder %s305, %s307
    %p314 = scmp.eq.s32.totalorder %s30, 1
    %p315 = por %p313, %p314
    %p316 = scmp.ne.s32.totalorder %s307, %s308
    %p317 = scmp.eq.s32.totalorder %s30, 0
    %p318 = por %p316, %p317
    %p319 = scmp.ne.s32.totalorder %s307, %s308
    %p320 = scmp.eq.s32.totalorder %s31, 1
    %p321 = por %p319, %p320
    %p323 = scmp.ne.s32.totalorder %s308, %s322
    %p324 = scmp.eq.s32.totalorder %s31, 0
    %p325 = por %p323, %p324
    %s327 = sadd.s32 %s326, 1
    %p330 = scmp.eq.s32.totalorder %s25, 1
    %p331 = scmp.ne.s32.totalorder %s326, %s328
    %p332 = scmp.eq.s32.totalorder %s25, 0
    %p333 = por %p331, %p332
    %p334 = scmp.ne.s32.totalorder %s326, %s328
    %p335 = scmp.eq.s32.totalorder %s30, 1
    %p336 = por %p334, %p335
    %p337 = scmp.ne.s32.totalorder %s328, %s329
    %p338 = scmp.eq.s32.totalorder %s30, 0
    %p339 = por %p337, %p338
    %p340 = scmp.ne.s32.totalorder %s328, %s329
    %p341 = scmp.eq.s32.totalorder %s31, 1
    %p342 = por %p340, %p341
    %p344 = scmp.ne.s32.totalorder %s329, %s343
    %p345 = scmp.eq.s32.totalorder %s31, 0
    %p346 = por %p344, %p345
    %s348 = sadd.s32 %s347, 1
    %p351 = scmp.eq.s32.totalorder %s25, 1
    %p352 = scmp.ne.s32.totalorder %s347, %s349
    %p353 = scmp.eq.s32.totalorder %s25, 0
    %p354 = por %p352, %p353
    %p355 = scmp.ne.s32.totalorder %s347, %s349
    %p356 = scmp.eq.s32.totalorder %s30, 1
    %p357 = por %p355, %p356
    %p358 = scmp.ne.s32.totalorder %s349, %s350
    %p359 = scmp.eq.s32.totalorder %s30, 0
    %p360 = por %p358, %p359
    %p361 = scmp.ne.s32.totalorder %s349, %s350
    %p362 = scmp.eq.s32.totalorder %s31, 1
    %p363 = por %p361, %p362
    %p365 = scmp.ne.s32.totalorder %s350, %s364
    %p366 = scmp.eq.s32.totalorder %s31, 0
    %p367 = por %p365, %p366
    %s369 = sadd.s32 %s368, 1
    %p372 = scmp.eq.s32.totalorder %s25, 1
    %p373 = scmp.ne.s32.totalorder %s368, %s370
    %p374 = scmp.eq.s32.totalorder %s25, 0
    %p375 = por %p373, %p374
    %p376 = scmp.ne.s32.totalorder %s368, %s370
    %p377 = scmp.eq.s32.totalorder %s30, 1
    %p378 = por %p376, %p377
    %p379 = scmp.ne.s32.totalorder %s370, %s371
    %p380 = scmp.eq.s32.totalorder %s30, 0
    %p381 = por %p379, %p380
    %p382 = scmp.ne.s32.totalorder %s370, %s371
    %p383 = scmp.eq.s32.totalorder %s31, 1
    %p384 = por %p382, %p383
    %p386 = scmp.ne.s32.totalorder %s371, %s385
    %p387 = scmp.eq.s32.totalorder %s31, 0
    %p388 = por %p386, %p387
    %s390 = sadd.s32 %s389, 1
    %p393 = scmp.eq.s32.totalorder %s25, 1
    %p394 = scmp.ne.s32.totalorder %s389, %s391
    %p395 = scmp.eq.s32.totalorder %s25, 0
    %p396 = por %p394, %p395
    %p397 = scmp.ne.s32.totalorder %s389, %s391
    %p398 = scmp.eq.s32.totalorder %s30, 1
    %p399 = por %p397, %p398
    %p400 = scmp.ne.s32.totalorder %s391, %s392
    %p401 = scmp.eq.s32.totalorder %s30, 0
    %p402 = por %p400, %p401
    %p403 = scmp.ne.s32.totalorder %s391, %s392
    %p404 = scmp.eq.s32.totalorder %s31, 1
    %p405 = por %p403, %p404
    %p407 = scmp.ne.s32.totalorder %s392, %s406
    %p408 = scmp.eq.s32.totalorder %s31, 0
    %p409 = por %p407, %p408
    %s411 = sadd.s32 %s410, 1
    %p414 = scmp.eq.s32.totalorder %s25, 1
    %p415 = scmp.ne.s32.totalorder %s410, %s412
    %p416 = scmp.eq.s32.totalorder %s25, 0
    %p417 = por %p415, %p416
    %p418 = scmp.ne.s32.totalorder %s410, %s412
    %p419 = scmp.eq.s32.totalorder %s30, 1
    %p420 = por %p418, %p419
    %p421 = scmp.ne.s32.totalorder %s412, %s413
    %p422 = scmp.eq.s32.totalorder %s30, 0
    %p423 = por %p421, %p422
    %p424 = scmp.ne.s32.totalorder %s412, %s413
    %p425 = scmp.eq.s32.totalorder %s31, 1
    %p426 = por %p424, %p425
    %p428 = scmp.ne.s32.totalorder %s413, %s427
    %p429 = scmp.eq.s32.totalorder %s31, 0
    %p430 = por %p428, %p429
    %s432 = sadd.s32 %s431, 1
    %p435 = scmp.eq.s32.totalorder %s25, 1
    %p436 = scmp.ne.s32.totalorder %s431, %s433
    %p437 = scmp.eq.s32.totalorder %s25, 0
    %p438 = por %p436, %p437
    %p439 = scmp.ne.s32.totalorder %s431, %s433
    %p440 = scmp.eq.s32.totalorder %s30, 1
    %p441 = por %p439, %p440
    %p442 = scmp.ne.s32.totalorder %s433, %s434
    %p443 = scmp.eq.s32.totalorder %s30, 0
    %p444 = por %p442, %p443
    %p445 = scmp.ne.s32.totalorder %s433, %s434
    %p446 = scmp.eq.s32.totalorder %s31, 1
    %p447 = por %p445, %p446
    %p449 = scmp.ne.s32.totalorder %s434, %s448
    %p450 = scmp.eq.s32.totalorder %s31, 0
    %p451 = por %p449, %p450
    %s452 = ssub.s32 %s25, %s32
    %p453 = scmp.eq.s32.totalorder %s452, 0
    %s455 = sadd.s32 %s454, 1
    %s456 = scalar_select %p453, %s454, %s455
    %p459 = pneg %p453
    %p460 = scmp.eq.s32.totalorder %s25, 1
    %p461 = por %p459, %p460
    %p462 = scmp.ne.s32.totalorder %s454, %s457
    %p463 = scmp.eq.s32.totalorder %s25, 0
    %p464 = por %p462, %p463
    %p465 = scmp.ne.s32.totalorder %s454, %s457
    %p466 = scmp.eq.s32.totalorder %s30, 1
    %p467 = por %p465, %p466
    %p468 = scmp.ne.s32.totalorder %s457, %s458
    %p469 = scmp.eq.s32.totalorder %s30, 0
    %p470 = por %p468, %p469
    %p471 = scmp.ne.s32.totalorder %s457, %s458
    %p472 = scmp.eq.s32.totalorder %s31, 1
    %p473 = por %p471, %p472
    %p475 = scmp.ne.s32.totalorder %s458, %s474
    %p476 = scmp.eq.s32.totalorder %s31, 0
    %p477 = por %p475, %p476
    %p478 = scmp.le.s32.totalorder 1, %s25
    %p479 = scmp.lt.s32.totalorder %s25, 3
    %p480 = pnand %p478, %p479
    %p481 = pneg %p480
    // Predicated region
    $region9: #{forward.8} parent=5 // pred_check
      _
    $region10: #{forward.8} parent=5 // pred_check_branch
      %483 = sbr.rel (%p480) target = $region12
    $region11: #{forward.8} parent=5 // pred_region
      %s484 = ssub.s32 %s25, 1
      // Predicated region
      $region13: #{forward.8} parent=11 // pred_check
        %p485 = pneg %p150
      $region14: #{forward.8} parent=11 // pred_check_branch
        %487 = sbr.rel (%p485) target = $region16
      $region15: #{forward.8} parent=11 // pred_region
        _
      $region16: #{forward.8} parent=11 // pred_fallthru
        _
      // Predicated region
      $region17: #{forward.8} parent=11 // pred_check
        %p488 = pneg %p171
      $region18: #{forward.8} parent=11 // pred_check_branch
        %490 = sbr.rel (%p488) target = $region20
      $region19: #{forward.8} parent=11 // pred_region
        _
      $region20: #{forward.8} parent=11 // pred_fallthru
        _
      // Predicated region
      $region21: #{forward.8} parent=11 // pred_check
        %p491 = pneg %p192
      $region22: #{forward.8} parent=11 // pred_check_branch
        %493 = sbr.rel (%p491) target = $region24
      $region23: #{forward.8} parent=11 // pred_region
        _
      $region24: #{forward.8} parent=11 // pred_fallthru
        _
      // Predicated region
      $region25: #{forward.8} parent=11 // pred_check
        %p494 = pneg %p213
      $region26: #{forward.8} parent=11 // pred_check_branch
        %496 = sbr.rel (%p494) target = $region28
      $region27: #{forward.8} parent=11 // pred_region
        _
      $region28: #{forward.8} parent=11 // pred_fallthru
        _
      // Predicated region
      $region29: #{forward.8} parent=11 // pred_check
        %p497 = pneg %p234
      $region30: #{forward.8} parent=11 // pred_check_branch
        %499 = sbr.rel (%p497) target = $region32
      $region31: #{forward.8} parent=11 // pred_region
        _
      $region32: #{forward.8} parent=11 // pred_fallthru
        _
      // Predicated region
      $region33: #{forward.8} parent=11 // pred_check
        %p500 = pneg %p255
      $region34: #{forward.8} parent=11 // pred_check_branch
        %502 = sbr.rel (%p500) target = $region36
      $region35: #{forward.8} parent=11 // pred_region
        _
      $region36: #{forward.8} parent=11 // pred_fallthru
        _
      // Predicated region
      $region37: #{forward.8} parent=11 // pred_check
        %p503 = pneg %p276
      $region38: #{forward.8} parent=11 // pred_check_branch
        %505 = sbr.rel (%p503) target = $region40
      $region39: #{forward.8} parent=11 // pred_region
        _
      $region40: #{forward.8} parent=11 // pred_fallthru
        _
      // Predicated region
      $region41: #{forward.8} parent=11 // pred_check
        %p506 = pneg %p297
      $region42: #{forward.8} parent=11 // pred_check_branch
        %508 = sbr.rel (%p506) target = $region44
      $region43: #{forward.8} parent=11 // pred_region
        _
      $region44: #{forward.8} parent=11 // pred_fallthru
        _
      // Predicated region
      $region45: #{forward.8} parent=11 // pred_check
        %p509 = pneg %p318
      $region46: #{forward.8} parent=11 // pred_check_branch
        %511 = sbr.rel (%p509) target = $region48
      $region47: #{forward.8} parent=11 // pred_region
        _
      $region48: #{forward.8} parent=11 // pred_fallthru
        _
      // Predicated region
      $region49: #{forward.8} parent=11 // pred_check
        %p512 = pneg %p339
      $region50: #{forward.8} parent=11 // pred_check_branch
        %514 = sbr.rel (%p512) target = $region52
      $region51: #{forward.8} parent=11 // pred_region
        _
      $region52: #{forward.8} parent=11 // pred_fallthru
        _
      // Predicated region
      $region53: #{forward.8} parent=11 // pred_check
        %p515 = pneg %p360
      $region54: #{forward.8} parent=11 // pred_check_branch
        %517 = sbr.rel (%p515) target = $region56
      $region55: #{forward.8} parent=11 // pred_region
        _
      $region56: #{forward.8} parent=11 // pred_fallthru
        _
      // Predicated region
      $region57: #{forward.8} parent=11 // pred_check
        %p518 = pneg %p381
      $region58: #{forward.8} parent=11 // pred_check_branch
        %520 = sbr.rel (%p518) target = $region60
      $region59: #{forward.8} parent=11 // pred_region
        _
      $region60: #{forward.8} parent=11 // pred_fallthru
        _
      // Predicated region
      $region61: #{forward.8} parent=11 // pred_check
        %p521 = pneg %p402
      $region62: #{forward.8} parent=11 // pred_check_branch
        %523 = sbr.rel (%p521) target = $region64
      $region63: #{forward.8} parent=11 // pred_region
        _
      $region64: #{forward.8} parent=11 // pred_fallthru
        _
      // Predicated region
      $region65: #{forward.8} parent=11 // pred_check
        %p524 = pneg %p423
      $region66: #{forward.8} parent=11 // pred_check_branch
        %526 = sbr.rel (%p524) target = $region68
      $region67: #{forward.8} parent=11 // pred_region
        _
      $region68: #{forward.8} parent=11 // pred_fallthru
        _
      // Predicated region
      $region69: #{forward.8} parent=11 // pred_check
        %p527 = pneg %p444
      $region70: #{forward.8} parent=11 // pred_check_branch
        %529 = sbr.rel (%p527) target = $region72
      $region71: #{forward.8} parent=11 // pred_region
        _
      $region72: #{forward.8} parent=11 // pred_fallthru
        _
    $region12: #{forward.8} parent=5 // pred_fallthru
      _
    %p530 = scmp.lt.s32.totalorder %s25, 2
    // Predicated region
    $region73: #{forward.8} parent=5 // pred_check
      %p531 = pneg %p530
    $region74: #{forward.8} parent=5 // pred_check_branch
      %533 = sbr.rel (%p531) target = $region76
    $region75: #{forward.8} parent=5 // pred_region
      // Predicated region
      $region77: #{forward.8} parent=75 // pred_check
        %p534 = pneg %p45
      $region78: #{forward.8} parent=75 // pred_check_branch
        %536 = sbr.rel (%p534) target = $region80
      $region79: #{forward.8} parent=75 // pred_region
        %p537 = scmp.lt.s32.totalorder %s25, 1
        %s538 = scalar_select %p537, %s25, 1
        %s539 = smul.addr %s538, 4
        %s540 = scalar_lea.vmem %s0, %s539
      $region80: #{forward.8} parent=75 // pred_fallthru
        _
      // Predicated region
      $region81: #{forward.8} parent=75 // pred_check
        %p541 = pneg %p71
      $region82: #{forward.8} parent=75 // pred_check_branch
        %543 = sbr.rel (%p541) target = $region84
      $region83: #{forward.8} parent=75 // pred_region
        %p544 = scmp.lt.s32.totalorder %s25, 1
        %s545 = scalar_select %p544, %s25, 1
        %s546 = smul.addr %s545, 4
        %s547 = scalar_lea.vmem %s1, %s546
      $region84: #{forward.8} parent=75 // pred_fallthru
        _
      // Predicated region
      $region85: #{forward.8} parent=75 // pred_check
        %p548 = pneg %p97
      $region86: #{forward.8} parent=75 // pred_check_branch
        %550 = sbr.rel (%p548) target = $region88
      $region87: #{forward.8} parent=75 // pred_region
        %p551 = scmp.lt.s32.totalorder %s25, 1
        %s552 = scalar_select %p551, %s25, 1
        %s553 = scalar_lea.vmem %s2, %s552
      $region88: #{forward.8} parent=75 // pred_fallthru
        _
      // Predicated region
      $region89: #{forward.8} parent=75 // pred_check
        %p554 = pneg %p123
      $region90: #{forward.8} parent=75 // pred_check_branch
        %556 = sbr.rel (%p554) target = $region92
      $region91: #{forward.8} parent=75 // pred_region
        %p557 = scmp.lt.s32.totalorder %s25, 1
        %s558 = scalar_select %p557, %s25, 1
        %s559 = scalar_lea.vmem %s3, %s558
      $region92: #{forward.8} parent=75 // pred_fallthru
        _
    $region76: #{forward.8} parent=5 // pred_fallthru
      _
    %p560 = scmp.le.s32.totalorder 1, %s25
    %p561 = scmp.lt.s32.totalorder %s25, 3
    %p562 = pnand %p560, %p561
    %p563 = pneg %p562
    // Predicated region
    $region93: #{forward.8} parent=5 // pred_check
      _
    $region94: #{forward.8} parent=5 // pred_check_branch
      %565 = sbr.rel (%p562) target = $region96
    $region95: #{forward.8} parent=5 // pred_region
      %s566 = ssub.s32 %s25, 1
      %p567 = scmp.lt.s32.totalorder %s30, 1
      %s568 = scalar_select %p567, %s30, 1
      %s569 = smul.addr %s568, 4
      %s570 = scalar_lea.vmem %s0, %s569
      %p571 = pneg %p51
      %p572 = pneg %p48
      %p573 = scmp.lt.s32.totalorder %s30, 1
      %s574 = scalar_select %p573, %s30, 1
      %s575 = smul.addr %s574, 4
      %s576 = scalar_lea.vmem %s1, %s575
      %p577 = pneg %p77
      %p578 = pneg %p74
      %p579 = scmp.lt.s32.totalorder %s30, 1
      %s580 = scalar_select %p579, %s30, 1
      %s581 = scalar_lea.vmem %s2, %s580
      %p582 = pneg %p103
      %p583 = pneg %p100
      %p584 = scmp.lt.s32.totalorder %s30, 1
      %s585 = scalar_select %p584, %s30, 1
      %s586 = scalar_lea.vmem %s3, %s585
      %p587 = pneg %p129
      %p588 = pneg %p126
      %p589 = pneg %p150
      %p590 = pneg %p147
      %p591 = pneg %p171
      %p592 = pneg %p168
      %p593 = pneg %p192
      %p594 = pneg %p189
      %p595 = pneg %p213
      %p596 = pneg %p210
      %p597 = pneg %p234
      %p598 = pneg %p231
      %p599 = pneg %p255
      %p600 = pneg %p252
      %p601 = pneg %p276
      %p602 = pneg %p273
      %p603 = pneg %p297
      %p604 = pneg %p294
      %p605 = pneg %p318
      %p606 = pneg %p315
      %p607 = pneg %p339
      %p608 = pneg %p336
      %p609 = pneg %p360
      %p610 = pneg %p357
      %p611 = pneg %p381
      %p612 = pneg %p378
      %p613 = pneg %p402
      %p614 = pneg %p399
      %p615 = pneg %p423
      %p616 = pneg %p420
      %p617 = pneg %p444
      %p618 = pneg %p441
      %p619 = pneg %p470
      %p620 = pneg %p467
      %p621 = scmp.lt.s32.totalorder %s30, 1
      %s622 = scalar_select %p621, %s30, 1
      %s623 = smul.addr %s622, 4
      %s624 = scalar_lea.vmem %s19, %s623
      %p625 = scmp.lt.s32.totalorder %s30, 1
      %s626 = scalar_select %p625, %s30, 1
      %s627 = smul.addr %s626, 4
      %s628 = scalar_lea.vmem %s0, %s627
      %p629 = scmp.lt.s32.totalorder %s30, 1
      %s630 = scalar_select %p629, %s30, 1
      %s631 = smul.addr %s630, 4
      %s632 = scalar_lea.vmem %s1, %s631
      %p633 = scmp.lt.s32.totalorder %s30, 1
      %s634 = scalar_select %p633, %s30, 1
      %s635 = scalar_lea.vmem %s2, %s634
      %p636 = scmp.lt.s32.totalorder %s30, 1
      %s637 = scalar_select %p636, %s30, 1
      %s638 = scalar_lea.vmem %s3, %s637
      %p639 = scmp.lt.s32.totalorder %s30, 1
      %s640 = scalar_select %p639, %s30, 1
      %s641 = smul.addr %s640, 4
      %s642 = scalar_lea.vmem %s19, %s641
      %v644 = vld [vmem:[%s628] sm:$0xf]
      %v645 = vld [vmem:[%s632] sm:$0xf]
      %v646 = vld [vmem:[%s635] sm:$0x1]
      %v647 = vld [vmem:[%s638] sm:$0x1]
      %v648 = vld [vmem:[%s4] sm:$0x3f]
      %vm649 = vcmask 257024
      %v650 = vsel %vm649, %v644, 0.0
      %651 = vadd.xlane.f32.xlu0 %v650
      %v652 = vpop.xlane.xlu0 %651
      %v653 = vrcp.pop 32.0
      %v654 = vmul.f32 %v652, %v653
      %v655 = vsub.f32 %v644, %v654
      %v656 = vmul.f32 %v655, %v655
      %v657 = vsel %vm649, %v656, 0.0
      %658 = vadd.xlane.f32.xlu0 %v657
      %v659 = vpop.xlane.xlu0 %658
      %v660 = vmul.f32 %v659, %v653
      %v661 = vadd.f32 %v660, 1e-05
      %v662 = vrsqrt.pop %v661
      %v663 = vmul.f32 %v655, %v662
      %v664 = vlaneseq
      %v665 = vshrl.u32 %v664, 7
      %v666 = vsub.s32 0, %v665
      %v667 = vrot.slane %v648, %v666
      %v668 = vmul.f32 %v663, %v667
      %v669 = vlaneseq
      %v670 = vshrl.u32 %v669, 7
      %v671 = vsub.s32 1, %v670
      %v672 = vrot.slane %v648, %v671
      %v673 = vadd.f32 %v668, %v672
      %v674 = vpack.c.bf16 %v673, %v673
      %v675 = vld [vmem:[%s5] sm:$0xf]
      %v676 = vld [vmem:[%s5 + $0x4] sm:$0xf]
      %v677 = vld [vmem:[%s5 + $0x8] sm:$0xf]
      %v678 = vld [vmem:[%s5 + $0xc] sm:$0xf]
      %v679 = vld [vmem:[%s6] sm:$0x1]
      %v681 = vlaneseq
      %v682 = vshrl.u32 %v681, 7
      %v683 = vsub.s32 0, %v682
      %v684 = vrot.slane %v679, %v683
      %v690 = vunpack.c.l.b16 %v675
      %v691 = vunpack.c.l.b16 %v676
      %v692 = vunpack.c.l.b16 %v677
      %v693 = vunpack.c.l.b16 %v678
      %v694 = vpack.c.b16 %v691, %v690
      %v695 = vpack.c.b16 %v693, %v692
      %vm698 = vcmask 261120
      %v700 = vsel %vm698, %v674, 0
      %702 = vmatprep.subr.bf16.mxu0 0
      %703 = vmatpush1.bf16.msra.mxu0 %v694
      %704 = vmatprep.subr.bf16.mxu0 0
      %705 = vmatpush1.bf16.msra.mxu0 %v695
      %706 = vmatprep.subr.bf16.mxu0 0
      %707 = vmatpush1.bf16.msra.mxu0 0
      %708 = vmatprep.subr.bf16.mxu0 0
      %709 = vmatpush1.bf16.msra.mxu0 0
      %710 = vmatprep.subr.bf16.mxu0 0
      %711 = vmatpush1.bf16.msra.mxu0 0
      %712 = vmatprep.subr.bf16.mxu0 0
      %713 = vmatpush1.bf16.msra.mxu0 0
      %714 = vmatprep.subr.bf16.mxu0 0
      %715 = vmatpush1.bf16.msra.mxu0 0
      %716 = vmatprep.subr.bf16.mxu0 0
      %717 = vmatpush1.bf16.msra.mxu0 0
      %718 = vmatprep.subr.bf16.mxu0 0
      %719 = vmatpush1.bf16.msra.mxu0 0
      %720 = vmatprep.subr.bf16.mxu0 0
      %721 = vmatpush1.bf16.msra.mxu0 0
      %722 = vmatprep.subr.bf16.mxu0 0
      %723 = vmatpush1.bf16.msra.mxu0 0
      %724 = vmatprep.subr.bf16.mxu0 0
      %725 = vmatpush1.bf16.msra.mxu0 0
      %726 = vmatprep.subr.bf16.mxu0 0
      %727 = vmatpush1.bf16.msra.mxu0 0
      %728 = vmatprep.subr.bf16.mxu0 0
      %729 = vmatpush1.bf16.msra.mxu0 0
      %730 = vmatprep.subr.bf16.mxu0 0
      %731 = vmatpush1.bf16.msra.mxu0 0
      %732 = vmatprep.subr.bf16.mxu0 0
      %733 = vmatpush1.bf16.msra.mxu0 0
      %734 = vmatprep.mubr.bf16.mxu0 0
      %735 = vmatmul.mubr.bf16.gmra.mrb[0].mxu0 %v700
      %v736 = vpop.f32.mrb[0].mxu0
      %v737 = vadd.f32 %v684, %v736
      %v738 = vpop.f32.mrb[0].mxu0
      %v739 = vpop.f32.mrb[0].mxu0
      %v740 = vpop.f32.mrb[0].mxu0
      %741 = vdwg.mxu0
      %v742 = vpack.c.bf16 %v737, %v737
      %744 = vrot.lane.b32.xlu0 %v742, 96
      %v745 = vpop.permute.xlu0 %744
      %vm746 = vcmask 64512
      %v748 = vsel %vm746, %v742, 0
      %v751 = vsel %vm746, %v745, 0
      %753 = vmatprep.subr.bf16.mxu0 0
      %754 = vmatpush1.bf16.xpose.msra.mxu0 %v751
      %755 = vmatprep.subr.bf16.mxu0 0
      %756 = vmatpush1.bf16.xpose.msra.mxu0 0
      %757 = vmatprep.subr.bf16.mxu0 0
      %758 = vmatpush1.bf16.xpose.msra.mxu0 0
      %759 = vmatprep.subr.bf16.mxu0 0
      %760 = vmatpush1.bf16.xpose.msra.mxu0 0
      %761 = vmatprep.subr.bf16.mxu0 0
      %762 = vmatpush1.bf16.xpose.msra.mxu0 0
      %763 = vmatprep.subr.bf16.mxu0 0
      %764 = vmatpush1.bf16.xpose.msra.mxu0 0
      %765 = vmatprep.subr.bf16.mxu0 0
      %766 = vmatpush1.bf16.xpose.msra.mxu0 0
      %767 = vmatprep.subr.bf16.mxu0 0
      %768 = vmatpush1.bf16.xpose.msra.mxu0 0
      %769 = vmatprep.subr.bf16.mxu0 0
      %770 = vmatpush1.bf16.xpose.msra.mxu0 0
      %771 = vmatprep.subr.bf16.mxu0 0
      %772 = vmatpush1.bf16.xpose.msra.mxu0 0
      %773 = vmatprep.subr.bf16.mxu0 0
      %774 = vmatpush1.bf16.xpose.msra.mxu0 0
      %775 = vmatprep.subr.bf16.mxu0 0
      %776 = vmatpush1.bf16.xpose.msra.mxu0 0
      %777 = vmatprep.subr.bf16.mxu0 0
      %778 = vmatpush1.bf16.xpose.msra.mxu0 0
      %779 = vmatprep.subr.bf16.mxu0 0
      %780 = vmatpush1.bf16.xpose.msra.mxu0 0
      %781 = vmatprep.subr.bf16.mxu0 0
      %782 = vmatpush1.bf16.xpose.msra.mxu0 0
      %783 = vmatprep.subr.bf16.mxu0 0
      %784 = vmatpush1.bf16.xpose.msra.mxu0 0
      %785 = vmatprep.mubr.bf16.mxu0 0
      %786 = vmatmul.mubr.bf16.gmra.mrb[0].mxu0 %v748
      %v787 = vpop.f32.mrb[0].mxu0
      %v788 = vadd.f32 0.0, %v787
      %v789 = vpop.f32.mrb[0].mxu0
      %v790 = vpop.f32.mrb[0].mxu0
      %v791 = vpop.f32.mrb[0].mxu0
      %792 = vdwg.mxu0
      %v793 = vmul.f32 %v788, 0.35355338
      %v795 = vlaneseq
      %v796 = vshrl.u32 %v795, 7
      %v797 = vsub.s32 0, %v796
      %v798 = vrot.slane %v646, %v797
      %v800 = vadd.f32 %v793, %v798
      %vm801 = vcmask 27648
      %v802 = vsel %vm801, %v800, -inf
      %803 = vmax.xlane.f32.xlu0 %v802
      %v804 = vpop.xlane.xlu0 %803
      %v805 = vsub.f32 %v800, %v804
      %v806 = vmul.f32 %v805, 1.442695
      %v807 = vpow.pop %v806
      %v808 = vsel %vm801, %v807, 0.0
      %809 = vadd.xlane.f32.xlu0 %v808
      %v810 = vpop.xlane.xlu0 %809
      %v811 = vrcp.pop %v810
      %v812 = vmul.f32 %v807, %v811
      %v813 = vpack.c.bf16 %v812, %v812
      %814 = vrot.lane.b32.xlu0 %v742, 64
      %v815 = vpop.permute.xlu0 %814
      %vm816 = vcmask 31744
      %v818 = vsel %vm816, %v813, 0
      %vm820 = vcmask 1041408
      %v822 = vsel %vm820, %v815, 0
      %824 = vmatprep.subr.bf16.mxu0 0
      %825 = vmatpush1.bf16.msra.mxu0 %v822
      %826 = vmatprep.subr.bf16.mxu0 0
      %827 = vmatpush1.bf16.msra.mxu0 0
      %828 = vmatprep.subr.bf16.mxu0 0
      %829 = vmatpush1.bf16.msra.mxu0 0
      %830 = vmatprep.subr.bf16.mxu0 0
      %831 = vmatpush1.bf16.msra.mxu0 0
      %832 = vmatprep.subr.bf16.mxu0 0
      %833 = vmatpush1.bf16.msra.mxu0 0
      %834 = vmatprep.subr.bf16.mxu0 0
      %835 = vmatpush1.bf16.msra.mxu0 0
      %836 = vmatprep.subr.bf16.mxu0 0
      %837 = vmatpush1.bf16.msra.mxu0 0
      %838 = vmatprep.subr.bf16.mxu0 0
      %839 = vmatpush1.bf16.msra.mxu0 0
      %840 = vmatprep.subr.bf16.mxu0 0
      %841 = vmatpush1.bf16.msra.mxu0 0
      %842 = vmatprep.subr.bf16.mxu0 0
      %843 = vmatpush1.bf16.msra.mxu0 0
      %844 = vmatprep.subr.bf16.mxu0 0
      %845 = vmatpush1.bf16.msra.mxu0 0
      %846 = vmatprep.subr.bf16.mxu0 0
      %847 = vmatpush1.bf16.msra.mxu0 0
      %848 = vmatprep.subr.bf16.mxu0 0
      %849 = vmatpush1.bf16.msra.mxu0 0
      %850 = vmatprep.subr.bf16.mxu0 0
      %851 = vmatpush1.bf16.msra.mxu0 0
      %852 = vmatprep.subr.bf16.mxu0 0
      %853 = vmatpush1.bf16.msra.mxu0 0
      %854 = vmatprep.subr.bf16.mxu0 0
      %855 = vmatpush1.bf16.msra.mxu0 0
      %856 = vmatprep.mubr.bf16.mxu0 0
      %857 = vmatmul.mubr.bf16.gmra.mrb[0].mxu0 %v818
      %v858 = vpop.f32.mrb[0].mxu0
      %v859 = vadd.f32 0.0, %v858
      %v860 = vpop.f32.mrb[0].mxu0
      %v861 = vpop.f32.mrb[0].mxu0
      %v862 = vpop.f32.mrb[0].mxu0
      %863 = vdwg.mxu0
      %864 = vrot.lane.b32.xlu0 %v742, 120
      %v865 = vpop.permute.xlu0 %864
      %866 = vrot.lane.b32.xlu0 %v742, 88
      %v867 = vpop.permute.xlu0 %866
      %v869 = vsel %vm746, %v865, 0
      %v872 = vsel %vm746, %v867, 0
      %874 = vmatprep.subr.bf16.mxu0 0
      %875 = vmatpush1.bf16.xpose.msra.mxu0 %v872
      %876 = vmatprep.subr.bf16.mxu0 0
      %877 = vmatpush1.bf16.xpose.msra.mxu0 0
      %878 = vmatprep.subr.bf16.mxu0 0
      %879 = vmatpush1.bf16.xpose.msra.mxu0 0
      %880 = vmatprep.subr.bf16.mxu0 0
      %881 = vmatpush1.bf16.xpose.msra.mxu0 0
      %882 = vmatprep.subr.bf16.mxu0 0
      %883 = vmatpush1.bf16.xpose.msra.mxu0 0
      %884 = vmatprep.subr.bf16.mxu0 0
      %885 = vmatpush1.bf16.xpose.msra.mxu0 0
      %886 = vmatprep.subr.bf16.mxu0 0
      %887 = vmatpush1.bf16.xpose.msra.mxu0 0
      %888 = vmatprep.subr.bf16.mxu0 0
      %889 = vmatpush1.bf16.xpose.msra.mxu0 0
      %890 = vmatprep.subr.bf16.mxu0 0
      %891 = vmatpush1.bf16.xpose.msra.mxu0 0
      %892 = vmatprep.subr.bf16.mxu0 0
      %893 = vmatpush1.bf16.xpose.msra.mxu0 0
      %894 = vmatprep.subr.bf16.mxu0 0
      %895 = vmatpush1.bf16.xpose.msra.mxu0 0
      %896 = vmatprep.subr.bf16.mxu0 0
      %897 = vmatpush1.bf16.xpose.msra.mxu0 0
      %898 = vmatprep.subr.bf16.mxu0 0
      %899 = vmatpush1.bf16.xpose.msra.mxu0 0
      %900 = vmatprep.subr.bf16.mxu0 0
      %901 = vmatpush1.bf16.xpose.msra.mxu0 0
      %902 = vmatprep.subr.bf16.mxu0 0
      %903 = vmatpush1.bf16.xpose.msra.mxu0 0
      %904 = vmatprep.subr.bf16.mxu0 0
      %905 = vmatpush1.bf16.xpose.msra.mxu0 0
      %906 = vmatprep.mubr.bf16.mxu0 0
      %907 = vmatmul.mubr.bf16.gmra.mrb[0].mxu0 %v869
      %v908 = vpop.f32.mrb[0].mxu0
      %v909 = vadd.f32 0.0, %v908
      %v910 = vpop.f32.mrb[0].mxu0
      %v911 = vpop.f32.mrb[0].mxu0
      %v912 = vpop.f32.mrb[0].mxu0
      %913 = vdwg.mxu0
      %v914 = vmul.f32 %v909, 0.35355338
      %v915 = vadd.f32 %v914, %v798
      %v916 = vsel %vm801, %v915, -inf
      %917 = vmax.xlane.f32.xlu0 %v916
      %v918 = vpop.xlane.xlu0 %917
      %v919 = vsub.f32 %v915, %v918
      %v920 = vmul.f32 %v919, 1.442695
      %v921 = vpow.pop %v920
      %v922 = vsel %vm801, %v921, 0.0
      %923 = vadd.xlane.f32.xlu0 %v922
      %v924 = vpop.xlane.xlu0 %923
      %v925 = vrcp.pop %v924
      %v926 = vmul.f32 %v921, %v925
      %v927 = vpack.c.bf16 %v926, %v926
      %928 = vrot.lane.b32.xlu0 %v742, 56
      %v929 = vpop.permute.xlu0 %928
      %v931 = vsel %vm816, %v927, 0
      %v934 = vsel %vm820, %v929, 0
      %936 = vmatprep.subr.bf16.mxu0 0
      %937 = vmatpush1.bf16.msra.mxu0 %v934
      %938 = vmatprep.subr.bf16.mxu0 0
      %939 = vmatpush1.bf16.msra.mxu0 0
      %940 = vmatprep.subr.bf16.mxu0 0
      %941 = vmatpush1.bf16.msra.mxu0 0
      %942 = vmatprep.subr.bf16.mxu0 0
      %943 = vmatpush1.bf16.msra.mxu0 0
      %944 = vmatprep.subr.bf16.mxu0 0
      %945 = vmatpush1.bf16.msra.mxu0 0
      %946 = vmatprep.subr.bf16.mxu0 0
      %947 = vmatpush1.bf16.msra.mxu0 0
      %948 = vmatprep.subr.bf16.mxu0 0
      %949 = vmatpush1.bf16.msra.mxu0 0
      %950 = vmatprep.subr.bf16.mxu0 0
      %951 = vmatpush1.bf16.msra.mxu0 0
      %952 = vmatprep.subr.bf16.mxu0 0
      %953 = vmatpush1.bf16.msra.mxu0 0
      %954 = vmatprep.subr.bf16.mxu0 0
      %955 = vmatpush1.bf16.msra.mxu0 0
      %956 = vmatprep.subr.bf16.mxu0 0
      %957 = vmatpush1.bf16.msra.mxu0 0
      %958 = vmatprep.subr.bf16.mxu0 0
      %959 = vmatpush1.bf16.msra.mxu0 0
      %960 = vmatprep.subr.bf16.mxu0 0
      %961 = vmatpush1.bf16.msra.mxu0 0
      %962 = vmatprep.subr.bf16.mxu0 0
      %963 = vmatpush1.bf16.msra.mxu0 0
      %964 = vmatprep.subr.bf16.mxu0 0
      %965 = vmatpush1.bf16.msra.mxu0 0
      %966 = vmatprep.subr.bf16.mxu0 0
      %967 = vmatpush1.bf16.msra.mxu0 0
      %968 = vmatprep.mubr.bf16.mxu0 0
      %969 = vmatmul.mubr.bf16.gmra.mrb[0].mxu0 %v931
      %v970 = vpop.f32.mrb[0].mxu0
      %v971 = vadd.f32 0.0, %v970
      %v972 = vpop.f32.mrb[0].mxu0
      %v973 = vpop.f32.mrb[0].mxu0
      %v974 = vpop.f32.mrb[0].mxu0
      %975 = vdwg.mxu0
      %976 = vrot.lane.b32.xlu0 %v742, 112
      %v977 = vpop.permute.xlu0 %976
      %978 = vrot.lane.b32.xlu0 %v742, 80
      %v979 = vpop.permute.xlu0 %978
      %v981 = vsel %vm746, %v977, 0
      %v984 = vsel %vm746, %v979, 0
      %986 = vmatprep.subr.bf16.mxu0 0
      %987 = vmatpush1.bf16.xpose.msra.mxu0 %v984
      %988 = vmatprep.subr.bf16.mxu0 0
      %989 = vmatpush1.bf16.xpose.msra.mxu0 0
      %990 = vmatprep.subr.bf16.mxu0 0
      %991 = vmatpush1.bf16.xpose.msra.mxu0 0
      %992 = vmatprep.subr.bf16.mxu0 0
      %993 = vmatpush1.bf16.xpose.msra.mxu0 0
      %994 = vmatprep.subr.bf16.mxu0 0
      %995 = vmatpush1.bf16.xpose.msra.mxu0 0
      %996 = vmatprep.subr.bf16.mxu0 0
      %997 = vmatpush1.bf16.xpose.msra.mxu0 0
      %998 = vmatprep.subr.bf16.mxu0 0
      %999 = vmatpush1.bf16.xpose.msra.mxu0 0
      %1000 = vmatprep.subr.bf16.mxu0 0
      %1001 = vmatpush1.bf16.xpose.msra.mxu0 0
      %1002 = vmatprep.subr.bf16.mxu0 0
      %1003 = vmatpush1.bf16.xpose.msra.mxu0 0
      %1004 = vmatprep.subr.bf16.mxu0 0
      %1005 = vmatpush1.bf16.xpose.msra.mxu0 0
      %1006 = vmatprep.subr.bf16.mxu0 0
      %1007 = vmatpush1.bf16.xpose.msra.mxu0 0
      %1008 = vmatprep.subr.bf16.mxu0 0
      %1009 = vmatpush1.bf16.xpose.msra.mxu0 0
      %1010 = vmatprep.subr.bf16.mxu0 0
      %1011 = vmatpush1.bf16.xpose.msra.mxu0 0
      %1012 = vmatprep.subr.bf16.mxu0 0
      %1013 = vmatpush1.bf16.xpose.msra.mxu0 0
      %1014 = vmatprep.subr.bf16.mxu0 0
      %1015 = vmatpush1.bf16.xpose.msra.mxu0 0
      %1016 = vmatprep.subr.bf16.mxu0 0
      %1017 = vmatpush1.bf16.xpose.msra.mxu0 0
      %1018 = vmatprep.mubr.bf16.mxu0 0
      %1019 = vmatmul.mubr.bf16.gmra.mrb[0].mxu0 %v981
      %v1020 = vpop.f32.mrb[0].mxu0
      %v1021 = vadd.f32 0.0, %v1020
      %v1022 = vpop.f32.mrb[0].mxu0
      %v1023 = vpop.f32.mrb[0].mxu0
      %v1024 = vpop.f32.mrb[0].mxu0
      %1025 = vdwg.mxu0
      %v1026 = vmul.f32 %v1021, 0.35355338
      %v1027 = vadd.f32 %v1026, %v798
      %v1028 = vsel %vm801, %v1027, -inf
      %1029 = vmax.xlane.f32.xlu0 %v1028
      %v1030 = vpop.xlane.xlu0 %1029
      %v1031 = vsub.f32 %v1027, %v1030
      %v1032 = vmul.f32 %v1031, 1.442695
      %v1033 = vpow.pop %v1032
      %v1034 = vsel %vm801, %v1033, 0.0
      %1035 = vadd.xlane.f32.xlu0 %v1034
      %v1036 = vpop.xlane.xlu0 %1035
      %v1037 = vrcp.pop %v1036
      %v1038 = vmul.f32 %v1033, %v1037
      %v1039 = vpack.c.bf16 %v1038, %v1038
      %1040 = vrot.lane.b32.xlu0 %v742, 48
      %v1041 = vpop.permute.xlu0 %1040
      %v1043 = vsel %vm816, %v1039, 0
      %v1046 = vsel %vm820, %v1041, 0
      %1048 = vmatprep.subr.bf16.mxu0 0
      %1049 = vmatpush1.bf16.msra.mxu0 %v1046
      %1050 = vmatprep.subr.bf16.mxu0 0
      %1051 = vmatpush1.bf16.msra.mxu0 0
      %1052 = vmatprep.subr.bf16.mxu0 0
      %1053 = vmatpush1.bf16.msra.mxu0 0
      %1054 = vmatprep.subr.bf16.mxu0 0
      %1055 = vmatpush1.bf16.msra.mxu0 0
      %1056 = vmatprep.subr.bf16.mxu0 0
      %1057 = vmatpush1.bf16.msra.mxu0 0
      %1058 = vmatprep.subr.bf16.mxu0 0
      %1059 = vmatpush1.bf16.msra.mxu0 0
      %1060 = vmatprep.subr.bf16.mxu0 0
      %1061 = vmatpush1.bf16.msra.mxu0 0
      %1062 = vmatprep.subr.bf16.mxu0 0
      %1063 = vmatpush1.bf16.msra.mxu0 0
      %1064 = vmatprep.subr.bf16.mxu0 0
      %1065 = vmatpush1.bf16.msra.mxu0 0
      %1066 = vmatprep.subr.bf16.mxu0 0
      %1067 = vmatpush1.bf16.msra.mxu0 0
      %1068 = vmatprep.subr.bf16.mxu0 0
      %1069 = vmatpush1.bf16.msra.mxu0 0
      %1070 = vmatprep.subr.bf16.mxu0 0
      %1071 = vmatpush1.bf16.msra.mxu0 0
      %1072 = vmatprep.subr.bf16.mxu0 0
      %1073 = vmatpush1.bf16.msra.mxu0 0
      %1074 = vmatprep.subr.bf16.mxu0 0
      %1075 = vmatpush1.bf16.msra.mxu0 0
      %1076 = vmatprep.subr.bf16.mxu0 0
      %1077 = vmatpush1.bf16.msra.mxu0 0
      %1078 = vmatprep.subr.bf16.mxu0 0
      %1079 = vmatpush1.bf16.msra.mxu0 0
      %1080 = vmatprep.mubr.bf16.mxu0 0
      %1081 = vmatmul.mubr.bf16.gmra.mrb[0].mxu0 %v1043
      %v1082 = vpop.f32.mrb[0].mxu0
      %v1083 = vadd.f32 0.0, %v1082
      %v1084 = vpop.f32.mrb[0].mxu0
      %v1085 = vpop.f32.mrb[0].mxu0
      %v1086 = vpop.f32.mrb[0].mxu0
      %1087 = vdwg.mxu0
      %1088 = vrot.lane.b32.xlu0 %v742, 104
      %v1089 = vpop.permute.xlu0 %1088
      %1090 = vrot.lane.b32.xlu0 %v742, 72
      %v1091 = vpop.permute.xlu0 %1090
      %v1093 = vsel %vm746, %v1089, 0
      %v1096 = vsel %vm746, %v1091, 0
      %1098 = vmatprep.subr.bf16.mxu0 0
      %1099 = vmatpush1.bf16.xpose.msra.mxu0 %v1096
      %1100 = vmatprep.subr.bf16.mxu0 0
      %1101 = vmatpush1.bf16.xpose.msra.mxu0 0
      %1102 = vmatprep.subr.bf16.mxu0 0
      %1103 = vmatpush1.bf16.xpose.msra.mxu0 0
      %1104 = vmatprep.subr.bf16.mxu0 0
      %1105 = vmatpush1.bf16.xpose.msra.mxu0 0
      %1106 = vmatprep.subr.bf16.mxu0 0
      %1107 = vmatpush1.bf16.xpose.msra.mxu0 0
      %1108 = vmatprep.subr.bf16.mxu0 0
      %1109 = vmatpush1.bf16.xpose.msra.mxu0 0
      %1110 = vmatprep.subr.bf16.mxu0 0
      %1111 = vmatpush1.bf16.xpose.msra.mxu0 0
      %1112 = vmatprep.subr.bf16.mxu0 0
      %1113 = vmatpush1.bf16.xpose.msra.mxu0 0
      %1114 = vmatprep.subr.bf16.mxu0 0
      %1115 = vmatpush1.bf16.xpose.msra.mxu0 0
      %1116 = vmatprep.subr.bf16.mxu0 0
      %1117 = vmatpush1.bf16.xpose.msra.mxu0 0
      %1118 = vmatprep.subr.bf16.mxu0 0
      %1119 = vmatpush1.bf16.xpose.msra.mxu0 0
      %1120 = vmatprep.subr.bf16.mxu0 0
      %1121 = vmatpush1.bf16.xpose.msra.mxu0 0
      %1122 = vmatprep.subr.bf16.mxu0 0
      %1123 = vmatpush1.bf16.xpose.msra.mxu0 0
      %1124 = vmatprep.subr.bf16.mxu0 0
      %1125 = vmatpush1.bf16.xpose.msra.mxu0 0
      %1126 = vmatprep.subr.bf16.mxu0 0
      %1127 = vmatpush1.bf16.xpose.msra.mxu0 0
      %1128 = vmatprep.subr.bf16.mxu0 0
      %1129 = vmatpush1.bf16.xpose.msra.mxu0 0
      %1130 = vmatprep.mubr.bf16.mxu0 0
      %1131 = vmatmul.mubr.bf16.gmra.mrb[0].mxu0 %v1093
      %v1132 = vpop.f32.mrb[0].mxu0
      %v1133 = vadd.f32 0.0, %v1132
      %v1134 = vpop.f32.mrb[0].mxu0
      %v1135 = vpop.f32.mrb[0].mxu0
      %v1136 = vpop.f32.mrb[0].mxu0
      %1137 = vdwg.mxu0
      %v1138 = vmul.f32 %v1133, 0.35355338
      %v1139 = vadd.f32 %v1138, %v798
      %v1140 = vsel %vm801, %v1139, -inf
      %1141 = vmax.xlane.f32.xlu0 %v1140
      %v1142 = vpop.xlane.xlu0 %1141
      %v1143 = vsub.f32 %v1139, %v1142
      %v1144 = vmul.f32 %v1143, 1.442695
      %v1145 = vpow.pop %v1144
      %v1146 = vsel %vm801, %v1145, 0.0
      %1147 = vadd.xlane.f32.xlu0 %v1146
      %v1148 = vpop.xlane.xlu0 %1147
      %v1149 = vrcp.pop %v1148
      %v1150 = vmul.f32 %v1145, %v1149
      %v1151 = vpack.c.bf16 %v1150, %v1150
      %1152 = vrot.lane.b32.xlu0 %v742, 40
      %v1153 = vpop.permute.xlu0 %1152
      %v1155 = vsel %vm816, %v1151, 0
      %v1158 = vsel %vm820, %v1153, 0
      %1160 = vmatprep.subr.bf16.mxu0 0
      %1161 = vmatpush1.bf16.msra.mxu0 %v1158
      %1162 = vmatprep.subr.bf16.mxu0 0
      %1163 = vmatpush1.bf16.msra.mxu0 0
      %1164 = vmatprep.subr.bf16.mxu0 0
      %1165 = vmatpush1.bf16.msra.mxu0 0
      %1166 = vmatprep.subr.bf16.mxu0 0
      %1167 = vmatpush1.bf16.msra.mxu0 0
      %1168 = vmatprep.subr.bf16.mxu0 0
      %1169 = vmatpush1.bf16.msra.mxu0 0
      %1170 = vmatprep.subr.bf16.mxu0 0
      %1171 = vmatpush1.bf16.msra.mxu0 0
      %1172 = vmatprep.subr.bf16.mxu0 0
      %1173 = vmatpush1.bf16.msra.mxu0 0
      %1174 = vmatprep.subr.bf16.mxu0 0
      %1175 = vmatpush1.bf16.msra.mxu0 0
      %1176 = vmatprep.subr.bf16.mxu0 0
      %1177 = vmatpush1.bf16.msra.mxu0 0
      %1178 = vmatprep.subr.bf16.mxu0 0
      %1179 = vmatpush1.bf16.msra.mxu0 0
      %1180 = vmatprep.subr.bf16.mxu0 0
      %1181 = vmatpush1.bf16.msra.mxu0 0
      %1182 = vmatprep.subr.bf16.mxu0 0
      %1183 = vmatpush1.bf16.msra.mxu0 0
      %1184 = vmatprep.subr.bf16.mxu0 0
      %1185 = vmatpush1.bf16.msra.mxu0 0
      %1186 = vmatprep.subr.bf16.mxu0 0
      %1187 = vmatpush1.bf16.msra.mxu0 0
      %1188 = vmatprep.subr.bf16.mxu0 0
      %1189 = vmatpush1.bf16.msra.mxu0 0
      %1190 = vmatprep.subr.bf16.mxu0 0
      %1191 = vmatpush1.bf16.msra.mxu0 0
      %1192 = vmatprep.mubr.bf16.mxu0 0
      %1193 = vmatmul.mubr.bf16.gmra.mrb[0].mxu0 %v1155
      %v1194 = vpop.f32.mrb[0].mxu0
      %v1195 = vadd.f32 0.0, %v1194
      %v1196 = vpop.f32.mrb[0].mxu0
      %v1197 = vpop.f32.mrb[0].mxu0
      %v1198 = vpop.f32.mrb[0].mxu0
      %1199 = vdwg.mxu0
      %1201 = vrot.lane.b32.xlu0 %v971, 8
      %v1202 = vpop.permute.xlu0 %1201
      %1205 = vrot.lane.b32.xlu0 %v1083, 16
      %v1206 = vpop.permute.xlu0 %1205
      %1209 = vrot.lane.b32.xlu0 %v1195, 24
      %v1210 = vpop.permute.xlu0 %1209
      %v1212 = vsel %vm746, %v859, %v1202
      %vm1213 = vcmask 130048
      %v1214 = vsel %vm1213, %v1212, %v1206
      %vm1215 = vcmask 195584
      %v1216 = vsel %vm1215, %v1214, %v1210
      %v1217 = vpack.c.bf16 %v1216, %v1216
      %v1218 = vld [vmem:[%s7] sm:$0xf]
      %v1219 = vld [vmem:[%s7 + $0x4] sm:$0xf]
      %v1220 = vld [vmem:[%s7 + $0x8] sm:$0xf]
      %v1221 = vld [vmem:[%s7 + $0xc] sm:$0xf]
      %v1222 = vld [vmem:[%s8] sm:$0x1]
      %v1224 = vlaneseq
      %v1225 = vshrl.u32 %v1224, 7
      %v1226 = vsub.s32 0, %v1225
      %v1227 = vrot.slane %v1222, %v1226
      %v1233 = vunpack.c.l.b16 %v1218
      %v1234 = vunpack.c.l.b16 %v1219
      %v1235 = vunpack.c.l.b16 %v1220
      %v1236 = vunpack.c.l.b16 %v1221
      %v1237 = vpack.c.b16 %v1234, %v1233
      %v1238 = vpack.c.b16 %v1236, %v1235
      %v1242 = vsel %vm698, %v1217, 0
      %1244 = vmatprep.subr.bf16.mxu0 0
      %1245 = vmatpush1.bf16.msra.mxu0 %v1237
      %1246 = vmatprep.subr.bf16.mxu0 0
      %1247 = vmatpush1.bf16.msra.mxu0 %v1238
      %1248 = vmatprep.subr.bf16.mxu0 0
      %1249 = vmatpush1.bf16.msra.mxu0 0
      %1250 = vmatprep.subr.bf16.mxu0 0
      %1251 = vmatpush1.bf16.msra.mxu0 0
      %1252 = vmatprep.subr.bf16.mxu0 0
      %1253 = vmatpush1.bf16.msra.mxu0 0
      %1254 = vmatprep.subr.bf16.mxu0 0
      %1255 = vmatpush1.bf16.msra.mxu0 0
      %1256 = vmatprep.subr.bf16.mxu0 0
      %1257 = vmatpush1.bf16.msra.mxu0 0
      %1258 = vmatprep.subr.bf16.mxu0 0
      %1259 = vmatpush1.bf16.msra.mxu0 0
      %1260 = vmatprep.subr.bf16.mxu0 0
      %1261 = vmatpush1.bf16.msra.mxu0 0
      %1262 = vmatprep.subr.bf16.mxu0 0
      %1263 = vmatpush1.bf16.msra.mxu0 0
      %1264 = vmatprep.subr.bf16.mxu0 0
      %1265 = vmatpush1.bf16.msra.mxu0 0
      %1266 = vmatprep.subr.bf16.mxu0 0
      %1267 = vmatpush1.bf16.msra.mxu0 0
      %1268 = vmatprep.subr.bf16.mxu0 0
      %1269 = vmatpush1.bf16.msra.mxu0 0
      %1270 = vmatprep.subr.bf16.mxu0 0
      %1271 = vmatpush1.bf16.msra.mxu0 0
      %1272 = vmatprep.subr.bf16.mxu0 0
      %1273 = vmatpush1.bf16.msra.mxu0 0
      %1274 = vmatprep.subr.bf16.mxu0 0
      %1275 = vmatpush1.bf16.msra.mxu0 0
      %1276 = vmatprep.mubr.bf16.mxu0 0
      %1277 = vmatmul.mubr.bf16.gmra.mrb[0].mxu0 %v1242
      %v1278 = vpop.f32.mrb[0].mxu0
      %v1279 = vadd.f32 %v1227, %v1278
      %v1280 = vpop.f32.mrb[0].mxu0
      %v1281 = vpop.f32.mrb[0].mxu0
      %v1282 = vpop.f32.mrb[0].mxu0
      %1283 = vdwg.mxu0
      %v1284 = vadd.f32 %v644, %v1279
      %v1285 = vsel %vm649, %v1284, 0.0
      %1286 = vadd.xlane.f32.xlu0 %v1285
      %v1287 = vpop.xlane.xlu0 %1286
      %v1288 = vmul.f32 %v1287, %v653
      %v1289 = vsub.f32 %v1284, %v1288
      %v1290 = vmul.f32 %v1289, %v1289
      %v1291 = vsel %vm649, %v1290, 0.0
      %1292 = vadd.xlane.f32.xlu0 %v1291
      %v1293 = vpop.xlane.xlu0 %1292
      %v1294 = vmul.f32 %v1293, %v653
      %v1295 = vadd.f32 %v1294, 1e-05
      %v1296 = vrsqrt.pop %v1295
      %v1297 = vmul.f32 %v1289, %v1296
      %v1298 = vlaneseq
      %v1299 = vshrl.u32 %v1298, 7
      %v1300 = vsub.s32 2, %v1299
      %v1301 = vrot.slane %v648, %v1300
      %v1302 = vmul.f32 %v1297, %v1301
      %v1303 = vlaneseq
      %v1304 = vshrl.u32 %v1303, 7
      %v1305 = vsub.s32 3, %v1304
      %v1306 = vrot.slane %v648, %v1305
      %v1307 = vadd.f32 %v1302, %v1306
      %v1308 = vpack.c.bf16 %v1307, %v1307
      %v1309 = vld [vmem:[%s9] sm:$0xf]
      %v1310 = vld [vmem:[%s9 + $0x4] sm:$0xf]
      %v1311 = vld [vmem:[%s9 + $0x8] sm:$0xf]
      %v1312 = vld [vmem:[%s9 + $0xc] sm:$0xf]
      %v1313 = vld [vmem:[%s10] sm:$0x1]
      %v1315 = vlaneseq
      %v1316 = vshrl.u32 %v1315, 7
      %v1317 = vsub.s32 0, %v1316
      %v1318 = vrot.slane %v1313, %v1317
      %v1324 = vunpack.c.l.b16 %v1309
      %v1325 = vunpack.c.l.b16 %v1310
      %v1326 = vunpack.c.l.b16 %v1311
      %v1327 = vunpack.c.l.b16 %v1312
      %v1328 = vpack.c.b16 %v1325, %v1324
      %v1329 = vpack.c.b16 %v1327, %v1326
      %v1333 = vsel %vm698, %v1308, 0
      %1335 = vmatprep.subr.bf16.mxu0 0
      %1336 = vmatpush1.bf16.msra.mxu0 %v1328
      %1337 = vmatprep.subr.bf16.mxu0 0
      %1338 = vmatpush1.bf16.msra.mxu0 %v1329
      %1339 = vmatprep.subr.bf16.mxu0 0
      %1340 = vmatpush1.bf16.msra.mxu0 0
      %1341 = vmatprep.subr.bf16.mxu0 0
      %1342 = vmatpush1.bf16.msra.mxu0 0
      %1343 = vmatprep.subr.bf16.mxu0 0
      %1344 = vmatpush1.bf16.msra.mxu0 0
      %1345 = vmatprep.subr.bf16.mxu0 0
      %1346 = vmatpush1.bf16.msra.mxu0 0
      %1347 = vmatprep.subr.bf16.mxu0 0
      %1348 = vmatpush1.bf16.msra.mxu0 0
      %1349 = vmatprep.subr.bf16.mxu0 0
      %1350 = vmatpush1.bf16.msra.mxu0 0
      %1351 = vmatprep.subr.bf16.mxu0 0
      %1352 = vmatpush1.bf16.msra.mxu0 0
      %1353 = vmatprep.subr.bf16.mxu0 0
      %1354 = vmatpush1.bf16.msra.mxu0 0
      %1355 = vmatprep.subr.bf16.mxu0 0
      %1356 = vmatpush1.bf16.msra.mxu0 0
      %1357 = vmatprep.subr.bf16.mxu0 0
      %1358 = vmatpush1.bf16.msra.mxu0 0
      %1359 = vmatprep.subr.bf16.mxu0 0
      %1360 = vmatpush1.bf16.msra.mxu0 0
      %1361 = vmatprep.subr.bf16.mxu0 0
      %1362 = vmatpush1.bf16.msra.mxu0 0
      %1363 = vmatprep.subr.bf16.mxu0 0
      %1364 = vmatpush1.bf16.msra.mxu0 0
      %1365 = vmatprep.subr.bf16.mxu0 0
      %1366 = vmatpush1.bf16.msra.mxu0 0
      %1367 = vmatprep.mubr.bf16.mxu0 0
      %1368 = vmatmul.mubr.bf16.gmra.mrb[0].mxu0 %v1333
      %v1369 = vpop.f32.mrb[0].mxu0
      %v1370 = vadd.f32 %v1318, %v1369
      %v1371 = vpop.f32.mrb[0].mxu0
      %v1372 = vpop.f32.mrb[0].mxu0
      %v1373 = vpop.f32.mrb[0].mxu0
      %1374 = vdwg.mxu0
      %v1375 = vpack.c.bf16 %v645, %v645
      %v1376 = vld [vmem:[%s11] sm:$0xf]
      %v1377 = vld [vmem:[%s11 + $0x4] sm:$0xf]
      %v1378 = vld [vmem:[%s11 + $0x8] sm:$0xf]
      %v1379 = vld [vmem:[%s11 + $0xc] sm:$0xf]
      %v1380 = vld [vmem:[%s12] sm:$0x1]
      %v1382 = vlaneseq
      %v1383 = vshrl.u32 %v1382, 7
      %v1384 = vsub.s32 0, %v1383
      %v1385 = vrot.slane %v1380, %v1384
      %v1391 = vunpack.c.l.b16 %v1376
      %v1392 = vunpack.c.l.b16 %v1377
      %v1393 = vunpack.c.l.b16 %v1378
      %v1394 = vunpack.c.l.b16 %v1379
      %v1395 = vpack.c.b16 %v1392, %v1391
      %v1396 = vpack.c.b16 %v1394, %v1393
      %v1400 = vsel %vm698, %v1375, 0
      %1402 = vmatprep.subr.bf16.mxu0 0
      %1403 = vmatpush1.bf16.msra.mxu0 %v1395
      %1404 = vmatprep.subr.bf16.mxu0 0
      %1405 = vmatpush1.bf16.msra.mxu0 %v1396
      %1406 = vmatprep.subr.bf16.mxu0 0
      %1407 = vmatpush1.bf16.msra.mxu0 0
      %1408 = vmatprep.subr.bf16.mxu0 0
      %1409 = vmatpush1.bf16.msra.mxu0 0
      %1410 = vmatprep.subr.bf16.mxu0 0
      %1411 = vmatpush1.bf16.msra.mxu0 0
      %1412 = vmatprep.subr.bf16.mxu0 0
      %1413 = vmatpush1.bf16.msra.mxu0 0
      %1414 = vmatprep.subr.bf16.mxu0 0
      %1415 = vmatpush1.bf16.msra.mxu0 0
      %1416 = vmatprep.subr.bf16.mxu0 0
      %1417 = vmatpush1.bf16.msra.mxu0 0
      %1418 = vmatprep.subr.bf16.mxu0 0
      %1419 = vmatpush1.bf16.msra.mxu0 0
      %1420 = vmatprep.subr.bf16.mxu0 0
      %1421 = vmatpush1.bf16.msra.mxu0 0
      %1422 = vmatprep.subr.bf16.mxu0 0
      %1423 = vmatpush1.bf16.msra.mxu0 0
      %1424 = vmatprep.subr.bf16.mxu0 0
      %1425 = vmatpush1.bf16.msra.mxu0 0
      %1426 = vmatprep.subr.bf16.mxu0 0
      %1427 = vmatpush1.bf16.msra.mxu0 0
      %1428 = vmatprep.subr.bf16.mxu0 0
      %1429 = vmatpush1.bf16.msra.mxu0 0
      %1430 = vmatprep.subr.bf16.mxu0 0
      %1431 = vmatpush1.bf16.msra.mxu0 0
      %1432 = vmatprep.subr.bf16.mxu0 0
      %1433 = vmatpush1.bf16.msra.mxu0 0
      %1434 = vmatprep.mubr.bf16.mxu0 0
      %1435 = vmatmul.mubr.bf16.gmra.mrb[0].mxu0 %v1400
      %v1436 = vpop.f32.mrb[0].mxu0
      %v1437 = vadd.f32 %v1385, %v1436
      %v1438 = vpop.f32.mrb[0].mxu0
      %v1439 = vpop.f32.mrb[0].mxu0
      %v1440 = vpop.f32.mrb[0].mxu0
      %1441 = vdwg.mxu0
      %v1442 = vpack.c.bf16 %v1370, %v1370
      %v1443 = vpack.c.bf16 %v1437, %v1437
      %v1445 = vsel %vm746, %v1442, 0
      %v1448 = vsel %vm746, %v1443, 0
      %1450 = vmatprep.subr.bf16.mxu0 0
      %1451 = vmatpush1.bf16.xpose.msra.mxu0 %v1448
      %1452 = vmatprep.subr.bf16.mxu0 0
      %1453 = vmatpush1.bf16.xpose.msra.mxu0 0
      %1454 = vmatprep.subr.bf16.mxu0 0
      %1455 = vmatpush1.bf16.xpose.msra.mxu0 0
      %1456 = vmatprep.subr.bf16.mxu0 0
      %1457 = vmatpush1.bf16.xpose.msra.mxu0 0
      %1458 = vmatprep.subr.bf16.mxu0 0
      %1459 = vmatpush1.bf16.xpose.msra.mxu0 0
      %1460 = vmatprep.subr.bf16.mxu0 0
      %1461 = vmatpush1.bf16.xpose.msra.mxu0 0
      %1462 = vmatprep.subr.bf16.mxu0 0
      %1463 = vmatpush1.bf16.xpose.msra.mxu0 0
      %1464 = vmatprep.subr.bf16.mxu0 0
      %1465 = vmatpush1.bf16.xpose.msra.mxu0 0
      %1466 = vmatprep.subr.bf16.mxu0 0
      %1467 = vmatpush1.bf16.xpose.msra.mxu0 0
      %1468 = vmatprep.subr.bf16.mxu0 0
      %1469 = vmatpush1.bf16.xpose.msra.mxu0 0
      %1470 = vmatprep.subr.bf16.mxu0 0
      %1471 = vmatpush1.bf16.xpose.msra.mxu0 0
      %1472 = vmatprep.subr.bf16.mxu0 0
      %1473 = vmatpush1.bf16.xpose.msra.mxu0 0
      %1474 = vmatprep.subr.bf16.mxu0 0
      %1475 = vmatpush1.bf16.xpose.msra.mxu0 0
      %1476 = vmatprep.subr.bf16.mxu0 0
      %1477 = vmatpush1.bf16.xpose.msra.mxu0 0
      %1478 = vmatprep.subr.bf16.mxu0 0
      %1479 = vmatpush1.bf16.xpose.msra.mxu0 0
      %1480 = vmatprep.subr.bf16.mxu0 0
      %1481 = vmatpush1.bf16.xpose.msra.mxu0 0
      %1482 = vmatprep.mubr.bf16.mxu0 0
      %1483 = vmatmul.mubr.bf16.gmra.mrb[0].mxu0 %v1445
      %v1484 = vpop.f32.mrb[0].mxu0
      %v1485 = vadd.f32 0.0, %v1484
      %v1486 = vpop.f32.mrb[0].mxu0
      %v1487 = vpop.f32.mrb[0].mxu0
      %v1488 = vpop.f32.mrb[0].mxu0
      %1489 = vdwg.mxu0
      %v1490 = vmul.f32 %v1485, 0.35355338
      %v1492 = vlaneseq
      %v1493 = vshrl.u32 %v1492, 7
      %v1494 = vsub.s32 0, %v1493
      %v1495 = vrot.slane %v647, %v1494
      %v1497 = vadd.f32 %v1490, %v1495
      %v1498 = vsel %vm801, %v1497, -inf
      %1499 = vmax.xlane.f32.xlu0 %v1498
      %v1500 = vpop.xlane.xlu0 %1499
      %v1501 = vsub.f32 %v1497, %v1500
      %v1502 = vmul.f32 %v1501, 1.442695
      %v1503 = vpow.pop %v1502
      %v1504 = vsel %vm801, %v1503, 0.0
      %1505 = vadd.xlane.f32.xlu0 %v1504
      %v1506 = vpop.xlane.xlu0 %1505
      %v1507 = vrcp.pop %v1506
      %v1508 = vmul.f32 %v1503, %v1507
      %v1509 = vpack.c.bf16 %v1508, %v1508
      %1511 = vrot.lane.b32.xlu0 %v1443, 96
      %v1512 = vpop.permute.xlu0 %1511
      %v1514 = vsel %vm816, %v1509, 0
      %v1517 = vsel %vm820, %v1512, 0
      %1519 = vmatprep.subr.bf16.mxu0 0
      %1520 = vmatpush1.bf16.msra.mxu0 %v1517
      %1521 = vmatprep.subr.bf16.mxu0 0
      %1522 = vmatpush1.bf16.msra.mxu0 0
      %1523 = vmatprep.subr.bf16.mxu0 0
      %1524 = vmatpush1.bf16.msra.mxu0 0
      %1525 = vmatprep.subr.bf16.mxu0 0
      %1526 = vmatpush1.bf16.msra.mxu0 0
      %1527 = vmatprep.subr.bf16.mxu0 0
      %1528 = vmatpush1.bf16.msra.mxu0 0
      %1529 = vmatprep.subr.bf16.mxu0 0
      %1530 = vmatpush1.bf16.msra.mxu0 0
      %1531 = vmatprep.subr.bf16.mxu0 0
      %1532 = vmatpush1.bf16.msra.mxu0 0
      %1533 = vmatprep.subr.bf16.mxu0 0
      %1534 = vmatpush1.bf16.msra.mxu0 0
      %1535 = vmatprep.subr.bf16.mxu0 0
      %1536 = vmatpush1.bf16.msra.mxu0 0
      %1537 = vmatprep.subr.bf16.mxu0 0
      %1538 = vmatpush1.bf16.msra.mxu0 0
      %1539 = vmatprep.subr.bf16.mxu0 0
      %1540 = vmatpush1.bf16.msra.mxu0 0
      %1541 = vmatprep.subr.bf16.mxu0 0
      %1542 = vmatpush1.bf16.msra.mxu0 0
      %1543 = vmatprep.subr.bf16.mxu0 0
      %1544 = vmatpush1.bf16.msra.mxu0 0
      %1545 = vmatprep.subr.bf16.mxu0 0
      %1546 = vmatpush1.bf16.msra.mxu0 0
      %1547 = vmatprep.subr.bf16.mxu0 0
      %1548 = vmatpush1.bf16.msra.mxu0 0
      %1549 = vmatprep.subr.bf16.mxu0 0
      %1550 = vmatpush1.bf16.msra.mxu0 0
      %1551 = vmatprep.mubr.bf16.mxu0 0
      %1552 = vmatmul.mubr.bf16.gmra.mrb[0].mxu0 %v1514
      %v1553 = vpop.f32.mrb[0].mxu0
      %v1554 = vadd.f32 0.0, %v1553
      %v1555 = vpop.f32.mrb[0].mxu0
      %v1556 = vpop.f32.mrb[0].mxu0
      %v1557 = vpop.f32.mrb[0].mxu0
      %1558 = vdwg.mxu0
      %1560 = vrot.lane.b32.xlu0 %v1442, 120
      %v1561 = vpop.permute.xlu0 %1560
      %1562 = vrot.lane.b32.xlu0 %v1443, 120
      %v1563 = vpop.permute.xlu0 %1562
      %v1565 = vsel %vm746, %v1561, 0
      %v1568 = vsel %vm746, %v1563, 0
      %1570 = vmatprep.subr.bf16.mxu0 0
      %1571 = vmatpush1.bf16.xpose.msra.mxu0 %v1568
      %1572 = vmatprep.subr.bf16.mxu0 0
      %1573 = vmatpush1.bf16.xpose.msra.mxu0 0
      %1574 = vmatprep.subr.bf16.mxu0 0
      %1575 = vmatpush1.bf16.xpose.msra.mxu0 0
      %1576 = vmatprep.subr.bf16.mxu0 0
      %1577 = vmatpush1.bf16.xpose.msra.mxu0 0
      %1578 = vmatprep.subr.bf16.mxu0 0
      %1579 = vmatpush1.bf16.xpose.msra.mxu0 0
      %1580 = vmatprep.subr.bf16.mxu0 0
      %1581 = vmatpush1.bf16.xpose.msra.mxu0 0
      %1582 = vmatprep.subr.bf16.mxu0 0
      %1583 = vmatpush1.bf16.xpose.msra.mxu0 0
      %1584 = vmatprep.subr.bf16.mxu0 0
      %1585 = vmatpush1.bf16.xpose.msra.mxu0 0
      %1586 = vmatprep.subr.bf16.mxu0 0
      %1587 = vmatpush1.bf16.xpose.msra.mxu0 0
      %1588 = vmatprep.subr.bf16.mxu0 0
      %1589 = vmatpush1.bf16.xpose.msra.mxu0 0
      %1590 = vmatprep.subr.bf16.mxu0 0
      %1591 = vmatpush1.bf16.xpose.msra.mxu0 0
      %1592 = vmatprep.subr.bf16.mxu0 0
      %1593 = vmatpush1.bf16.xpose.msra.mxu0 0
      %1594 = vmatprep.subr.bf16.mxu0 0
      %1595 = vmatpush1.bf16.xpose.msra.mxu0 0
      %1596 = vmatprep.subr.bf16.mxu0 0
      %1597 = vmatpush1.bf16.xpose.msra.mxu0 0
      %1598 = vmatprep.subr.bf16.mxu0 0
      %1599 = vmatpush1.bf16.xpose.msra.mxu0 0
      %1600 = vmatprep.subr.bf16.mxu0 0
      %1601 = vmatpush1.bf16.xpose.msra.mxu0 0
      %1602 = vmatprep.mubr.bf16.mxu0 0
      %1603 = vmatmul.mubr.bf16.gmra.mrb[0].mxu0 %v1565
      %v1604 = vpop.f32.mrb[0].mxu0
      %v1605 = vadd.f32 0.0, %v1604
      %v1606 = vpop.f32.mrb[0].mxu0
      %v1607 = vpop.f32.mrb[0].mxu0
      %v1608 = vpop.f32.mrb[0].mxu0
      %1609 = vdwg.mxu0
      %v1610 = vmul.f32 %v1605, 0.35355338
      %v1611 = vadd.f32 %v1610, %v1495
      %v1612 = vsel %vm801, %v1611, -inf
      %1613 = vmax.xlane.f32.xlu0 %v1612
      %v1614 = vpop.xlane.xlu0 %1613
      %v1615 = vsub.f32 %v1611, %v1614
      %v1616 = vmul.f32 %v1615, 1.442695
      %v1617 = vpow.pop %v1616
      %v1618 = vsel %vm801, %v1617, 0.0
      %1619 = vadd.xlane.f32.xlu0 %v1618
      %v1620 = vpop.xlane.xlu0 %1619
      %v1621 = vrcp.pop %v1620
      %v1622 = vmul.f32 %v1617, %v1621
      %v1623 = vpack.c.bf16 %v1622, %v1622
      %1624 = vrot.lane.b32.xlu0 %v1443, 88
      %v1625 = vpop.permute.xlu0 %1624
      %v1627 = vsel %vm816, %v1623, 0
      %v1630 = vsel %vm820, %v1625, 0
      %1632 = vmatprep.subr.bf16.mxu0 0
      %1633 = vmatpush1.bf16.msra.mxu0 %v1630
      %1634 = vmatprep.subr.bf16.mxu0 0
      %1635 = vmatpush1.bf16.msra.mxu0 0
      %1636 = vmatprep.subr.bf16.mxu0 0
      %1637 = vmatpush1.bf16.msra.mxu0 0
      %1638 = vmatprep.subr.bf16.mxu0 0
      %1639 = vmatpush1.bf16.msra.mxu0 0
      %1640 = vmatprep.subr.bf16.mxu0 0
      %1641 = vmatpush1.bf16.msra.mxu0 0
      %1642 = vmatprep.subr.bf16.mxu0 0
      %1643 = vmatpush1.bf16.msra.mxu0 0
      %1644 = vmatprep.subr.bf16.mxu0 0
      %1645 = vmatpush1.bf16.msra.mxu0 0
      %1646 = vmatprep.subr.bf16.mxu0 0
      %1647 = vmatpush1.bf16.msra.mxu0 0
      %1648 = vmatprep.subr.bf16.mxu0 0
      %1649 = vmatpush1.bf16.msra.mxu0 0
      %1650 = vmatprep.subr.bf16.mxu0 0
      %1651 = vmatpush1.bf16.msra.mxu0 0
      %1652 = vmatprep.subr.bf16.mxu0 0
      %1653 = vmatpush1.bf16.msra.mxu0 0
      %1654 = vmatprep.subr.bf16.mxu0 0
      %1655 = vmatpush1.bf16.msra.mxu0 0
      %1656 = vmatprep.subr.bf16.mxu0 0
      %1657 = vmatpush1.bf16.msra.mxu0 0
      %1658 = vmatprep.subr.bf16.mxu0 0
      %1659 = vmatpush1.bf16.msra.mxu0 0
      %1660 = vmatprep.subr.bf16.mxu0 0
      %1661 = vmatpush1.bf16.msra.mxu0 0
      %1662 = vmatprep.subr.bf16.mxu0 0
      %1663 = vmatpush1.bf16.msra.mxu0 0
      %1664 = vmatprep.mubr.bf16.mxu0 0
      %1665 = vmatmul.mubr.bf16.gmra.mrb[0].mxu0 %v1627
      %v1666 = vpop.f32.mrb[0].mxu0
      %v1667 = vadd.f32 0.0, %v1666
      %v1668 = vpop.f32.mrb[0].mxu0
      %v1669 = vpop.f32.mrb[0].mxu0
      %v1670 = vpop.f32.mrb[0].mxu0
      %1671 = vdwg.mxu0
      %1672 = vrot.lane.b32.xlu0 %v1442, 112
      %v1673 = vpop.permute.xlu0 %1672
      %1674 = vrot.lane.b32.xlu0 %v1443, 112
      %v1675 = vpop.permute.xlu0 %1674
      %v1677 = vsel %vm746, %v1673, 0
      %v1680 = vsel %vm746, %v1675, 0
      %1682 = vmatprep.subr.bf16.mxu0 0
      %1683 = vmatpush1.bf16.xpose.msra.mxu0 %v1680
      %1684 = vmatprep.subr.bf16.mxu0 0
      %1685 = vmatpush1.bf16.xpose.msra.mxu0 0
      %1686 = vmatprep.subr.bf16.mxu0 0
      %1687 = vmatpush1.bf16.xpose.msra.mxu0 0
      %1688 = vmatprep.subr.bf16.mxu0 0
      %1689 = vmatpush1.bf16.xpose.msra.mxu0 0
      %1690 = vmatprep.subr.bf16.mxu0 0
      %1691 = vmatpush1.bf16.xpose.msra.mxu0 0
      %1692 = vmatprep.subr.bf16.mxu0 0
      %1693 = vmatpush1.bf16.xpose.msra.mxu0 0
      %1694 = vmatprep.subr.bf16.mxu0 0
      %1695 = vmatpush1.bf16.xpose.msra.mxu0 0
      %1696 = vmatprep.subr.bf16.mxu0 0
      %1697 = vmatpush1.bf16.xpose.msra.mxu0 0
      %1698 = vmatprep.subr.bf16.mxu0 0
      %1699 = vmatpush1.bf16.xpose.msra.mxu0 0
      %1700 = vmatprep.subr.bf16.mxu0 0
      %1701 = vmatpush1.bf16.xpose.msra.mxu0 0
      %1702 = vmatprep.subr.bf16.mxu0 0
      %1703 = vmatpush1.bf16.xpose.msra.mxu0 0
      %1704 = vmatprep.subr.bf16.mxu0 0
      %1705 = vmatpush1.bf16.xpose.msra.mxu0 0
      %1706 = vmatprep.subr.bf16.mxu0 0
      %1707 = vmatpush1.bf16.xpose.msra.mxu0 0
      %1708 = vmatprep.subr.bf16.mxu0 0
      %1709 = vmatpush1.bf16.xpose.msra.mxu0 0
      %1710 = vmatprep.subr.bf16.mxu0 0
      %1711 = vmatpush1.bf16.xpose.msra.mxu0 0
      %1712 = vmatprep.subr.bf16.mxu0 0
      %1713 = vmatpush1.bf16.xpose.msra.mxu0 0
      %1714 = vmatprep.mubr.bf16.mxu0 0
      %1715 = vmatmul.mubr.bf16.gmra.mrb[0].mxu0 %v1677
      %v1716 = vpop.f32.mrb[0].mxu0
      %v1717 = vadd.f32 0.0, %v1716
      %v1718 = vpop.f32.mrb[0].mxu0
      %v1719 = vpop.f32.mrb[0].mxu0
      %v1720 = vpop.f32.mrb[0].mxu0
      %1721 = vdwg.mxu0
      %v1722 = vmul.f32 %v1717, 0.35355338
      %v1723 = vadd.f32 %v1722, %v1495
      %v1724 = vsel %vm801, %v1723, -inf
      %1725 = vmax.xlane.f32.xlu0 %v1724
      %v1726 = vpop.xlane.xlu0 %1725
      %v1727 = vsub.f32 %v1723, %v1726
      %v1728 = vmul.f32 %v1727, 1.442695
      %v1729 = vpow.pop %v1728
      %v1730 = vsel %vm801, %v1729, 0.0
      %1731 = vadd.xlane.f32.xlu0 %v1730
      %v1732 = vpop.xlane.xlu0 %1731
      %v1733 = vrcp.pop %v1732
      %v1734 = vmul.f32 %v1729, %v1733
      %v1735 = vpack.c.bf16 %v1734, %v1734
      %1736 = vrot.lane.b32.xlu0 %v1443, 80
      %v1737 = vpop.permute.xlu0 %1736
      %v1739 = vsel %vm816, %v1735, 0
      %v1742 = vsel %vm820, %v1737, 0
      %1744 = vmatprep.subr.bf16.mxu0 0
      %1745 = vmatpush1.bf16.msra.mxu0 %v1742
      %1746 = vmatprep.subr.bf16.mxu0 0
      %1747 = vmatpush1.bf16.msra.mxu0 0
      %1748 = vmatprep.subr.bf16.mxu0 0
      %1749 = vmatpush1.bf16.msra.mxu0 0
      %1750 = vmatprep.subr.bf16.mxu0 0
      %1751 = vmatpush1.bf16.msra.mxu0 0
      %1752 = vmatprep.subr.bf16.mxu0 0
      %1753 = vmatpush1.bf16.msra.mxu0 0
      %1754 = vmatprep.subr.bf16.mxu0 0
      %1755 = vmatpush1.bf16.msra.mxu0 0
      %1756 = vmatprep.subr.bf16.mxu0 0
      %1757 = vmatpush1.bf16.msra.mxu0 0
      %1758 = vmatprep.subr.bf16.mxu0 0
      %1759 = vmatpush1.bf16.msra.mxu0 0
      %1760 = vmatprep.subr.bf16.mxu0 0
      %1761 = vmatpush1.bf16.msra.mxu0 0
      %1762 = vmatprep.subr.bf16.mxu0 0
      %1763 = vmatpush1.bf16.msra.mxu0 0
      %1764 = vmatprep.subr.bf16.mxu0 0
      %1765 = vmatpush1.bf16.msra.mxu0 0
      %1766 = vmatprep.subr.bf16.mxu0 0
      %1767 = vmatpush1.bf16.msra.mxu0 0
      %1768 = vmatprep.subr.bf16.mxu0 0
      %1769 = vmatpush1.bf16.msra.mxu0 0
      %1770 = vmatprep.subr.bf16.mxu0 0
      %1771 = vmatpush1.bf16.msra.mxu0 0
      %1772 = vmatprep.subr.bf16.mxu0 0
      %1773 = vmatpush1.bf16.msra.mxu0 0
      %1774 = vmatprep.subr.bf16.mxu0 0
      %1775 = vmatpush1.bf16.msra.mxu0 0
      %1776 = vmatprep.mubr.bf16.mxu0 0
      %1777 = vmatmul.mubr.bf16.gmra.mrb[0].mxu0 %v1739
      %v1778 = vpop.f32.mrb[0].mxu0
      %v1779 = vadd.f32 0.0, %v1778
      %v1780 = vpop.f32.mrb[0].mxu0
      %v1781 = vpop.f32.mrb[0].mxu0
      %v1782 = vpop.f32.mrb[0].mxu0
      %1783 = vdwg.mxu0
      %1784 = vrot.lane.b32.xlu0 %v1442, 104
      %v1785 = vpop.permute.xlu0 %1784
      %1786 = vrot.lane.b32.xlu0 %v1443, 104
      %v1787 = vpop.permute.xlu0 %1786
      %v1789 = vsel %vm746, %v1785, 0
      %v1792 = vsel %vm746, %v1787, 0
      %1794 = vmatprep.subr.bf16.mxu0 0
      %1795 = vmatpush1.bf16.xpose.msra.mxu0 %v1792
      %1796 = vmatprep.subr.bf16.mxu0 0
      %1797 = vmatpush1.bf16.xpose.msra.mxu0 0
      %1798 = vmatprep.subr.bf16.mxu0 0
      %1799 = vmatpush1.bf16.xpose.msra.mxu0 0
      %1800 = vmatprep.subr.bf16.mxu0 0
      %1801 = vmatpush1.bf16.xpose.msra.mxu0 0
      %1802 = vmatprep.subr.bf16.mxu0 0
      %1803 = vmatpush1.bf16.xpose.msra.mxu0 0
      %1804 = vmatprep.subr.bf16.mxu0 0
      %1805 = vmatpush1.bf16.xpose.msra.mxu0 0
      %1806 = vmatprep.subr.bf16.mxu0 0
      %1807 = vmatpush1.bf16.xpose.msra.mxu0 0
      %1808 = vmatprep.subr.bf16.mxu0 0
      %1809 = vmatpush1.bf16.xpose.msra.mxu0 0
      %1810 = vmatprep.subr.bf16.mxu0 0
      %1811 = vmatpush1.bf16.xpose.msra.mxu0 0
      %1812 = vmatprep.subr.bf16.mxu0 0
      %1813 = vmatpush1.bf16.xpose.msra.mxu0 0
      %1814 = vmatprep.subr.bf16.mxu0 0
      %1815 = vmatpush1.bf16.xpose.msra.mxu0 0
      %1816 = vmatprep.subr.bf16.mxu0 0
      %1817 = vmatpush1.bf16.xpose.msra.mxu0 0
      %1818 = vmatprep.subr.bf16.mxu0 0
      %1819 = vmatpush1.bf16.xpose.msra.mxu0 0
      %1820 = vmatprep.subr.bf16.mxu0 0
      %1821 = vmatpush1.bf16.xpose.msra.mxu0 0
      %1822 = vmatprep.subr.bf16.mxu0 0
      %1823 = vmatpush1.bf16.xpose.msra.mxu0 0
      %1824 = vmatprep.subr.bf16.mxu0 0
      %1825 = vmatpush1.bf16.xpose.msra.mxu0 0
      %1826 = vmatprep.mubr.bf16.mxu0 0
      %1827 = vmatmul.mubr.bf16.gmra.mrb[0].mxu0 %v1789
      %v1828 = vpop.f32.mrb[0].mxu0
      %v1829 = vadd.f32 0.0, %v1828
      %v1830 = vpop.f32.mrb[0].mxu0
      %v1831 = vpop.f32.mrb[0].mxu0
      %v1832 = vpop.f32.mrb[0].mxu0
      %1833 = vdwg.mxu0
      %v1834 = vmul.f32 %v1829, 0.35355338
      %v1835 = vadd.f32 %v1834, %v1495
      %v1836 = vsel %vm801, %v1835, -inf
      %1837 = vmax.xlane.f32.xlu0 %v1836
      %v1838 = vpop.xlane.xlu0 %1837
      %v1839 = vsub.f32 %v1835, %v1838
      %v1840 = vmul.f32 %v1839, 1.442695
      %v1841 = vpow.pop %v1840
      %v1842 = vsel %vm801, %v1841, 0.0
      %1843 = vadd.xlane.f32.xlu0 %v1842
      %v1844 = vpop.xlane.xlu0 %1843
      %v1845 = vrcp.pop %v1844
      %v1846 = vmul.f32 %v1841, %v1845
      %v1847 = vpack.c.bf16 %v1846, %v1846
      %1848 = vrot.lane.b32.xlu0 %v1443, 72
      %v1849 = vpop.permute.xlu0 %1848
      %v1851 = vsel %vm816, %v1847, 0
      %v1854 = vsel %vm820, %v1849, 0
      %1856 = vmatprep.subr.bf16.mxu0 0
      %1857 = vmatpush1.bf16.msra.mxu0 %v1854
      %1858 = vmatprep.subr.bf16.mxu0 0
      %1859 = vmatpush1.bf16.msra.mxu0 0
      %1860 = vmatprep.subr.bf16.mxu0 0
      %1861 = vmatpush1.bf16.msra.mxu0 0
      %1862 = vmatprep.subr.bf16.mxu0 0
      %1863 = vmatpush1.bf16.msra.mxu0 0
      %1864 = vmatprep.subr.bf16.mxu0 0
      %1865 = vmatpush1.bf16.msra.mxu0 0
      %1866 = vmatprep.subr.bf16.mxu0 0
      %1867 = vmatpush1.bf16.msra.mxu0 0
      %1868 = vmatprep.subr.bf16.mxu0 0
      %1869 = vmatpush1.bf16.msra.mxu0 0
      %1870 = vmatprep.subr.bf16.mxu0 0
      %1871 = vmatpush1.bf16.msra.mxu0 0
      %1872 = vmatprep.subr.bf16.mxu0 0
      %1873 = vmatpush1.bf16.msra.mxu0 0
      %1874 = vmatprep.subr.bf16.mxu0 0
      %1875 = vmatpush1.bf16.msra.mxu0 0
      %1876 = vmatprep.subr.bf16.mxu0 0
      %1877 = vmatpush1.bf16.msra.mxu0 0
      %1878 = vmatprep.subr.bf16.mxu0 0
      %1879 = vmatpush1.bf16.msra.mxu0 0
      %1880 = vmatprep.subr.bf16.mxu0 0
      %1881 = vmatpush1.bf16.msra.mxu0 0
      %1882 = vmatprep.subr.bf16.mxu0 0
      %1883 = vmatpush1.bf16.msra.mxu0 0
      %1884 = vmatprep.subr.bf16.mxu0 0
      %1885 = vmatpush1.bf16.msra.mxu0 0
      %1886 = vmatprep.subr.bf16.mxu0 0
      %1887 = vmatpush1.bf16.msra.mxu0 0
      %1888 = vmatprep.mubr.bf16.mxu0 0
      %1889 = vmatmul.mubr.bf16.gmra.mrb[0].mxu0 %v1851
      %v1890 = vpop.f32.mrb[0].mxu0
      %v1891 = vadd.f32 0.0, %v1890
      %v1892 = vpop.f32.mrb[0].mxu0
      %v1893 = vpop.f32.mrb[0].mxu0
      %v1894 = vpop.f32.mrb[0].mxu0
      %1895 = vdwg.mxu0
      %1897 = vrot.lane.b32.xlu0 %v1667, 8
      %v1898 = vpop.permute.xlu0 %1897
      %1901 = vrot.lane.b32.xlu0 %v1779, 16
      %v1902 = vpop.permute.xlu0 %1901
      %1905 = vrot.lane.b32.xlu0 %v1891, 24
      %v1906 = vpop.permute.xlu0 %1905
      %v1908 = vsel %vm746, %v1554, %v1898
      %v1909 = vsel %vm1213, %v1908, %v1902
      %v1910 = vsel %vm1215, %v1909, %v1906
      %v1911 = vpack.c.bf16 %v1910, %v1910
      %v1912 = vld [vmem:[%s13] sm:$0xf]
      %v1913 = vld [vmem:[%s13 + $0x4] sm:$0xf]
      %v1914 = vld [vmem:[%s13 + $0x8] sm:$0xf]
      %v1915 = vld [vmem:[%s13 + $0xc] sm:$0xf]
      %v1916 = vld [vmem:[%s14] sm:$0x1]
      %v1918 = vlaneseq
      %v1919 = vshrl.u32 %v1918, 7
      %v1920 = vsub.s32 0, %v1919
      %v1921 = vrot.slane %v1916, %v1920
      %v1927 = vunpack.c.l.b16 %v1912
      %v1928 = vunpack.c.l.b16 %v1913
      %v1929 = vunpack.c.l.b16 %v1914
      %v1930 = vunpack.c.l.b16 %v1915
      %v1931 = vpack.c.b16 %v1928, %v1927
      %v1932 = vpack.c.b16 %v1930, %v1929
      %v1936 = vsel %vm698, %v1911, 0
      %1938 = vmatprep.subr.bf16.mxu0 0
      %1939 = vmatpush1.bf16.msra.mxu0 %v1931
      %1940 = vmatprep.subr.bf16.mxu0 0
      %1941 = vmatpush1.bf16.msra.mxu0 %v1932
      %1942 = vmatprep.subr.bf16.mxu0 0
      %1943 = vmatpush1.bf16.msra.mxu0 0
      %1944 = vmatprep.subr.bf16.mxu0 0
      %1945 = vmatpush1.bf16.msra.mxu0 0
      %1946 = vmatprep.subr.bf16.mxu0 0
      %1947 = vmatpush1.bf16.msra.mxu0 0
      %1948 = vmatprep.subr.bf16.mxu0 0
      %1949 = vmatpush1.bf16.msra.mxu0 0
      %1950 = vmatprep.subr.bf16.mxu0 0
      %1951 = vmatpush1.bf16.msra.mxu0 0
      %1952 = vmatprep.subr.bf16.mxu0 0
      %1953 = vmatpush1.bf16.msra.mxu0 0
      %1954 = vmatprep.subr.bf16.mxu0 0
      %1955 = vmatpush1.bf16.msra.mxu0 0
      %1956 = vmatprep.subr.bf16.mxu0 0
      %1957 = vmatpush1.bf16.msra.mxu0 0
      %1958 = vmatprep.subr.bf16.mxu0 0
      %1959 = vmatpush1.bf16.msra.mxu0 0
      %1960 = vmatprep.subr.bf16.mxu0 0
      %1961 = vmatpush1.bf16.msra.mxu0 0
      %1962 = vmatprep.subr.bf16.mxu0 0
      %1963 = vmatpush1.bf16.msra.mxu0 0
      %1964 = vmatprep.subr.bf16.mxu0 0
      %1965 = vmatpush1.bf16.msra.mxu0 0
      %1966 = vmatprep.subr.bf16.mxu0 0
      %1967 = vmatpush1.bf16.msra.mxu0 0
      %1968 = vmatprep.subr.bf16.mxu0 0
      %1969 = vmatpush1.bf16.msra.mxu0 0
      %1970 = vmatprep.mubr.bf16.mxu0 0
      %1971 = vmatmul.mubr.bf16.gmra.mrb[0].mxu0 %v1936
      %v1972 = vpop.f32.mrb[0].mxu0
      %v1973 = vadd.f32 %v1921, %v1972
      %v1974 = vpop.f32.mrb[0].mxu0
      %v1975 = vpop.f32.mrb[0].mxu0
      %v1976 = vpop.f32.mrb[0].mxu0
      %1977 = vdwg.mxu0
      %v1978 = vadd.f32 %v1284, %v1973
      %v1979 = vsel %vm649, %v1978, 0.0
      %1980 = vadd.xlane.f32.xlu0 %v1979
      %v1981 = vpop.xlane.xlu0 %1980
      %v1982 = vmul.f32 %v1981, %v653
      %v1983 = vsub.f32 %v1978, %v1982
      %v1984 = vmul.f32 %v1983, %v1983
      %v1985 = vsel %vm649, %v1984, 0.0
      %1986 = vadd.xlane.f32.xlu0 %v1985
      %v1987 = vpop.xlane.xlu0 %1986
      %v1988 = vmul.f32 %v1987, %v653
      %v1989 = vadd.f32 %v1988, 1e-05
      %v1990 = vrsqrt.pop %v1989
      %v1991 = vmul.f32 %v1983, %v1990
      %v1992 = vlaneseq
      %v1993 = vshrl.u32 %v1992, 7
      %v1994 = vsub.s32 4, %v1993
      %v1995 = vrot.slane %v648, %v1994
      %v1996 = vmul.f32 %v1991, %v1995
      %v1997 = vlaneseq
      %v1998 = vshrl.u32 %v1997, 7
      %v1999 = vsub.s32 5, %v1998
      %v2000 = vrot.slane %v648, %v1999
      %v2001 = vadd.f32 %v1996, %v2000
      %v2002 = vpack.c.bf16 %v2001, %v2001
      %v2003 = vld [vmem:[%s15] sm:$0xf]
      %v2004 = vld [vmem:[%s15 + $0x4] sm:$0xf]
      %v2005 = vld [vmem:[%s15 + $0x8] sm:$0xf]
      %v2006 = vld [vmem:[%s15 + $0xc] sm:$0xf]
      %v2007 = vld [vmem:[%s16] sm:$0x1]
      %v2009 = vlaneseq
      %v2010 = vshrl.u32 %v2009, 7
      %v2011 = vsub.s32 0, %v2010
      %v2012 = vrot.slane %v2007, %v2011
      %v2018 = vunpack.c.l.b16 %v2003
      %v2019 = vunpack.c.l.b16 %v2004
      %v2020 = vunpack.c.l.b16 %v2005
      %v2021 = vunpack.c.l.b16 %v2006
      %v2022 = vpack.c.b16 %v2019, %v2018
      %v2023 = vpack.c.b16 %v2021, %v2020
      %v2027 = vsel %vm698, %v2002, 0
      %2029 = vmatprep.subr.bf16.mxu0 0
      %2030 = vmatpush1.bf16.msra.mxu0 %v2022
      %2031 = vmatprep.subr.bf16.mxu0 0
      %2032 = vmatpush1.bf16.msra.mxu0 %v2023
      %2033 = vmatprep.subr.bf16.mxu0 0
      %2034 = vmatpush1.bf16.msra.mxu0 0
      %2035 = vmatprep.subr.bf16.mxu0 0
      %2036 = vmatpush1.bf16.msra.mxu0 0
      %2037 = vmatprep.subr.bf16.mxu0 0
      %2038 = vmatpush1.bf16.msra.mxu0 0
      %2039 = vmatprep.subr.bf16.mxu0 0
      %2040 = vmatpush1.bf16.msra.mxu0 0
      %2041 = vmatprep.subr.bf16.mxu0 0
      %2042 = vmatpush1.bf16.msra.mxu0 0
      %2043 = vmatprep.subr.bf16.mxu0 0
      %2044 = vmatpush1.bf16.msra.mxu0 0
      %2045 = vmatprep.subr.bf16.mxu0 0
      %2046 = vmatpush1.bf16.msra.mxu0 0
      %2047 = vmatprep.subr.bf16.mxu0 0
      %2048 = vmatpush1.bf16.msra.mxu0 0
      %2049 = vmatprep.subr.bf16.mxu0 0
      %2050 = vmatpush1.bf16.msra.mxu0 0
      %2051 = vmatprep.subr.bf16.mxu0 0
      %2052 = vmatpush1.bf16.msra.mxu0 0
      %2053 = vmatprep.subr.bf16.mxu0 0
      %2054 = vmatpush1.bf16.msra.mxu0 0
      %2055 = vmatprep.subr.bf16.mxu0 0
      %2056 = vmatpush1.bf16.msra.mxu0 0
      %2057 = vmatprep.subr.bf16.mxu0 0
      %2058 = vmatpush1.bf16.msra.mxu0 0
      %2059 = vmatprep.subr.bf16.mxu0 0
      %2060 = vmatpush1.bf16.msra.mxu0 0
      %2061 = vmatprep.mubr.bf16.mxu0 0
      %2062 = vmatmul.mubr.bf16.gmra.mrb[0].mxu0 %v2027
      %v2063 = vpop.f32.mrb[0].mxu0
      %v2064 = vadd.f32 %v2012, %v2063
      %v2065 = vpop.f32.mrb[0].mxu0
      %v2066 = vpop.f32.mrb[0].mxu0
      %v2067 = vpop.f32.mrb[0].mxu0
      %2068 = vdwg.mxu0
      %v2069 = vmax.f32 %v2064, 0.0
      %v2070 = vpack.c.bf16 %v2069, %v2069
      %v2071 = vld [vmem:[%s17] sm:$0xf]
      %v2072 = vld [vmem:[%s17 + $0x4] sm:$0xf]
      %v2073 = vld [vmem:[%s17 + $0x8] sm:$0xf]
      %v2074 = vld [vmem:[%s17 + $0xc] sm:$0xf]
      %v2075 = vld [vmem:[%s18] sm:$0x1]
      %v2077 = vlaneseq
      %v2078 = vshrl.u32 %v2077, 7
      %v2079 = vsub.s32 0, %v2078
      %v2080 = vrot.slane %v2075, %v2079
      %v2086 = vunpack.c.l.b16 %v2071
      %v2087 = vunpack.c.l.b16 %v2072
      %v2088 = vunpack.c.l.b16 %v2073
      %v2089 = vunpack.c.l.b16 %v2074
      %v2090 = vpack.c.b16 %v2087, %v2086
      %v2091 = vpack.c.b16 %v2089, %v2088
      %v2095 = vsel %vm698, %v2070, 0
      %2097 = vmatprep.subr.bf16.mxu0 0
      %2098 = vmatpush1.bf16.msra.mxu0 %v2090
      %2099 = vmatprep.subr.bf16.mxu0 0
      %2100 = vmatpush1.bf16.msra.mxu0 %v2091
      %2101 = vmatprep.subr.bf16.mxu0 0
      %2102 = vmatpush1.bf16.msra.mxu0 0
      %2103 = vmatprep.subr.bf16.mxu0 0
      %2104 = vmatpush1.bf16.msra.mxu0 0
      %2105 = vmatprep.subr.bf16.mxu0 0
      %2106 = vmatpush1.bf16.msra.mxu0 0
      %2107 = vmatprep.subr.bf16.mxu0 0
      %2108 = vmatpush1.bf16.msra.mxu0 0
      %2109 = vmatprep.subr.bf16.mxu0 0
      %2110 = vmatpush1.bf16.msra.mxu0 0
      %2111 = vmatprep.subr.bf16.mxu0 0
      %2112 = vmatpush1.bf16.msra.mxu0 0
      %2113 = vmatprep.subr.bf16.mxu0 0
      %2114 = vmatpush1.bf16.msra.mxu0 0
      %2115 = vmatprep.subr.bf16.mxu0 0
      %2116 = vmatpush1.bf16.msra.mxu0 0
      %2117 = vmatprep.subr.bf16.mxu0 0
      %2118 = vmatpush1.bf16.msra.mxu0 0
      %2119 = vmatprep.subr.bf16.mxu0 0
      %2120 = vmatpush1.bf16.msra.mxu0 0
      %2121 = vmatprep.subr.bf16.mxu0 0
      %2122 = vmatpush1.bf16.msra.mxu0 0
      %2123 = vmatprep.subr.bf16.mxu0 0
      %2124 = vmatpush1.bf16.msra.mxu0 0
      %2125 = vmatprep.subr.bf16.mxu0 0
      %2126 = vmatpush1.bf16.msra.mxu0 0
      %2127 = vmatprep.subr.bf16.mxu0 0
      %2128 = vmatpush1.bf16.msra.mxu0 0
      %2129 = vmatprep.mubr.bf16.mxu0 0
      %2130 = vmatmul.mubr.bf16.gmra.mrb[0].mxu0 %v2095
      %v2131 = vpop.f32.mrb[0].mxu0
      %v2132 = vadd.f32 %v2080, %v2131
      %v2133 = vpop.f32.mrb[0].mxu0
      %v2134 = vpop.f32.mrb[0].mxu0
      %v2135 = vpop.f32.mrb[0].mxu0
      %2136 = vdwg.mxu0
      %v2137 = vadd.f32 %v1978, %v2132
      %2138 = vst.msk [vmem:[%s642] sm:$0xf] %vm649, %v2137
      %p2139 = scmp.lt.s32.totalorder %s30, 1
      %s2140 = scalar_select %p2139, %s30, 1
      %s2141 = smul.addr %s2140, 4
      %s2142 = scalar_lea.vmem %s19, %s2141
      // Predicated region
      $region97: #{forward.8} parent=95 // pred_check
        %p2143 = pneg %p467
      $region98: #{forward.8} parent=95 // pred_check_branch
        %2145 = sbr.rel (%p2143) target = $region100
      $region99: #{forward.8} parent=95 // pred_region
        _
      $region100: #{forward.8} parent=95 // pred_fallthru
        _
    $region96: #{forward.8} parent=5 // pred_fallthru
      _
    %p2146 = scmp.le.s32.totalorder 2, %s25
    // Predicated region
    $region101: #{forward.8} parent=5 // pred_check
      %p2147 = pneg %p2146
    $region102: #{forward.8} parent=5 // pred_check_branch
      %2149 = sbr.rel (%p2147) target = $region104
    $region103: #{forward.8} parent=5 // pred_region
      %s2150 = ssub.s32 %s25, 2
      // Predicated region
      $region105: #{forward.8} parent=103 // pred_check
        %p2151 = pneg %p473
      $region106: #{forward.8} parent=103 // pred_check_branch
        %2153 = sbr.rel (%p2151) target = $region108
      $region107: #{forward.8} parent=103 // pred_region
        %p2154 = scmp.lt.s32.totalorder %s31, 1
        %s2155 = scalar_select %p2154, %s31, 1
        %s2156 = smul.addr %s2155, 4
        %s2157 = scalar_lea.vmem %s19, %s2156
      $region108: #{forward.8} parent=103 // pred_fallthru
        _
    $region104: #{forward.8} parent=5 // pred_fallthru
      _
  $region6: #{forward.8} parent=0 // loop_footer
    %s29 = sadd.s32 1, %s25
  $region7: #{forward.8} parent=0 // loop_footer_branch
    %24 = sbr.rel target = $region3
  $region8: #{forward.8} parent=0 // loop_exit
    _

</llo_original>
